<compile_context>
chip_gen: v5e
topology: v5e:2x2
jax: 0.10.0
libtpu: 0.0.40
codegen_flags: <defaults>
</compile_context>

<pallas_src>
import functools

import numpy as np
import jax
import jax.numpy as jnp
from jax.experimental import pallas as pl
from jax.experimental.pallas import tpu as pltpu

_EPS = 1e-5  # PyTorch BatchNorm2d default eps


def _round_up(x, m):
    return (x + m - 1) // m * m


# ---------------------------------------------------------------------------
# Pallas fused matmul kernel: out = act( (x @ w) * scale + shift )
# Single full-K block -> no k-grid, no accumulator scratch.
# ---------------------------------------------------------------------------
def _fused_matmul_kernel(x_ref, w_ref, s_ref, b_ref, o_ref, *, activation):
    y = jnp.dot(x_ref[...], w_ref[...], preferred_element_type=jnp.float32)
    y = y * s_ref[...] + b_ref[...]
    if activation == "relu":
        y = jnp.maximum(y, 0.0)
    elif activation == "tanh":
        y = jnp.tanh(y)
    o_ref[...] = y.astype(o_ref.dtype)


def fused_matmul(x, w, scale, shift, activation="none", out_dtype=jnp.float32):
    """x:(M,K) w:(K,N) scale/shift:(N,) -> (M,N) in out_dtype.

    bf16 MXU operands, f32 epilogue.  K is kept as a single full-extent block.
    """
    M, K = x.shape
    _, N = w.shape

    if M <= 256:
        Mp, tm = _round_up(M, 16), _round_up(M, 16)
    else:
        Mp, tm = _round_up(M, 256), 256           # >=2 M-blocks -> both TCs busy
    if N <= 512:
        Np, tn = _round_up(N, 128), _round_up(N, 128)
    else:
        Np, tn = _round_up(N, 256), 256
    Kp = _round_up(K, 16)

    xp = jnp.pad(x.astype(jnp.bfloat16), ((0, Mp - M), (0, Kp - K)))
    wp = jnp.pad(w.astype(jnp.bfloat16), ((0, Kp - K), (0, Np - N)))
    sp = jnp.pad(scale.astype(jnp.float32), (0, Np - N)).reshape(1, Np)
    bp = jnp.pad(shift.astype(jnp.float32), (0, Np - N)).reshape(1, Np)

    kernel = functools.partial(_fused_matmul_kernel, activation=activation)
    out = pl.pallas_call(
        kernel,
        out_shape=jax.ShapeDtypeStruct((Mp, Np), out_dtype),
        grid_spec=pltpu.PrefetchScalarGridSpec(
            num_scalar_prefetch=0,
            grid=(Mp // tm, Np // tn),
            in_specs=[
                pl.BlockSpec((tm, Kp), lambda i, j: (i, 0)),
                pl.BlockSpec((Kp, tn), lambda i, j: (0, j)),
                pl.BlockSpec((1, tn), lambda i, j: (0, j)),
                pl.BlockSpec((1, tn), lambda i, j: (0, j)),
            ],
            out_specs=pl.BlockSpec((tm, tn), lambda i, j: (i, j)),
        ),
        compiler_params=pltpu.CompilerParams(
            dimension_semantics=("parallel", "parallel")),
    )(xp, wp, sp, bp)
    return out[:M, :N]


# ---------------------------------------------------------------------------
# im2col glue (plain JAX) -- cross-correlation patch extraction, NHWC
# NOTE: patches are materialized in HBM; at these small spatial sizes the
# network is launch-latency bound, so the amplification is negligible.
# ---------------------------------------------------------------------------
def im2col(x, kh, kw, stride):
    N, H, W, C = x.shape
    Ho = (H - kh) // stride + 1
    Wo = (W - kw) // stride + 1
    cols = []
    for di in range(kh):
        for dj in range(kw):
            cols.append(x[:, di:di + (Ho - 1) * stride + 1:stride,
                            dj:dj + (Wo - 1) * stride + 1:stride, :])
    cols = jnp.concatenate(cols, axis=-1)       # (N, Ho, Wo, kh*kw*C)
    return cols.reshape(N * Ho * Wo, kh * kw * C), (N, Ho, Wo)


def _bn_fold(prm):
    scale = prm["gamma"] / jnp.sqrt(prm["var"] + _EPS)
    shift = prm["beta"] + (prm["b"] - prm["mean"]) * scale
    return scale, shift


# ---------------------------------------------------------------------------
# Standard conv + BN + activation (stem / downsampling / head)
# ---------------------------------------------------------------------------
def conv_bn_act(x, prm, *, k, stride, pad, pad_mode, act,
                out_dtype=jnp.bfloat16):
    cin = x.shape[-1]
    cout = prm["w"].shape[0]
    if pad > 0:
        x = jnp.pad(x, ((0, 0), (pad, pad), (pad, pad), (0, 0)), mode=pad_mode)
    cols, (N, Ho, Wo) = im2col(x, k, k, stride)
    wmat = prm["w"].transpose(2, 3, 1, 0).reshape(k * k * cin, cout)
    scale, shift = _bn_fold(prm)
    y = fused_matmul(cols, wmat, scale, shift, activation=act,
                     out_dtype=out_dtype)
    return y.reshape(N, Ho, Wo, cout)


def final_conv_tanh(x, prm, *, k=7, pad=3):
    cin = x.shape[-1]
    cout = prm["w"].shape[0]
    x = jnp.pad(x, ((0, 0), (pad, pad), (pad, pad), (0, 0)), mode="reflect")
    cols, (N, Ho, Wo) = im2col(x, k, k, 1)
    wmat = prm["w"].transpose(2, 3, 1, 0).reshape(k * k * cin, cout)
    y = fused_matmul(cols, wmat, jnp.ones((cout,), jnp.float32),
                     prm["b"].astype(jnp.float32),
                     activation="tanh", out_dtype=jnp.float32)
    return y.reshape(N, Ho, Wo, cout)


# ---------------------------------------------------------------------------
# ConvTranspose2d(k=3, s=2, p=1, op=1) + BN + act via sub-pixel decomposition:
# one matmul over 2x2 patches (K=4*Cin) with a block-structured (4Cin,4Cout)
# weight producing all 4 output parities, then a pixel shuffle.
# ---------------------------------------------------------------------------
def convT_bn_act(x, prm, *, act="relu"):
    N, H, W, cin = x.shape
    w = prm["w"]                               # (cin, cout, 3, 3)
    cout = w.shape[1]
    xp = jnp.pad(x, ((0, 0), (0, 1), (0, 1), (0, 0)))   # zero-pad bottom/right
    cols, _ = im2col(xp, 2, 2, 1)              # (N*H*W, 4*cin), taps (0,0)(0,1)(1,0)(1,1)

    z = jnp.zeros((cin, cout), w.dtype)

    def wt(kh, kw):
        return w[:, :, kh, kw]                 # (cin, cout)

    # rows: im2col taps (dh,dw); column blocks: output parities (a,b)
    blocks = [
        [wt(1, 1), wt(1, 2), wt(2, 1), wt(2, 2)],   # tap (0,0)
        [z,        wt(1, 0), z,        wt(2, 0)],   # tap (0,1)
        [z,        z,        wt(0, 1), wt(0, 2)],   # tap (1,0)
        [z,        z,        z,        wt(0, 0)],   # tap (1,1)
    ]
    wbig = jnp.concatenate([jnp.concatenate(r, axis=1) for r in blocks], axis=0)

    scale, shift = _bn_fold(prm)
    y = fused_matmul(cols, wbig, jnp.tile(scale, 4), jnp.tile(shift, 4),
                     activation=act, out_dtype=jnp.bfloat16)
    # pixel shuffle: (N,H,W,2,2,cout) -> (N,2H,2W,cout)
    y = y.reshape(N, H, W, 2, 2, cout).transpose(0, 1, 3, 2, 4, 5)
    return y.reshape(N, 2 * H, 2 * W, cout)


# ---------------------------------------------------------------------------
# Fused resnet trunk: all 9 blocks in ONE pallas_call.
# The 3x3 reflection-padded conv is written as
#   out = sum_t  P_t @ X @ W_t
# where P_t is a static 0/1 permutation of the N*H*W rows for tap t.
# ---------------------------------------------------------------------------
def _reflect_perm_mats(nbatch, H, W):
    def refl(i, n):
        if i < 0:
            return -i
        if i >= n:
            return 2 * n - 2 - i
        return i

    HW = H * W
    M = nbatch * HW
    taps = []
    for di in (-1, 0, 1):
        for dj in (-1, 0, 1):
            P = np.zeros((M, M), np.float32)
            for n in range(nbatch):
                for i in range(H):
                    for j in range(W):
                        src = n * HW + refl(i + di, H) * W + refl(j + dj, W)
                        dst = n * HW + i * W + j
                        P[dst, src] = 1.0
            taps.append(P)
    return jnp.asarray(np.stack(taps))          # (9, M, M)


def _resnet_trunk_kernel(x_ref, p_ref, wa_ref, wb_ref, sa_ref, ba_ref,
                         sb_ref, bb_ref, o_ref, act_ref, *, ntaps):
    blk = pl.program_id(0)

    @pl.when(blk == 0)
    def _init():
        act_ref[...] = x_ref[...].astype(jnp.float32)

    x0 = act_ref[...]                            # (M, C) f32, residual input
    xb = x0.astype(jnp.bfloat16)

    # conv-a (3x3 reflect-pad) as 9 permuted-tap matmuls, then BN + ReLU
    acc = jnp.zeros_like(x0)
    for t in range(ntaps):
        xt = jnp.dot(p_ref[t], xb, preferred_element_type=jnp.float32)
        acc += jnp.dot(xt.astype(jnp.bfloat16), wa_ref[0, t],
                       preferred_element_type=jnp.float32)
    h = jnp.maximum(acc * sa_ref[0] + ba_ref[0], 0.0)
    hb = h.astype(jnp.bfloat16)
    # Dropout(0.5) is the identity in eval mode.

    # conv-b (3x3 reflect-pad) + BN + residual add
    acc2 = jnp.zeros_like(x0)
    for t in range(ntaps):
        ht = jnp.dot(p_ref[t], hb, preferred_element_type=jnp.float32)
        acc2 += jnp.dot(ht.astype(jnp.bfloat16), wb_ref[0, t],
                        preferred_element_type=jnp.float32)
    y = acc2 * sb_ref[0] + bb_ref[0] + x0
    act_ref[...] = y
    o_ref[...] = y.astype(o_ref.dtype)


def resnet_trunk(x, blocks):
    N, H, W, C = x.shape
    M = N * H * W
    nb = len(blocks)

    if M > 1024 or M % 8 != 0:
        # Fallback for large spatial extents (permutation matrices scale M^2).
        # TODO(synk): in-kernel shifted-window patch extraction for big images.
        for blk in blocks:
            h = conv_bn_act(x, blk["a"], k=3, stride=1, pad=1,
                            pad_mode="reflect", act="relu")
            d = conv_bn_act(h, blk["b"], k=3, stride=1, pad=1,
                            pad_mode="reflect", act="none")
            x = (x.astype(jnp.float32) + d.astype(jnp.float32)).astype(x.dtype)
        return x

    perms = _reflect_perm_mats(N, H, W).astype(jnp.bfloat16)      # (9, M, M)

    def stack_w(key):
        return jnp.stack([blk[key]["w"].transpose(2, 3, 1, 0).reshape(9, C, C)
                          for blk in blocks]).astype(jnp.bfloat16)  # (nb,9,C,C)

    def stack_sb(key):
        ss, bs = zip(*[_bn_fold(blk[key]) for blk in blocks])
        return (jnp.stack(ss).astype(jnp.float32).reshape(nb, 1, C),
                jnp.stack(bs).astype(jnp.float32).reshape(nb, 1, C))

    wa, wb = stack_w("a"), stack_w("b")
    sa, ba = stack_sb("a")
    sb, bb = stack_sb("b")
    x2 = x.reshape(M, C).astype(jnp.bfloat16)

    out = pl.pallas_call(
        functools.partial(_resnet_trunk_kernel, ntaps=9),
        out_shape=jax.ShapeDtypeStruct((M, C), jnp.bfloat16),
        grid_spec=pltpu.PrefetchScalarGridSpec(
            num_scalar_prefetch=0,
            grid=(nb,),
            in_specs=[
                pl.BlockSpec((M, C), lambda b: (0, 0)),            # x (DMA once)
                pl.BlockSpec((9, M, M), lambda b: (0, 0, 0)),      # perms (once)
                pl.BlockSpec((1, 9, C, C), lambda b: (b, 0, 0, 0)),  # wa
                pl.BlockSpec((1, 9, C, C), lambda b: (b, 0, 0, 0)),  # wb
                pl.BlockSpec((1, 1, C), lambda b: (b, 0, 0)),        # scale a
                pl.BlockSpec((1, 1, C), lambda b: (b, 0, 0)),        # shift a
                pl.BlockSpec((1, 1, C), lambda b: (b, 0, 0)),        # scale b
                pl.BlockSpec((1, 1, C), lambda b: (b, 0, 0)),        # shift b
            ],
            out_specs=pl.BlockSpec((M, C), lambda b: (0, 0)),
            scratch_shapes=[pltpu.VMEM((M, C), jnp.float32)],
        ),
        compiler_params=pltpu.CompilerParams(
            dimension_semantics=("arbitrary",)),
    )(x2, perms, wa, wb, sa, ba, sb, bb)
    return out.reshape(N, H, W, C)


# ---------------------------------------------------------------------------
# Parameter initialization (deterministic, synthetic)
# ---------------------------------------------------------------------------
def _make_bn(key, c):
    k1, k2, k3, k4 = jax.random.split(key, 4)
    return dict(
        gamma=1.0 + 0.1 * jax.random.normal(k1, (c,), jnp.float32),
        beta=0.1 * jax.random.normal(k2, (c,), jnp.float32),
        mean=0.1 * jax.random.normal(k3, (c,), jnp.float32),
        var=1.0 + 0.1 * jax.random.uniform(k4, (c,), jnp.float32),
    )


def _make_conv(key, cin, cout, k):
    kw_, kb, kbn = jax.random.split(key, 3)
    p = dict(w=0.05 * jax.random.normal(kw_, (cout, cin, k, k), jnp.float32),
             b=0.05 * jax.random.normal(kb, (cout,), jnp.float32))
    p.update(_make_bn(kbn, cout))
    return p


def _make_convT(key, cin, cout, k):
    kw_, kb, kbn = jax.random.split(key, 3)
    p = dict(w=0.05 * jax.random.normal(kw_, (cin, cout, k, k), jnp.float32),
             b=0.05 * jax.random.normal(kb, (cout,), jnp.float32))
    p.update(_make_bn(kbn, cout))
    return p


def init_params(key, ngf=32, num_blocks=9):
    ki = iter(jax.random.split(key, 64))
    p = {}
    p["c1"] = _make_conv(next(ki), 3, ngf, 7)
    p["d1"] = _make_conv(next(ki), ngf, 2 * ngf, 3)
    p["d2"] = _make_conv(next(ki), 2 * ngf, 4 * ngf, 3)
    p["res"] = [dict(a=_make_conv(next(ki), 4 * ngf, 4 * ngf, 3),
                     b=_make_conv(next(ki), 4 * ngf, 4 * ngf, 3))
                for _ in range(num_blocks)]
    p["u1"] = _make_convT(next(ki), 4 * ngf, 2 * ngf, 3)
    p["u2"] = _make_convT(next(ki), 2 * ngf, ngf, 3)
    kw_, kb = jax.random.split(next(ki), 2)
    p["cf"] = dict(w=0.05 * jax.random.normal(kw_, (3, ngf, 7, 7), jnp.float32),
                   b=0.05 * jax.random.normal(kb, (3,), jnp.float32))
    return p


# ---------------------------------------------------------------------------
# Full generator forward (NCHW in / NCHW out, like PyTorch)
# ---------------------------------------------------------------------------
def generator_forward(x_nchw, params):
    x = jnp.transpose(x_nchw, (0, 2, 3, 1)).astype(jnp.bfloat16)

    # stem: ReflectionPad(3) + Conv7 + BN + ReLU
    x = conv_bn_act(x, params["c1"], k=7, stride=1, pad=3,
                    pad_mode="reflect", act="relu")
    # 2x downsampling: Conv3 s2 p1 + BN + ReLU
    x = conv_bn_act(x, params["d1"], k=3, stride=2, pad=1,
                    pad_mode="constant", act="relu")
    x = conv_bn_act(x, params["d2"], k=3, stride=2, pad=1,
                    pad_mode="constant", act="relu")
    # 9 resnet blocks, fused into a single pallas_call
    x = resnet_trunk(x, params["res"])
    # 2x upsampling: ConvTranspose3 s2 p1 op1 + BN + ReLU (sub-pixel lowering)
    x = convT_bn_act(x, params["u1"], act="relu")
    x = convT_bn_act(x, params["u2"], act="relu")
    # ReflectionPad(3) + Conv7 + Tanh
    x = final_conv_tanh(x, params["cf"])

    return jnp.transpose(x, (0, 3, 1, 2)).astype(jnp.float32)


if __name__ == "__main__":
    key = jax.random.PRNGKey(0)
    kx, kp = jax.random.split(key)
    ngf = 32
    x = jax.random.normal(kx, (2, 3, 16, 16), jnp.float32)  # NCHW, like PyTorch
    params = init_params(kp, ngf=ngf, num_blocks=9)

    fwd = jax.jit(generator_forward)
    out = fwd(x, params)
    jax.block_until_ready(out)
    assert out.shape == (2, 3, 16, 16), out.shape
    assert bool(jnp.all(jnp.isfinite(out)))
    assert bool(jnp.all(jnp.abs(out) <= 1.0))  # tanh output range
    print("KERNEL_OK")
</pallas_src>

<mosaic_0001>
module attributes {stable_mosaic.version = 11 : i64} {
  func.func @_fused_matmul_kernel(%arg0: i32, %arg1: i32, %arg2: memref<256x160xbf16, #tpu.memory_space<vmem>>, %arg3: memref<160x128xbf16, #tpu.memory_space<vmem>>, %arg4: memref<1x128xf32, #tpu.memory_space<vmem>>, %arg5: memref<1x128xf32, #tpu.memory_space<vmem>>, %arg6: memref<256x128xbf16, #tpu.memory_space<vmem>>) attributes {dimension_semantics = [#tpu.dimension_semantics<parallel>, #tpu.dimension_semantics<parallel>], iteration_bounds = array<i64: 2, 1>, scalar_prefetch = 0 : i64, scratch_operands = 0 : i64, tpu.core_type = #tpu.core_type<tc>, window_params = [{transform_indices = @transform_0, window_bounds = array<i64: 256, 160>}, {transform_indices = @transform_1, window_bounds = array<i64: 160, 128>}, {transform_indices = @transform_2, window_bounds = array<i64: 1, 128>}, {transform_indices = @transform_3, window_bounds = array<i64: 1, 128>}, {transform_indices = @transform_4, window_bounds = array<i64: 256, 128>}]} {
    %c0 = arith.constant 0 : index
    %c0_0 = arith.constant 0 : index
    %0 = vector.load %arg2[%c0, %c0_0] : memref<256x160xbf16, #tpu.memory_space<vmem>>, vector<256x160xbf16>
    %c0_1 = arith.constant 0 : index
    %c0_2 = arith.constant 0 : index
    %1 = vector.load %arg3[%c0_1, %c0_2] : memref<160x128xbf16, #tpu.memory_space<vmem>>, vector<160x128xbf16>
    %cst = arith.constant dense<0.000000e+00> : vector<256x128xf32>
    %2 = tpu.matmul %0, %1, %cst {dimension_numbers = #tpu.dot_dimension_numbers<[1], [0], [0], [1], [0, 0, 1, 1], [], []>} : vector<256x160xbf16>, vector<160x128xbf16>, vector<256x128xf32> -> vector<256x128xf32>
    %c0_3 = arith.constant 0 : index
    %c0_4 = arith.constant 0 : index
    %3 = vector.load %arg4[%c0_3, %c0_4] : memref<1x128xf32, #tpu.memory_space<vmem>>, vector<1x128xf32>
    %4 = vector.broadcast %3 : vector<1x128xf32> to vector<256x128xf32>
    %5 = arith.mulf %2, %4 : vector<256x128xf32>
    %c0_5 = arith.constant 0 : index
    %c0_6 = arith.constant 0 : index
    %6 = vector.load %arg5[%c0_5, %c0_6] : memref<1x128xf32, #tpu.memory_space<vmem>>, vector<1x128xf32>
    %7 = vector.broadcast %6 : vector<1x128xf32> to vector<256x128xf32>
    %8 = arith.addf %5, %7 : vector<256x128xf32>
    %cst_7 = arith.constant 0.000000e+00 : f32
    %9 = vector.broadcast %cst_7 : f32 to vector<256x128xf32>
    %10 = arith.maximumf %8, %9 : vector<256x128xf32>
    %11 = arith.truncf %10 : vector<256x128xf32> to vector<256x128xbf16>
    %c0_8 = arith.constant 0 : index
    %c0_9 = arith.constant 0 : index
    %12 = vector.load %arg6[%c0_8, %c0_9] : memref<256x128xbf16, #tpu.memory_space<vmem>>, vector<256x128xbf16>
    tpu.vector_store %arg6[%c0_8, %c0_9], %11 {strides = array<i32>} : memref<256x128xbf16, #tpu.memory_space<vmem>>, vector<256x128xbf16>,
    return
  }
  func.func @transform_0(%arg0: i32, %arg1: i32) -> (i32, i32) {
    %c0_i32 = arith.constant 0 : i32
    %c0_i32_0 = arith.constant 0 : i32
    return %arg0, %c0_i32 : i32, i32
  }
  func.func @transform_1(%arg0: i32, %arg1: i32) -> (i32, i32) {
    %c0_i32 = arith.constant 0 : i32
    %c0_i32_0 = arith.constant 0 : i32
    return %c0_i32, %arg1 : i32, i32
  }
  func.func @transform_2(%arg0: i32, %arg1: i32) -> (i32, i32) {
    %c0_i32 = arith.constant 0 : i32
    %c0_i32_0 = arith.constant 0 : i32
    return %c0_i32, %arg1 : i32, i32
  }
  func.func @transform_3(%arg0: i32, %arg1: i32) -> (i32, i32) {
    %c0_i32 = arith.constant 0 : i32
    %c0_i32_0 = arith.constant 0 : i32
    return %c0_i32, %arg1 : i32, i32
  }
  func.func @transform_4(%arg0: i32, %arg1: i32) -> (i32, i32) {
    %c0_i32 = arith.constant 0 : i32
    return %arg0, %arg1 : i32, i32
  }
}

module attributes {stable_mosaic.version = 11 : i64} {
  func.func @_fused_matmul_kernel(%arg0: i32, %arg1: i32, %arg2: memref<128x288xbf16, #tpu.memory_space<vmem>>, %arg3: memref<288x128xbf16, #tpu.memory_space<vmem>>, %arg4: memref<1x128xf32, #tpu.memory_space<vmem>>, %arg5: memref<1x128xf32, #tpu.memory_space<vmem>>, %arg6: memref<128x128xbf16, #tpu.memory_space<vmem>>) attributes {dimension_semantics = [#tpu.dimension_semantics<parallel>, #tpu.dimension_semantics<parallel>], iteration_bounds = array<i64: 1, 1>, scalar_prefetch = 0 : i64, scratch_operands = 0 : i64, tpu.core_type = #tpu.core_type<tc>, window_params = [{transform_indices = @transform_0, window_bounds = array<i64: 128, 288>}, {transform_indices = @transform_1, window_bounds = array<i64: 288, 128>}, {transform_indices = @transform_2, window_bounds = array<i64: 1, 128>}, {transform_indices = @transform_3, window_bounds = array<i64: 1, 128>}, {transform_indices = @transform_4, window_bounds = array<i64: 128, 128>}]} {
    %c0 = arith.constant 0 : index
    %c0_0 = arith.constant 0 : index
    %0 = vector.load %arg2[%c0, %c0_0] : memref<128x288xbf16, #tpu.memory_space<vmem>>, vector<128x288xbf16>
    %c0_1 = arith.constant 0 : index
    %c0_2 = arith.constant 0 : index
    %1 = vector.load %arg3[%c0_1, %c0_2] : memref<288x128xbf16, #tpu.memory_space<vmem>>, vector<288x128xbf16>
    %cst = arith.constant dense<0.000000e+00> : vector<128x128xf32>
    %2 = tpu.matmul %0, %1, %cst {dimension_numbers = #tpu.dot_dimension_numbers<[1], [0], [0], [1], [0, 0, 1, 1], [], []>} : vector<128x288xbf16>, vector<288x128xbf16>, vector<128x128xf32> -> vector<128x128xf32>
    %c0_3 = arith.constant 0 : index
    %c0_4 = arith.constant 0 : index
    %3 = vector.load %arg4[%c0_3, %c0_4] : memref<1x128xf32, #tpu.memory_space<vmem>>, vector<1x128xf32>
    %4 = vector.broadcast %3 : vector<1x128xf32> to vector<128x128xf32>
    %5 = arith.mulf %2, %4 : vector<128x128xf32>
    %c0_5 = arith.constant 0 : index
    %c0_6 = arith.constant 0 : index
    %6 = vector.load %arg5[%c0_5, %c0_6] : memref<1x128xf32, #tpu.memory_space<vmem>>, vector<1x128xf32>
    %7 = vector.broadcast %6 : vector<1x128xf32> to vector<128x128xf32>
    %8 = arith.addf %5, %7 : vector<128x128xf32>
    %cst_7 = arith.constant 0.000000e+00 : f32
    %9 = vector.broadcast %cst_7 : f32 to vector<128x128xf32>
    %10 = arith.maximumf %8, %9 : vector<128x128xf32>
    %11 = arith.truncf %10 : vector<128x128xf32> to vector<128x128xbf16>
    %c0_8 = arith.constant 0 : index
    %c0_9 = arith.constant 0 : index
    %12 = vector.load %arg6[%c0_8, %c0_9] : memref<128x128xbf16, #tpu.memory_space<vmem>>, vector<128x128xbf16>
    tpu.vector_store %arg6[%c0_8, %c0_9], %11 {strides = array<i32>} : memref<128x128xbf16, #tpu.memory_space<vmem>>, vector<128x128xbf16>,
    return
  }
  func.func @transform_0(%arg0: i32, %arg1: i32) -> (i32, i32) {
    %c0_i32 = arith.constant 0 : i32
    %c0_i32_0 = arith.constant 0 : i32
    return %arg0, %c0_i32 : i32, i32
  }
  func.func @transform_1(%arg0: i32, %arg1: i32) -> (i32, i32) {
    %c0_i32 = arith.constant 0 : i32
    %c0_i32_0 = arith.constant 0 : i32
    return %c0_i32, %arg1 : i32, i32
  }
  func.func @transform_2(%arg0: i32, %arg1: i32) -> (i32, i32) {
    %c0_i32 = arith.constant 0 : i32
    %c0_i32_0 = arith.constant 0 : i32
    return %c0_i32, %arg1 : i32, i32
  }
  func.func @transform_3(%arg0: i32, %arg1: i32) -> (i32, i32) {
    %c0_i32 = arith.constant 0 : i32
    %c0_i32_0 = arith.constant 0 : i32
    return %c0_i32, %arg1 : i32, i32
  }
  func.func @transform_4(%arg0: i32, %arg1: i32) -> (i32, i32) {
    %c0_i32 = arith.constant 0 : i32
    return %arg0, %arg1 : i32, i32
  }
}

module attributes {stable_mosaic.version = 11 : i64} {
  func.func @_fused_matmul_kernel(%arg0: i32, %arg1: i32, %arg2: memref<32x576xbf16, #tpu.memory_space<vmem>>, %arg3: memref<576x128xbf16, #tpu.memory_space<vmem>>, %arg4: memref<1x128xf32, #tpu.memory_space<vmem>>, %arg5: memref<1x128xf32, #tpu.memory_space<vmem>>, %arg6: memref<32x128xbf16, #tpu.memory_space<vmem>>) attributes {dimension_semantics = [#tpu.dimension_semantics<parallel>, #tpu.dimension_semantics<parallel>], iteration_bounds = array<i64: 1, 1>, scalar_prefetch = 0 : i64, scratch_operands = 0 : i64, tpu.core_type = #tpu.core_type<tc>, window_params = [{transform_indices = @transform_0, window_bounds = array<i64: 32, 576>}, {transform_indices = @transform_1, window_bounds = array<i64: 576, 128>}, {transform_indices = @transform_2, window_bounds = array<i64: 1, 128>}, {transform_indices = @transform_3, window_bounds = array<i64: 1, 128>}, {transform_indices = @transform_4, window_bounds = array<i64: 32, 128>}]} {
    %c0 = arith.constant 0 : index
    %c0_0 = arith.constant 0 : index
    %0 = vector.load %arg2[%c0, %c0_0] : memref<32x576xbf16, #tpu.memory_space<vmem>>, vector<32x576xbf16>
    %c0_1 = arith.constant 0 : index
    %c0_2 = arith.constant 0 : index
    %1 = vector.load %arg3[%c0_1, %c0_2] : memref<576x128xbf16, #tpu.memory_space<vmem>>, vector<576x128xbf16>
    %cst = arith.constant dense<0.000000e+00> : vector<32x128xf32>
    %2 = tpu.matmul %0, %1, %cst {dimension_numbers = #tpu.dot_dimension_numbers<[1], [0], [0], [1], [0, 0, 1, 1], [], []>} : vector<32x576xbf16>, vector<576x128xbf16>, vector<32x128xf32> -> vector<32x128xf32>
    %c0_3 = arith.constant 0 : index
    %c0_4 = arith.constant 0 : index
    %3 = vector.load %arg4[%c0_3, %c0_4] : memref<1x128xf32, #tpu.memory_space<vmem>>, vector<1x128xf32>
    %4 = vector.broadcast %3 : vector<1x128xf32> to vector<32x128xf32>
    %5 = arith.mulf %2, %4 : vector<32x128xf32>
    %c0_5 = arith.constant 0 : index
    %c0_6 = arith.constant 0 : index
    %6 = vector.load %arg5[%c0_5, %c0_6] : memref<1x128xf32, #tpu.memory_space<vmem>>, vector<1x128xf32>
    %7 = vector.broadcast %6 : vector<1x128xf32> to vector<32x128xf32>
    %8 = arith.addf %5, %7 : vector<32x128xf32>
    %cst_7 = arith.constant 0.000000e+00 : f32
    %9 = vector.broadcast %cst_7 : f32 to vector<32x128xf32>
    %10 = arith.maximumf %8, %9 : vector<32x128xf32>
    %11 = arith.truncf %10 : vector<32x128xf32> to vector<32x128xbf16>
    %c0_8 = arith.constant 0 : index
    %c0_9 = arith.constant 0 : index
    %12 = vector.load %arg6[%c0_8, %c0_9] : memref<32x128xbf16, #tpu.memory_space<vmem>>, vector<32x128xbf16>
    tpu.vector_store %arg6[%c0_8, %c0_9], %11 {strides = array<i32>} : memref<32x128xbf16, #tpu.memory_space<vmem>>, vector<32x128xbf16>,
    return
  }
  func.func @transform_0(%arg0: i32, %arg1: i32) -> (i32, i32) {
    %c0_i32 = arith.constant 0 : i32
    %c0_i32_0 = arith.constant 0 : i32
    return %arg0, %c0_i32 : i32, i32
  }
  func.func @transform_1(%arg0: i32, %arg1: i32) -> (i32, i32) {
    %c0_i32 = arith.constant 0 : i32
    %c0_i32_0 = arith.constant 0 : i32
    return %c0_i32, %arg1 : i32, i32
  }
  func.func @transform_2(%arg0: i32, %arg1: i32) -> (i32, i32) {
    %c0_i32 = arith.constant 0 : i32
    %c0_i32_0 = arith.constant 0 : i32
    return %c0_i32, %arg1 : i32, i32
  }
  func.func @transform_3(%arg0: i32, %arg1: i32) -> (i32, i32) {
    %c0_i32 = arith.constant 0 : i32
    %c0_i32_0 = arith.constant 0 : i32
    return %c0_i32, %arg1 : i32, i32
  }
  func.func @transform_4(%arg0: i32, %arg1: i32) -> (i32, i32) {
    %c0_i32 = arith.constant 0 : i32
    return %arg0, %arg1 : i32, i32
  }
}

module attributes {stable_mosaic.version = 11 : i64} {
  func.func @_fused_matmul_kernel(%arg0: i32, %arg1: i32, %arg2: memref<32x512xbf16, #tpu.memory_space<vmem>>, %arg3: memref<512x256xbf16, #tpu.memory_space<vmem>>, %arg4: memref<1x256xf32, #tpu.memory_space<vmem>>, %arg5: memref<1x256xf32, #tpu.memory_space<vmem>>, %arg6: memref<32x256xbf16, #tpu.memory_space<vmem>>) attributes {dimension_semantics = [#tpu.dimension_semantics<parallel>, #tpu.dimension_semantics<parallel>], iteration_bounds = array<i64: 1, 1>, scalar_prefetch = 0 : i64, scratch_operands = 0 : i64, tpu.core_type = #tpu.core_type<tc>, window_params = [{transform_indices = @transform_0, window_bounds = array<i64: 32, 512>}, {transform_indices = @transform_1, window_bounds = array<i64: 512, 256>}, {transform_indices = @transform_2, window_bounds = array<i64: 1, 256>}, {transform_indices = @transform_3, window_bounds = array<i64: 1, 256>}, {transform_indices = @transform_4, window_bounds = array<i64: 32, 256>}]} {
    %c0 = arith.constant 0 : index
    %c0_0 = arith.constant 0 : index
    %0 = vector.load %arg2[%c0, %c0_0] : memref<32x512xbf16, #tpu.memory_space<vmem>>, vector<32x512xbf16>
    %c0_1 = arith.constant 0 : index
    %c0_2 = arith.constant 0 : index
    %1 = vector.load %arg3[%c0_1, %c0_2] : memref<512x256xbf16, #tpu.memory_space<vmem>>, vector<512x256xbf16>
    %cst = arith.constant dense<0.000000e+00> : vector<32x256xf32>
    %2 = tpu.matmul %0, %1, %cst {dimension_numbers = #tpu.dot_dimension_numbers<[1], [0], [0], [1], [0, 0, 1, 1], [], []>} : vector<32x512xbf16>, vector<512x256xbf16>, vector<32x256xf32> -> vector<32x256xf32>
    %c0_3 = arith.constant 0 : index
    %c0_4 = arith.constant 0 : index
    %3 = vector.load %arg4[%c0_3, %c0_4] : memref<1x256xf32, #tpu.memory_space<vmem>>, vector<1x256xf32>
    %4 = vector.broadcast %3 : vector<1x256xf32> to vector<32x256xf32>
    %5 = arith.mulf %2, %4 : vector<32x256xf32>
    %c0_5 = arith.constant 0 : index
    %c0_6 = arith.constant 0 : index
    %6 = vector.load %arg5[%c0_5, %c0_6] : memref<1x256xf32, #tpu.memory_space<vmem>>, vector<1x256xf32>
    %7 = vector.broadcast %6 : vector<1x256xf32> to vector<32x256xf32>
    %8 = arith.addf %5, %7 : vector<32x256xf32>
    %cst_7 = arith.constant 0.000000e+00 : f32
    %9 = vector.broadcast %cst_7 : f32 to vector<32x256xf32>
    %10 = arith.maximumf %8, %9 : vector<32x256xf32>
    %11 = arith.truncf %10 : vector<32x256xf32> to vector<32x256xbf16>
    %c0_8 = arith.constant 0 : index
    %c0_9 = arith.constant 0 : index
    %12 = vector.load %arg6[%c0_8, %c0_9] : memref<32x256xbf16, #tpu.memory_space<vmem>>, vector<32x256xbf16>
    tpu.vector_store %arg6[%c0_8, %c0_9], %11 {strides = array<i32>} : memref<32x256xbf16, #tpu.memory_space<vmem>>, vector<32x256xbf16>,
    return
  }
  func.func @transform_0(%arg0: i32, %arg1: i32) -> (i32, i32) {
    %c0_i32 = arith.constant 0 : i32
    %c0_i32_0 = arith.constant 0 : i32
    return %arg0, %c0_i32 : i32, i32
  }
  func.func @transform_1(%arg0: i32, %arg1: i32) -> (i32, i32) {
    %c0_i32 = arith.constant 0 : i32
    %c0_i32_0 = arith.constant 0 : i32
    return %c0_i32, %arg1 : i32, i32
  }
  func.func @transform_2(%arg0: i32, %arg1: i32) -> (i32, i32) {
    %c0_i32 = arith.constant 0 : i32
    %c0_i32_0 = arith.constant 0 : i32
    return %c0_i32, %arg1 : i32, i32
  }
  func.func @transform_3(%arg0: i32, %arg1: i32) -> (i32, i32) {
    %c0_i32 = arith.constant 0 : i32
    %c0_i32_0 = arith.constant 0 : i32
    return %c0_i32, %arg1 : i32, i32
  }
  func.func @transform_4(%arg0: i32, %arg1: i32) -> (i32, i32) {
    %c0_i32 = arith.constant 0 : i32
    return %arg0, %arg1 : i32, i32
  }
}

module attributes {stable_mosaic.version = 11 : i64} {
  func.func @_resnet_trunk_kernel(%arg0: i32, %arg1: memref<32x128xbf16, #tpu.memory_space<vmem>>, %arg2: memref<9x32x32xbf16, #tpu.memory_space<vmem>>, %arg3: memref<1x9x128x128xbf16, #tpu.memory_space<vmem>>, %arg4: memref<1x9x128x128xbf16, #tpu.memory_space<vmem>>, %arg5: memref<1x1x128xf32, #tpu.memory_space<vmem>>, %arg6: memref<1x1x128xf32, #tpu.memory_space<vmem>>, %arg7: memref<1x1x128xf32, #tpu.memory_space<vmem>>, %arg8: memref<1x1x128xf32, #tpu.memory_space<vmem>>, %arg9: memref<32x128xbf16, #tpu.memory_space<vmem>>, %arg10: memref<32x128xf32, #tpu.memory_space<vmem>>) attributes {dimension_semantics = [#tpu.dimension_semantics<arbitrary>], iteration_bounds = array<i64: 9>, scalar_prefetch = 0 : i64, scratch_operands = 1 : i64, tpu.core_type = #tpu.core_type<tc>, window_params = [{pipeline_mode = #tpu.pipeline_mode<synchronous>, transform_indices = @transform_0, window_bounds = array<i64: 32, 128>}, {pipeline_mode = #tpu.pipeline_mode<synchronous>, transform_indices = @transform_1, window_bounds = array<i64: 9, 32, 32>}, {transform_indices = @transform_2, window_bounds = array<i64: 1, 9, 128, 128>}, {transform_indices = @transform_3, window_bounds = array<i64: 1, 9, 128, 128>}, {transform_indices = @transform_4, window_bounds = array<i64: 1, 1, 128>}, {transform_indices = @transform_5, window_bounds = array<i64: 1, 1, 128>}, {transform_indices = @transform_6, window_bounds = array<i64: 1, 1, 128>}, {transform_indices = @transform_7, window_bounds = array<i64: 1, 1, 128>}, {pipeline_mode = #tpu.pipeline_mode<synchronous>, transform_indices = @transform_8, window_bounds = array<i64: 32, 128>}]} {
    %c0_i32 = arith.constant 0 : i32
    %0 = arith.cmpi eq, %arg0, %c0_i32 : i32
    %1 = arith.extui %0 : i1 to i32
    %c0_i32_0 = arith.constant 0 : i32
    %2 = arith.cmpi ne, %1, %c0_i32_0 : i32
    scf.if %2 {
      %c0_174 = arith.constant 0 : index
      %c0_175 = arith.constant 0 : index
      %174 = vector.load %arg1[%c0_174, %c0_175] : memref<32x128xbf16, #tpu.memory_space<vmem>>, vector<32x128xbf16>
      %175 = arith.extf %174 : vector<32x128xbf16> to vector<32x128xf32>
      %c0_176 = arith.constant 0 : index
      %c0_177 = arith.constant 0 : index
      %176 = vector.load %arg10[%c0_176, %c0_177] : memref<32x128xf32, #tpu.memory_space<vmem>>, vector<32x128xf32>
      tpu.vector_store %arg10[%c0_176, %c0_177], %175 {strides = array<i32>} : memref<32x128xf32, #tpu.memory_space<vmem>>, vector<32x128xf32>,
    } else {
    }
    %c0 = arith.constant 0 : index
    %c0_1 = arith.constant 0 : index
    %3 = vector.load %arg10[%c0, %c0_1] : memref<32x128xf32, #tpu.memory_space<vmem>>, vector<32x128xf32>
    %4 = arith.truncf %3 : vector<32x128xf32> to vector<32x128xbf16>
    %cst = arith.constant 0.000000e+00 : f32
    %5 = vector.broadcast %cst : f32 to vector<32x128xf32>
    %c0_2 = arith.constant 0 : index
    %c0_3 = arith.constant 0 : index
    %c0_4 = arith.constant 0 : index
    %6 = vector.load %arg2[%c0_2, %c0_3, %c0_4] : memref<9x32x32xbf16, #tpu.memory_space<vmem>>, vector<1x32x32xbf16>
    %7 = vector.shape_cast %6 : vector<1x32x32xbf16> to vector<32x32xbf16>
    %cst_5 = arith.constant dense<0.000000e+00> : vector<32x128xf32>
    %8 = tpu.matmul %7, %4, %cst_5 {dimension_numbers = #tpu.dot_dimension_numbers<[1], [0], [0], [1], [0, 0, 1, 1], [], []>} : vector<32x32xbf16>, vector<32x128xbf16>, vector<32x128xf32> -> vector<32x128xf32>
    %9 = arith.truncf %8 : vector<32x128xf32> to vector<32x128xbf16>
    %c0_6 = arith.constant 0 : index
    %c0_7 = arith.constant 0 : index
    %c0_8 = arith.constant 0 : index
    %c0_9 = arith.constant 0 : index
    %10 = vector.load %arg3[%c0_6, %c0_7, %c0_8, %c0_9] : memref<1x9x128x128xbf16, #tpu.memory_space<vmem>>, vector<1x1x128x128xbf16>
    %11 = vector.shape_cast %10 : vector<1x1x128x128xbf16> to vector<128x128xbf16>
    %cst_10 = arith.constant dense<0.000000e+00> : vector<32x128xf32>
    %12 = tpu.matmul %9, %11, %cst_10 {dimension_numbers = #tpu.dot_dimension_numbers<[1], [0], [0], [1], [0, 0, 1, 1], [], []>} : vector<32x128xbf16>, vector<128x128xbf16>, vector<32x128xf32> -> vector<32x128xf32>
    %13 = arith.addf %5, %12 : vector<32x128xf32>
    %c1 = arith.constant 1 : index
    %c0_11 = arith.constant 0 : index
    %c0_12 = arith.constant 0 : index
    %14 = vector.load %arg2[%c1, %c0_11, %c0_12] : memref<9x32x32xbf16, #tpu.memory_space<vmem>>, vector<1x32x32xbf16>
    %15 = vector.shape_cast %14 : vector<1x32x32xbf16> to vector<32x32xbf16>
    %cst_13 = arith.constant dense<0.000000e+00> : vector<32x128xf32>
    %16 = tpu.matmul %15, %4, %cst_13 {dimension_numbers = #tpu.dot_dimension_numbers<[1], [0], [0], [1], [0, 0, 1, 1], [], []>} : vector<32x32xbf16>, vector<32x128xbf16>, vector<32x128xf32> -> vector<32x128xf32>
    %17 = arith.truncf %16 : vector<32x128xf32> to vector<32x128xbf16>
    %c0_14 = arith.constant 0 : index
    %c1_15 = arith.constant 1 : index
    %c0_16 = arith.constant 0 : index
    %c0_17 = arith.constant 0 : index
    %18 = vector.load %arg3[%c0_14, %c1_15, %c0_16, %c0_17] : memref<1x9x128x128xbf16, #tpu.memory_space<vmem>>, vector<1x1x128x128xbf16>
    %19 = vector.shape_cast %18 : vector<1x1x128x128xbf16> to vector<128x128xbf16>
    %cst_18 = arith.constant dense<0.000000e+00> : vector<32x128xf32>
    %20 = tpu.matmul %17, %19, %cst_18 {dimension_numbers = #tpu.dot_dimension_numbers<[1], [0], [0], [1], [0, 0, 1, 1], [], []>} : vector<32x128xbf16>, vector<128x128xbf16>, vector<32x128xf32> -> vector<32x128xf32>
    %21 = arith.addf %13, %20 : vector<32x128xf32>
    %c2 = arith.constant 2 : index
    %c0_19 = arith.constant 0 : index
    %c0_20 = arith.constant 0 : index
    %22 = vector.load %arg2[%c2, %c0_19, %c0_20] : memref<9x32x32xbf16, #tpu.memory_space<vmem>>, vector<1x32x32xbf16>
    %23 = vector.shape_cast %22 : vector<1x32x32xbf16> to vector<32x32xbf16>
    %cst_21 = arith.constant dense<0.000000e+00> : vector<32x128xf32>
    %24 = tpu.matmul %23, %4, %cst_21 {dimension_numbers = #tpu.dot_dimension_numbers<[1], [0], [0], [1], [0, 0, 1, 1], [], []>} : vector<32x32xbf16>, vector<32x128xbf16>, vector<32x128xf32> -> vector<32x128xf32>
    %25 = arith.truncf %24 : vector<32x128xf32> to vector<32x128xbf16>
    %c0_22 = arith.constant 0 : index
    %c2_23 = arith.constant 2 : index
    %c0_24 = arith.constant 0 : index
    %c0_25 = arith.constant 0 : index
    %26 = vector.load %arg3[%c0_22, %c2_23, %c0_24, %c0_25] : memref<1x9x128x128xbf16, #tpu.memory_space<vmem>>, vector<1x1x128x128xbf16>
    %27 = vector.shape_cast %26 : vector<1x1x128x128xbf16> to vector<128x128xbf16>
    %cst_26 = arith.constant dense<0.000000e+00> : vector<32x128xf32>
    %28 = tpu.matmul %25, %27, %cst_26 {dimension_numbers = #tpu.dot_dimension_numbers<[1], [0], [0], [1], [0, 0, 1, 1], [], []>} : vector<32x128xbf16>, vector<128x128xbf16>, vector<32x128xf32> -> vector<32x128xf32>
    %29 = arith.addf %21, %28 : vector<32x128xf32>
    %c3 = arith.constant 3 : index
    %c0_27 = arith.constant 0 : index
    %c0_28 = arith.constant 0 : index
    %30 = vector.load %arg2[%c3, %c0_27, %c0_28] : memref<9x32x32xbf16, #tpu.memory_space<vmem>>, vector<1x32x32xbf16>
    %31 = vector.shape_cast %30 : vector<1x32x32xbf16> to vector<32x32xbf16>
    %cst_29 = arith.constant dense<0.000000e+00> : vector<32x128xf32>
    %32 = tpu.matmul %31, %4, %cst_29 {dimension_numbers = #tpu.dot_dimension_numbers<[1], [0], [0], [1], [0, 0, 1, 1], [], []>} : vector<32x32xbf16>, vector<32x128xbf16>, vector<32x128xf32> -> vector<32x128xf32>
    %33 = arith.truncf %32 : vector<32x128xf32> to vector<32x128xbf16>
    %c0_30 = arith.constant 0 : index
    %c3_31 = arith.constant 3 : index
    %c0_32 = arith.constant 0 : index
    %c0_33 = arith.constant 0 : index
    %34 = vector.load %arg3[%c0_30, %c3_31, %c0_32, %c0_33] : memref<1x9x128x128xbf16, #tpu.memory_space<vmem>>, vector<1x1x128x128xbf16>
    %35 = vector.shape_cast %34 : vector<1x1x128x128xbf16> to vector<128x128xbf16>
    %cst_34 = arith.constant dense<0.000000e+00> : vector<32x128xf32>
    %36 = tpu.matmul %33, %35, %cst_34 {dimension_numbers = #tpu.dot_dimension_numbers<[1], [0], [0], [1], [0, 0, 1, 1], [], []>} : vector<32x128xbf16>, vector<128x128xbf16>, vector<32x128xf32> -> vector<32x128xf32>
    %37 = arith.addf %29, %36 : vector<32x128xf32>
    %c4 = arith.constant 4 : index
    %c0_35 = arith.constant 0 : index
    %c0_36 = arith.constant 0 : index
    %38 = vector.load %arg2[%c4, %c0_35, %c0_36] : memref<9x32x32xbf16, #tpu.memory_space<vmem>>, vector<1x32x32xbf16>
    %39 = vector.shape_cast %38 : vector<1x32x32xbf16> to vector<32x32xbf16>
    %cst_37 = arith.constant dense<0.000000e+00> : vector<32x128xf32>
    %40 = tpu.matmul %39, %4, %cst_37 {dimension_numbers = #tpu.dot_dimension_numbers<[1], [0], [0], [1], [0, 0, 1, 1], [], []>} : vector<32x32xbf16>, vector<32x128xbf16>, vector<32x128xf32> -> vector<32x128xf32>
    %41 = arith.truncf %40 : vector<32x128xf32> to vector<32x128xbf16>
    %c0_38 = arith.constant 0 : index
    %c4_39 = arith.constant 4 : index
    %c0_40 = arith.constant 0 : index
    %c0_41 = arith.constant 0 : index
    %42 = vector.load %arg3[%c0_38, %c4_39, %c0_40, %c0_41] : memref<1x9x128x128xbf16, #tpu.memory_space<vmem>>, vector<1x1x128x128xbf16>
    %43 = vector.shape_cast %42 : vector<1x1x128x128xbf16> to vector<128x128xbf16>
    %cst_42 = arith.constant dense<0.000000e+00> : vector<32x128xf32>
    %44 = tpu.matmul %41, %43, %cst_42 {dimension_numbers = #tpu.dot_dimension_numbers<[1], [0], [0], [1], [0, 0, 1, 1], [], []>} : vector<32x128xbf16>, vector<128x128xbf16>, vector<32x128xf32> -> vector<32x128xf32>
    %45 = arith.addf %37, %44 : vector<32x128xf32>
    %c5 = arith.constant 5 : index
    %c0_43 = arith.constant 0 : index
    %c0_44 = arith.constant 0 : index
    %46 = vector.load %arg2[%c5, %c0_43, %c0_44] : memref<9x32x32xbf16, #tpu.memory_space<vmem>>, vector<1x32x32xbf16>
    %47 = vector.shape_cast %46 : vector<1x32x32xbf16> to vector<32x32xbf16>
    %cst_45 = arith.constant dense<0.000000e+00> : vector<32x128xf32>
    %48 = tpu.matmul %47, %4, %cst_45 {dimension_numbers = #tpu.dot_dimension_numbers<[1], [0], [0], [1], [0, 0, 1, 1], [], []>} : vector<32x32xbf16>, vector<32x128xbf16>, vector<32x128xf32> -> vector<32x128xf32>
    %49 = arith.truncf %48 : vector<32x128xf32> to vector<32x128xbf16>
    %c0_46 = arith.constant 0 : index
    %c5_47 = arith.constant 5 : index
    %c0_48 = arith.constant 0 : index
    %c0_49 = arith.constant 0 : index
    %50 = vector.load %arg3[%c0_46, %c5_47, %c0_48, %c0_49] : memref<1x9x128x128xbf16, #tpu.memory_space<vmem>>, vector<1x1x128x128xbf16>
    %51 = vector.shape_cast %50 : vector<1x1x128x128xbf16> to vector<128x128xbf16>
    %cst_50 = arith.constant dense<0.000000e+00> : vector<32x128xf32>
    %52 = tpu.matmul %49, %51, %cst_50 {dimension_numbers = #tpu.dot_dimension_numbers<[1], [0], [0], [1], [0, 0, 1, 1], [], []>} : vector<32x128xbf16>, vector<128x128xbf16>, vector<32x128xf32> -> vector<32x128xf32>
    %53 = arith.addf %45, %52 : vector<32x128xf32>
    %c6 = arith.constant 6 : index
    %c0_51 = arith.constant 0 : index
    %c0_52 = arith.constant 0 : index
    %54 = vector.load %arg2[%c6, %c0_51, %c0_52] : memref<9x32x32xbf16, #tpu.memory_space<vmem>>, vector<1x32x32xbf16>
    %55 = vector.shape_cast %54 : vector<1x32x32xbf16> to vector<32x32xbf16>
    %cst_53 = arith.constant dense<0.000000e+00> : vector<32x128xf32>
    %56 = tpu.matmul %55, %4, %cst_53 {dimension_numbers = #tpu.dot_dimension_numbers<[1], [0], [0], [1], [0, 0, 1, 1], [], []>} : vector<32x32xbf16>, vector<32x128xbf16>, vector<32x128xf32> -> vector<32x128xf32>
    %57 = arith.truncf %56 : vector<32x128xf32> to vector<32x128xbf16>
    %c0_54 = arith.constant 0 : index
    %c6_55 = arith.constant 6 : index
    %c0_56 = arith.constant 0 : index
    %c0_57 = arith.constant 0 : index
    %58 = vector.load %arg3[%c0_54, %c6_55, %c0_56, %c0_57] : memref<1x9x128x128xbf16, #tpu.memory_space<vmem>>, vector<1x1x128x128xbf16>
    %59 = vector.shape_cast %58 : vector<1x1x128x128xbf16> to vector<128x128xbf16>
    %cst_58 = arith.constant dense<0.000000e+00> : vector<32x128xf32>
    %60 = tpu.matmul %57, %59, %cst_58 {dimension_numbers = #tpu.dot_dimension_numbers<[1], [0], [0], [1], [0, 0, 1, 1], [], []>} : vector<32x128xbf16>, vector<128x128xbf16>, vector<32x128xf32> -> vector<32x128xf32>
    %61 = arith.addf %53, %60 : vector<32x128xf32>
    %c7 = arith.constant 7 : index
    %c0_59 = arith.constant 0 : index
    %c0_60 = arith.constant 0 : index
    %62 = vector.load %arg2[%c7, %c0_59, %c0_60] : memref<9x32x32xbf16, #tpu.memory_space<vmem>>, vector<1x32x32xbf16>
    %63 = vector.shape_cast %62 : vector<1x32x32xbf16> to vector<32x32xbf16>
    %cst_61 = arith.constant dense<0.000000e+00> : vector<32x128xf32>
    %64 = tpu.matmul %63, %4, %cst_61 {dimension_numbers = #tpu.dot_dimension_numbers<[1], [0], [0], [1], [0, 0, 1, 1], [], []>} : vector<32x32xbf16>, vector<32x128xbf16>, vector<32x128xf32> -> vector<32x128xf32>
    %65 = arith.truncf %64 : vector<32x128xf32> to vector<32x128xbf16>
    %c0_62 = arith.constant 0 : index
    %c7_63 = arith.constant 7 : index
    %c0_64 = arith.constant 0 : index
    %c0_65 = arith.constant 0 : index
    %66 = vector.load %arg3[%c0_62, %c7_63, %c0_64, %c0_65] : memref<1x9x128x128xbf16, #tpu.memory_space<vmem>>, vector<1x1x128x128xbf16>
    %67 = vector.shape_cast %66 : vector<1x1x128x128xbf16> to vector<128x128xbf16>
    %cst_66 = arith.constant dense<0.000000e+00> : vector<32x128xf32>
    %68 = tpu.matmul %65, %67, %cst_66 {dimension_numbers = #tpu.dot_dimension_numbers<[1], [0], [0], [1], [0, 0, 1, 1], [], []>} : vector<32x128xbf16>, vector<128x128xbf16>, vector<32x128xf32> -> vector<32x128xf32>
    %69 = arith.addf %61, %68 : vector<32x128xf32>
    %c8 = arith.constant 8 : index
    %c0_67 = arith.constant 0 : index
    %c0_68 = arith.constant 0 : index
    %70 = vector.load %arg2[%c8, %c0_67, %c0_68] : memref<9x32x32xbf16, #tpu.memory_space<vmem>>, vector<1x32x32xbf16>
    %71 = vector.shape_cast %70 : vector<1x32x32xbf16> to vector<32x32xbf16>
    %cst_69 = arith.constant dense<0.000000e+00> : vector<32x128xf32>
    %72 = tpu.matmul %71, %4, %cst_69 {dimension_numbers = #tpu.dot_dimension_numbers<[1], [0], [0], [1], [0, 0, 1, 1], [], []>} : vector<32x32xbf16>, vector<32x128xbf16>, vector<32x128xf32> -> vector<32x128xf32>
    %73 = arith.truncf %72 : vector<32x128xf32> to vector<32x128xbf16>
    %c0_70 = arith.constant 0 : index
    %c8_71 = arith.constant 8 : index
    %c0_72 = arith.constant 0 : index
    %c0_73 = arith.constant 0 : index
    %74 = vector.load %arg3[%c0_70, %c8_71, %c0_72, %c0_73] : memref<1x9x128x128xbf16, #tpu.memory_space<vmem>>, vector<1x1x128x128xbf16>
    %75 = vector.shape_cast %74 : vector<1x1x128x128xbf16> to vector<128x128xbf16>
    %cst_74 = arith.constant dense<0.000000e+00> : vector<32x128xf32>
    %76 = tpu.matmul %73, %75, %cst_74 {dimension_numbers = #tpu.dot_dimension_numbers<[1], [0], [0], [1], [0, 0, 1, 1], [], []>} : vector<32x128xbf16>, vector<128x128xbf16>, vector<32x128xf32> -> vector<32x128xf32>
    %77 = arith.addf %69, %76 : vector<32x128xf32>
    %c0_75 = arith.constant 0 : index
    %c0_76 = arith.constant 0 : index
    %c0_77 = arith.constant 0 : index
    %78 = vector.load %arg5[%c0_75, %c0_76, %c0_77] : memref<1x1x128xf32, #tpu.memory_space<vmem>>, vector<1x1x128xf32>
    %79 = vector.shape_cast %78 : vector<1x1x128xf32> to vector<1x128xf32>
    %80 = vector.broadcast %79 : vector<1x128xf32> to vector<32x128xf32>
    %81 = arith.mulf %77, %80 : vector<32x128xf32>
    %c0_78 = arith.constant 0 : index
    %c0_79 = arith.constant 0 : index
    %c0_80 = arith.constant 0 : index
    %82 = vector.load %arg6[%c0_78, %c0_79, %c0_80] : memref<1x1x128xf32, #tpu.memory_space<vmem>>, vector<1x1x128xf32>
    %83 = vector.shape_cast %82 : vector<1x1x128xf32> to vector<1x128xf32>
    %84 = vector.broadcast %83 : vector<1x128xf32> to vector<32x128xf32>
    %85 = arith.addf %81, %84 : vector<32x128xf32>
    %cst_81 = arith.constant 0.000000e+00 : f32
    %86 = vector.broadcast %cst_81 : f32 to vector<32x128xf32>
    %87 = arith.maximumf %85, %86 : vector<32x128xf32>
    %88 = arith.truncf %87 : vector<32x128xf32> to vector<32x128xbf16>
    %cst_82 = arith.constant 0.000000e+00 : f32
    %89 = vector.broadcast %cst_82 : f32 to vector<32x128xf32>
    %c0_83 = arith.constant 0 : index
    %c0_84 = arith.constant 0 : index
    %c0_85 = arith.constant 0 : index
    %90 = vector.load %arg2[%c0_83, %c0_84, %c0_85] : memref<9x32x32xbf16, #tpu.memory_space<vmem>>, vector<1x32x32xbf16>
    %91 = vector.shape_cast %90 : vector<1x32x32xbf16> to vector<32x32xbf16>
    %cst_86 = arith.constant dense<0.000000e+00> : vector<32x128xf32>
    %92 = tpu.matmul %91, %88, %cst_86 {dimension_numbers = #tpu.dot_dimension_numbers<[1], [0], [0], [1], [0, 0, 1, 1], [], []>} : vector<32x32xbf16>, vector<32x128xbf16>, vector<32x128xf32> -> vector<32x128xf32>
    %93 = arith.truncf %92 : vector<32x128xf32> to vector<32x128xbf16>
    %c0_87 = arith.constant 0 : index
    %c0_88 = arith.constant 0 : index
    %c0_89 = arith.constant 0 : index
    %c0_90 = arith.constant 0 : index
    %94 = vector.load %arg4[%c0_87, %c0_88, %c0_89, %c0_90] : memref<1x9x128x128xbf16, #tpu.memory_space<vmem>>, vector<1x1x128x128xbf16>
    %95 = vector.shape_cast %94 : vector<1x1x128x128xbf16> to vector<128x128xbf16>
    %cst_91 = arith.constant dense<0.000000e+00> : vector<32x128xf32>
    %96 = tpu.matmul %93, %95, %cst_91 {dimension_numbers = #tpu.dot_dimension_numbers<[1], [0], [0], [1], [0, 0, 1, 1], [], []>} : vector<32x128xbf16>, vector<128x128xbf16>, vector<32x128xf32> -> vector<32x128xf32>
    %97 = arith.addf %89, %96 : vector<32x128xf32>
    %c1_92 = arith.constant 1 : index
    %c0_93 = arith.constant 0 : index
    %c0_94 = arith.constant 0 : index
    %98 = vector.load %arg2[%c1_92, %c0_93, %c0_94] : memref<9x32x32xbf16, #tpu.memory_space<vmem>>, vector<1x32x32xbf16>
    %99 = vector.shape_cast %98 : vector<1x32x32xbf16> to vector<32x32xbf16>
    %cst_95 = arith.constant dense<0.000000e+00> : vector<32x128xf32>
    %100 = tpu.matmul %99, %88, %cst_95 {dimension_numbers = #tpu.dot_dimension_numbers<[1], [0], [0], [1], [0, 0, 1, 1], [], []>} : vector<32x32xbf16>, vector<32x128xbf16>, vector<32x128xf32> -> vector<32x128xf32>
    %101 = arith.truncf %100 : vector<32x128xf32> to vector<32x128xbf16>
    %c0_96 = arith.constant 0 : index
    %c1_97 = arith.constant 1 : index
    %c0_98 = arith.constant 0 : index
    %c0_99 = arith.constant 0 : index
    %102 = vector.load %arg4[%c0_96, %c1_97, %c0_98, %c0_99] : memref<1x9x128x128xbf16, #tpu.memory_space<vmem>>, vector<1x1x128x128xbf16>
    %103 = vector.shape_cast %102 : vector<1x1x128x128xbf16> to vector<128x128xbf16>
    %cst_100 = arith.constant dense<0.000000e+00> : vector<32x128xf32>
    %104 = tpu.matmul %101, %103, %cst_100 {dimension_numbers = #tpu.dot_dimension_numbers<[1], [0], [0], [1], [0, 0, 1, 1], [], []>} : vector<32x128xbf16>, vector<128x128xbf16>, vector<32x128xf32> -> vector<32x128xf32>
    %105 = arith.addf %97, %104 : vector<32x128xf32>
    %c2_101 = arith.constant 2 : index
    %c0_102 = arith.constant 0 : index
    %c0_103 = arith.constant 0 : index
    %106 = vector.load %arg2[%c2_101, %c0_102, %c0_103] : memref<9x32x32xbf16, #tpu.memory_space<vmem>>, vector<1x32x32xbf16>
    %107 = vector.shape_cast %106 : vector<1x32x32xbf16> to vector<32x32xbf16>
    %cst_104 = arith.constant dense<0.000000e+00> : vector<32x128xf32>
    %108 = tpu.matmul %107, %88, %cst_104 {dimension_numbers = #tpu.dot_dimension_numbers<[1], [0], [0], [1], [0, 0, 1, 1], [], []>} : vector<32x32xbf16>, vector<32x128xbf16>, vector<32x128xf32> -> vector<32x128xf32>
    %109 = arith.truncf %108 : vector<32x128xf32> to vector<32x128xbf16>
    %c0_105 = arith.constant 0 : index
    %c2_106 = arith.constant 2 : index
    %c0_107 = arith.constant 0 : index
    %c0_108 = arith.constant 0 : index
    %110 = vector.load %arg4[%c0_105, %c2_106, %c0_107, %c0_108] : memref<1x9x128x128xbf16, #tpu.memory_space<vmem>>, vector<1x1x128x128xbf16>
    %111 = vector.shape_cast %110 : vector<1x1x128x128xbf16> to vector<128x128xbf16>
    %cst_109 = arith.constant dense<0.000000e+00> : vector<32x128xf32>
    %112 = tpu.matmul %109, %111, %cst_109 {dimension_numbers = #tpu.dot_dimension_numbers<[1], [0], [0], [1], [0, 0, 1, 1], [], []>} : vector<32x128xbf16>, vector<128x128xbf16>, vector<32x128xf32> -> vector<32x128xf32>
    %113 = arith.addf %105, %112 : vector<32x128xf32>
    %c3_110 = arith.constant 3 : index
    %c0_111 = arith.constant 0 : index
    %c0_112 = arith.constant 0 : index
    %114 = vector.load %arg2[%c3_110, %c0_111, %c0_112] : memref<9x32x32xbf16, #tpu.memory_space<vmem>>, vector<1x32x32xbf16>
    %115 = vector.shape_cast %114 : vector<1x32x32xbf16> to vector<32x32xbf16>
    %cst_113 = arith.constant dense<0.000000e+00> : vector<32x128xf32>
    %116 = tpu.matmul %115, %88, %cst_113 {dimension_numbers = #tpu.dot_dimension_numbers<[1], [0], [0], [1], [0, 0, 1, 1], [], []>} : vector<32x32xbf16>, vector<32x128xbf16>, vector<32x128xf32> -> vector<32x128xf32>
    %117 = arith.truncf %116 : vector<32x128xf32> to vector<32x128xbf16>
    %c0_114 = arith.constant 0 : index
    %c3_115 = arith.constant 3 : index
    %c0_116 = arith.constant 0 : index
    %c0_117 = arith.constant 0 : index
    %118 = vector.load %arg4[%c0_114, %c3_115, %c0_116, %c0_117] : memref<1x9x128x128xbf16, #tpu.memory_space<vmem>>, vector<1x1x128x128xbf16>
    %119 = vector.shape_cast %118 : vector<1x1x128x128xbf16> to vector<128x128xbf16>
    %cst_118 = arith.constant dense<0.000000e+00> : vector<32x128xf32>
    %120 = tpu.matmul %117, %119, %cst_118 {dimension_numbers = #tpu.dot_dimension_numbers<[1], [0], [0], [1], [0, 0, 1, 1], [], []>} : vector<32x128xbf16>, vector<128x128xbf16>, vector<32x128xf32> -> vector<32x128xf32>
    %121 = arith.addf %113, %120 : vector<32x128xf32>
    %c4_119 = arith.constant 4 : index
    %c0_120 = arith.constant 0 : index
    %c0_121 = arith.constant 0 : index
    %122 = vector.load %arg2[%c4_119, %c0_120, %c0_121] : memref<9x32x32xbf16, #tpu.memory_space<vmem>>, vector<1x32x32xbf16>
    %123 = vector.shape_cast %122 : vector<1x32x32xbf16> to vector<32x32xbf16>
    %cst_122 = arith.constant dense<0.000000e+00> : vector<32x128xf32>
    %124 = tpu.matmul %123, %88, %cst_122 {dimension_numbers = #tpu.dot_dimension_numbers<[1], [0], [0], [1], [0, 0, 1, 1], [], []>} : vector<32x32xbf16>, vector<32x128xbf16>, vector<32x128xf32> -> vector<32x128xf32>
    %125 = arith.truncf %124 : vector<32x128xf32> to vector<32x128xbf16>
    %c0_123 = arith.constant 0 : index
    %c4_124 = arith.constant 4 : index
    %c0_125 = arith.constant 0 : index
    %c0_126 = arith.constant 0 : index
    %126 = vector.load %arg4[%c0_123, %c4_124, %c0_125, %c0_126] : memref<1x9x128x128xbf16, #tpu.memory_space<vmem>>, vector<1x1x128x128xbf16>
    %127 = vector.shape_cast %126 : vector<1x1x128x128xbf16> to vector<128x128xbf16>
    %cst_127 = arith.constant dense<0.000000e+00> : vector<32x128xf32>
    %128 = tpu.matmul %125, %127, %cst_127 {dimension_numbers = #tpu.dot_dimension_numbers<[1], [0], [0], [1], [0, 0, 1, 1], [], []>} : vector<32x128xbf16>, vector<128x128xbf16>, vector<32x128xf32> -> vector<32x128xf32>
    %129 = arith.addf %121, %128 : vector<32x128xf32>
    %c5_128 = arith.constant 5 : index
    %c0_129 = arith.constant 0 : index
    %c0_130 = arith.constant 0 : index
    %130 = vector.load %arg2[%c5_128, %c0_129, %c0_130] : memref<9x32x32xbf16, #tpu.memory_space<vmem>>, vector<1x32x32xbf16>
    %131 = vector.shape_cast %130 : vector<1x32x32xbf16> to vector<32x32xbf16>
    %cst_131 = arith.constant dense<0.000000e+00> : vector<32x128xf32>
    %132 = tpu.matmul %131, %88, %cst_131 {dimension_numbers = #tpu.dot_dimension_numbers<[1], [0], [0], [1], [0, 0, 1, 1], [], []>} : vector<32x32xbf16>, vector<32x128xbf16>, vector<32x128xf32> -> vector<32x128xf32>
    %133 = arith.truncf %132 : vector<32x128xf32> to vector<32x128xbf16>
    %c0_132 = arith.constant 0 : index
    %c5_133 = arith.constant 5 : index
    %c0_134 = arith.constant 0 : index
    %c0_135 = arith.constant 0 : index
    %134 = vector.load %arg4[%c0_132, %c5_133, %c0_134, %c0_135] : memref<1x9x128x128xbf16, #tpu.memory_space<vmem>>, vector<1x1x128x128xbf16>
    %135 = vector.shape_cast %134 : vector<1x1x128x128xbf16> to vector<128x128xbf16>
    %cst_136 = arith.constant dense<0.000000e+00> : vector<32x128xf32>
    %136 = tpu.matmul %133, %135, %cst_136 {dimension_numbers = #tpu.dot_dimension_numbers<[1], [0], [0], [1], [0, 0, 1, 1], [], []>} : vector<32x128xbf16>, vector<128x128xbf16>, vector<32x128xf32> -> vector<32x128xf32>
    %137 = arith.addf %129, %136 : vector<32x128xf32>
    %c6_137 = arith.constant 6 : index
    %c0_138 = arith.constant 0 : index
    %c0_139 = arith.constant 0 : index
    %138 = vector.load %arg2[%c6_137, %c0_138, %c0_139] : memref<9x32x32xbf16, #tpu.memory_space<vmem>>, vector<1x32x32xbf16>
    %139 = vector.shape_cast %138 : vector<1x32x32xbf16> to vector<32x32xbf16>
    %cst_140 = arith.constant dense<0.000000e+00> : vector<32x128xf32>
    %140 = tpu.matmul %139, %88, %cst_140 {dimension_numbers = #tpu.dot_dimension_numbers<[1], [0], [0], [1], [0, 0, 1, 1], [], []>} : vector<32x32xbf16>, vector<32x128xbf16>, vector<32x128xf32> -> vector<32x128xf32>
    %141 = arith.truncf %140 : vector<32x128xf32> to vector<32x128xbf16>
    %c0_141 = arith.constant 0 : index
    %c6_142 = arith.constant 6 : index
    %c0_143 = arith.constant 0 : index
    %c0_144 = arith.constant 0 : index
    %142 = vector.load %arg4[%c0_141, %c6_142, %c0_143, %c0_144] : memref<1x9x128x128xbf16, #tpu.memory_space<vmem>>, vector<1x1x128x128xbf16>
    %143 = vector.shape_cast %142 : vector<1x1x128x128xbf16> to vector<128x128xbf16>
    %cst_145 = arith.constant dense<0.000000e+00> : vector<32x128xf32>
    %144 = tpu.matmul %141, %143, %cst_145 {dimension_numbers = #tpu.dot_dimension_numbers<[1], [0], [0], [1], [0, 0, 1, 1], [], []>} : vector<32x128xbf16>, vector<128x128xbf16>, vector<32x128xf32> -> vector<32x128xf32>
    %145 = arith.addf %137, %144 : vector<32x128xf32>
    %c7_146 = arith.constant 7 : index
    %c0_147 = arith.constant 0 : index
    %c0_148 = arith.constant 0 : index
    %146 = vector.load %arg2[%c7_146, %c0_147, %c0_148] : memref<9x32x32xbf16, #tpu.memory_space<vmem>>, vector<1x32x32xbf16>
    %147 = vector.shape_cast %146 : vector<1x32x32xbf16> to vector<32x32xbf16>
    %cst_149 = arith.constant dense<0.000000e+00> : vector<32x128xf32>
    %148 = tpu.matmul %147, %88, %cst_149 {dimension_numbers = #tpu.dot_dimension_numbers<[1], [0], [0], [1], [0, 0, 1, 1], [], []>} : vector<32x32xbf16>, vector<32x128xbf16>, vector<32x128xf32> -> vector<32x128xf32>
    %149 = arith.truncf %148 : vector<32x128xf32> to vector<32x128xbf16>
    %c0_150 = arith.constant 0 : index
    %c7_151 = arith.constant 7 : index
    %c0_152 = arith.constant 0 : index
    %c0_153 = arith.constant 0 : index
    %150 = vector.load %arg4[%c0_150, %c7_151, %c0_152, %c0_153] : memref<1x9x128x128xbf16, #tpu.memory_space<vmem>>, vector<1x1x128x128xbf16>
    %151 = vector.shape_cast %150 : vector<1x1x128x128xbf16> to vector<128x128xbf16>
    %cst_154 = arith.constant dense<0.000000e+00> : vector<32x128xf32>
    %152 = tpu.matmul %149, %151, %cst_154 {dimension_numbers = #tpu.dot_dimension_numbers<[1], [0], [0], [1], [0, 0, 1, 1], [], []>} : vector<32x128xbf16>, vector<128x128xbf16>, vector<32x128xf32> -> vector<32x128xf32>
    %153 = arith.addf %145, %152 : vector<32x128xf32>
    %c8_155 = arith.constant 8 : index
    %c0_156 = arith.constant 0 : index
    %c0_157 = arith.constant 0 : index
    %154 = vector.load %arg2[%c8_155, %c0_156, %c0_157] : memref<9x32x32xbf16, #tpu.memory_space<vmem>>, vector<1x32x32xbf16>
    %155 = vector.shape_cast %154 : vector<1x32x32xbf16> to vector<32x32xbf16>
    %cst_158 = arith.constant dense<0.000000e+00> : vector<32x128xf32>
    %156 = tpu.matmul %155, %88, %cst_158 {dimension_numbers = #tpu.dot_dimension_numbers<[1], [0], [0], [1], [0, 0, 1, 1], [], []>} : vector<32x32xbf16>, vector<32x128xbf16>, vector<32x128xf32> -> vector<32x128xf32>
    %157 = arith.truncf %156 : vector<32x128xf32> to vector<32x128xbf16>
    %c0_159 = arith.constant 0 : index
    %c8_160 = arith.constant 8 : index
    %c0_161 = arith.constant 0 : index
    %c0_162 = arith.constant 0 : index
    %158 = vector.load %arg4[%c0_159, %c8_160, %c0_161, %c0_162] : memref<1x9x128x128xbf16, #tpu.memory_space<vmem>>, vector<1x1x128x128xbf16>
    %159 = vector.shape_cast %158 : vector<1x1x128x128xbf16> to vector<128x128xbf16>
    %cst_163 = arith.constant dense<0.000000e+00> : vector<32x128xf32>
    %160 = tpu.matmul %157, %159, %cst_163 {dimension_numbers = #tpu.dot_dimension_numbers<[1], [0], [0], [1], [0, 0, 1, 1], [], []>} : vector<32x128xbf16>, vector<128x128xbf16>, vector<32x128xf32> -> vector<32x128xf32>
    %161 = arith.addf %153, %160 : vector<32x128xf32>
    %c0_164 = arith.constant 0 : index
    %c0_165 = arith.constant 0 : index
    %c0_166 = arith.constant 0 : index
    %162 = vector.load %arg7[%c0_164, %c0_165, %c0_166] : memref<1x1x128xf32, #tpu.memory_space<vmem>>, vector<1x1x128xf32>
    %163 = vector.shape_cast %162 : vector<1x1x128xf32> to vector<1x128xf32>
    %164 = vector.broadcast %163 : vector<1x128xf32> to vector<32x128xf32>
    %165 = arith.mulf %161, %164 : vector<32x128xf32>
    %c0_167 = arith.constant 0 : index
    %c0_168 = arith.constant 0 : index
    %c0_169 = arith.constant 0 : index
    %166 = vector.load %arg8[%c0_167, %c0_168, %c0_169] : memref<1x1x128xf32, #tpu.memory_space<vmem>>, vector<1x1x128xf32>
    %167 = vector.shape_cast %166 : vector<1x1x128xf32> to vector<1x128xf32>
    %168 = vector.broadcast %167 : vector<1x128xf32> to vector<32x128xf32>
    %169 = arith.addf %165, %168 : vector<32x128xf32>
    %170 = arith.addf %169, %3 : vector<32x128xf32>
    %c0_170 = arith.constant 0 : index
    %c0_171 = arith.constant 0 : index
    %171 = vector.load %arg10[%c0_170, %c0_171] : memref<32x128xf32, #tpu.memory_space<vmem>>, vector<32x128xf32>
    tpu.vector_store %arg10[%c0_170, %c0_171], %170 {strides = array<i32>} : memref<32x128xf32, #tpu.memory_space<vmem>>, vector<32x128xf32>,
    %172 = arith.truncf %170 : vector<32x128xf32> to vector<32x128xbf16>
    %c0_172 = arith.constant 0 : index
    %c0_173 = arith.constant 0 : index
    %173 = vector.load %arg9[%c0_172, %c0_173] : memref<32x128xbf16, #tpu.memory_space<vmem>>, vector<32x128xbf16>
    tpu.vector_store %arg9[%c0_172, %c0_173], %172 {strides = array<i32>} : memref<32x128xbf16, #tpu.memory_space<vmem>>, vector<32x128xbf16>,
    return
  }
  func.func @transform_0(%arg0: i32) -> (i32, i32) {
    %c0_i32 = arith.constant 0 : i32
    %c0_i32_0 = arith.constant 0 : i32
    %c0_i32_1 = arith.constant 0 : i32
    return %c0_i32, %c0_i32_0 : i32, i32
  }
  func.func @transform_1(%arg0: i32) -> (i32, i32, i32) {
    %c0_i32 = arith.constant 0 : i32
    %c0_i32_0 = arith.constant 0 : i32
    %c0_i32_1 = arith.constant 0 : i32
    %c0_i32_2 = arith.constant 0 : i32
    return %c0_i32, %c0_i32_0, %c0_i32_1 : i32, i32, i32
  }
  func.func @transform_2(%arg0: i32) -> (i32, i32, i32, i32) {
    %c0_i32 = arith.constant 0 : i32
    %c0_i32_0 = arith.constant 0 : i32
    %c0_i32_1 = arith.constant 0 : i32
    %c0_i32_2 = arith.constant 0 : i32
    return %arg0, %c0_i32, %c0_i32_0, %c0_i32_1 : i32, i32, i32, i32
  }
  func.func @transform_3(%arg0: i32) -> (i32, i32, i32, i32) {
    %c0_i32 = arith.constant 0 : i32
    %c0_i32_0 = arith.constant 0 : i32
    %c0_i32_1 = arith.constant 0 : i32
    %c0_i32_2 = arith.constant 0 : i32
    return %arg0, %c0_i32, %c0_i32_0, %c0_i32_1 : i32, i32, i32, i32
  }
  func.func @transform_4(%arg0: i32) -> (i32, i32, i32) {
    %c0_i32 = arith.constant 0 : i32
    %c0_i32_0 = arith.constant 0 : i32
    %c0_i32_1 = arith.constant 0 : i32
    return %arg0, %c0_i32, %c0_i32_0 : i32, i32, i32
  }
  func.func @transform_5(%arg0: i32) -> (i32, i32, i32) {
    %c0_i32 = arith.constant 0 : i32
    %c0_i32_0 = arith.constant 0 : i32
    %c0_i32_1 = arith.constant 0 : i32
    return %arg0, %c0_i32, %c0_i32_0 : i32, i32, i32
  }
  func.func @transform_6(%arg0: i32) -> (i32, i32, i32) {
    %c0_i32 = arith.constant 0 : i32
    %c0_i32_0 = arith.constant 0 : i32
    %c0_i32_1 = arith.constant 0 : i32
    return %arg0, %c0_i32, %c0_i32_0 : i32, i32, i32
  }
  func.func @transform_7(%arg0: i32) -> (i32, i32, i32) {
    %c0_i32 = arith.constant 0 : i32
    %c0_i32_0 = arith.constant 0 : i32
    %c0_i32_1 = arith.constant 0 : i32
    return %arg0, %c0_i32, %c0_i32_0 : i32, i32, i32
  }
  func.func @transform_8(%arg0: i32) -> (i32, i32) {
    %c0_i32 = arith.constant 0 : i32
    %c0_i32_0 = arith.constant 0 : i32
    %c0_i32_1 = arith.constant 0 : i32
    return %c0_i32, %c0_i32_0 : i32, i32
  }
}

module attributes {stable_mosaic.version = 11 : i64} {
  func.func @_fused_matmul_kernel(%arg0: i32, %arg1: i32, %arg2: memref<128x256xbf16, #tpu.memory_space<vmem>>, %arg3: memref<256x128xbf16, #tpu.memory_space<vmem>>, %arg4: memref<1x128xf32, #tpu.memory_space<vmem>>, %arg5: memref<1x128xf32, #tpu.memory_space<vmem>>, %arg6: memref<128x128xbf16, #tpu.memory_space<vmem>>) attributes {dimension_semantics = [#tpu.dimension_semantics<parallel>, #tpu.dimension_semantics<parallel>], iteration_bounds = array<i64: 1, 1>, scalar_prefetch = 0 : i64, scratch_operands = 0 : i64, tpu.core_type = #tpu.core_type<tc>, window_params = [{transform_indices = @transform_0, window_bounds = array<i64: 128, 256>}, {transform_indices = @transform_1, window_bounds = array<i64: 256, 128>}, {transform_indices = @transform_2, window_bounds = array<i64: 1, 128>}, {transform_indices = @transform_3, window_bounds = array<i64: 1, 128>}, {transform_indices = @transform_4, window_bounds = array<i64: 128, 128>}]} {
    %c0 = arith.constant 0 : index
    %c0_0 = arith.constant 0 : index
    %0 = vector.load %arg2[%c0, %c0_0] : memref<128x256xbf16, #tpu.memory_space<vmem>>, vector<128x256xbf16>
    %c0_1 = arith.constant 0 : index
    %c0_2 = arith.constant 0 : index
    %1 = vector.load %arg3[%c0_1, %c0_2] : memref<256x128xbf16, #tpu.memory_space<vmem>>, vector<256x128xbf16>
    %cst = arith.constant dense<0.000000e+00> : vector<128x128xf32>
    %2 = tpu.matmul %0, %1, %cst {dimension_numbers = #tpu.dot_dimension_numbers<[1], [0], [0], [1], [0, 0, 1, 1], [], []>} : vector<128x256xbf16>, vector<256x128xbf16>, vector<128x128xf32> -> vector<128x128xf32>
    %c0_3 = arith.constant 0 : index
    %c0_4 = arith.constant 0 : index
    %3 = vector.load %arg4[%c0_3, %c0_4] : memref<1x128xf32, #tpu.memory_space<vmem>>, vector<1x128xf32>
    %4 = vector.broadcast %3 : vector<1x128xf32> to vector<128x128xf32>
    %5 = arith.mulf %2, %4 : vector<128x128xf32>
    %c0_5 = arith.constant 0 : index
    %c0_6 = arith.constant 0 : index
    %6 = vector.load %arg5[%c0_5, %c0_6] : memref<1x128xf32, #tpu.memory_space<vmem>>, vector<1x128xf32>
    %7 = vector.broadcast %6 : vector<1x128xf32> to vector<128x128xf32>
    %8 = arith.addf %5, %7 : vector<128x128xf32>
    %cst_7 = arith.constant 0.000000e+00 : f32
    %9 = vector.broadcast %cst_7 : f32 to vector<128x128xf32>
    %10 = arith.maximumf %8, %9 : vector<128x128xf32>
    %11 = arith.truncf %10 : vector<128x128xf32> to vector<128x128xbf16>
    %c0_8 = arith.constant 0 : index
    %c0_9 = arith.constant 0 : index
    %12 = vector.load %arg6[%c0_8, %c0_9] : memref<128x128xbf16, #tpu.memory_space<vmem>>, vector<128x128xbf16>
    tpu.vector_store %arg6[%c0_8, %c0_9], %11 {strides = array<i32>} : memref<128x128xbf16, #tpu.memory_space<vmem>>, vector<128x128xbf16>,
    return
  }
  func.func @transform_0(%arg0: i32, %arg1: i32) -> (i32, i32) {
    %c0_i32 = arith.constant 0 : i32
    %c0_i32_0 = arith.constant 0 : i32
    return %arg0, %c0_i32 : i32, i32
  }
  func.func @transform_1(%arg0: i32, %arg1: i32) -> (i32, i32) {
    %c0_i32 = arith.constant 0 : i32
    %c0_i32_0 = arith.constant 0 : i32
    return %c0_i32, %arg1 : i32, i32
  }
  func.func @transform_2(%arg0: i32, %arg1: i32) -> (i32, i32) {
    %c0_i32 = arith.constant 0 : i32
    %c0_i32_0 = arith.constant 0 : i32
    return %c0_i32, %arg1 : i32, i32
  }
  func.func @transform_3(%arg0: i32, %arg1: i32) -> (i32, i32) {
    %c0_i32 = arith.constant 0 : i32
    %c0_i32_0 = arith.constant 0 : i32
    return %c0_i32, %arg1 : i32, i32
  }
  func.func @transform_4(%arg0: i32, %arg1: i32) -> (i32, i32) {
    %c0_i32 = arith.constant 0 : i32
    return %arg0, %arg1 : i32, i32
  }
}

module attributes {stable_mosaic.version = 11 : i64} {
  func.func @_fused_matmul_kernel(%arg0: i32, %arg1: i32, %arg2: memref<256x1568xbf16, #tpu.memory_space<vmem>>, %arg3: memref<1568x128xbf16, #tpu.memory_space<vmem>>, %arg4: memref<1x128xf32, #tpu.memory_space<vmem>>, %arg5: memref<1x128xf32, #tpu.memory_space<vmem>>, %arg6: memref<256x128xf32, #tpu.memory_space<vmem>>) attributes {dimension_semantics = [#tpu.dimension_semantics<parallel>, #tpu.dimension_semantics<parallel>], iteration_bounds = array<i64: 2, 1>, scalar_prefetch = 0 : i64, scratch_operands = 0 : i64, tpu.core_type = #tpu.core_type<tc>, window_params = [{transform_indices = @transform_0, window_bounds = array<i64: 256, 1568>}, {transform_indices = @transform_1, window_bounds = array<i64: 1568, 128>}, {transform_indices = @transform_2, window_bounds = array<i64: 1, 128>}, {transform_indices = @transform_3, window_bounds = array<i64: 1, 128>}, {transform_indices = @transform_4, window_bounds = array<i64: 256, 128>}]} {
    %c0 = arith.constant 0 : index
    %c0_0 = arith.constant 0 : index
    %0 = vector.load %arg2[%c0, %c0_0] : memref<256x1568xbf16, #tpu.memory_space<vmem>>, vector<256x1568xbf16>
    %c0_1 = arith.constant 0 : index
    %c0_2 = arith.constant 0 : index
    %1 = vector.load %arg3[%c0_1, %c0_2] : memref<1568x128xbf16, #tpu.memory_space<vmem>>, vector<1568x128xbf16>
    %cst = arith.constant dense<0.000000e+00> : vector<256x128xf32>
    %2 = tpu.matmul %0, %1, %cst {dimension_numbers = #tpu.dot_dimension_numbers<[1], [0], [0], [1], [0, 0, 1, 1], [], []>} : vector<256x1568xbf16>, vector<1568x128xbf16>, vector<256x128xf32> -> vector<256x128xf32>
    %c0_3 = arith.constant 0 : index
    %c0_4 = arith.constant 0 : index
    %3 = vector.load %arg4[%c0_3, %c0_4] : memref<1x128xf32, #tpu.memory_space<vmem>>, vector<1x128xf32>
    %4 = vector.broadcast %3 : vector<1x128xf32> to vector<256x128xf32>
    %5 = arith.mulf %2, %4 : vector<256x128xf32>
    %c0_5 = arith.constant 0 : index
    %c0_6 = arith.constant 0 : index
    %6 = vector.load %arg5[%c0_5, %c0_6] : memref<1x128xf32, #tpu.memory_space<vmem>>, vector<1x128xf32>
    %7 = vector.broadcast %6 : vector<1x128xf32> to vector<256x128xf32>
    %8 = arith.addf %5, %7 : vector<256x128xf32>
    %9 = math.tanh %8 : vector<256x128xf32>
    %c0_7 = arith.constant 0 : index
    %c0_8 = arith.constant 0 : index
    %10 = vector.load %arg6[%c0_7, %c0_8] : memref<256x128xf32, #tpu.memory_space<vmem>>, vector<256x128xf32>
    tpu.vector_store %arg6[%c0_7, %c0_8], %9 {strides = array<i32>} : memref<256x128xf32, #tpu.memory_space<vmem>>, vector<256x128xf32>,
    return
  }
  func.func @transform_0(%arg0: i32, %arg1: i32) -> (i32, i32) {
    %c0_i32 = arith.constant 0 : i32
    %c0_i32_0 = arith.constant 0 : i32
    return %arg0, %c0_i32 : i32, i32
  }
  func.func @transform_1(%arg0: i32, %arg1: i32) -> (i32, i32) {
    %c0_i32 = arith.constant 0 : i32
    %c0_i32_0 = arith.constant 0 : i32
    return %c0_i32, %arg1 : i32, i32
  }
  func.func @transform_2(%arg0: i32, %arg1: i32) -> (i32, i32) {
    %c0_i32 = arith.constant 0 : i32
    %c0_i32_0 = arith.constant 0 : i32
    return %c0_i32, %arg1 : i32, i32
  }
  func.func @transform_3(%arg0: i32, %arg1: i32) -> (i32, i32) {
    %c0_i32 = arith.constant 0 : i32
    %c0_i32_0 = arith.constant 0 : i32
    return %c0_i32, %arg1 : i32, i32
  }
  func.func @transform_4(%arg0: i32, %arg1: i32) -> (i32, i32) {
    %c0_i32 = arith.constant 0 : i32
    return %arg0, %arg1 : i32, i32
  }
}

</mosaic_0001>

<llo_original>
// kernel: generator_forward.7
$region0: #{generator_forward.7}
  #allocation0 [shape = 'u32[]', space=smem, size = 0x4, offset = 0x4, fixed_abs, tag = 'smem constant byte address 0x4 - core index']
  #allocation1 [shape = 'u32[72,128]{1,0:T(1,128)}', space=vmem, size = 0x9000, scoped, tag = 'internal scratch']
  %s0 = inlined_call_operand.vmem [shape: bf16[512,160], index: 0, kind: input, shape index: {}]
  %s1 = inlined_call_operand.vmem [shape: bf16[160,128], index: 1, kind: input, shape index: {}]
  %s2 = inlined_call_operand.vmem [shape: f32[1,128], index: 2, kind: input, shape index: {}]
  %s3 = inlined_call_operand.vmem [shape: f32[1,128], index: 3, kind: input, shape index: {}]
  %s4 = inlined_call_operand.vmem [shape: bf16[512,128], index: 4, kind: output, shape index: {}]
  %s5 = sld [smem:[#allocation0]]
  $region49: #{generator_forward.7} parent=0
    _
  %s7 = ssub.s32 1, %s5
  %s8 = scalar_select 0, %s7, %s5
  loop: start=0, step=1, limit=4
  $region2: #{generator_forward.7} parent=0 // loop_pre_header
    _
  $region3: #{generator_forward.7} parent=0 // loop_header
    %s10 = sphi 0, %s14
    %p11 = scmp.ge.s32.totalorder %s10, 4
    %s17 = sphi 0, %s29
    %s18 = sphi 0, %s25
    %s19 = sphi 0, %s17
    %s20 = sphi 0, %s18
    %s21 = sphi 0, %s19
    %s22 = sphi 0, %s20
    %s32 = sphi 0, %s34
    %s35 = sphi 0, %s32
    %s36 = sphi 0, %s35
    %s52 = sphi 0, %s36
    %s58 = sphi 0, %s60
    %s61 = sphi 0, %s58
    %s62 = sphi 0, %s61
    %s78 = sphi 0, %s62
    %s84 = sphi 0, %s86
    %s87 = sphi 0, %s84
    %s88 = sphi 0, %s87
    %s104 = sphi 0, %s88
    %s110 = sphi 0, %s112
    %s113 = sphi 0, %s110
    %s114 = sphi 0, %s113
    %s130 = sphi 0, %s114
    %s138 = sphi 0, %s140
    %s141 = sphi 0, %s138
    %s142 = sphi 0, %s141
    %s158 = sphi 0, %s142
  $region4: #{generator_forward.7} parent=0 // loop_header_branch
    %13 = sbr.rel (%p11) target = $region8
  $region5: #{generator_forward.7} parent=0 // loop_body
    %s15 = ssub.s32 %s10, 1
    %s16 = ssub.s32 %s10, 2
    %s23 = sadd.s32 1, %s18
    %p24 = scmp.ge.s32.totalorder %s23, 1
    %s25 = scalar_select %p24, 0, %s23
    %s26 = sadd.s32 1, %s17
    %s27 = scalar_select %p24, %s26, %s17
    %p28 = scmp.ge.s32.totalorder %s27, 2
    %s29 = scalar_select %p28, 0, %s27
    %s30 = ssub.s32 %s17, %s29
    %p31 = scmp.eq.s32.totalorder %s30, 0
    %s33 = sadd.s32 %s32, 1
    %s34 = scalar_select %p31, %s32, %s33
    %p37 = pneg %p31
    %p38 = scmp.eq.s32.totalorder %s10, 1
    %p39 = por %p37, %p38
    %p40 = scmp.ne.s32.totalorder %s32, %s35
    %p41 = scmp.eq.s32.totalorder %s10, 0
    %p42 = por %p40, %p41
    %p43 = scmp.ne.s32.totalorder %s32, %s35
    %p44 = scmp.eq.s32.totalorder %s15, 1
    %p45 = por %p43, %p44
    %p46 = scmp.ne.s32.totalorder %s35, %s36
    %p47 = scmp.eq.s32.totalorder %s15, 0
    %p48 = por %p46, %p47
    %p49 = scmp.ne.s32.totalorder %s35, %s36
    %p50 = scmp.eq.s32.totalorder %s16, 1
    %p51 = por %p49, %p50
    %p53 = scmp.ne.s32.totalorder %s36, %s52
    %p54 = scmp.eq.s32.totalorder %s16, 0
    %p55 = por %p53, %p54
    %s56 = ssub.s32 %s18, %s25
    %p57 = scmp.eq.s32.totalorder %s56, 0
    %s59 = sadd.s32 %s58, 1
    %s60 = scalar_select %p57, %s58, %s59
    %p63 = pneg %p57
    %p64 = scmp.eq.s32.totalorder %s10, 1
    %p65 = por %p63, %p64
    %p66 = scmp.ne.s32.totalorder %s58, %s61
    %p67 = scmp.eq.s32.totalorder %s10, 0
    %p68 = por %p66, %p67
    %p69 = scmp.ne.s32.totalorder %s58, %s61
    %p70 = scmp.eq.s32.totalorder %s15, 1
    %p71 = por %p69, %p70
    %p72 = scmp.ne.s32.totalorder %s61, %s62
    %p73 = scmp.eq.s32.totalorder %s15, 0
    %p74 = por %p72, %p73
    %p75 = scmp.ne.s32.totalorder %s61, %s62
    %p76 = scmp.eq.s32.totalorder %s16, 1
    %p77 = por %p75, %p76
    %p79 = scmp.ne.s32.totalorder %s62, %s78
    %p80 = scmp.eq.s32.totalorder %s16, 0
    %p81 = por %p79, %p80
    %s82 = ssub.s32 %s18, %s25
    %p83 = scmp.eq.s32.totalorder %s82, 0
    %s85 = sadd.s32 %s84, 1
    %s86 = scalar_select %p83, %s84, %s85
    %p89 = pneg %p83
    %p90 = scmp.eq.s32.totalorder %s10, 1
    %p91 = por %p89, %p90
    %p92 = scmp.ne.s32.totalorder %s84, %s87
    %p93 = scmp.eq.s32.totalorder %s10, 0
    %p94 = por %p92, %p93
    %p95 = scmp.ne.s32.totalorder %s84, %s87
    %p96 = scmp.eq.s32.totalorder %s15, 1
    %p97 = por %p95, %p96
    %p98 = scmp.ne.s32.totalorder %s87, %s88
    %p99 = scmp.eq.s32.totalorder %s15, 0
    %p100 = por %p98, %p99
    %p101 = scmp.ne.s32.totalorder %s87, %s88
    %p102 = scmp.eq.s32.totalorder %s16, 1
    %p103 = por %p101, %p102
    %p105 = scmp.ne.s32.totalorder %s88, %s104
    %p106 = scmp.eq.s32.totalorder %s16, 0
    %p107 = por %p105, %p106
    %s108 = ssub.s32 %s18, %s25
    %p109 = scmp.eq.s32.totalorder %s108, 0
    %s111 = sadd.s32 %s110, 1
    %s112 = scalar_select %p109, %s110, %s111
    %p115 = pneg %p109
    %p116 = scmp.eq.s32.totalorder %s10, 1
    %p117 = por %p115, %p116
    %p118 = scmp.ne.s32.totalorder %s110, %s113
    %p119 = scmp.eq.s32.totalorder %s10, 0
    %p120 = por %p118, %p119
    %p121 = scmp.ne.s32.totalorder %s110, %s113
    %p122 = scmp.eq.s32.totalorder %s15, 1
    %p123 = por %p121, %p122
    %p124 = scmp.ne.s32.totalorder %s113, %s114
    %p125 = scmp.eq.s32.totalorder %s15, 0
    %p126 = por %p124, %p125
    %p127 = scmp.ne.s32.totalorder %s113, %s114
    %p128 = scmp.eq.s32.totalorder %s16, 1
    %p129 = por %p127, %p128
    %p131 = scmp.ne.s32.totalorder %s114, %s130
    %p132 = scmp.eq.s32.totalorder %s16, 0
    %p133 = por %p131, %p132
    %s134 = ssub.s32 %s17, %s29
    %s135 = ssub.s32 %s18, %s25
    %s136 = sor.u32 %s134, %s135
    %p137 = scmp.eq.s32.totalorder %s136, 0
    %s139 = sadd.s32 %s138, 1
    %s140 = scalar_select %p137, %s138, %s139
    %p143 = pneg %p137
    %p144 = scmp.eq.s32.totalorder %s10, 1
    %p145 = por %p143, %p144
    %p146 = scmp.ne.s32.totalorder %s138, %s141
    %p147 = scmp.eq.s32.totalorder %s10, 0
    %p148 = por %p146, %p147
    %p149 = scmp.ne.s32.totalorder %s138, %s141
    %p150 = scmp.eq.s32.totalorder %s15, 1
    %p151 = por %p149, %p150
    %p152 = scmp.ne.s32.totalorder %s141, %s142
    %p153 = scmp.eq.s32.totalorder %s15, 0
    %p154 = por %p152, %p153
    %p155 = scmp.ne.s32.totalorder %s141, %s142
    %p156 = scmp.eq.s32.totalorder %s16, 1
    %p157 = por %p155, %p156
    %p159 = scmp.ne.s32.totalorder %s142, %s158
    %p160 = scmp.eq.s32.totalorder %s16, 0
    %p161 = por %p159, %p160
    %p162 = scmp.le.s32.totalorder 1, %s10
    %p163 = scmp.lt.s32.totalorder %s10, 3
    %p164 = pnand %p162, %p163
    %p165 = pneg %p164
    // Predicated region
    $region9: #{generator_forward.7} parent=5 // pred_check
      _
    $region10: #{generator_forward.7} parent=5 // pred_check_branch
      %167 = sbr.rel (%p164) target = $region12
    $region11: #{generator_forward.7} parent=5 // pred_region
      %s168 = ssub.s32 %s10, 1
      // Predicated region
      $region13: #{generator_forward.7} parent=11 // pred_check
        %p169 = pneg %p74
      $region14: #{generator_forward.7} parent=11 // pred_check_branch
        %171 = sbr.rel (%p169) target = $region16
      $region15: #{generator_forward.7} parent=11 // pred_region
        %p172 = scmp.lt.s32.totalorder %s20, 0
        %s173 = scalar_select %p172, %s20, 0
        %s174 = smul.addr %s173, 4
        %s175 = scalar_lea.vmem %s1, %s174
      $region16: #{generator_forward.7} parent=11 // pred_fallthru
        _
      // Predicated region
      $region17: #{generator_forward.7} parent=11 // pred_check
        %p176 = pneg %p100
      $region18: #{generator_forward.7} parent=11 // pred_check_branch
        %178 = sbr.rel (%p176) target = $region20
      $region19: #{generator_forward.7} parent=11 // pred_region
        %p179 = scmp.lt.s32.totalorder %s20, 0
        %s180 = scalar_select %p179, %s20, 0
        %s181 = scalar_lea.vmem %s2, %s180
      $region20: #{generator_forward.7} parent=11 // pred_fallthru
        _
      // Predicated region
      $region21: #{generator_forward.7} parent=11 // pred_check
        %p182 = pneg %p126
      $region22: #{generator_forward.7} parent=11 // pred_check_branch
        %184 = sbr.rel (%p182) target = $region24
      $region23: #{generator_forward.7} parent=11 // pred_region
        %p185 = scmp.lt.s32.totalorder %s20, 0
        %s186 = scalar_select %p185, %s20, 0
        %s187 = scalar_lea.vmem %s3, %s186
      $region24: #{generator_forward.7} parent=11 // pred_fallthru
        _
    $region12: #{generator_forward.7} parent=5 // pred_fallthru
      _
    %p188 = scmp.lt.s32.totalorder %s10, 2
    // Predicated region
    $region25: #{generator_forward.7} parent=5 // pred_check
      %p189 = pneg %p188
    $region26: #{generator_forward.7} parent=5 // pred_check_branch
      %191 = sbr.rel (%p189) target = $region28
    $region27: #{generator_forward.7} parent=5 // pred_region
      // Predicated region
      $region29: #{generator_forward.7} parent=27 // pred_check
        %p192 = pneg %p42
      $region30: #{generator_forward.7} parent=27 // pred_check_branch
        %194 = sbr.rel (%p192) target = $region32
      $region31: #{generator_forward.7} parent=27 // pred_region
        %s195 = smul.u32 32, %s17
        %p196 = scmp.lt.s32.totalorder %s195, 63
        %s197 = scalar_select %p196, %s195, 63
        %s198 = smul.addr %s197, 2
        %s199 = smul.addr %s198, 4
        %s200 = scalar_lea.vmem %s0, %s199
        %s201 = smul.u32 32, %s17
      $region32: #{generator_forward.7} parent=27 // pred_fallthru
        _
    $region28: #{generator_forward.7} parent=5 // pred_fallthru
      _
    %p202 = scmp.le.s32.totalorder 1, %s10
    %p203 = scmp.lt.s32.totalorder %s10, 3
    %p204 = pnand %p202, %p203
    %p205 = pneg %p204
    // Predicated region
    $region33: #{generator_forward.7} parent=5 // pred_check
      _
    $region34: #{generator_forward.7} parent=5 // pred_check_branch
      %207 = sbr.rel (%p204) target = $region36
    $region35: #{generator_forward.7} parent=5 // pred_region
      %s208 = ssub.s32 %s10, 1
      %s209 = smul.u32 32, %s19
      %p210 = scmp.lt.s32.totalorder %s209, 63
      %s211 = scalar_select %p210, %s209, 63
      %s212 = smul.addr %s211, 2
      %s213 = smul.addr %s212, 4
      %s214 = scalar_lea.vmem %s0, %s213
      %p215 = pneg %p48
      %p216 = pneg %p45
      %p217 = scmp.lt.s32.totalorder %s20, 0
      %s218 = scalar_select %p217, %s20, 0
      %s219 = smul.addr %s218, 4
      %s220 = scalar_lea.vmem %s1, %s219
      %p221 = pneg %p74
      %p222 = pneg %p71
      %p223 = scmp.lt.s32.totalorder %s20, 0
      %s224 = scalar_select %p223, %s20, 0
      %s225 = scalar_lea.vmem %s2, %s224
      %p226 = pneg %p100
      %p227 = pneg %p97
      %p228 = scmp.lt.s32.totalorder %s20, 0
      %s229 = scalar_select %p228, %s20, 0
      %s230 = scalar_lea.vmem %s3, %s229
      %p231 = pneg %p126
      %p232 = pneg %p123
      %p233 = pneg %p154
      %p234 = pneg %p151
      %s235 = smul.u32 32, %s19
      %p236 = scmp.lt.s32.totalorder %s235, 63
      %s237 = scalar_select %p236, %s235, 63
      %p238 = scmp.lt.s32.totalorder %s20, 0
      %s239 = scalar_select %p238, %s20, 0
      %s240 = sadd.s32 %s239, %s237
      %s241 = smul.addr %s240, 4
      %s242 = scalar_lea.vmem %s4, %s241
      %s243 = smul.u32 32, %s19
      %p244 = scmp.lt.s32.totalorder %s243, 63
      %s245 = scalar_select %p244, %s243, 63
      %s246 = smul.addr %s245, 2
      %s247 = smul.addr %s246, 4
      %s248 = scalar_lea.vmem %s0, %s247
      %s249 = smul.u32 32, %s19
      %p250 = scmp.lt.s32.totalorder %s20, 0
      %s251 = scalar_select %p250, %s20, 0
      %s252 = smul.addr %s251, 4
      %s253 = scalar_lea.vmem %s1, %s252
      %p254 = scmp.lt.s32.totalorder %s20, 0
      %s255 = scalar_select %p254, %s20, 0
      %s256 = scalar_lea.vmem %s2, %s255
      %p257 = scmp.lt.s32.totalorder %s20, 0
      %s258 = scalar_select %p257, %s20, 0
      %s259 = scalar_lea.vmem %s3, %s258
      %s260 = smul.u32 32, %s19
      %p261 = scmp.lt.s32.totalorder %s260, 63
      %s262 = scalar_select %p261, %s260, 63
      %p263 = scmp.lt.s32.totalorder %s20, 0
      %s264 = scalar_select %p263, %s20, 0
      %s265 = sadd.s32 %s264, %s262
      %s266 = smul.addr %s265, 4
      %s267 = scalar_lea.vmem %s4, %s266
      %s268 = smul.u32 32, %s19
      %v270 = vld [vmem:[%s248] sm:$0xff]
      %v271 = vld [vmem:[%s248 + $0x8] sm:$0xff]
      %v272 = vld [vmem:[%s248 + $0x10] sm:$0xff]
      %v273 = vld [vmem:[%s248 + $0x18] sm:$0xff]
      %v274 = vld [vmem:[%s248 + $0x20] sm:$0xff]
      %v275 = vld [vmem:[%s248 + $0x28] sm:$0xff]
      %v276 = vld [vmem:[%s248 + $0x30] sm:$0xff]
      %v277 = vld [vmem:[%s248 + $0x38] sm:$0xff]
      %v278 = vld [vmem:[%s248 + $0x40] sm:$0xff]
      %v279 = vld [vmem:[%s248 + $0x48] sm:$0xff]
      %v280 = vld [vmem:[%s248 + $0x50] sm:$0xff]
      %v281 = vld [vmem:[%s248 + $0x58] sm:$0xff]
      %v282 = vld [vmem:[%s248 + $0x60] sm:$0xff]
      %v283 = vld [vmem:[%s248 + $0x68] sm:$0xff]
      %v284 = vld [vmem:[%s248 + $0x70] sm:$0xff]
      %v285 = vld [vmem:[%s248 + $0x78] sm:$0xff]
      %v286 = vld [vmem:[%s248 + $0x80] sm:$0xff]
      %v287 = vld [vmem:[%s248 + $0x88] sm:$0xff]
      %v288 = vld [vmem:[%s248 + $0x90] sm:$0xff]
      %v289 = vld [vmem:[%s248 + $0x98] sm:$0xff]
      %v290 = vld [vmem:[%s248 + $0xa0] sm:$0xff]
      %v291 = vld [vmem:[%s248 + $0xa8] sm:$0xff]
      %v292 = vld [vmem:[%s248 + $0xb0] sm:$0xff]
      %v293 = vld [vmem:[%s248 + $0xb8] sm:$0xff]
      %v294 = vld [vmem:[%s248 + $0xc0] sm:$0xff]
      %v295 = vld [vmem:[%s248 + $0xc8] sm:$0xff]
      %v296 = vld [vmem:[%s248 + $0xd0] sm:$0xff]
      %v297 = vld [vmem:[%s248 + $0xd8] sm:$0xff]
      %v298 = vld [vmem:[%s248 + $0xe0] sm:$0xff]
      %v299 = vld [vmem:[%s248 + $0xe8] sm:$0xff]
      %v300 = vld [vmem:[%s248 + $0xf0] sm:$0xff]
      %v301 = vld [vmem:[%s248 + $0xf8] sm:$0xff]
      %v302 = vld [vmem:[%s253] sm:$0xf]
      %v303 = vld [vmem:[%s253 + $0x4] sm:$0xf]
      %v304 = vld [vmem:[%s253 + $0x8] sm:$0xf]
      %v305 = vld [vmem:[%s253 + $0xc] sm:$0xf]
      %v306 = vld [vmem:[%s253 + $0x10] sm:$0xf]
      %v307 = vld [vmem:[%s253 + $0x14] sm:$0xf]
      %v308 = vld [vmem:[%s253 + $0x18] sm:$0xf]
      %v309 = vld [vmem:[%s253 + $0x1c] sm:$0xf]
      %v310 = vld [vmem:[%s253 + $0x20] sm:$0xf]
      %v311 = vld [vmem:[%s253 + $0x24] sm:$0xf]
      %v312 = vld [vmem:[%s253 + $0x28] sm:$0xf]
      %v313 = vld [vmem:[%s253 + $0x2c] sm:$0xf]
      %v314 = vld [vmem:[%s253 + $0x30] sm:$0xf]
      %v315 = vld [vmem:[%s253 + $0x34] sm:$0xf]
      %v316 = vld [vmem:[%s253 + $0x38] sm:$0xf]
      %v317 = vld [vmem:[%s253 + $0x3c] sm:$0xf]
      %v318 = vld [vmem:[%s253 + $0x40] sm:$0xf]
      %v319 = vld [vmem:[%s253 + $0x44] sm:$0xf]
      %v320 = vld [vmem:[%s253 + $0x48] sm:$0xf]
      %v321 = vld [vmem:[%s253 + $0x4c] sm:$0xf]
      %v354 = vunpack.c.l.b16 %v270
      %v355 = vunpack.c.h.b16 %v270
      %v356 = vunpack.c.l.b16 %v271
      %v357 = vunpack.c.h.b16 %v271
      %v358 = vunpack.c.l.b16 %v272
      %v359 = vunpack.c.h.b16 %v272
      %v360 = vunpack.c.l.b16 %v273
      %v361 = vunpack.c.h.b16 %v273
      %v362 = vunpack.c.l.b16 %v274
      %v363 = vunpack.c.h.b16 %v274
      %v364 = vunpack.c.l.b16 %v275
      %v365 = vunpack.c.h.b16 %v275
      %v366 = vunpack.c.l.b16 %v276
      %v367 = vunpack.c.h.b16 %v276
      %v368 = vunpack.c.l.b16 %v277
      %v369 = vunpack.c.h.b16 %v277
      %v370 = vunpack.c.l.b16 %v278
      %v371 = vunpack.c.h.b16 %v278
      %v372 = vunpack.c.l.b16 %v279
      %v373 = vunpack.c.h.b16 %v279
      %v374 = vunpack.c.l.b16 %v280
      %v375 = vunpack.c.h.b16 %v280
      %v376 = vunpack.c.l.b16 %v281
      %v377 = vunpack.c.h.b16 %v281
      %v378 = vunpack.c.l.b16 %v282
      %v379 = vunpack.c.h.b16 %v282
      %v380 = vunpack.c.l.b16 %v283
      %v381 = vunpack.c.h.b16 %v283
      %v382 = vunpack.c.l.b16 %v284
      %v383 = vunpack.c.h.b16 %v284
      %v384 = vunpack.c.l.b16 %v285
      %v385 = vunpack.c.h.b16 %v285
      %v386 = vunpack.c.l.b16 %v286
      %v387 = vunpack.c.h.b16 %v286
      %v388 = vunpack.c.l.b16 %v287
      %v389 = vunpack.c.h.b16 %v287
      %v390 = vunpack.c.l.b16 %v288
      %v391 = vunpack.c.h.b16 %v288
      %v392 = vunpack.c.l.b16 %v289
      %v393 = vunpack.c.h.b16 %v289
      %v394 = vunpack.c.l.b16 %v290
      %v395 = vunpack.c.h.b16 %v290
      %v396 = vunpack.c.l.b16 %v291
      %v397 = vunpack.c.h.b16 %v291
      %v398 = vunpack.c.l.b16 %v292
      %v399 = vunpack.c.h.b16 %v292
      %v400 = vunpack.c.l.b16 %v293
      %v401 = vunpack.c.h.b16 %v293
      %v402 = vunpack.c.l.b16 %v294
      %v403 = vunpack.c.h.b16 %v294
      %v404 = vunpack.c.l.b16 %v295
      %v405 = vunpack.c.h.b16 %v295
      %v406 = vunpack.c.l.b16 %v296
      %v407 = vunpack.c.h.b16 %v296
      %v408 = vunpack.c.l.b16 %v297
      %v409 = vunpack.c.h.b16 %v297
      %v410 = vunpack.c.l.b16 %v298
      %v411 = vunpack.c.h.b16 %v298
      %v412 = vunpack.c.l.b16 %v299
      %v413 = vunpack.c.h.b16 %v299
      %v414 = vunpack.c.l.b16 %v300
      %v415 = vunpack.c.h.b16 %v300
      %v416 = vunpack.c.l.b16 %v301
      %v417 = vunpack.c.h.b16 %v301
      %v418 = vpack.c.b16 %v356, %v354
      %v419 = vpack.c.b16 %v357, %v355
      %v420 = vpack.c.b16 %v360, %v358
      %v421 = vpack.c.b16 %v361, %v359
      %v422 = vpack.c.b16 %v364, %v362
      %v423 = vpack.c.b16 %v365, %v363
      %v424 = vpack.c.b16 %v368, %v366
      %v425 = vpack.c.b16 %v369, %v367
      %v426 = vpack.c.b16 %v372, %v370
      %v427 = vpack.c.b16 %v373, %v371
      %v428 = vpack.c.b16 %v376, %v374
      %v429 = vpack.c.b16 %v377, %v375
      %v430 = vpack.c.b16 %v380, %v378
      %v431 = vpack.c.b16 %v381, %v379
      %v432 = vpack.c.b16 %v384, %v382
      %v433 = vpack.c.b16 %v385, %v383
      %v434 = vpack.c.b16 %v388, %v386
      %v435 = vpack.c.b16 %v389, %v387
      %v436 = vpack.c.b16 %v392, %v390
      %v437 = vpack.c.b16 %v393, %v391
      %v438 = vpack.c.b16 %v396, %v394
      %v439 = vpack.c.b16 %v397, %v395
      %v440 = vpack.c.b16 %v400, %v398
      %v441 = vpack.c.b16 %v401, %v399
      %v442 = vpack.c.b16 %v404, %v402
      %v443 = vpack.c.b16 %v405, %v403
      %v444 = vpack.c.b16 %v408, %v406
      %v445 = vpack.c.b16 %v409, %v407
      %v446 = vpack.c.b16 %v412, %v410
      %v447 = vpack.c.b16 %v413, %v411
      %v448 = vpack.c.b16 %v416, %v414
      %v449 = vpack.c.b16 %v417, %v415
      %v486 = vunpack.c.l.b16 %v302
      %v487 = vunpack.c.l.b16 %v303
      %v488 = vunpack.c.l.b16 %v304
      %v489 = vunpack.c.l.b16 %v305
      %v490 = vunpack.c.l.b16 %v306
      %v491 = vunpack.c.l.b16 %v307
      %v492 = vunpack.c.l.b16 %v308
      %v493 = vunpack.c.l.b16 %v309
      %v494 = vunpack.c.l.b16 %v310
      %v495 = vunpack.c.l.b16 %v311
      %v496 = vunpack.c.l.b16 %v312
      %v497 = vunpack.c.l.b16 %v313
      %v498 = vunpack.c.l.b16 %v314
      %v499 = vunpack.c.l.b16 %v315
      %v500 = vunpack.c.l.b16 %v316
      %v501 = vunpack.c.l.b16 %v317
      %v502 = vunpack.c.l.b16 %v318
      %v503 = vunpack.c.l.b16 %v319
      %v504 = vunpack.c.l.b16 %v320
      %v505 = vunpack.c.l.b16 %v321
      %v506 = vpack.c.b16 %v487, %v486
      %v507 = vpack.c.b16 %v489, %v488
      %v508 = vpack.c.b16 %v491, %v490
      %v509 = vpack.c.b16 %v493, %v492
      %v510 = vpack.c.b16 %v495, %v494
      %v511 = vpack.c.b16 %v497, %v496
      %v512 = vpack.c.b16 %v499, %v498
      %v513 = vpack.c.b16 %v501, %v500
      %v514 = vpack.c.b16 %v503, %v502
      %v515 = vpack.c.b16 %v505, %v504
      %vm526 = vcmask 261120
      %v528 = vsel %vm526, %v419, 0
      %v531 = vsel %vm526, %v421, 0
      %v534 = vsel %vm526, %v423, 0
      %v537 = vsel %vm526, %v425, 0
      %v540 = vsel %vm526, %v427, 0
      %v543 = vsel %vm526, %v429, 0
      %v546 = vsel %vm526, %v431, 0
      %v549 = vsel %vm526, %v433, 0
      %v552 = vsel %vm526, %v435, 0
      %v555 = vsel %vm526, %v437, 0
      %v558 = vsel %vm526, %v439, 0
      %v561 = vsel %vm526, %v441, 0
      %v564 = vsel %vm526, %v443, 0
      %v567 = vsel %vm526, %v445, 0
      %v570 = vsel %vm526, %v447, 0
      %v573 = vsel %vm526, %v449, 0
      %575 = vmatpush.bf16.msra.mxu0 %v513
      %576 = vmatpush.bf16.msra.mxu0 %v512
      %577 = vmatpush.bf16.msra.mxu0 %v511
      %578 = vmatpush.bf16.msra.mxu0 %v510
      %579 = vmatpush.bf16.msra.mxu0 %v509
      %580 = vmatpush.bf16.msra.mxu0 %v508
      %581 = vmatpush.bf16.msra.mxu0 %v507
      %582 = vmatpush.bf16.msra.mxu0 %v506
      %583 = vmatmul.bf16.gmra.mxu0 %v418
      %v584 = vpop.f32.mrf.mxu0
      %v585 = vadd.f32 0.0, %v584
      %v586 = vpop.f32.mrf.mxu0
      %v587 = vadd.f32 0.0, %v586
      %588 = vmatmul.bf16.gmra.mxu0 %v420
      %v589 = vpop.f32.mrf.mxu0
      %v590 = vadd.f32 0.0, %v589
      %v591 = vpop.f32.mrf.mxu0
      %v592 = vadd.f32 0.0, %v591
      %593 = vmatmul.bf16.gmra.mxu0 %v422
      %v594 = vpop.f32.mrf.mxu0
      %v595 = vadd.f32 0.0, %v594
      %v596 = vpop.f32.mrf.mxu0
      %v597 = vadd.f32 0.0, %v596
      %598 = vmatmul.bf16.gmra.mxu0 %v424
      %v599 = vpop.f32.mrf.mxu0
      %v600 = vadd.f32 0.0, %v599
      %v601 = vpop.f32.mrf.mxu0
      %v602 = vadd.f32 0.0, %v601
      %603 = vmatmul.bf16.gmra.mxu0 %v426
      %v604 = vpop.f32.mrf.mxu0
      %v605 = vadd.f32 0.0, %v604
      %v606 = vpop.f32.mrf.mxu0
      %v607 = vadd.f32 0.0, %v606
      %608 = vmatmul.bf16.gmra.mxu0 %v428
      %v609 = vpop.f32.mrf.mxu0
      %v610 = vadd.f32 0.0, %v609
      %v611 = vpop.f32.mrf.mxu0
      %v612 = vadd.f32 0.0, %v611
      %613 = vmatmul.bf16.gmra.mxu0 %v430
      %v614 = vpop.f32.mrf.mxu0
      %v615 = vadd.f32 0.0, %v614
      %v616 = vpop.f32.mrf.mxu0
      %v617 = vadd.f32 0.0, %v616
      %618 = vmatmul.bf16.gmra.mxu0 %v432
      %v619 = vpop.f32.mrf.mxu0
      %v620 = vadd.f32 0.0, %v619
      %v621 = vpop.f32.mrf.mxu0
      %v622 = vadd.f32 0.0, %v621
      %623 = vmatmul.bf16.gmra.mxu0 %v434
      %v624 = vpop.f32.mrf.mxu0
      %v625 = vadd.f32 0.0, %v624
      %v626 = vpop.f32.mrf.mxu0
      %v627 = vadd.f32 0.0, %v626
      %628 = vmatmul.bf16.gmra.mxu0 %v436
      %v629 = vpop.f32.mrf.mxu0
      %v630 = vadd.f32 0.0, %v629
      %v631 = vpop.f32.mrf.mxu0
      %v632 = vadd.f32 0.0, %v631
      %633 = vmatmul.bf16.gmra.mxu0 %v438
      %v634 = vpop.f32.mrf.mxu0
      %v635 = vadd.f32 0.0, %v634
      %v636 = vpop.f32.mrf.mxu0
      %v637 = vadd.f32 0.0, %v636
      %638 = vmatmul.bf16.gmra.mxu0 %v440
      %v639 = vpop.f32.mrf.mxu0
      %v640 = vadd.f32 0.0, %v639
      %v641 = vpop.f32.mrf.mxu0
      %v642 = vadd.f32 0.0, %v641
      %643 = vmatmul.bf16.gmra.mxu0 %v442
      %v644 = vpop.f32.mrf.mxu0
      %v645 = vadd.f32 0.0, %v644
      %v646 = vpop.f32.mrf.mxu0
      %v647 = vadd.f32 0.0, %v646
      %648 = vmatmul.bf16.gmra.mxu0 %v444
      %v649 = vpop.f32.mrf.mxu0
      %v650 = vadd.f32 0.0, %v649
      %v651 = vpop.f32.mrf.mxu0
      %v652 = vadd.f32 0.0, %v651
      %653 = vmatmul.bf16.gmra.mxu0 %v446
      %v654 = vpop.f32.mrf.mxu0
      %v655 = vadd.f32 0.0, %v654
      %v656 = vpop.f32.mrf.mxu0
      %v657 = vadd.f32 0.0, %v656
      %658 = vmatmul.bf16.gmra.mxu0 %v448
      %v659 = vpop.f32.mrf.mxu0
      %v660 = vadd.f32 0.0, %v659
      %v661 = vpop.f32.mrf.mxu0
      %v662 = vadd.f32 0.0, %v661
      %663 = vdwg.mxu0
      %664 = vmatpush.bf16.msra.mxu0 0
      %665 = vmatpush.bf16.msra.mxu0 0
      %666 = vmatpush.bf16.msra.mxu0 0
      %667 = vmatpush.bf16.msra.mxu0 0
      %668 = vmatpush.bf16.msra.mxu0 0
      %669 = vmatpush.bf16.msra.mxu0 0
      %670 = vmatpush.bf16.msra.mxu0 %v515
      %671 = vmatpush.bf16.msra.mxu0 %v514
      %672 = vmatmul.bf16.gmra.mxu0 %v528
      %v673 = vpop.f32.mrf.mxu0
      %v674 = vadd.f32 %v585, %v673
      %v675 = vpop.f32.mrf.mxu0
      %v676 = vadd.f32 %v587, %v675
      %677 = vmatmul.bf16.gmra.mxu0 %v531
      %v678 = vpop.f32.mrf.mxu0
      %v679 = vadd.f32 %v590, %v678
      %v680 = vpop.f32.mrf.mxu0
      %v681 = vadd.f32 %v592, %v680
      %682 = vmatmul.bf16.gmra.mxu0 %v534
      %v683 = vpop.f32.mrf.mxu0
      %v684 = vadd.f32 %v595, %v683
      %v685 = vpop.f32.mrf.mxu0
      %v686 = vadd.f32 %v597, %v685
      %687 = vmatmul.bf16.gmra.mxu0 %v537
      %v688 = vpop.f32.mrf.mxu0
      %v689 = vadd.f32 %v600, %v688
      %v690 = vpop.f32.mrf.mxu0
      %v691 = vadd.f32 %v602, %v690
      %692 = vmatmul.bf16.gmra.mxu0 %v540
      %v693 = vpop.f32.mrf.mxu0
      %v694 = vadd.f32 %v605, %v693
      %v695 = vpop.f32.mrf.mxu0
      %v696 = vadd.f32 %v607, %v695
      %697 = vmatmul.bf16.gmra.mxu0 %v543
      %v698 = vpop.f32.mrf.mxu0
      %v699 = vadd.f32 %v610, %v698
      %v700 = vpop.f32.mrf.mxu0
      %v701 = vadd.f32 %v612, %v700
      %702 = vmatmul.bf16.gmra.mxu0 %v546
      %v703 = vpop.f32.mrf.mxu0
      %v704 = vadd.f32 %v615, %v703
      %v705 = vpop.f32.mrf.mxu0
      %v706 = vadd.f32 %v617, %v705
      %707 = vmatmul.bf16.gmra.mxu0 %v549
      %v708 = vpop.f32.mrf.mxu0
      %v709 = vadd.f32 %v620, %v708
      %v710 = vpop.f32.mrf.mxu0
      %v711 = vadd.f32 %v622, %v710
      %712 = vmatmul.bf16.gmra.mxu0 %v552
      %v713 = vpop.f32.mrf.mxu0
      %v714 = vadd.f32 %v625, %v713
      %v715 = vpop.f32.mrf.mxu0
      %v716 = vadd.f32 %v627, %v715
      %717 = vmatmul.bf16.gmra.mxu0 %v555
      %v718 = vpop.f32.mrf.mxu0
      %v719 = vadd.f32 %v630, %v718
      %v720 = vpop.f32.mrf.mxu0
      %v721 = vadd.f32 %v632, %v720
      %722 = vmatmul.bf16.gmra.mxu0 %v558
      %v723 = vpop.f32.mrf.mxu0
      %v724 = vadd.f32 %v635, %v723
      %v725 = vpop.f32.mrf.mxu0
      %v726 = vadd.f32 %v637, %v725
      %727 = vmatmul.bf16.gmra.mxu0 %v561
      %v728 = vpop.f32.mrf.mxu0
      %v729 = vadd.f32 %v640, %v728
      %v730 = vpop.f32.mrf.mxu0
      %v731 = vadd.f32 %v642, %v730
      %732 = vmatmul.bf16.gmra.mxu0 %v564
      %v733 = vpop.f32.mrf.mxu0
      %v734 = vadd.f32 %v645, %v733
      %v735 = vpop.f32.mrf.mxu0
      %v736 = vadd.f32 %v647, %v735
      %737 = vmatmul.bf16.gmra.mxu0 %v567
      %v738 = vpop.f32.mrf.mxu0
      %v739 = vadd.f32 %v650, %v738
      %v740 = vpop.f32.mrf.mxu0
      %v741 = vadd.f32 %v652, %v740
      %742 = vmatmul.bf16.gmra.mxu0 %v570
      %v743 = vpop.f32.mrf.mxu0
      %v744 = vadd.f32 %v655, %v743
      %v745 = vpop.f32.mrf.mxu0
      %v746 = vadd.f32 %v657, %v745
      %747 = vmatmul.bf16.gmra.mxu0 %v573
      %v748 = vpop.f32.mrf.mxu0
      %v749 = vadd.f32 %v660, %v748
      %v750 = vpop.f32.mrf.mxu0
      %v751 = vadd.f32 %v662, %v750
      %752 = vdwg.mxu0
      %v753 = vld [vmem:[%s256] sm:$0x1]
      %v755 = vperm.slane %v753, 0
      %v757 = vmul.f32 %v674, %v755
      %v758 = vmul.f32 %v676, %v755
      %v759 = vmul.f32 %v679, %v755
      %v760 = vmul.f32 %v681, %v755
      %v761 = vmul.f32 %v684, %v755
      %v762 = vmul.f32 %v686, %v755
      %v763 = vmul.f32 %v689, %v755
      %v764 = vmul.f32 %v691, %v755
      %v765 = vmul.f32 %v694, %v755
      %v766 = vmul.f32 %v696, %v755
      %v767 = vmul.f32 %v699, %v755
      %v768 = vmul.f32 %v701, %v755
      %v769 = vmul.f32 %v704, %v755
      %v770 = vmul.f32 %v706, %v755
      %v771 = vmul.f32 %v709, %v755
      %v772 = vmul.f32 %v711, %v755
      %v773 = vmul.f32 %v714, %v755
      %v774 = vmul.f32 %v716, %v755
      %v775 = vmul.f32 %v719, %v755
      %v776 = vmul.f32 %v721, %v755
      %v777 = vmul.f32 %v724, %v755
      %v778 = vmul.f32 %v726, %v755
      %v779 = vmul.f32 %v729, %v755
      %v780 = vmul.f32 %v731, %v755
      %v781 = vmul.f32 %v734, %v755
      %v782 = vmul.f32 %v736, %v755
      %v783 = vmul.f32 %v739, %v755
      %v784 = vmul.f32 %v741, %v755
      %v785 = vmul.f32 %v744, %v755
      %v786 = vmul.f32 %v746, %v755
      %v787 = vmul.f32 %v749, %v755
      %v788 = vmul.f32 %v751, %v755
      %v789 = vld [vmem:[%s259] sm:$0x1]
      %v791 = vperm.slane %v789, 0
      %v793 = vadd.f32 %v757, %v791
      %v794 = vadd.f32 %v758, %v791
      %v795 = vadd.f32 %v759, %v791
      %v796 = vadd.f32 %v760, %v791
      %v797 = vadd.f32 %v761, %v791
      %v798 = vadd.f32 %v762, %v791
      %v799 = vadd.f32 %v763, %v791
      %v800 = vadd.f32 %v764, %v791
      %v801 = vadd.f32 %v765, %v791
      %v802 = vadd.f32 %v766, %v791
      %v803 = vadd.f32 %v767, %v791
      %v804 = vadd.f32 %v768, %v791
      %v805 = vadd.f32 %v769, %v791
      %v806 = vadd.f32 %v770, %v791
      %v807 = vadd.f32 %v771, %v791
      %v808 = vadd.f32 %v772, %v791
      %v809 = vadd.f32 %v773, %v791
      %v810 = vadd.f32 %v774, %v791
      %v811 = vadd.f32 %v775, %v791
      %v812 = vadd.f32 %v776, %v791
      %v813 = vadd.f32 %v777, %v791
      %v814 = vadd.f32 %v778, %v791
      %v815 = vadd.f32 %v779, %v791
      %v816 = vadd.f32 %v780, %v791
      %v817 = vadd.f32 %v781, %v791
      %v818 = vadd.f32 %v782, %v791
      %v819 = vadd.f32 %v783, %v791
      %v820 = vadd.f32 %v784, %v791
      %v821 = vadd.f32 %v785, %v791
      %v822 = vadd.f32 %v786, %v791
      %v823 = vadd.f32 %v787, %v791
      %v824 = vadd.f32 %v788, %v791
      %v825 = vmax.f32 %v793, 0.0
      %v826 = vmax.f32 %v794, 0.0
      %v827 = vmax.f32 %v795, 0.0
      %v828 = vmax.f32 %v796, 0.0
      %v829 = vmax.f32 %v797, 0.0
      %v830 = vmax.f32 %v798, 0.0
      %v831 = vmax.f32 %v799, 0.0
      %v832 = vmax.f32 %v800, 0.0
      %v833 = vmax.f32 %v801, 0.0
      %v834 = vmax.f32 %v802, 0.0
      %v835 = vmax.f32 %v803, 0.0
      %v836 = vmax.f32 %v804, 0.0
      %v837 = vmax.f32 %v805, 0.0
      %v838 = vmax.f32 %v806, 0.0
      %v839 = vmax.f32 %v807, 0.0
      %v840 = vmax.f32 %v808, 0.0
      %v841 = vmax.f32 %v809, 0.0
      %v842 = vmax.f32 %v810, 0.0
      %v843 = vmax.f32 %v811, 0.0
      %v844 = vmax.f32 %v812, 0.0
      %v845 = vmax.f32 %v813, 0.0
      %v846 = vmax.f32 %v814, 0.0
      %v847 = vmax.f32 %v815, 0.0
      %v848 = vmax.f32 %v816, 0.0
      %v849 = vmax.f32 %v817, 0.0
      %v850 = vmax.f32 %v818, 0.0
      %v851 = vmax.f32 %v819, 0.0
      %v852 = vmax.f32 %v820, 0.0
      %v853 = vmax.f32 %v821, 0.0
      %v854 = vmax.f32 %v822, 0.0
      %v855 = vmax.f32 %v823, 0.0
      %v856 = vmax.f32 %v824, 0.0
      %v857 = vpack.c.bf16 %v825, %v825
      %v858 = vpack.c.bf16 %v826, %v826
      %v859 = vpack.c.bf16 %v827, %v827
      %v860 = vpack.c.bf16 %v828, %v828
      %v861 = vpack.c.bf16 %v829, %v829
      %v862 = vpack.c.bf16 %v830, %v830
      %v863 = vpack.c.bf16 %v831, %v831
      %v864 = vpack.c.bf16 %v832, %v832
      %v865 = vpack.c.bf16 %v833, %v833
      %v866 = vpack.c.bf16 %v834, %v834
      %v867 = vpack.c.bf16 %v835, %v835
      %v868 = vpack.c.bf16 %v836, %v836
      %v869 = vpack.c.bf16 %v837, %v837
      %v870 = vpack.c.bf16 %v838, %v838
      %v871 = vpack.c.bf16 %v839, %v839
      %v872 = vpack.c.bf16 %v840, %v840
      %v873 = vpack.c.bf16 %v841, %v841
      %v874 = vpack.c.bf16 %v842, %v842
      %v875 = vpack.c.bf16 %v843, %v843
      %v876 = vpack.c.bf16 %v844, %v844
      %v877 = vpack.c.bf16 %v845, %v845
      %v878 = vpack.c.bf16 %v846, %v846
      %v879 = vpack.c.bf16 %v847, %v847
      %v880 = vpack.c.bf16 %v848, %v848
      %v881 = vpack.c.bf16 %v849, %v849
      %v882 = vpack.c.bf16 %v850, %v850
      %v883 = vpack.c.bf16 %v851, %v851
      %v884 = vpack.c.bf16 %v852, %v852
      %v885 = vpack.c.bf16 %v853, %v853
      %v886 = vpack.c.bf16 %v854, %v854
      %v887 = vpack.c.bf16 %v855, %v855
      %v888 = vpack.c.bf16 %v856, %v856
      %889 = vst [vmem:[%s267] sm:$0xf] %v857
      %890 = vst [vmem:[%s267 + $0x4] sm:$0xf] %v858
      %891 = vst [vmem:[%s267 + $0x8] sm:$0xf] %v859
      %892 = vst [vmem:[%s267 + $0xc] sm:$0xf] %v860
      %893 = vst [vmem:[%s267 + $0x10] sm:$0xf] %v861
      %894 = vst [vmem:[%s267 + $0x14] sm:$0xf] %v862
      %895 = vst [vmem:[%s267 + $0x18] sm:$0xf] %v863
      %896 = vst [vmem:[%s267 + $0x1c] sm:$0xf] %v864
      %897 = vst [vmem:[%s267 + $0x20] sm:$0xf] %v865
      %898 = vst [vmem:[%s267 + $0x24] sm:$0xf] %v866
      %899 = vst [vmem:[%s267 + $0x28] sm:$0xf] %v867
      %900 = vst [vmem:[%s267 + $0x2c] sm:$0xf] %v868
      %901 = vst [vmem:[%s267 + $0x30] sm:$0xf] %v869
      %902 = vst [vmem:[%s267 + $0x34] sm:$0xf] %v870
      %903 = vst [vmem:[%s267 + $0x38] sm:$0xf] %v871
      %904 = vst [vmem:[%s267 + $0x3c] sm:$0xf] %v872
      %905 = vst [vmem:[%s267 + $0x40] sm:$0xf] %v873
      %906 = vst [vmem:[%s267 + $0x44] sm:$0xf] %v874
      %907 = vst [vmem:[%s267 + $0x48] sm:$0xf] %v875
      %908 = vst [vmem:[%s267 + $0x4c] sm:$0xf] %v876
      %909 = vst [vmem:[%s267 + $0x50] sm:$0xf] %v877
      %910 = vst [vmem:[%s267 + $0x54] sm:$0xf] %v878
      %911 = vst [vmem:[%s267 + $0x58] sm:$0xf] %v879
      %912 = vst [vmem:[%s267 + $0x5c] sm:$0xf] %v880
      %913 = vst [vmem:[%s267 + $0x60] sm:$0xf] %v881
      %914 = vst [vmem:[%s267 + $0x64] sm:$0xf] %v882
      %915 = vst [vmem:[%s267 + $0x68] sm:$0xf] %v883
      %916 = vst [vmem:[%s267 + $0x6c] sm:$0xf] %v884
      %917 = vst [vmem:[%s267 + $0x70] sm:$0xf] %v885
      %918 = vst [vmem:[%s267 + $0x74] sm:$0xf] %v886
      %919 = vst [vmem:[%s267 + $0x78] sm:$0xf] %v887
      %920 = vst [vmem:[%s267 + $0x7c] sm:$0xf] %v888
      %s921 = smul.u32 32, %s19
      %p922 = scmp.lt.s32.totalorder %s921, 63
      %s923 = scalar_select %p922, %s921, 63
      %p924 = scmp.lt.s32.totalorder %s20, 0
      %s925 = scalar_select %p924, %s20, 0
      %s926 = sadd.s32 %s925, %s923
      %s927 = smul.addr %s926, 4
      %s928 = scalar_lea.vmem %s4, %s927
      // Predicated region
      $region37: #{generator_forward.7} parent=35 // pred_check
        %p929 = pneg %p151
      $region38: #{generator_forward.7} parent=35 // pred_check_branch
        %931 = sbr.rel (%p929) target = $region40
      $region39: #{generator_forward.7} parent=35 // pred_region
        %s932 = smul.u32 32, %s19
      $region40: #{generator_forward.7} parent=35 // pred_fallthru
        _
    $region36: #{generator_forward.7} parent=5 // pred_fallthru
      _
    %p933 = scmp.le.s32.totalorder 2, %s10
    // Predicated region
    $region41: #{generator_forward.7} parent=5 // pred_check
      %p934 = pneg %p933
    $region42: #{generator_forward.7} parent=5 // pred_check_branch
      %936 = sbr.rel (%p934) target = $region44
    $region43: #{generator_forward.7} parent=5 // pred_region
      %s937 = ssub.s32 %s10, 2
      // Predicated region
      $region45: #{generator_forward.7} parent=43 // pred_check
        %p938 = pneg %p157
      $region46: #{generator_forward.7} parent=43 // pred_check_branch
        %940 = sbr.rel (%p938) target = $region48
      $region47: #{generator_forward.7} parent=43 // pred_region
        %s941 = smul.u32 32, %s21
        %p942 = scmp.lt.s32.totalorder %s941, 63
        %s943 = scalar_select %p942, %s941, 63
        %p944 = scmp.lt.s32.totalorder %s22, 0
        %s945 = scalar_select %p944, %s22, 0
        %s946 = sadd.s32 %s945, %s943
        %s947 = smul.addr %s946, 4
        %s948 = scalar_lea.vmem %s4, %s947
      $region48: #{generator_forward.7} parent=43 // pred_fallthru
        _
    $region44: #{generator_forward.7} parent=5 // pred_fallthru
      _
  $region6: #{generator_forward.7} parent=0 // loop_footer
    %s14 = sadd.s32 1, %s10
  $region7: #{generator_forward.7} parent=0 // loop_footer_branch
    %9 = sbr.rel target = $region3
  $region8: #{generator_forward.7} parent=0 // loop_exit
    _

// kernel: generator_forward.8
$region0: #{generator_forward.8}
  #allocation0 [shape = 'u32[]', space=smem, size = 0x4, offset = 0x4, fixed_abs, tag = 'smem constant byte address 0x4 - core index']
  #allocation1 [shape = 'u32[72,128]{1,0:T(1,128)}', space=vmem, size = 0x9000, scoped, tag = 'internal scratch']
  %s0 = inlined_call_operand.vmem [shape: bf16[128,288], index: 0, kind: input, shape index: {}]
  %s1 = inlined_call_operand.vmem [shape: bf16[288,128], index: 1, kind: input, shape index: {}]
  %s2 = inlined_call_operand.vmem [shape: f32[1,128], index: 2, kind: input, shape index: {}]
  %s3 = inlined_call_operand.vmem [shape: f32[1,128], index: 3, kind: input, shape index: {}]
  %s4 = inlined_call_operand.vmem [shape: bf16[128,128], index: 4, kind: output, shape index: {}]
  %s5 = sld [smem:[#allocation0]]
  $region26: #{generator_forward.8} parent=0
    _
  %s7 = ssub.s32 1, %s5
  %s8 = scalar_select 0, %s7, %s5
  // Predicated region
  $region2: #{generator_forward.8} parent=0 // pred_check
    _
  $region3: #{generator_forward.8} parent=0 // pred_check_branch
    %10 = sbr.rel (0) target = $region5
  $region4: #{generator_forward.8} parent=0 // pred_region
    _
  $region5: #{generator_forward.8} parent=0 // pred_fallthru
    _
  // Predicated region
  $region6: #{generator_forward.8} parent=0 // pred_check
    _
  $region7: #{generator_forward.8} parent=0 // pred_check_branch
    %12 = sbr.rel (0) target = $region9
  $region8: #{generator_forward.8} parent=0 // pred_region
    _
  $region9: #{generator_forward.8} parent=0 // pred_fallthru
    _
  // Predicated region
  $region10: #{generator_forward.8} parent=0 // pred_check
    _
  $region11: #{generator_forward.8} parent=0 // pred_check_branch
    %14 = sbr.rel (0) target = $region13
  $region12: #{generator_forward.8} parent=0 // pred_region
    _
  $region13: #{generator_forward.8} parent=0 // pred_fallthru
    _
  // Predicated region
  $region14: #{generator_forward.8} parent=0 // pred_check
    _
  $region15: #{generator_forward.8} parent=0 // pred_check_branch
    %16 = sbr.rel (0) target = $region17
  $region16: #{generator_forward.8} parent=0 // pred_region
    _
  $region17: #{generator_forward.8} parent=0 // pred_fallthru
    _
  %v18 = vld [vmem:[%s0] sm:$0xff]
  %v19 = vld [vmem:[%s0 + $0x8] sm:$0xf]
  %v20 = vld [vmem:[%s0 + $0xc] sm:$0xff]
  %v21 = vld [vmem:[%s0 + $0x14] sm:$0xf]
  %v22 = vld [vmem:[%s0 + $0x18] sm:$0xff]
  %v23 = vld [vmem:[%s0 + $0x20] sm:$0xf]
  %v24 = vld [vmem:[%s0 + $0x24] sm:$0xff]
  %v25 = vld [vmem:[%s0 + $0x2c] sm:$0xf]
  %v26 = vld [vmem:[%s0 + $0x30] sm:$0xff]
  %v27 = vld [vmem:[%s0 + $0x38] sm:$0xf]
  %v28 = vld [vmem:[%s0 + $0x3c] sm:$0xff]
  %v29 = vld [vmem:[%s0 + $0x44] sm:$0xf]
  %v30 = vld [vmem:[%s0 + $0x48] sm:$0xff]
  %v31 = vld [vmem:[%s0 + $0x50] sm:$0xf]
  %v32 = vld [vmem:[%s0 + $0x54] sm:$0xff]
  %v33 = vld [vmem:[%s0 + $0x5c] sm:$0xf]
  %v34 = vld [vmem:[%s0 + $0x60] sm:$0xff]
  %v35 = vld [vmem:[%s0 + $0x68] sm:$0xf]
  %v36 = vld [vmem:[%s0 + $0x6c] sm:$0xff]
  %v37 = vld [vmem:[%s0 + $0x74] sm:$0xf]
  %v38 = vld [vmem:[%s0 + $0x78] sm:$0xff]
  %v39 = vld [vmem:[%s0 + $0x80] sm:$0xf]
  %v40 = vld [vmem:[%s0 + $0x84] sm:$0xff]
  %v41 = vld [vmem:[%s0 + $0x8c] sm:$0xf]
  %v42 = vld [vmem:[%s0 + $0x90] sm:$0xff]
  %v43 = vld [vmem:[%s0 + $0x98] sm:$0xf]
  %v44 = vld [vmem:[%s0 + $0x9c] sm:$0xff]
  %v45 = vld [vmem:[%s0 + $0xa4] sm:$0xf]
  %v46 = vld [vmem:[%s0 + $0xa8] sm:$0xff]
  %v47 = vld [vmem:[%s0 + $0xb0] sm:$0xf]
  %v48 = vld [vmem:[%s0 + $0xb4] sm:$0xff]
  %v49 = vld [vmem:[%s0 + $0xbc] sm:$0xf]
  %v50 = vld [vmem:[%s1] sm:$0xf]
  %v51 = vld [vmem:[%s1 + $0x4] sm:$0xf]
  %v52 = vld [vmem:[%s1 + $0x8] sm:$0xf]
  %v53 = vld [vmem:[%s1 + $0xc] sm:$0xf]
  %v54 = vld [vmem:[%s1 + $0x10] sm:$0xf]
  %v55 = vld [vmem:[%s1 + $0x14] sm:$0xf]
  %v56 = vld [vmem:[%s1 + $0x18] sm:$0xf]
  %v57 = vld [vmem:[%s1 + $0x1c] sm:$0xf]
  %v58 = vld [vmem:[%s1 + $0x20] sm:$0xf]
  %v59 = vld [vmem:[%s1 + $0x24] sm:$0xf]
  %v60 = vld [vmem:[%s1 + $0x28] sm:$0xf]
  %v61 = vld [vmem:[%s1 + $0x2c] sm:$0xf]
  %v62 = vld [vmem:[%s1 + $0x30] sm:$0xf]
  %v63 = vld [vmem:[%s1 + $0x34] sm:$0xf]
  %v64 = vld [vmem:[%s1 + $0x38] sm:$0xf]
  %v65 = vld [vmem:[%s1 + $0x3c] sm:$0xf]
  %v66 = vld [vmem:[%s1 + $0x40] sm:$0xf]
  %v67 = vld [vmem:[%s1 + $0x44] sm:$0xf]
  %v68 = vld [vmem:[%s1 + $0x48] sm:$0xf]
  %v69 = vld [vmem:[%s1 + $0x4c] sm:$0xf]
  %v70 = vld [vmem:[%s1 + $0x50] sm:$0xf]
  %v71 = vld [vmem:[%s1 + $0x54] sm:$0xf]
  %v72 = vld [vmem:[%s1 + $0x58] sm:$0xf]
  %v73 = vld [vmem:[%s1 + $0x5c] sm:$0xf]
  %v74 = vld [vmem:[%s1 + $0x60] sm:$0xf]
  %v75 = vld [vmem:[%s1 + $0x64] sm:$0xf]
  %v76 = vld [vmem:[%s1 + $0x68] sm:$0xf]
  %v77 = vld [vmem:[%s1 + $0x6c] sm:$0xf]
  %v78 = vld [vmem:[%s1 + $0x70] sm:$0xf]
  %v79 = vld [vmem:[%s1 + $0x74] sm:$0xf]
  %v80 = vld [vmem:[%s1 + $0x78] sm:$0xf]
  %v81 = vld [vmem:[%s1 + $0x7c] sm:$0xf]
  %v82 = vld [vmem:[%s1 + $0x80] sm:$0xf]
  %v83 = vld [vmem:[%s1 + $0x84] sm:$0xf]
  %v84 = vld [vmem:[%s1 + $0x88] sm:$0xf]
  %v85 = vld [vmem:[%s1 + $0x8c] sm:$0xf]
  %v118 = vunpack.c.l.b16 %v18
  %v119 = vunpack.c.h.b16 %v18
  %v120 = vunpack.c.l.b16 %v19
  %v121 = vunpack.c.l.b16 %v20
  %v122 = vunpack.c.h.b16 %v20
  %v123 = vunpack.c.l.b16 %v21
  %v124 = vunpack.c.l.b16 %v22
  %v125 = vunpack.c.h.b16 %v22
  %v126 = vunpack.c.l.b16 %v23
  %v127 = vunpack.c.l.b16 %v24
  %v128 = vunpack.c.h.b16 %v24
  %v129 = vunpack.c.l.b16 %v25
  %v130 = vunpack.c.l.b16 %v26
  %v131 = vunpack.c.h.b16 %v26
  %v132 = vunpack.c.l.b16 %v27
  %v133 = vunpack.c.l.b16 %v28
  %v134 = vunpack.c.h.b16 %v28
  %v135 = vunpack.c.l.b16 %v29
  %v136 = vunpack.c.l.b16 %v30
  %v137 = vunpack.c.h.b16 %v30
  %v138 = vunpack.c.l.b16 %v31
  %v139 = vunpack.c.l.b16 %v32
  %v140 = vunpack.c.h.b16 %v32
  %v141 = vunpack.c.l.b16 %v33
  %v142 = vunpack.c.l.b16 %v34
  %v143 = vunpack.c.h.b16 %v34
  %v144 = vunpack.c.l.b16 %v35
  %v145 = vunpack.c.l.b16 %v36
  %v146 = vunpack.c.h.b16 %v36
  %v147 = vunpack.c.l.b16 %v37
  %v148 = vunpack.c.l.b16 %v38
  %v149 = vunpack.c.h.b16 %v38
  %v150 = vunpack.c.l.b16 %v39
  %v151 = vunpack.c.l.b16 %v40
  %v152 = vunpack.c.h.b16 %v40
  %v153 = vunpack.c.l.b16 %v41
  %v154 = vunpack.c.l.b16 %v42
  %v155 = vunpack.c.h.b16 %v42
  %v156 = vunpack.c.l.b16 %v43
  %v157 = vunpack.c.l.b16 %v44
  %v158 = vunpack.c.h.b16 %v44
  %v159 = vunpack.c.l.b16 %v45
  %v160 = vunpack.c.l.b16 %v46
  %v161 = vunpack.c.h.b16 %v46
  %v162 = vunpack.c.l.b16 %v47
  %v163 = vunpack.c.l.b16 %v48
  %v164 = vunpack.c.h.b16 %v48
  %v165 = vunpack.c.l.b16 %v49
  %v166 = vpack.c.b16 %v121, %v118
  %v167 = vpack.c.b16 %v122, %v119
  %v168 = vpack.c.b16 %v123, %v120
  %v169 = vpack.c.b16 %v127, %v124
  %v170 = vpack.c.b16 %v128, %v125
  %v171 = vpack.c.b16 %v129, %v126
  %v172 = vpack.c.b16 %v133, %v130
  %v173 = vpack.c.b16 %v134, %v131
  %v174 = vpack.c.b16 %v135, %v132
  %v175 = vpack.c.b16 %v139, %v136
  %v176 = vpack.c.b16 %v140, %v137
  %v177 = vpack.c.b16 %v141, %v138
  %v178 = vpack.c.b16 %v145, %v142
  %v179 = vpack.c.b16 %v146, %v143
  %v180 = vpack.c.b16 %v147, %v144
  %v181 = vpack.c.b16 %v151, %v148
  %v182 = vpack.c.b16 %v152, %v149
  %v183 = vpack.c.b16 %v153, %v150
  %v184 = vpack.c.b16 %v157, %v154
  %v185 = vpack.c.b16 %v158, %v155
  %v186 = vpack.c.b16 %v159, %v156
  %v187 = vpack.c.b16 %v163, %v160
  %v188 = vpack.c.b16 %v164, %v161
  %v189 = vpack.c.b16 %v165, %v162
  %v242 = vunpack.c.l.b16 %v50
  %v243 = vunpack.c.l.b16 %v51
  %v244 = vunpack.c.l.b16 %v52
  %v245 = vunpack.c.l.b16 %v53
  %v246 = vunpack.c.l.b16 %v54
  %v247 = vunpack.c.l.b16 %v55
  %v248 = vunpack.c.l.b16 %v56
  %v249 = vunpack.c.l.b16 %v57
  %v250 = vunpack.c.l.b16 %v58
  %v251 = vunpack.c.l.b16 %v59
  %v252 = vunpack.c.l.b16 %v60
  %v253 = vunpack.c.l.b16 %v61
  %v254 = vunpack.c.l.b16 %v62
  %v255 = vunpack.c.l.b16 %v63
  %v256 = vunpack.c.l.b16 %v64
  %v257 = vunpack.c.l.b16 %v65
  %v258 = vunpack.c.l.b16 %v66
  %v259 = vunpack.c.l.b16 %v67
  %v260 = vunpack.c.l.b16 %v68
  %v261 = vunpack.c.l.b16 %v69
  %v262 = vunpack.c.l.b16 %v70
  %v263 = vunpack.c.l.b16 %v71
  %v264 = vunpack.c.l.b16 %v72
  %v265 = vunpack.c.l.b16 %v73
  %v266 = vunpack.c.l.b16 %v74
  %v267 = vunpack.c.l.b16 %v75
  %v268 = vunpack.c.l.b16 %v76
  %v269 = vunpack.c.l.b16 %v77
  %v270 = vunpack.c.l.b16 %v78
  %v271 = vunpack.c.l.b16 %v79
  %v272 = vunpack.c.l.b16 %v80
  %v273 = vunpack.c.l.b16 %v81
  %v274 = vunpack.c.l.b16 %v82
  %v275 = vunpack.c.l.b16 %v83
  %v276 = vunpack.c.l.b16 %v84
  %v277 = vunpack.c.l.b16 %v85
  %v278 = vpack.c.b16 %v243, %v242
  %v279 = vpack.c.b16 %v245, %v244
  %v280 = vpack.c.b16 %v247, %v246
  %v281 = vpack.c.b16 %v249, %v248
  %v282 = vpack.c.b16 %v251, %v250
  %v283 = vpack.c.b16 %v253, %v252
  %v284 = vpack.c.b16 %v255, %v254
  %v285 = vpack.c.b16 %v257, %v256
  %v286 = vpack.c.b16 %v259, %v258
  %v287 = vpack.c.b16 %v261, %v260
  %v288 = vpack.c.b16 %v263, %v262
  %v289 = vpack.c.b16 %v265, %v264
  %v290 = vpack.c.b16 %v267, %v266
  %v291 = vpack.c.b16 %v269, %v268
  %v292 = vpack.c.b16 %v271, %v270
  %v293 = vpack.c.b16 %v273, %v272
  %v294 = vpack.c.b16 %v275, %v274
  %v295 = vpack.c.b16 %v277, %v276
  %vm314 = vcmask 261120
  %v316 = vsel %vm314, %v168, 0
  %v319 = vsel %vm314, %v171, 0
  %v322 = vsel %vm314, %v174, 0
  %v325 = vsel %vm314, %v177, 0
  %v328 = vsel %vm314, %v180, 0
  %v331 = vsel %vm314, %v183, 0
  %v334 = vsel %vm314, %v186, 0
  %v337 = vsel %vm314, %v189, 0
  %339 = vmatpush.bf16.msra.mxu0 %v285
  %340 = vmatpush.bf16.msra.mxu0 %v284
  %341 = vmatpush.bf16.msra.mxu0 %v283
  %342 = vmatpush.bf16.msra.mxu0 %v282
  %343 = vmatpush.bf16.msra.mxu0 %v281
  %344 = vmatpush.bf16.msra.mxu0 %v280
  %345 = vmatpush.bf16.msra.mxu0 %v279
  %346 = vmatpush.bf16.msra.mxu0 %v278
  %347 = vmatmul.bf16.gmra.mxu0 %v166
  %v348 = vpop.f32.mrf.mxu0
  %v349 = vadd.f32 0.0, %v348
  %v350 = vpop.f32.mrf.mxu0
  %v351 = vadd.f32 0.0, %v350
  %352 = vmatmul.bf16.gmra.mxu0 %v169
  %v353 = vpop.f32.mrf.mxu0
  %v354 = vadd.f32 0.0, %v353
  %v355 = vpop.f32.mrf.mxu0
  %v356 = vadd.f32 0.0, %v355
  %357 = vmatmul.bf16.gmra.mxu0 %v172
  %v358 = vpop.f32.mrf.mxu0
  %v359 = vadd.f32 0.0, %v358
  %v360 = vpop.f32.mrf.mxu0
  %v361 = vadd.f32 0.0, %v360
  %362 = vmatmul.bf16.gmra.mxu0 %v175
  %v363 = vpop.f32.mrf.mxu0
  %v364 = vadd.f32 0.0, %v363
  %v365 = vpop.f32.mrf.mxu0
  %v366 = vadd.f32 0.0, %v365
  %367 = vmatmul.bf16.gmra.mxu0 %v178
  %v368 = vpop.f32.mrf.mxu0
  %v369 = vadd.f32 0.0, %v368
  %v370 = vpop.f32.mrf.mxu0
  %v371 = vadd.f32 0.0, %v370
  %372 = vmatmul.bf16.gmra.mxu0 %v181
  %v373 = vpop.f32.mrf.mxu0
  %v374 = vadd.f32 0.0, %v373
  %v375 = vpop.f32.mrf.mxu0
  %v376 = vadd.f32 0.0, %v375
  %377 = vmatmul.bf16.gmra.mxu0 %v184
  %v378 = vpop.f32.mrf.mxu0
  %v379 = vadd.f32 0.0, %v378
  %v380 = vpop.f32.mrf.mxu0
  %v381 = vadd.f32 0.0, %v380
  %382 = vmatmul.bf16.gmra.mxu0 %v187
  %v383 = vpop.f32.mrf.mxu0
  %v384 = vadd.f32 0.0, %v383
  %v385 = vpop.f32.mrf.mxu0
  %v386 = vadd.f32 0.0, %v385
  %387 = vdwg.mxu0
  %388 = vmatpush.bf16.msra.mxu0 %v293
  %389 = vmatpush.bf16.msra.mxu0 %v292
  %390 = vmatpush.bf16.msra.mxu0 %v291
  %391 = vmatpush.bf16.msra.mxu0 %v290
  %392 = vmatpush.bf16.msra.mxu0 %v289
  %393 = vmatpush.bf16.msra.mxu0 %v288
  %394 = vmatpush.bf16.msra.mxu0 %v287
  %395 = vmatpush.bf16.msra.mxu0 %v286
  %396 = vmatmul.bf16.gmra.mxu0 %v167
  %v397 = vpop.f32.mrf.mxu0
  %v398 = vadd.f32 %v349, %v397
  %v399 = vpop.f32.mrf.mxu0
  %v400 = vadd.f32 %v351, %v399
  %401 = vmatmul.bf16.gmra.mxu0 %v170
  %v402 = vpop.f32.mrf.mxu0
  %v403 = vadd.f32 %v354, %v402
  %v404 = vpop.f32.mrf.mxu0
  %v405 = vadd.f32 %v356, %v404
  %406 = vmatmul.bf16.gmra.mxu0 %v173
  %v407 = vpop.f32.mrf.mxu0
  %v408 = vadd.f32 %v359, %v407
  %v409 = vpop.f32.mrf.mxu0
  %v410 = vadd.f32 %v361, %v409
  %411 = vmatmul.bf16.gmra.mxu0 %v176
  %v412 = vpop.f32.mrf.mxu0
  %v413 = vadd.f32 %v364, %v412
  %v414 = vpop.f32.mrf.mxu0
  %v415 = vadd.f32 %v366, %v414
  %416 = vmatmul.bf16.gmra.mxu0 %v179
  %v417 = vpop.f32.mrf.mxu0
  %v418 = vadd.f32 %v369, %v417
  %v419 = vpop.f32.mrf.mxu0
  %v420 = vadd.f32 %v371, %v419
  %421 = vmatmul.bf16.gmra.mxu0 %v182
  %v422 = vpop.f32.mrf.mxu0
  %v423 = vadd.f32 %v374, %v422
  %v424 = vpop.f32.mrf.mxu0
  %v425 = vadd.f32 %v376, %v424
  %426 = vmatmul.bf16.gmra.mxu0 %v185
  %v427 = vpop.f32.mrf.mxu0
  %v428 = vadd.f32 %v379, %v427
  %v429 = vpop.f32.mrf.mxu0
  %v430 = vadd.f32 %v381, %v429
  %431 = vmatmul.bf16.gmra.mxu0 %v188
  %v432 = vpop.f32.mrf.mxu0
  %v433 = vadd.f32 %v384, %v432
  %v434 = vpop.f32.mrf.mxu0
  %v435 = vadd.f32 %v386, %v434
  %436 = vdwg.mxu0
  %437 = vmatpush.bf16.msra.mxu0 0
  %438 = vmatpush.bf16.msra.mxu0 0
  %439 = vmatpush.bf16.msra.mxu0 0
  %440 = vmatpush.bf16.msra.mxu0 0
  %441 = vmatpush.bf16.msra.mxu0 0
  %442 = vmatpush.bf16.msra.mxu0 0
  %443 = vmatpush.bf16.msra.mxu0 %v295
  %444 = vmatpush.bf16.msra.mxu0 %v294
  %445 = vmatmul.bf16.gmra.mxu0 %v316
  %v446 = vpop.f32.mrf.mxu0
  %v447 = vadd.f32 %v398, %v446
  %v448 = vpop.f32.mrf.mxu0
  %v449 = vadd.f32 %v400, %v448
  %450 = vmatmul.bf16.gmra.mxu0 %v319
  %v451 = vpop.f32.mrf.mxu0
  %v452 = vadd.f32 %v403, %v451
  %v453 = vpop.f32.mrf.mxu0
  %v454 = vadd.f32 %v405, %v453
  %455 = vmatmul.bf16.gmra.mxu0 %v322
  %v456 = vpop.f32.mrf.mxu0
  %v457 = vadd.f32 %v408, %v456
  %v458 = vpop.f32.mrf.mxu0
  %v459 = vadd.f32 %v410, %v458
  %460 = vmatmul.bf16.gmra.mxu0 %v325
  %v461 = vpop.f32.mrf.mxu0
  %v462 = vadd.f32 %v413, %v461
  %v463 = vpop.f32.mrf.mxu0
  %v464 = vadd.f32 %v415, %v463
  %465 = vmatmul.bf16.gmra.mxu0 %v328
  %v466 = vpop.f32.mrf.mxu0
  %v467 = vadd.f32 %v418, %v466
  %v468 = vpop.f32.mrf.mxu0
  %v469 = vadd.f32 %v420, %v468
  %470 = vmatmul.bf16.gmra.mxu0 %v331
  %v471 = vpop.f32.mrf.mxu0
  %v472 = vadd.f32 %v423, %v471
  %v473 = vpop.f32.mrf.mxu0
  %v474 = vadd.f32 %v425, %v473
  %475 = vmatmul.bf16.gmra.mxu0 %v334
  %v476 = vpop.f32.mrf.mxu0
  %v477 = vadd.f32 %v428, %v476
  %v478 = vpop.f32.mrf.mxu0
  %v479 = vadd.f32 %v430, %v478
  %480 = vmatmul.bf16.gmra.mxu0 %v337
  %v481 = vpop.f32.mrf.mxu0
  %v482 = vadd.f32 %v433, %v481
  %v483 = vpop.f32.mrf.mxu0
  %v484 = vadd.f32 %v435, %v483
  %485 = vdwg.mxu0
  %v486 = vld [vmem:[%s2] sm:$0x1]
  %v488 = vperm.slane %v486, 0
  %v490 = vmul.f32 %v447, %v488
  %v491 = vmul.f32 %v449, %v488
  %v492 = vmul.f32 %v452, %v488
  %v493 = vmul.f32 %v454, %v488
  %v494 = vmul.f32 %v457, %v488
  %v495 = vmul.f32 %v459, %v488
  %v496 = vmul.f32 %v462, %v488
  %v497 = vmul.f32 %v464, %v488
  %v498 = vmul.f32 %v467, %v488
  %v499 = vmul.f32 %v469, %v488
  %v500 = vmul.f32 %v472, %v488
  %v501 = vmul.f32 %v474, %v488
  %v502 = vmul.f32 %v477, %v488
  %v503 = vmul.f32 %v479, %v488
  %v504 = vmul.f32 %v482, %v488
  %v505 = vmul.f32 %v484, %v488
  %v506 = vld [vmem:[%s3] sm:$0x1]
  %v508 = vperm.slane %v506, 0
  %v510 = vadd.f32 %v490, %v508
  %v511 = vadd.f32 %v491, %v508
  %v512 = vadd.f32 %v492, %v508
  %v513 = vadd.f32 %v493, %v508
  %v514 = vadd.f32 %v494, %v508
  %v515 = vadd.f32 %v495, %v508
  %v516 = vadd.f32 %v496, %v508
  %v517 = vadd.f32 %v497, %v508
  %v518 = vadd.f32 %v498, %v508
  %v519 = vadd.f32 %v499, %v508
  %v520 = vadd.f32 %v500, %v508
  %v521 = vadd.f32 %v501, %v508
  %v522 = vadd.f32 %v502, %v508
  %v523 = vadd.f32 %v503, %v508
  %v524 = vadd.f32 %v504, %v508
  %v525 = vadd.f32 %v505, %v508
  %v526 = vmax.f32 %v510, 0.0
  %v527 = vmax.f32 %v511, 0.0
  %v528 = vmax.f32 %v512, 0.0
  %v529 = vmax.f32 %v513, 0.0
  %v530 = vmax.f32 %v514, 0.0
  %v531 = vmax.f32 %v515, 0.0
  %v532 = vmax.f32 %v516, 0.0
  %v533 = vmax.f32 %v517, 0.0
  %v534 = vmax.f32 %v518, 0.0
  %v535 = vmax.f32 %v519, 0.0
  %v536 = vmax.f32 %v520, 0.0
  %v537 = vmax.f32 %v521, 0.0
  %v538 = vmax.f32 %v522, 0.0
  %v539 = vmax.f32 %v523, 0.0
  %v540 = vmax.f32 %v524, 0.0
  %v541 = vmax.f32 %v525, 0.0
  %v542 = vpack.c.bf16 %v526, %v526
  %v543 = vpack.c.bf16 %v527, %v527
  %v544 = vpack.c.bf16 %v528, %v528
  %v545 = vpack.c.bf16 %v529, %v529
  %v546 = vpack.c.bf16 %v530, %v530
  %v547 = vpack.c.bf16 %v531, %v531
  %v548 = vpack.c.bf16 %v532, %v532
  %v549 = vpack.c.bf16 %v533, %v533
  %v550 = vpack.c.bf16 %v534, %v534
  %v551 = vpack.c.bf16 %v535, %v535
  %v552 = vpack.c.bf16 %v536, %v536
  %v553 = vpack.c.bf16 %v537, %v537
  %v554 = vpack.c.bf16 %v538, %v538
  %v555 = vpack.c.bf16 %v539, %v539
  %v556 = vpack.c.bf16 %v540, %v540
  %v557 = vpack.c.bf16 %v541, %v541
  %558 = vst [vmem:[%s4] sm:$0xf] %v542
  %559 = vst [vmem:[%s4 + $0x4] sm:$0xf] %v543
  %560 = vst [vmem:[%s4 + $0x8] sm:$0xf] %v544
  %561 = vst [vmem:[%s4 + $0xc] sm:$0xf] %v545
  %562 = vst [vmem:[%s4 + $0x10] sm:$0xf] %v546
  %563 = vst [vmem:[%s4 + $0x14] sm:$0xf] %v547
  %564 = vst [vmem:[%s4 + $0x18] sm:$0xf] %v548
  %565 = vst [vmem:[%s4 + $0x1c] sm:$0xf] %v549
  %566 = vst [vmem:[%s4 + $0x20] sm:$0xf] %v550
  %567 = vst [vmem:[%s4 + $0x24] sm:$0xf] %v551
  %568 = vst [vmem:[%s4 + $0x28] sm:$0xf] %v552
  %569 = vst [vmem:[%s4 + $0x2c] sm:$0xf] %v553
  %570 = vst [vmem:[%s4 + $0x30] sm:$0xf] %v554
  %571 = vst [vmem:[%s4 + $0x34] sm:$0xf] %v555
  %572 = vst [vmem:[%s4 + $0x38] sm:$0xf] %v556
  %573 = vst [vmem:[%s4 + $0x3c] sm:$0xf] %v557
  // Predicated region
  $region18: #{generator_forward.8} parent=0 // pred_check
    _
  $region19: #{generator_forward.8} parent=0 // pred_check_branch
    %575 = sbr.rel (0) target = $region21
  $region20: #{generator_forward.8} parent=0 // pred_region
    _
  $region21: #{generator_forward.8} parent=0 // pred_fallthru
    _
  // Predicated region
  $region22: #{generator_forward.8} parent=0 // pred_check
    _
  $region23: #{generator_forward.8} parent=0 // pred_check_branch
    %577 = sbr.rel (0) target = $region25
  $region24: #{generator_forward.8} parent=0 // pred_region
    _
  $region25: #{generator_forward.8} parent=0 // pred_fallthru
    _

// kernel: generator_forward.9
$region0: #{generator_forward.9}
  #allocation0 [shape = 'u32[]', space=smem, size = 0x4, offset = 0x4, fixed_abs, tag = 'smem constant byte address 0x4 - core index']
  #allocation1 [shape = 'u32[72,128]{1,0:T(1,128)}', space=vmem, size = 0x9000, scoped, tag = 'internal scratch']
  %s0 = inlined_call_operand.vmem [shape: bf16[32,576], index: 0, kind: input, shape index: {}]
  %s1 = inlined_call_operand.vmem [shape: bf16[576,128], index: 1, kind: input, shape index: {}]
  %s2 = inlined_call_operand.vmem [shape: f32[1,128], index: 2, kind: input, shape index: {}]
  %s3 = inlined_call_operand.vmem [shape: f32[1,128], index: 3, kind: input, shape index: {}]
  %s4 = inlined_call_operand.vmem [shape: bf16[32,128], index: 4, kind: output, shape index: {}]
  %s5 = sld [smem:[#allocation0]]
  $region26: #{generator_forward.9} parent=0
    _
  %s7 = ssub.s32 1, %s5
  %s8 = scalar_select 0, %s7, %s5
  // Predicated region
  $region2: #{generator_forward.9} parent=0 // pred_check
    _
  $region3: #{generator_forward.9} parent=0 // pred_check_branch
    %10 = sbr.rel (0) target = $region5
  $region4: #{generator_forward.9} parent=0 // pred_region
    _
  $region5: #{generator_forward.9} parent=0 // pred_fallthru
    _
  // Predicated region
  $region6: #{generator_forward.9} parent=0 // pred_check
    _
  $region7: #{generator_forward.9} parent=0 // pred_check_branch
    %12 = sbr.rel (0) target = $region9
  $region8: #{generator_forward.9} parent=0 // pred_region
    _
  $region9: #{generator_forward.9} parent=0 // pred_fallthru
    _
  // Predicated region
  $region10: #{generator_forward.9} parent=0 // pred_check
    _
  $region11: #{generator_forward.9} parent=0 // pred_check_branch
    %14 = sbr.rel (0) target = $region13
  $region12: #{generator_forward.9} parent=0 // pred_region
    _
  $region13: #{generator_forward.9} parent=0 // pred_fallthru
    _
  // Predicated region
  $region14: #{generator_forward.9} parent=0 // pred_check
    _
  $region15: #{generator_forward.9} parent=0 // pred_check_branch
    %16 = sbr.rel (0) target = $region17
  $region16: #{generator_forward.9} parent=0 // pred_region
    _
  $region17: #{generator_forward.9} parent=0 // pred_fallthru
    _
  %v18 = vld [vmem:[%s0] sm:$0xff]
  %v19 = vld [vmem:[%s0 + $0x8] sm:$0xff]
  %v20 = vld [vmem:[%s0 + $0x10] sm:$0xf]
  %v21 = vld [vmem:[%s0 + $0x14] sm:$0xff]
  %v22 = vld [vmem:[%s0 + $0x1c] sm:$0xff]
  %v23 = vld [vmem:[%s0 + $0x24] sm:$0xf]
  %v24 = vld [vmem:[%s0 + $0x28] sm:$0xff]
  %v25 = vld [vmem:[%s0 + $0x30] sm:$0xff]
  %v26 = vld [vmem:[%s0 + $0x38] sm:$0xf]
  %v27 = vld [vmem:[%s0 + $0x3c] sm:$0xff]
  %v28 = vld [vmem:[%s0 + $0x44] sm:$0xff]
  %v29 = vld [vmem:[%s0 + $0x4c] sm:$0xf]
  %v30 = vld [vmem:[%s1] sm:$0xf]
  %v31 = vld [vmem:[%s1 + $0x4] sm:$0xf]
  %v32 = vld [vmem:[%s1 + $0x8] sm:$0xf]
  %v33 = vld [vmem:[%s1 + $0xc] sm:$0xf]
  %v34 = vld [vmem:[%s1 + $0x10] sm:$0xf]
  %v35 = vld [vmem:[%s1 + $0x14] sm:$0xf]
  %v36 = vld [vmem:[%s1 + $0x18] sm:$0xf]
  %v37 = vld [vmem:[%s1 + $0x1c] sm:$0xf]
  %v38 = vld [vmem:[%s1 + $0x20] sm:$0xf]
  %v39 = vld [vmem:[%s1 + $0x24] sm:$0xf]
  %v40 = vld [vmem:[%s1 + $0x28] sm:$0xf]
  %v41 = vld [vmem:[%s1 + $0x2c] sm:$0xf]
  %v42 = vld [vmem:[%s1 + $0x30] sm:$0xf]
  %v43 = vld [vmem:[%s1 + $0x34] sm:$0xf]
  %v44 = vld [vmem:[%s1 + $0x38] sm:$0xf]
  %v45 = vld [vmem:[%s1 + $0x3c] sm:$0xf]
  %v46 = vld [vmem:[%s1 + $0x40] sm:$0xf]
  %v47 = vld [vmem:[%s1 + $0x44] sm:$0xf]
  %v48 = vld [vmem:[%s1 + $0x48] sm:$0xf]
  %v49 = vld [vmem:[%s1 + $0x4c] sm:$0xf]
  %v50 = vld [vmem:[%s1 + $0x50] sm:$0xf]
  %v51 = vld [vmem:[%s1 + $0x54] sm:$0xf]
  %v52 = vld [vmem:[%s1 + $0x58] sm:$0xf]
  %v53 = vld [vmem:[%s1 + $0x5c] sm:$0xf]
  %v54 = vld [vmem:[%s1 + $0x60] sm:$0xf]
  %v55 = vld [vmem:[%s1 + $0x64] sm:$0xf]
  %v56 = vld [vmem:[%s1 + $0x68] sm:$0xf]
  %v57 = vld [vmem:[%s1 + $0x6c] sm:$0xf]
  %v58 = vld [vmem:[%s1 + $0x70] sm:$0xf]
  %v59 = vld [vmem:[%s1 + $0x74] sm:$0xf]
  %v60 = vld [vmem:[%s1 + $0x78] sm:$0xf]
  %v61 = vld [vmem:[%s1 + $0x7c] sm:$0xf]
  %v62 = vld [vmem:[%s1 + $0x80] sm:$0xf]
  %v63 = vld [vmem:[%s1 + $0x84] sm:$0xf]
  %v64 = vld [vmem:[%s1 + $0x88] sm:$0xf]
  %v65 = vld [vmem:[%s1 + $0x8c] sm:$0xf]
  %v66 = vld [vmem:[%s1 + $0x90] sm:$0xf]
  %v67 = vld [vmem:[%s1 + $0x94] sm:$0xf]
  %v68 = vld [vmem:[%s1 + $0x98] sm:$0xf]
  %v69 = vld [vmem:[%s1 + $0x9c] sm:$0xf]
  %v70 = vld [vmem:[%s1 + $0xa0] sm:$0xf]
  %v71 = vld [vmem:[%s1 + $0xa4] sm:$0xf]
  %v72 = vld [vmem:[%s1 + $0xa8] sm:$0xf]
  %v73 = vld [vmem:[%s1 + $0xac] sm:$0xf]
  %v74 = vld [vmem:[%s1 + $0xb0] sm:$0xf]
  %v75 = vld [vmem:[%s1 + $0xb4] sm:$0xf]
  %v76 = vld [vmem:[%s1 + $0xb8] sm:$0xf]
  %v77 = vld [vmem:[%s1 + $0xbc] sm:$0xf]
  %v78 = vld [vmem:[%s1 + $0xc0] sm:$0xf]
  %v79 = vld [vmem:[%s1 + $0xc4] sm:$0xf]
  %v80 = vld [vmem:[%s1 + $0xc8] sm:$0xf]
  %v81 = vld [vmem:[%s1 + $0xcc] sm:$0xf]
  %v82 = vld [vmem:[%s1 + $0xd0] sm:$0xf]
  %v83 = vld [vmem:[%s1 + $0xd4] sm:$0xf]
  %v84 = vld [vmem:[%s1 + $0xd8] sm:$0xf]
  %v85 = vld [vmem:[%s1 + $0xdc] sm:$0xf]
  %v86 = vld [vmem:[%s1 + $0xe0] sm:$0xf]
  %v87 = vld [vmem:[%s1 + $0xe4] sm:$0xf]
  %v88 = vld [vmem:[%s1 + $0xe8] sm:$0xf]
  %v89 = vld [vmem:[%s1 + $0xec] sm:$0xf]
  %v90 = vld [vmem:[%s1 + $0xf0] sm:$0xf]
  %v91 = vld [vmem:[%s1 + $0xf4] sm:$0xf]
  %v92 = vld [vmem:[%s1 + $0xf8] sm:$0xf]
  %v93 = vld [vmem:[%s1 + $0xfc] sm:$0xf]
  %v94 = vld [vmem:[%s1 + $0x100] sm:$0xf]
  %v95 = vld [vmem:[%s1 + $0x104] sm:$0xf]
  %v96 = vld [vmem:[%s1 + $0x108] sm:$0xf]
  %v97 = vld [vmem:[%s1 + $0x10c] sm:$0xf]
  %v98 = vld [vmem:[%s1 + $0x110] sm:$0xf]
  %v99 = vld [vmem:[%s1 + $0x114] sm:$0xf]
  %v100 = vld [vmem:[%s1 + $0x118] sm:$0xf]
  %v101 = vld [vmem:[%s1 + $0x11c] sm:$0xf]
  %v114 = vunpack.c.l.b16 %v18
  %v115 = vunpack.c.h.b16 %v18
  %v116 = vunpack.c.l.b16 %v19
  %v117 = vunpack.c.h.b16 %v19
  %v118 = vunpack.c.l.b16 %v20
  %v119 = vunpack.c.l.b16 %v21
  %v120 = vunpack.c.h.b16 %v21
  %v121 = vunpack.c.l.b16 %v22
  %v122 = vunpack.c.h.b16 %v22
  %v123 = vunpack.c.l.b16 %v23
  %v124 = vunpack.c.l.b16 %v24
  %v125 = vunpack.c.h.b16 %v24
  %v126 = vunpack.c.l.b16 %v25
  %v127 = vunpack.c.h.b16 %v25
  %v128 = vunpack.c.l.b16 %v26
  %v129 = vunpack.c.l.b16 %v27
  %v130 = vunpack.c.h.b16 %v27
  %v131 = vunpack.c.l.b16 %v28
  %v132 = vunpack.c.h.b16 %v28
  %v133 = vunpack.c.l.b16 %v29
  %v134 = vpack.c.b16 %v119, %v114
  %v135 = vpack.c.b16 %v120, %v115
  %v136 = vpack.c.b16 %v121, %v116
  %v137 = vpack.c.b16 %v122, %v117
  %v138 = vpack.c.b16 %v123, %v118
  %v139 = vpack.c.b16 %v129, %v124
  %v140 = vpack.c.b16 %v130, %v125
  %v141 = vpack.c.b16 %v131, %v126
  %v142 = vpack.c.b16 %v132, %v127
  %v143 = vpack.c.b16 %v133, %v128
  %v224 = vunpack.c.l.b16 %v30
  %v225 = vunpack.c.l.b16 %v31
  %v226 = vunpack.c.l.b16 %v32
  %v227 = vunpack.c.l.b16 %v33
  %v228 = vunpack.c.l.b16 %v34
  %v229 = vunpack.c.l.b16 %v35
  %v230 = vunpack.c.l.b16 %v36
  %v231 = vunpack.c.l.b16 %v37
  %v232 = vunpack.c.l.b16 %v38
  %v233 = vunpack.c.l.b16 %v39
  %v234 = vunpack.c.l.b16 %v40
  %v235 = vunpack.c.l.b16 %v41
  %v236 = vunpack.c.l.b16 %v42
  %v237 = vunpack.c.l.b16 %v43
  %v238 = vunpack.c.l.b16 %v44
  %v239 = vunpack.c.l.b16 %v45
  %v240 = vunpack.c.l.b16 %v46
  %v241 = vunpack.c.l.b16 %v47
  %v242 = vunpack.c.l.b16 %v48
  %v243 = vunpack.c.l.b16 %v49
  %v244 = vunpack.c.l.b16 %v50
  %v245 = vunpack.c.l.b16 %v51
  %v246 = vunpack.c.l.b16 %v52
  %v247 = vunpack.c.l.b16 %v53
  %v248 = vunpack.c.l.b16 %v54
  %v249 = vunpack.c.l.b16 %v55
  %v250 = vunpack.c.l.b16 %v56
  %v251 = vunpack.c.l.b16 %v57
  %v252 = vunpack.c.l.b16 %v58
  %v253 = vunpack.c.l.b16 %v59
  %v254 = vunpack.c.l.b16 %v60
  %v255 = vunpack.c.l.b16 %v61
  %v256 = vunpack.c.l.b16 %v62
  %v257 = vunpack.c.l.b16 %v63
  %v258 = vunpack.c.l.b16 %v64
  %v259 = vunpack.c.l.b16 %v65
  %v260 = vunpack.c.l.b16 %v66
  %v261 = vunpack.c.l.b16 %v67
  %v262 = vunpack.c.l.b16 %v68
  %v263 = vunpack.c.l.b16 %v69
  %v264 = vunpack.c.l.b16 %v70
  %v265 = vunpack.c.l.b16 %v71
  %v266 = vunpack.c.l.b16 %v72
  %v267 = vunpack.c.l.b16 %v73
  %v268 = vunpack.c.l.b16 %v74
  %v269 = vunpack.c.l.b16 %v75
  %v270 = vunpack.c.l.b16 %v76
  %v271 = vunpack.c.l.b16 %v77
  %v272 = vunpack.c.l.b16 %v78
  %v273 = vunpack.c.l.b16 %v79
  %v274 = vunpack.c.l.b16 %v80
  %v275 = vunpack.c.l.b16 %v81
  %v276 = vunpack.c.l.b16 %v82
  %v277 = vunpack.c.l.b16 %v83
  %v278 = vunpack.c.l.b16 %v84
  %v279 = vunpack.c.l.b16 %v85
  %v280 = vunpack.c.l.b16 %v86
  %v281 = vunpack.c.l.b16 %v87
  %v282 = vunpack.c.l.b16 %v88
  %v283 = vunpack.c.l.b16 %v89
  %v284 = vunpack.c.l.b16 %v90
  %v285 = vunpack.c.l.b16 %v91
  %v286 = vunpack.c.l.b16 %v92
  %v287 = vunpack.c.l.b16 %v93
  %v288 = vunpack.c.l.b16 %v94
  %v289 = vunpack.c.l.b16 %v95
  %v290 = vunpack.c.l.b16 %v96
  %v291 = vunpack.c.l.b16 %v97
  %v292 = vunpack.c.l.b16 %v98
  %v293 = vunpack.c.l.b16 %v99
  %v294 = vunpack.c.l.b16 %v100
  %v295 = vunpack.c.l.b16 %v101
  %v296 = vpack.c.b16 %v225, %v224
  %v297 = vpack.c.b16 %v227, %v226
  %v298 = vpack.c.b16 %v229, %v228
  %v299 = vpack.c.b16 %v231, %v230
  %v300 = vpack.c.b16 %v233, %v232
  %v301 = vpack.c.b16 %v235, %v234
  %v302 = vpack.c.b16 %v237, %v236
  %v303 = vpack.c.b16 %v239, %v238
  %v304 = vpack.c.b16 %v241, %v240
  %v305 = vpack.c.b16 %v243, %v242
  %v306 = vpack.c.b16 %v245, %v244
  %v307 = vpack.c.b16 %v247, %v246
  %v308 = vpack.c.b16 %v249, %v248
  %v309 = vpack.c.b16 %v251, %v250
  %v310 = vpack.c.b16 %v253, %v252
  %v311 = vpack.c.b16 %v255, %v254
  %v312 = vpack.c.b16 %v257, %v256
  %v313 = vpack.c.b16 %v259, %v258
  %v314 = vpack.c.b16 %v261, %v260
  %v315 = vpack.c.b16 %v263, %v262
  %v316 = vpack.c.b16 %v265, %v264
  %v317 = vpack.c.b16 %v267, %v266
  %v318 = vpack.c.b16 %v269, %v268
  %v319 = vpack.c.b16 %v271, %v270
  %v320 = vpack.c.b16 %v273, %v272
  %v321 = vpack.c.b16 %v275, %v274
  %v322 = vpack.c.b16 %v277, %v276
  %v323 = vpack.c.b16 %v279, %v278
  %v324 = vpack.c.b16 %v281, %v280
  %v325 = vpack.c.b16 %v283, %v282
  %v326 = vpack.c.b16 %v285, %v284
  %v327 = vpack.c.b16 %v287, %v286
  %v328 = vpack.c.b16 %v289, %v288
  %v329 = vpack.c.b16 %v291, %v290
  %v330 = vpack.c.b16 %v293, %v292
  %v331 = vpack.c.b16 %v295, %v294
  %vm368 = vcmask 523264
  %v370 = vsel %vm368, %v138, 0
  %v373 = vsel %vm368, %v143, 0
  %375 = vmatpush.bf16.msra.mxu0 %v303
  %376 = vmatpush.bf16.msra.mxu0 %v302
  %377 = vmatpush.bf16.msra.mxu0 %v301
  %378 = vmatpush.bf16.msra.mxu0 %v300
  %379 = vmatpush.bf16.msra.mxu0 %v299
  %380 = vmatpush.bf16.msra.mxu0 %v298
  %381 = vmatpush.bf16.msra.mxu0 %v297
  %382 = vmatpush.bf16.msra.mxu0 %v296
  %383 = vmatmul.bf16.gmra.mxu0 %v134
  %v384 = vpop.f32.mrf.mxu0
  %v385 = vadd.f32 0.0, %v384
  %v386 = vpop.f32.mrf.mxu0
  %v387 = vadd.f32 0.0, %v386
  %388 = vmatmul.bf16.gmra.mxu0 %v139
  %v389 = vpop.f32.mrf.mxu0
  %v390 = vadd.f32 0.0, %v389
  %v391 = vpop.f32.mrf.mxu0
  %v392 = vadd.f32 0.0, %v391
  %393 = vdwg.mxu0
  %394 = vmatpush.bf16.msra.mxu0 %v311
  %395 = vmatpush.bf16.msra.mxu0 %v310
  %396 = vmatpush.bf16.msra.mxu0 %v309
  %397 = vmatpush.bf16.msra.mxu0 %v308
  %398 = vmatpush.bf16.msra.mxu0 %v307
  %399 = vmatpush.bf16.msra.mxu0 %v306
  %400 = vmatpush.bf16.msra.mxu0 %v305
  %401 = vmatpush.bf16.msra.mxu0 %v304
  %402 = vmatmul.bf16.gmra.mxu0 %v135
  %v403 = vpop.f32.mrf.mxu0
  %v404 = vadd.f32 %v385, %v403
  %v405 = vpop.f32.mrf.mxu0
  %v406 = vadd.f32 %v387, %v405
  %407 = vmatmul.bf16.gmra.mxu0 %v140
  %v408 = vpop.f32.mrf.mxu0
  %v409 = vadd.f32 %v390, %v408
  %v410 = vpop.f32.mrf.mxu0
  %v411 = vadd.f32 %v392, %v410
  %412 = vdwg.mxu0
  %413 = vmatpush.bf16.msra.mxu0 %v319
  %414 = vmatpush.bf16.msra.mxu0 %v318
  %415 = vmatpush.bf16.msra.mxu0 %v317
  %416 = vmatpush.bf16.msra.mxu0 %v316
  %417 = vmatpush.bf16.msra.mxu0 %v315
  %418 = vmatpush.bf16.msra.mxu0 %v314
  %419 = vmatpush.bf16.msra.mxu0 %v313
  %420 = vmatpush.bf16.msra.mxu0 %v312
  %421 = vmatmul.bf16.gmra.mxu0 %v136
  %v422 = vpop.f32.mrf.mxu0
  %v423 = vadd.f32 %v404, %v422
  %v424 = vpop.f32.mrf.mxu0
  %v425 = vadd.f32 %v406, %v424
  %426 = vmatmul.bf16.gmra.mxu0 %v141
  %v427 = vpop.f32.mrf.mxu0
  %v428 = vadd.f32 %v409, %v427
  %v429 = vpop.f32.mrf.mxu0
  %v430 = vadd.f32 %v411, %v429
  %431 = vdwg.mxu0
  %432 = vmatpush.bf16.msra.mxu0 %v327
  %433 = vmatpush.bf16.msra.mxu0 %v326
  %434 = vmatpush.bf16.msra.mxu0 %v325
  %435 = vmatpush.bf16.msra.mxu0 %v324
  %436 = vmatpush.bf16.msra.mxu0 %v323
  %437 = vmatpush.bf16.msra.mxu0 %v322
  %438 = vmatpush.bf16.msra.mxu0 %v321
  %439 = vmatpush.bf16.msra.mxu0 %v320
  %440 = vmatmul.bf16.gmra.mxu0 %v137
  %v441 = vpop.f32.mrf.mxu0
  %v442 = vadd.f32 %v423, %v441
  %v443 = vpop.f32.mrf.mxu0
  %v444 = vadd.f32 %v425, %v443
  %445 = vmatmul.bf16.gmra.mxu0 %v142
  %v446 = vpop.f32.mrf.mxu0
  %v447 = vadd.f32 %v428, %v446
  %v448 = vpop.f32.mrf.mxu0
  %v449 = vadd.f32 %v430, %v448
  %450 = vdwg.mxu0
  %451 = vmatpush.bf16.msra.mxu0 0
  %452 = vmatpush.bf16.msra.mxu0 0
  %453 = vmatpush.bf16.msra.mxu0 0
  %454 = vmatpush.bf16.msra.mxu0 0
  %455 = vmatpush.bf16.msra.mxu0 %v331
  %456 = vmatpush.bf16.msra.mxu0 %v330
  %457 = vmatpush.bf16.msra.mxu0 %v329
  %458 = vmatpush.bf16.msra.mxu0 %v328
  %459 = vmatmul.bf16.gmra.mxu0 %v370
  %v460 = vpop.f32.mrf.mxu0
  %v461 = vadd.f32 %v442, %v460
  %v462 = vpop.f32.mrf.mxu0
  %v463 = vadd.f32 %v444, %v462
  %464 = vmatmul.bf16.gmra.mxu0 %v373
  %v465 = vpop.f32.mrf.mxu0
  %v466 = vadd.f32 %v447, %v465
  %v467 = vpop.f32.mrf.mxu0
  %v468 = vadd.f32 %v449, %v467
  %469 = vdwg.mxu0
  %v470 = vld [vmem:[%s2] sm:$0x1]
  %v472 = vperm.slane %v470, 0
  %v474 = vmul.f32 %v461, %v472
  %v475 = vmul.f32 %v463, %v472
  %v476 = vmul.f32 %v466, %v472
  %v477 = vmul.f32 %v468, %v472
  %v478 = vld [vmem:[%s3] sm:$0x1]
  %v480 = vperm.slane %v478, 0
  %v482 = vadd.f32 %v474, %v480
  %v483 = vadd.f32 %v475, %v480
  %v484 = vadd.f32 %v476, %v480
  %v485 = vadd.f32 %v477, %v480
  %v486 = vmax.f32 %v482, 0.0
  %v487 = vmax.f32 %v483, 0.0
  %v488 = vmax.f32 %v484, 0.0
  %v489 = vmax.f32 %v485, 0.0
  %v490 = vpack.c.bf16 %v486, %v486
  %v491 = vpack.c.bf16 %v487, %v487
  %v492 = vpack.c.bf16 %v488, %v488
  %v493 = vpack.c.bf16 %v489, %v489
  %494 = vst [vmem:[%s4] sm:$0xf] %v490
  %495 = vst [vmem:[%s4 + $0x4] sm:$0xf] %v491
  %496 = vst [vmem:[%s4 + $0x8] sm:$0xf] %v492
  %497 = vst [vmem:[%s4 + $0xc] sm:$0xf] %v493
  // Predicated region
  $region18: #{generator_forward.9} parent=0 // pred_check
    _
  $region19: #{generator_forward.9} parent=0 // pred_check_branch
    %499 = sbr.rel (0) target = $region21
  $region20: #{generator_forward.9} parent=0 // pred_region
    _
  $region21: #{generator_forward.9} parent=0 // pred_fallthru
    _
  // Predicated region
  $region22: #{generator_forward.9} parent=0 // pred_check
    _
  $region23: #{generator_forward.9} parent=0 // pred_check_branch
    %501 = sbr.rel (0) target = $region25
  $region24: #{generator_forward.9} parent=0 // pred_region
    _
  $region25: #{generator_forward.9} parent=0 // pred_fallthru
    _

// kernel: tile.23
$region0: #{tile.23}
  #allocation0 [shape = 's32[1]{0}', space=sflag, size = 0x4, scoped, tag = 'scoped memory for tile.23']
  %s0 = inlined_call_operand.vmem [shape: f32[64], index: 0, kind: input, shape index: {}]
  %s1 = inlined_call_operand.vmem [shape: f32[4,64], index: 1, kind: output, shape index: {}]
  // Predicated region
  $region2: #{tile.23} parent=0 // pred_check
    _
  $region3: #{tile.23} parent=0 // pred_check_branch
    %3 = sbr.rel (0) target = $region5
  $region4: #{tile.23} parent=0 // pred_region
    _
  $region5: #{tile.23} parent=0 // pred_fallthru
    _
  %v4 = vld [vmem:[%s0] ss:$0 sm:$0xff]
  %5 = vst [vmem:[%s1] sm:$0xf] %v4

// kernel: generator_forward.11
$region0: #{generator_forward.11}
  #allocation0 [shape = 'u32[]', space=smem, size = 0x4, offset = 0x4, fixed_abs, tag = 'smem constant byte address 0x4 - core index']
  #allocation1 [shape = 'u32[72,128]{1,0:T(1,128)}', space=vmem, size = 0x9000, scoped, tag = 'internal scratch']
  %s0 = inlined_call_operand.vmem [shape: bf16[32,512], index: 0, kind: input, shape index: {}]
  %s1 = inlined_call_operand.vmem [shape: bf16[512,256], index: 1, kind: input, shape index: {}]
  %s2 = inlined_call_operand.vmem [shape: f32[1,256], index: 2, kind: input, shape index: {}]
  %s3 = inlined_call_operand.vmem [shape: f32[1,256], index: 3, kind: input, shape index: {}]
  %s4 = inlined_call_operand.vmem [shape: bf16[32,256], index: 4, kind: output, shape index: {}]
  %s5 = sld [smem:[#allocation0]]
  $region26: #{generator_forward.11} parent=0
    _
  %s7 = ssub.s32 1, %s5
  %s8 = scalar_select 0, %s7, %s5
  // Predicated region
  $region2: #{generator_forward.11} parent=0 // pred_check
    _
  $region3: #{generator_forward.11} parent=0 // pred_check_branch
    %10 = sbr.rel (0) target = $region5
  $region4: #{generator_forward.11} parent=0 // pred_region
    _
  $region5: #{generator_forward.11} parent=0 // pred_fallthru
    _
  // Predicated region
  $region6: #{generator_forward.11} parent=0 // pred_check
    _
  $region7: #{generator_forward.11} parent=0 // pred_check_branch
    %12 = sbr.rel (0) target = $region9
  $region8: #{generator_forward.11} parent=0 // pred_region
    _
  $region9: #{generator_forward.11} parent=0 // pred_fallthru
    _
  // Predicated region
  $region10: #{generator_forward.11} parent=0 // pred_check
    _
  $region11: #{generator_forward.11} parent=0 // pred_check_branch
    %14 = sbr.rel (0) target = $region13
  $region12: #{generator_forward.11} parent=0 // pred_region
    _
  $region13: #{generator_forward.11} parent=0 // pred_fallthru
    _
  // Predicated region
  $region14: #{generator_forward.11} parent=0 // pred_check
    _
  $region15: #{generator_forward.11} parent=0 // pred_check_branch
    %16 = sbr.rel (0) target = $region17
  $region16: #{generator_forward.11} parent=0 // pred_region
    _
  $region17: #{generator_forward.11} parent=0 // pred_fallthru
    _
  %v17 = vld [vmem:[%s0] sm:$0xff]
  %v18 = vld [vmem:[%s0 + $0x8] sm:$0xff]
  %v19 = vld [vmem:[%s0 + $0x10] sm:$0xff]
  %v20 = vld [vmem:[%s0 + $0x18] sm:$0xff]
  %v21 = vld [vmem:[%s0 + $0x20] sm:$0xff]
  %v22 = vld [vmem:[%s0 + $0x28] sm:$0xff]
  %v23 = vld [vmem:[%s0 + $0x30] sm:$0xff]
  %v24 = vld [vmem:[%s0 + $0x38] sm:$0xff]
  %v25 = vld [vmem:[%s1] sm:$0xff]
  %v26 = vld [vmem:[%s1 + $0x8] sm:$0xff]
  %v27 = vld [vmem:[%s1 + $0x10] sm:$0xff]
  %v28 = vld [vmem:[%s1 + $0x18] sm:$0xff]
  %v29 = vld [vmem:[%s1 + $0x20] sm:$0xff]
  %v30 = vld [vmem:[%s1 + $0x28] sm:$0xff]
  %v31 = vld [vmem:[%s1 + $0x30] sm:$0xff]
  %v32 = vld [vmem:[%s1 + $0x38] sm:$0xff]
  %v33 = vld [vmem:[%s1 + $0x40] sm:$0xff]
  %v34 = vld [vmem:[%s1 + $0x48] sm:$0xff]
  %v35 = vld [vmem:[%s1 + $0x50] sm:$0xff]
  %v36 = vld [vmem:[%s1 + $0x58] sm:$0xff]
  %v37 = vld [vmem:[%s1 + $0x60] sm:$0xff]
  %v38 = vld [vmem:[%s1 + $0x68] sm:$0xff]
  %v39 = vld [vmem:[%s1 + $0x70] sm:$0xff]
  %v40 = vld [vmem:[%s1 + $0x78] sm:$0xff]
  %v41 = vld [vmem:[%s1 + $0x80] sm:$0xff]
  %v42 = vld [vmem:[%s1 + $0x88] sm:$0xff]
  %v43 = vld [vmem:[%s1 + $0x90] sm:$0xff]
  %v44 = vld [vmem:[%s1 + $0x98] sm:$0xff]
  %v45 = vld [vmem:[%s1 + $0xa0] sm:$0xff]
  %v46 = vld [vmem:[%s1 + $0xa8] sm:$0xff]
  %v47 = vld [vmem:[%s1 + $0xb0] sm:$0xff]
  %v48 = vld [vmem:[%s1 + $0xb8] sm:$0xff]
  %v49 = vld [vmem:[%s1 + $0xc0] sm:$0xff]
  %v50 = vld [vmem:[%s1 + $0xc8] sm:$0xff]
  %v51 = vld [vmem:[%s1 + $0xd0] sm:$0xff]
  %v52 = vld [vmem:[%s1 + $0xd8] sm:$0xff]
  %v53 = vld [vmem:[%s1 + $0xe0] sm:$0xff]
  %v54 = vld [vmem:[%s1 + $0xe8] sm:$0xff]
  %v55 = vld [vmem:[%s1 + $0xf0] sm:$0xff]
  %v56 = vld [vmem:[%s1 + $0xf8] sm:$0xff]
  %v57 = vld [vmem:[%s1 + $0x100] sm:$0xff]
  %v58 = vld [vmem:[%s1 + $0x108] sm:$0xff]
  %v59 = vld [vmem:[%s1 + $0x110] sm:$0xff]
  %v60 = vld [vmem:[%s1 + $0x118] sm:$0xff]
  %v61 = vld [vmem:[%s1 + $0x120] sm:$0xff]
  %v62 = vld [vmem:[%s1 + $0x128] sm:$0xff]
  %v63 = vld [vmem:[%s1 + $0x130] sm:$0xff]
  %v64 = vld [vmem:[%s1 + $0x138] sm:$0xff]
  %v65 = vld [vmem:[%s1 + $0x140] sm:$0xff]
  %v66 = vld [vmem:[%s1 + $0x148] sm:$0xff]
  %v67 = vld [vmem:[%s1 + $0x150] sm:$0xff]
  %v68 = vld [vmem:[%s1 + $0x158] sm:$0xff]
  %v69 = vld [vmem:[%s1 + $0x160] sm:$0xff]
  %v70 = vld [vmem:[%s1 + $0x168] sm:$0xff]
  %v71 = vld [vmem:[%s1 + $0x170] sm:$0xff]
  %v72 = vld [vmem:[%s1 + $0x178] sm:$0xff]
  %v73 = vld [vmem:[%s1 + $0x180] sm:$0xff]
  %v74 = vld [vmem:[%s1 + $0x188] sm:$0xff]
  %v75 = vld [vmem:[%s1 + $0x190] sm:$0xff]
  %v76 = vld [vmem:[%s1 + $0x198] sm:$0xff]
  %v77 = vld [vmem:[%s1 + $0x1a0] sm:$0xff]
  %v78 = vld [vmem:[%s1 + $0x1a8] sm:$0xff]
  %v79 = vld [vmem:[%s1 + $0x1b0] sm:$0xff]
  %v80 = vld [vmem:[%s1 + $0x1b8] sm:$0xff]
  %v81 = vld [vmem:[%s1 + $0x1c0] sm:$0xff]
  %v82 = vld [vmem:[%s1 + $0x1c8] sm:$0xff]
  %v83 = vld [vmem:[%s1 + $0x1d0] sm:$0xff]
  %v84 = vld [vmem:[%s1 + $0x1d8] sm:$0xff]
  %v85 = vld [vmem:[%s1 + $0x1e0] sm:$0xff]
  %v86 = vld [vmem:[%s1 + $0x1e8] sm:$0xff]
  %v87 = vld [vmem:[%s1 + $0x1f0] sm:$0xff]
  %v88 = vld [vmem:[%s1 + $0x1f8] sm:$0xff]
  %v97 = vunpack.c.l.b16 %v17
  %v98 = vunpack.c.h.b16 %v17
  %v99 = vunpack.c.l.b16 %v18
  %v100 = vunpack.c.h.b16 %v18
  %v101 = vunpack.c.l.b16 %v19
  %v102 = vunpack.c.h.b16 %v19
  %v103 = vunpack.c.l.b16 %v20
  %v104 = vunpack.c.h.b16 %v20
  %v105 = vunpack.c.l.b16 %v21
  %v106 = vunpack.c.h.b16 %v21
  %v107 = vunpack.c.l.b16 %v22
  %v108 = vunpack.c.h.b16 %v22
  %v109 = vunpack.c.l.b16 %v23
  %v110 = vunpack.c.h.b16 %v23
  %v111 = vunpack.c.l.b16 %v24
  %v112 = vunpack.c.h.b16 %v24
  %v113 = vpack.c.b16 %v101, %v97
  %v114 = vpack.c.b16 %v102, %v98
  %v115 = vpack.c.b16 %v103, %v99
  %v116 = vpack.c.b16 %v104, %v100
  %v117 = vpack.c.b16 %v109, %v105
  %v118 = vpack.c.b16 %v110, %v106
  %v119 = vpack.c.b16 %v111, %v107
  %v120 = vpack.c.b16 %v112, %v108
  %v193 = vunpack.c.l.b16 %v25
  %v194 = vunpack.c.h.b16 %v25
  %v195 = vunpack.c.l.b16 %v26
  %v196 = vunpack.c.h.b16 %v26
  %v197 = vunpack.c.l.b16 %v27
  %v198 = vunpack.c.h.b16 %v27
  %v199 = vunpack.c.l.b16 %v28
  %v200 = vunpack.c.h.b16 %v28
  %v201 = vunpack.c.l.b16 %v29
  %v202 = vunpack.c.h.b16 %v29
  %v203 = vunpack.c.l.b16 %v30
  %v204 = vunpack.c.h.b16 %v30
  %v205 = vunpack.c.l.b16 %v31
  %v206 = vunpack.c.h.b16 %v31
  %v207 = vunpack.c.l.b16 %v32
  %v208 = vunpack.c.h.b16 %v32
  %v209 = vunpack.c.l.b16 %v33
  %v210 = vunpack.c.h.b16 %v33
  %v211 = vunpack.c.l.b16 %v34
  %v212 = vunpack.c.h.b16 %v34
  %v213 = vunpack.c.l.b16 %v35
  %v214 = vunpack.c.h.b16 %v35
  %v215 = vunpack.c.l.b16 %v36
  %v216 = vunpack.c.h.b16 %v36
  %v217 = vunpack.c.l.b16 %v37
  %v218 = vunpack.c.h.b16 %v37
  %v219 = vunpack.c.l.b16 %v38
  %v220 = vunpack.c.h.b16 %v38
  %v221 = vunpack.c.l.b16 %v39
  %v222 = vunpack.c.h.b16 %v39
  %v223 = vunpack.c.l.b16 %v40
  %v224 = vunpack.c.h.b16 %v40
  %v225 = vunpack.c.l.b16 %v41
  %v226 = vunpack.c.h.b16 %v41
  %v227 = vunpack.c.l.b16 %v42
  %v228 = vunpack.c.h.b16 %v42
  %v229 = vunpack.c.l.b16 %v43
  %v230 = vunpack.c.h.b16 %v43
  %v231 = vunpack.c.l.b16 %v44
  %v232 = vunpack.c.h.b16 %v44
  %v233 = vunpack.c.l.b16 %v45
  %v234 = vunpack.c.h.b16 %v45
  %v235 = vunpack.c.l.b16 %v46
  %v236 = vunpack.c.h.b16 %v46
  %v237 = vunpack.c.l.b16 %v47
  %v238 = vunpack.c.h.b16 %v47
  %v239 = vunpack.c.l.b16 %v48
  %v240 = vunpack.c.h.b16 %v48
  %v241 = vunpack.c.l.b16 %v49
  %v242 = vunpack.c.h.b16 %v49
  %v243 = vunpack.c.l.b16 %v50
  %v244 = vunpack.c.h.b16 %v50
  %v245 = vunpack.c.l.b16 %v51
  %v246 = vunpack.c.h.b16 %v51
  %v247 = vunpack.c.l.b16 %v52
  %v248 = vunpack.c.h.b16 %v52
  %v249 = vunpack.c.l.b16 %v53
  %v250 = vunpack.c.h.b16 %v53
  %v251 = vunpack.c.l.b16 %v54
  %v252 = vunpack.c.h.b16 %v54
  %v253 = vunpack.c.l.b16 %v55
  %v254 = vunpack.c.h.b16 %v55
  %v255 = vunpack.c.l.b16 %v56
  %v256 = vunpack.c.h.b16 %v56
  %v257 = vunpack.c.l.b16 %v57
  %v258 = vunpack.c.h.b16 %v57
  %v259 = vunpack.c.l.b16 %v58
  %v260 = vunpack.c.h.b16 %v58
  %v261 = vunpack.c.l.b16 %v59
  %v262 = vunpack.c.h.b16 %v59
  %v263 = vunpack.c.l.b16 %v60
  %v264 = vunpack.c.h.b16 %v60
  %v265 = vunpack.c.l.b16 %v61
  %v266 = vunpack.c.h.b16 %v61
  %v267 = vunpack.c.l.b16 %v62
  %v268 = vunpack.c.h.b16 %v62
  %v269 = vunpack.c.l.b16 %v63
  %v270 = vunpack.c.h.b16 %v63
  %v271 = vunpack.c.l.b16 %v64
  %v272 = vunpack.c.h.b16 %v64
  %v273 = vunpack.c.l.b16 %v65
  %v274 = vunpack.c.h.b16 %v65
  %v275 = vunpack.c.l.b16 %v66
  %v276 = vunpack.c.h.b16 %v66
  %v277 = vunpack.c.l.b16 %v67
  %v278 = vunpack.c.h.b16 %v67
  %v279 = vunpack.c.l.b16 %v68
  %v280 = vunpack.c.h.b16 %v68
  %v281 = vunpack.c.l.b16 %v69
  %v282 = vunpack.c.h.b16 %v69
  %v283 = vunpack.c.l.b16 %v70
  %v284 = vunpack.c.h.b16 %v70
  %v285 = vunpack.c.l.b16 %v71
  %v286 = vunpack.c.h.b16 %v71
  %v287 = vunpack.c.l.b16 %v72
  %v288 = vunpack.c.h.b16 %v72
  %v289 = vunpack.c.l.b16 %v73
  %v290 = vunpack.c.h.b16 %v73
  %v291 = vunpack.c.l.b16 %v74
  %v292 = vunpack.c.h.b16 %v74
  %v293 = vunpack.c.l.b16 %v75
  %v294 = vunpack.c.h.b16 %v75
  %v295 = vunpack.c.l.b16 %v76
  %v296 = vunpack.c.h.b16 %v76
  %v297 = vunpack.c.l.b16 %v77
  %v298 = vunpack.c.h.b16 %v77
  %v299 = vunpack.c.l.b16 %v78
  %v300 = vunpack.c.h.b16 %v78
  %v301 = vunpack.c.l.b16 %v79
  %v302 = vunpack.c.h.b16 %v79
  %v303 = vunpack.c.l.b16 %v80
  %v304 = vunpack.c.h.b16 %v80
  %v305 = vunpack.c.l.b16 %v81
  %v306 = vunpack.c.h.b16 %v81
  %v307 = vunpack.c.l.b16 %v82
  %v308 = vunpack.c.h.b16 %v82
  %v309 = vunpack.c.l.b16 %v83
  %v310 = vunpack.c.h.b16 %v83
  %v311 = vunpack.c.l.b16 %v84
  %v312 = vunpack.c.h.b16 %v84
  %v313 = vunpack.c.l.b16 %v85
  %v314 = vunpack.c.h.b16 %v85
  %v315 = vunpack.c.l.b16 %v86
  %v316 = vunpack.c.h.b16 %v86
  %v317 = vunpack.c.l.b16 %v87
  %v318 = vunpack.c.h.b16 %v87
  %v319 = vunpack.c.l.b16 %v88
  %v320 = vunpack.c.h.b16 %v88
  %v321 = vpack.c.b16 %v195, %v193
  %v322 = vpack.c.b16 %v196, %v194
  %v323 = vpack.c.b16 %v199, %v197
  %v324 = vpack.c.b16 %v200, %v198
  %v325 = vpack.c.b16 %v203, %v201
  %v326 = vpack.c.b16 %v204, %v202
  %v327 = vpack.c.b16 %v207, %v205
  %v328 = vpack.c.b16 %v208, %v206
  %v329 = vpack.c.b16 %v211, %v209
  %v330 = vpack.c.b16 %v212, %v210
  %v331 = vpack.c.b16 %v215, %v213
  %v332 = vpack.c.b16 %v216, %v214
  %v333 = vpack.c.b16 %v219, %v217
  %v334 = vpack.c.b16 %v220, %v218
  %v335 = vpack.c.b16 %v223, %v221
  %v336 = vpack.c.b16 %v224, %v222
  %v337 = vpack.c.b16 %v227, %v225
  %v338 = vpack.c.b16 %v228, %v226
  %v339 = vpack.c.b16 %v231, %v229
  %v340 = vpack.c.b16 %v232, %v230
  %v341 = vpack.c.b16 %v235, %v233
  %v342 = vpack.c.b16 %v236, %v234
  %v343 = vpack.c.b16 %v239, %v237
  %v344 = vpack.c.b16 %v240, %v238
  %v345 = vpack.c.b16 %v243, %v241
  %v346 = vpack.c.b16 %v244, %v242
  %v347 = vpack.c.b16 %v247, %v245
  %v348 = vpack.c.b16 %v248, %v246
  %v349 = vpack.c.b16 %v251, %v249
  %v350 = vpack.c.b16 %v252, %v250
  %v351 = vpack.c.b16 %v255, %v253
  %v352 = vpack.c.b16 %v256, %v254
  %v353 = vpack.c.b16 %v259, %v257
  %v354 = vpack.c.b16 %v260, %v258
  %v355 = vpack.c.b16 %v263, %v261
  %v356 = vpack.c.b16 %v264, %v262
  %v357 = vpack.c.b16 %v267, %v265
  %v358 = vpack.c.b16 %v268, %v266
  %v359 = vpack.c.b16 %v271, %v269
  %v360 = vpack.c.b16 %v272, %v270
  %v361 = vpack.c.b16 %v275, %v273
  %v362 = vpack.c.b16 %v276, %v274
  %v363 = vpack.c.b16 %v279, %v277
  %v364 = vpack.c.b16 %v280, %v278
  %v365 = vpack.c.b16 %v283, %v281
  %v366 = vpack.c.b16 %v284, %v282
  %v367 = vpack.c.b16 %v287, %v285
  %v368 = vpack.c.b16 %v288, %v286
  %v369 = vpack.c.b16 %v291, %v289
  %v370 = vpack.c.b16 %v292, %v290
  %v371 = vpack.c.b16 %v295, %v293
  %v372 = vpack.c.b16 %v296, %v294
  %v373 = vpack.c.b16 %v299, %v297
  %v374 = vpack.c.b16 %v300, %v298
  %v375 = vpack.c.b16 %v303, %v301
  %v376 = vpack.c.b16 %v304, %v302
  %v377 = vpack.c.b16 %v307, %v305
  %v378 = vpack.c.b16 %v308, %v306
  %v379 = vpack.c.b16 %v311, %v309
  %v380 = vpack.c.b16 %v312, %v310
  %v381 = vpack.c.b16 %v315, %v313
  %v382 = vpack.c.b16 %v316, %v314
  %v383 = vpack.c.b16 %v319, %v317
  %v384 = vpack.c.b16 %v320, %v318
  %449 = vmatpush.bf16.msra.mxu0 %v335
  %450 = vmatpush.bf16.msra.mxu0 %v333
  %451 = vmatpush.bf16.msra.mxu0 %v331
  %452 = vmatpush.bf16.msra.mxu0 %v329
  %453 = vmatpush.bf16.msra.mxu0 %v327
  %454 = vmatpush.bf16.msra.mxu0 %v325
  %455 = vmatpush.bf16.msra.mxu0 %v323
  %456 = vmatpush.bf16.msra.mxu0 %v321
  %457 = vmatmul.bf16.gmra.mxu0 %v113
  %v458 = vpop.f32.mrf.mxu0
  %v459 = vadd.f32 0.0, %v458
  %v460 = vpop.f32.mrf.mxu0
  %v461 = vadd.f32 0.0, %v460
  %462 = vmatmul.bf16.gmra.mxu0 %v117
  %v463 = vpop.f32.mrf.mxu0
  %v464 = vadd.f32 0.0, %v463
  %v465 = vpop.f32.mrf.mxu0
  %v466 = vadd.f32 0.0, %v465
  %467 = vdwg.mxu0
  %468 = vmatpush.bf16.msra.mxu0 %v351
  %469 = vmatpush.bf16.msra.mxu0 %v349
  %470 = vmatpush.bf16.msra.mxu0 %v347
  %471 = vmatpush.bf16.msra.mxu0 %v345
  %472 = vmatpush.bf16.msra.mxu0 %v343
  %473 = vmatpush.bf16.msra.mxu0 %v341
  %474 = vmatpush.bf16.msra.mxu0 %v339
  %475 = vmatpush.bf16.msra.mxu0 %v337
  %476 = vmatmul.bf16.gmra.mxu0 %v114
  %v477 = vpop.f32.mrf.mxu0
  %v478 = vadd.f32 %v459, %v477
  %v479 = vpop.f32.mrf.mxu0
  %v480 = vadd.f32 %v461, %v479
  %481 = vmatmul.bf16.gmra.mxu0 %v118
  %v482 = vpop.f32.mrf.mxu0
  %v483 = vadd.f32 %v464, %v482
  %v484 = vpop.f32.mrf.mxu0
  %v485 = vadd.f32 %v466, %v484
  %486 = vdwg.mxu0
  %487 = vmatpush.bf16.msra.mxu0 %v367
  %488 = vmatpush.bf16.msra.mxu0 %v365
  %489 = vmatpush.bf16.msra.mxu0 %v363
  %490 = vmatpush.bf16.msra.mxu0 %v361
  %491 = vmatpush.bf16.msra.mxu0 %v359
  %492 = vmatpush.bf16.msra.mxu0 %v357
  %493 = vmatpush.bf16.msra.mxu0 %v355
  %494 = vmatpush.bf16.msra.mxu0 %v353
  %495 = vmatmul.bf16.gmra.mxu0 %v115
  %v496 = vpop.f32.mrf.mxu0
  %v497 = vadd.f32 %v478, %v496
  %v498 = vpop.f32.mrf.mxu0
  %v499 = vadd.f32 %v480, %v498
  %500 = vmatmul.bf16.gmra.mxu0 %v119
  %v501 = vpop.f32.mrf.mxu0
  %v502 = vadd.f32 %v483, %v501
  %v503 = vpop.f32.mrf.mxu0
  %v504 = vadd.f32 %v485, %v503
  %505 = vdwg.mxu0
  %506 = vmatpush.bf16.msra.mxu0 %v383
  %507 = vmatpush.bf16.msra.mxu0 %v381
  %508 = vmatpush.bf16.msra.mxu0 %v379
  %509 = vmatpush.bf16.msra.mxu0 %v377
  %510 = vmatpush.bf16.msra.mxu0 %v375
  %511 = vmatpush.bf16.msra.mxu0 %v373
  %512 = vmatpush.bf16.msra.mxu0 %v371
  %513 = vmatpush.bf16.msra.mxu0 %v369
  %514 = vmatmul.bf16.gmra.mxu0 %v116
  %v515 = vpop.f32.mrf.mxu0
  %v516 = vadd.f32 %v497, %v515
  %v517 = vpop.f32.mrf.mxu0
  %v518 = vadd.f32 %v499, %v517
  %519 = vmatmul.bf16.gmra.mxu0 %v120
  %v520 = vpop.f32.mrf.mxu0
  %v521 = vadd.f32 %v502, %v520
  %v522 = vpop.f32.mrf.mxu0
  %v523 = vadd.f32 %v504, %v522
  %524 = vdwg.mxu0
  %525 = vmatpush.bf16.msra.mxu0 %v336
  %526 = vmatpush.bf16.msra.mxu0 %v334
  %527 = vmatpush.bf16.msra.mxu0 %v332
  %528 = vmatpush.bf16.msra.mxu0 %v330
  %529 = vmatpush.bf16.msra.mxu0 %v328
  %530 = vmatpush.bf16.msra.mxu0 %v326
  %531 = vmatpush.bf16.msra.mxu0 %v324
  %532 = vmatpush.bf16.msra.mxu0 %v322
  %533 = vmatmul.bf16.gmra.mxu0 %v113
  %v534 = vpop.f32.mrf.mxu0
  %v535 = vadd.f32 0.0, %v534
  %v536 = vpop.f32.mrf.mxu0
  %v537 = vadd.f32 0.0, %v536
  %538 = vmatmul.bf16.gmra.mxu0 %v117
  %v539 = vpop.f32.mrf.mxu0
  %v540 = vadd.f32 0.0, %v539
  %v541 = vpop.f32.mrf.mxu0
  %v542 = vadd.f32 0.0, %v541
  %543 = vdwg.mxu0
  %544 = vmatpush.bf16.msra.mxu0 %v352
  %545 = vmatpush.bf16.msra.mxu0 %v350
  %546 = vmatpush.bf16.msra.mxu0 %v348
  %547 = vmatpush.bf16.msra.mxu0 %v346
  %548 = vmatpush.bf16.msra.mxu0 %v344
  %549 = vmatpush.bf16.msra.mxu0 %v342
  %550 = vmatpush.bf16.msra.mxu0 %v340
  %551 = vmatpush.bf16.msra.mxu0 %v338
  %552 = vmatmul.bf16.gmra.mxu0 %v114
  %v553 = vpop.f32.mrf.mxu0
  %v554 = vadd.f32 %v535, %v553
  %v555 = vpop.f32.mrf.mxu0
  %v556 = vadd.f32 %v537, %v555
  %557 = vmatmul.bf16.gmra.mxu0 %v118
  %v558 = vpop.f32.mrf.mxu0
  %v559 = vadd.f32 %v540, %v558
  %v560 = vpop.f32.mrf.mxu0
  %v561 = vadd.f32 %v542, %v560
  %562 = vdwg.mxu0
  %563 = vmatpush.bf16.msra.mxu0 %v368
  %564 = vmatpush.bf16.msra.mxu0 %v366
  %565 = vmatpush.bf16.msra.mxu0 %v364
  %566 = vmatpush.bf16.msra.mxu0 %v362
  %567 = vmatpush.bf16.msra.mxu0 %v360
  %568 = vmatpush.bf16.msra.mxu0 %v358
  %569 = vmatpush.bf16.msra.mxu0 %v356
  %570 = vmatpush.bf16.msra.mxu0 %v354
  %571 = vmatmul.bf16.gmra.mxu0 %v115
  %v572 = vpop.f32.mrf.mxu0
  %v573 = vadd.f32 %v554, %v572
  %v574 = vpop.f32.mrf.mxu0
  %v575 = vadd.f32 %v556, %v574
  %576 = vmatmul.bf16.gmra.mxu0 %v119
  %v577 = vpop.f32.mrf.mxu0
  %v578 = vadd.f32 %v559, %v577
  %v579 = vpop.f32.mrf.mxu0
  %v580 = vadd.f32 %v561, %v579
  %581 = vdwg.mxu0
  %582 = vmatpush.bf16.msra.mxu0 %v384
  %583 = vmatpush.bf16.msra.mxu0 %v382
  %584 = vmatpush.bf16.msra.mxu0 %v380
  %585 = vmatpush.bf16.msra.mxu0 %v378
  %586 = vmatpush.bf16.msra.mxu0 %v376
  %587 = vmatpush.bf16.msra.mxu0 %v374
  %588 = vmatpush.bf16.msra.mxu0 %v372
  %589 = vmatpush.bf16.msra.mxu0 %v370
  %590 = vmatmul.bf16.gmra.mxu0 %v116
  %v591 = vpop.f32.mrf.mxu0
  %v592 = vadd.f32 %v573, %v591
  %v593 = vpop.f32.mrf.mxu0
  %v594 = vadd.f32 %v575, %v593
  %595 = vmatmul.bf16.gmra.mxu0 %v120
  %v596 = vpop.f32.mrf.mxu0
  %v597 = vadd.f32 %v578, %v596
  %v598 = vpop.f32.mrf.mxu0
  %v599 = vadd.f32 %v580, %v598
  %600 = vdwg.mxu0
  %v601 = vld [vmem:[%s2] sm:$0x3]
  %v603 = vperm.slane %v601, 0
  %v604 = vperm.slane %v601, 1
  %v607 = vmul.f32 %v516, %v603
  %v608 = vmul.f32 %v592, %v604
  %v609 = vmul.f32 %v518, %v603
  %v610 = vmul.f32 %v594, %v604
  %v611 = vmul.f32 %v521, %v603
  %v612 = vmul.f32 %v597, %v604
  %v613 = vmul.f32 %v523, %v603
  %v614 = vmul.f32 %v599, %v604
  %v615 = vld [vmem:[%s3] sm:$0x3]
  %v617 = vperm.slane %v615, 0
  %v618 = vperm.slane %v615, 1
  %v621 = vadd.f32 %v607, %v617
  %v622 = vadd.f32 %v608, %v618
  %v623 = vadd.f32 %v609, %v617
  %v624 = vadd.f32 %v610, %v618
  %v625 = vadd.f32 %v611, %v617
  %v626 = vadd.f32 %v612, %v618
  %v627 = vadd.f32 %v613, %v617
  %v628 = vadd.f32 %v614, %v618
  %v629 = vmax.f32 %v621, 0.0
  %v630 = vmax.f32 %v622, 0.0
  %v631 = vmax.f32 %v623, 0.0
  %v632 = vmax.f32 %v624, 0.0
  %v633 = vmax.f32 %v625, 0.0
  %v634 = vmax.f32 %v626, 0.0
  %v635 = vmax.f32 %v627, 0.0
  %v636 = vmax.f32 %v628, 0.0
  %v637 = vpack.c.bf16 %v630, %v629
  %v638 = vpack.c.bf16 %v632, %v631
  %v639 = vpack.c.bf16 %v634, %v633
  %v640 = vpack.c.bf16 %v636, %v635
  %641 = vst [vmem:[%s4] sm:$0xff] %v637
  %642 = vst [vmem:[%s4 + $0x8] sm:$0xff] %v638
  %643 = vst [vmem:[%s4 + $0x10] sm:$0xff] %v639
  %644 = vst [vmem:[%s4 + $0x18] sm:$0xff] %v640
  // Predicated region
  $region18: #{generator_forward.11} parent=0 // pred_check
    _
  $region19: #{generator_forward.11} parent=0 // pred_check_branch
    %646 = sbr.rel (0) target = $region21
  $region20: #{generator_forward.11} parent=0 // pred_region
    _
  $region21: #{generator_forward.11} parent=0 // pred_fallthru
    _
  // Predicated region
  $region22: #{generator_forward.11} parent=0 // pred_check
    _
  $region23: #{generator_forward.11} parent=0 // pred_check_branch
    %648 = sbr.rel (0) target = $region25
  $region24: #{generator_forward.11} parent=0 // pred_region
    _
  $region25: #{generator_forward.11} parent=0 // pred_fallthru
    _

// kernel: tile.33
$region0: #{tile.33}
  #allocation0 [shape = 's32[1]{0}', space=sflag, size = 0x4, scoped, tag = 'scoped memory for tile.33']
  %s0 = inlined_call_operand.vmem [shape: f32[32], index: 0, kind: input, shape index: {}]
  %s1 = inlined_call_operand.vmem [shape: f32[4,32], index: 1, kind: output, shape index: {}]
  // Predicated region
  $region2: #{tile.33} parent=0 // pred_check
    _
  $region3: #{tile.33} parent=0 // pred_check_branch
    %3 = sbr.rel (0) target = $region5
  $region4: #{tile.33} parent=0 // pred_region
    _
  $region5: #{tile.33} parent=0 // pred_fallthru
    _
  %v4 = vld [vmem:[%s0] ss:$0 sm:$0xff]
  %5 = vst [vmem:[%s1] sm:$0xf] %v4

// kernel: generator_forward.12
$region0: #{generator_forward.12}
  #allocation0 [shape = 'u32[]', space=smem, size = 0x4, offset = 0x4, fixed_abs, tag = 'smem constant byte address 0x4 - core index']
  #allocation1 [shape = 'u32[72,128]{1,0:T(1,128)}', space=vmem, size = 0x9000, scoped, tag = 'internal scratch']
  %s0 = inlined_call_operand.vmem [shape: bf16[128,256], index: 0, kind: input, shape index: {}]
  %s1 = inlined_call_operand.vmem [shape: bf16[256,128], index: 1, kind: input, shape index: {}]
  %s2 = inlined_call_operand.vmem [shape: f32[1,128], index: 2, kind: input, shape index: {}]
  %s3 = inlined_call_operand.vmem [shape: f32[1,128], index: 3, kind: input, shape index: {}]
  %s4 = inlined_call_operand.vmem [shape: bf16[128,128], index: 4, kind: output, shape index: {}]
  %s5 = sld [smem:[#allocation0]]
  $region26: #{generator_forward.12} parent=0
    _
  %s7 = ssub.s32 1, %s5
  %s8 = scalar_select 0, %s7, %s5
  // Predicated region
  $region2: #{generator_forward.12} parent=0 // pred_check
    _
  $region3: #{generator_forward.12} parent=0 // pred_check_branch
    %10 = sbr.rel (0) target = $region5
  $region4: #{generator_forward.12} parent=0 // pred_region
    _
  $region5: #{generator_forward.12} parent=0 // pred_fallthru
    _
  // Predicated region
  $region6: #{generator_forward.12} parent=0 // pred_check
    _
  $region7: #{generator_forward.12} parent=0 // pred_check_branch
    %12 = sbr.rel (0) target = $region9
  $region8: #{generator_forward.12} parent=0 // pred_region
    _
  $region9: #{generator_forward.12} parent=0 // pred_fallthru
    _
  // Predicated region
  $region10: #{generator_forward.12} parent=0 // pred_check
    _
  $region11: #{generator_forward.12} parent=0 // pred_check_branch
    %14 = sbr.rel (0) target = $region13
  $region12: #{generator_forward.12} parent=0 // pred_region
    _
  $region13: #{generator_forward.12} parent=0 // pred_fallthru
    _
  // Predicated region
  $region14: #{generator_forward.12} parent=0 // pred_check
    _
  $region15: #{generator_forward.12} parent=0 // pred_check_branch
    %16 = sbr.rel (0) target = $region17
  $region16: #{generator_forward.12} parent=0 // pred_region
    _
  $region17: #{generator_forward.12} parent=0 // pred_fallthru
    _
  %v17 = vld [vmem:[%s0] sm:$0xff]
  %v18 = vld [vmem:[%s0 + $0x8] sm:$0xff]
  %v19 = vld [vmem:[%s0 + $0x10] sm:$0xff]
  %v20 = vld [vmem:[%s0 + $0x18] sm:$0xff]
  %v21 = vld [vmem:[%s0 + $0x20] sm:$0xff]
  %v22 = vld [vmem:[%s0 + $0x28] sm:$0xff]
  %v23 = vld [vmem:[%s0 + $0x30] sm:$0xff]
  %v24 = vld [vmem:[%s0 + $0x38] sm:$0xff]
  %v25 = vld [vmem:[%s0 + $0x40] sm:$0xff]
  %v26 = vld [vmem:[%s0 + $0x48] sm:$0xff]
  %v27 = vld [vmem:[%s0 + $0x50] sm:$0xff]
  %v28 = vld [vmem:[%s0 + $0x58] sm:$0xff]
  %v29 = vld [vmem:[%s0 + $0x60] sm:$0xff]
  %v30 = vld [vmem:[%s0 + $0x68] sm:$0xff]
  %v31 = vld [vmem:[%s0 + $0x70] sm:$0xff]
  %v32 = vld [vmem:[%s0 + $0x78] sm:$0xff]
  %v33 = vld [vmem:[%s1] sm:$0xf]
  %v34 = vld [vmem:[%s1 + $0x4] sm:$0xf]
  %v35 = vld [vmem:[%s1 + $0x8] sm:$0xf]
  %v36 = vld [vmem:[%s1 + $0xc] sm:$0xf]
  %v37 = vld [vmem:[%s1 + $0x10] sm:$0xf]
  %v38 = vld [vmem:[%s1 + $0x14] sm:$0xf]
  %v39 = vld [vmem:[%s1 + $0x18] sm:$0xf]
  %v40 = vld [vmem:[%s1 + $0x1c] sm:$0xf]
  %v41 = vld [vmem:[%s1 + $0x20] sm:$0xf]
  %v42 = vld [vmem:[%s1 + $0x24] sm:$0xf]
  %v43 = vld [vmem:[%s1 + $0x28] sm:$0xf]
  %v44 = vld [vmem:[%s1 + $0x2c] sm:$0xf]
  %v45 = vld [vmem:[%s1 + $0x30] sm:$0xf]
  %v46 = vld [vmem:[%s1 + $0x34] sm:$0xf]
  %v47 = vld [vmem:[%s1 + $0x38] sm:$0xf]
  %v48 = vld [vmem:[%s1 + $0x3c] sm:$0xf]
  %v49 = vld [vmem:[%s1 + $0x40] sm:$0xf]
  %v50 = vld [vmem:[%s1 + $0x44] sm:$0xf]
  %v51 = vld [vmem:[%s1 + $0x48] sm:$0xf]
  %v52 = vld [vmem:[%s1 + $0x4c] sm:$0xf]
  %v53 = vld [vmem:[%s1 + $0x50] sm:$0xf]
  %v54 = vld [vmem:[%s1 + $0x54] sm:$0xf]
  %v55 = vld [vmem:[%s1 + $0x58] sm:$0xf]
  %v56 = vld [vmem:[%s1 + $0x5c] sm:$0xf]
  %v57 = vld [vmem:[%s1 + $0x60] sm:$0xf]
  %v58 = vld [vmem:[%s1 + $0x64] sm:$0xf]
  %v59 = vld [vmem:[%s1 + $0x68] sm:$0xf]
  %v60 = vld [vmem:[%s1 + $0x6c] sm:$0xf]
  %v61 = vld [vmem:[%s1 + $0x70] sm:$0xf]
  %v62 = vld [vmem:[%s1 + $0x74] sm:$0xf]
  %v63 = vld [vmem:[%s1 + $0x78] sm:$0xf]
  %v64 = vld [vmem:[%s1 + $0x7c] sm:$0xf]
  %v81 = vunpack.c.l.b16 %v17
  %v82 = vunpack.c.h.b16 %v17
  %v83 = vunpack.c.l.b16 %v18
  %v84 = vunpack.c.h.b16 %v18
  %v85 = vunpack.c.l.b16 %v19
  %v86 = vunpack.c.h.b16 %v19
  %v87 = vunpack.c.l.b16 %v20
  %v88 = vunpack.c.h.b16 %v20
  %v89 = vunpack.c.l.b16 %v21
  %v90 = vunpack.c.h.b16 %v21
  %v91 = vunpack.c.l.b16 %v22
  %v92 = vunpack.c.h.b16 %v22
  %v93 = vunpack.c.l.b16 %v23
  %v94 = vunpack.c.h.b16 %v23
  %v95 = vunpack.c.l.b16 %v24
  %v96 = vunpack.c.h.b16 %v24
  %v97 = vunpack.c.l.b16 %v25
  %v98 = vunpack.c.h.b16 %v25
  %v99 = vunpack.c.l.b16 %v26
  %v100 = vunpack.c.h.b16 %v26
  %v101 = vunpack.c.l.b16 %v27
  %v102 = vunpack.c.h.b16 %v27
  %v103 = vunpack.c.l.b16 %v28
  %v104 = vunpack.c.h.b16 %v28
  %v105 = vunpack.c.l.b16 %v29
  %v106 = vunpack.c.h.b16 %v29
  %v107 = vunpack.c.l.b16 %v30
  %v108 = vunpack.c.h.b16 %v30
  %v109 = vunpack.c.l.b16 %v31
  %v110 = vunpack.c.h.b16 %v31
  %v111 = vunpack.c.l.b16 %v32
  %v112 = vunpack.c.h.b16 %v32
  %v113 = vpack.c.b16 %v83, %v81
  %v114 = vpack.c.b16 %v84, %v82
  %v115 = vpack.c.b16 %v87, %v85
  %v116 = vpack.c.b16 %v88, %v86
  %v117 = vpack.c.b16 %v91, %v89
  %v118 = vpack.c.b16 %v92, %v90
  %v119 = vpack.c.b16 %v95, %v93
  %v120 = vpack.c.b16 %v96, %v94
  %v121 = vpack.c.b16 %v99, %v97
  %v122 = vpack.c.b16 %v100, %v98
  %v123 = vpack.c.b16 %v103, %v101
  %v124 = vpack.c.b16 %v104, %v102
  %v125 = vpack.c.b16 %v107, %v105
  %v126 = vpack.c.b16 %v108, %v106
  %v127 = vpack.c.b16 %v111, %v109
  %v128 = vpack.c.b16 %v112, %v110
  %v177 = vunpack.c.l.b16 %v33
  %v178 = vunpack.c.l.b16 %v34
  %v179 = vunpack.c.l.b16 %v35
  %v180 = vunpack.c.l.b16 %v36
  %v181 = vunpack.c.l.b16 %v37
  %v182 = vunpack.c.l.b16 %v38
  %v183 = vunpack.c.l.b16 %v39
  %v184 = vunpack.c.l.b16 %v40
  %v185 = vunpack.c.l.b16 %v41
  %v186 = vunpack.c.l.b16 %v42
  %v187 = vunpack.c.l.b16 %v43
  %v188 = vunpack.c.l.b16 %v44
  %v189 = vunpack.c.l.b16 %v45
  %v190 = vunpack.c.l.b16 %v46
  %v191 = vunpack.c.l.b16 %v47
  %v192 = vunpack.c.l.b16 %v48
  %v193 = vunpack.c.l.b16 %v49
  %v194 = vunpack.c.l.b16 %v50
  %v195 = vunpack.c.l.b16 %v51
  %v196 = vunpack.c.l.b16 %v52
  %v197 = vunpack.c.l.b16 %v53
  %v198 = vunpack.c.l.b16 %v54
  %v199 = vunpack.c.l.b16 %v55
  %v200 = vunpack.c.l.b16 %v56
  %v201 = vunpack.c.l.b16 %v57
  %v202 = vunpack.c.l.b16 %v58
  %v203 = vunpack.c.l.b16 %v59
  %v204 = vunpack.c.l.b16 %v60
  %v205 = vunpack.c.l.b16 %v61
  %v206 = vunpack.c.l.b16 %v62
  %v207 = vunpack.c.l.b16 %v63
  %v208 = vunpack.c.l.b16 %v64
  %v209 = vpack.c.b16 %v178, %v177
  %v210 = vpack.c.b16 %v180, %v179
  %v211 = vpack.c.b16 %v182, %v181
  %v212 = vpack.c.b16 %v184, %v183
  %v213 = vpack.c.b16 %v186, %v185
  %v214 = vpack.c.b16 %v188, %v187
  %v215 = vpack.c.b16 %v190, %v189
  %v216 = vpack.c.b16 %v192, %v191
  %v217 = vpack.c.b16 %v194, %v193
  %v218 = vpack.c.b16 %v196, %v195
  %v219 = vpack.c.b16 %v198, %v197
  %v220 = vpack.c.b16 %v200, %v199
  %v221 = vpack.c.b16 %v202, %v201
  %v222 = vpack.c.b16 %v204, %v203
  %v223 = vpack.c.b16 %v206, %v205
  %v224 = vpack.c.b16 %v208, %v207
  %241 = vmatpush.bf16.msra.mxu0 %v216
  %242 = vmatpush.bf16.msra.mxu0 %v215
  %243 = vmatpush.bf16.msra.mxu0 %v214
  %244 = vmatpush.bf16.msra.mxu0 %v213
  %245 = vmatpush.bf16.msra.mxu0 %v212
  %246 = vmatpush.bf16.msra.mxu0 %v211
  %247 = vmatpush.bf16.msra.mxu0 %v210
  %248 = vmatpush.bf16.msra.mxu0 %v209
  %249 = vmatmul.bf16.gmra.mxu0 %v113
  %v250 = vpop.f32.mrf.mxu0
  %v251 = vadd.f32 0.0, %v250
  %v252 = vpop.f32.mrf.mxu0
  %v253 = vadd.f32 0.0, %v252
  %254 = vmatmul.bf16.gmra.mxu0 %v115
  %v255 = vpop.f32.mrf.mxu0
  %v256 = vadd.f32 0.0, %v255
  %v257 = vpop.f32.mrf.mxu0
  %v258 = vadd.f32 0.0, %v257
  %259 = vmatmul.bf16.gmra.mxu0 %v117
  %v260 = vpop.f32.mrf.mxu0
  %v261 = vadd.f32 0.0, %v260
  %v262 = vpop.f32.mrf.mxu0
  %v263 = vadd.f32 0.0, %v262
  %264 = vmatmul.bf16.gmra.mxu0 %v119
  %v265 = vpop.f32.mrf.mxu0
  %v266 = vadd.f32 0.0, %v265
  %v267 = vpop.f32.mrf.mxu0
  %v268 = vadd.f32 0.0, %v267
  %269 = vmatmul.bf16.gmra.mxu0 %v121
  %v270 = vpop.f32.mrf.mxu0
  %v271 = vadd.f32 0.0, %v270
  %v272 = vpop.f32.mrf.mxu0
  %v273 = vadd.f32 0.0, %v272
  %274 = vmatmul.bf16.gmra.mxu0 %v123
  %v275 = vpop.f32.mrf.mxu0
  %v276 = vadd.f32 0.0, %v275
  %v277 = vpop.f32.mrf.mxu0
  %v278 = vadd.f32 0.0, %v277
  %279 = vmatmul.bf16.gmra.mxu0 %v125
  %v280 = vpop.f32.mrf.mxu0
  %v281 = vadd.f32 0.0, %v280
  %v282 = vpop.f32.mrf.mxu0
  %v283 = vadd.f32 0.0, %v282
  %284 = vmatmul.bf16.gmra.mxu0 %v127
  %v285 = vpop.f32.mrf.mxu0
  %v286 = vadd.f32 0.0, %v285
  %v287 = vpop.f32.mrf.mxu0
  %v288 = vadd.f32 0.0, %v287
  %289 = vdwg.mxu0
  %290 = vmatpush.bf16.msra.mxu0 %v224
  %291 = vmatpush.bf16.msra.mxu0 %v223
  %292 = vmatpush.bf16.msra.mxu0 %v222
  %293 = vmatpush.bf16.msra.mxu0 %v221
  %294 = vmatpush.bf16.msra.mxu0 %v220
  %295 = vmatpush.bf16.msra.mxu0 %v219
  %296 = vmatpush.bf16.msra.mxu0 %v218
  %297 = vmatpush.bf16.msra.mxu0 %v217
  %298 = vmatmul.bf16.gmra.mxu0 %v114
  %v299 = vpop.f32.mrf.mxu0
  %v300 = vadd.f32 %v251, %v299
  %v301 = vpop.f32.mrf.mxu0
  %v302 = vadd.f32 %v253, %v301
  %303 = vmatmul.bf16.gmra.mxu0 %v116
  %v304 = vpop.f32.mrf.mxu0
  %v305 = vadd.f32 %v256, %v304
  %v306 = vpop.f32.mrf.mxu0
  %v307 = vadd.f32 %v258, %v306
  %308 = vmatmul.bf16.gmra.mxu0 %v118
  %v309 = vpop.f32.mrf.mxu0
  %v310 = vadd.f32 %v261, %v309
  %v311 = vpop.f32.mrf.mxu0
  %v312 = vadd.f32 %v263, %v311
  %313 = vmatmul.bf16.gmra.mxu0 %v120
  %v314 = vpop.f32.mrf.mxu0
  %v315 = vadd.f32 %v266, %v314
  %v316 = vpop.f32.mrf.mxu0
  %v317 = vadd.f32 %v268, %v316
  %318 = vmatmul.bf16.gmra.mxu0 %v122
  %v319 = vpop.f32.mrf.mxu0
  %v320 = vadd.f32 %v271, %v319
  %v321 = vpop.f32.mrf.mxu0
  %v322 = vadd.f32 %v273, %v321
  %323 = vmatmul.bf16.gmra.mxu0 %v124
  %v324 = vpop.f32.mrf.mxu0
  %v325 = vadd.f32 %v276, %v324
  %v326 = vpop.f32.mrf.mxu0
  %v327 = vadd.f32 %v278, %v326
  %328 = vmatmul.bf16.gmra.mxu0 %v126
  %v329 = vpop.f32.mrf.mxu0
  %v330 = vadd.f32 %v281, %v329
  %v331 = vpop.f32.mrf.mxu0
  %v332 = vadd.f32 %v283, %v331
  %333 = vmatmul.bf16.gmra.mxu0 %v128
  %v334 = vpop.f32.mrf.mxu0
  %v335 = vadd.f32 %v286, %v334
  %v336 = vpop.f32.mrf.mxu0
  %v337 = vadd.f32 %v288, %v336
  %338 = vdwg.mxu0
  %v339 = vld [vmem:[%s2] sm:$0x1]
  %v341 = vperm.slane %v339, 0
  %v343 = vmul.f32 %v300, %v341
  %v344 = vmul.f32 %v302, %v341
  %v345 = vmul.f32 %v305, %v341
  %v346 = vmul.f32 %v307, %v341
  %v347 = vmul.f32 %v310, %v341
  %v348 = vmul.f32 %v312, %v341
  %v349 = vmul.f32 %v315, %v341
  %v350 = vmul.f32 %v317, %v341
  %v351 = vmul.f32 %v320, %v341
  %v352 = vmul.f32 %v322, %v341
  %v353 = vmul.f32 %v325, %v341
  %v354 = vmul.f32 %v327, %v341
  %v355 = vmul.f32 %v330, %v341
  %v356 = vmul.f32 %v332, %v341
  %v357 = vmul.f32 %v335, %v341
  %v358 = vmul.f32 %v337, %v341
  %v359 = vld [vmem:[%s3] sm:$0x1]
  %v361 = vperm.slane %v359, 0
  %v363 = vadd.f32 %v343, %v361
  %v364 = vadd.f32 %v344, %v361
  %v365 = vadd.f32 %v345, %v361
  %v366 = vadd.f32 %v346, %v361
  %v367 = vadd.f32 %v347, %v361
  %v368 = vadd.f32 %v348, %v361
  %v369 = vadd.f32 %v349, %v361
  %v370 = vadd.f32 %v350, %v361
  %v371 = vadd.f32 %v351, %v361
  %v372 = vadd.f32 %v352, %v361
  %v373 = vadd.f32 %v353, %v361
  %v374 = vadd.f32 %v354, %v361
  %v375 = vadd.f32 %v355, %v361
  %v376 = vadd.f32 %v356, %v361
  %v377 = vadd.f32 %v357, %v361
  %v378 = vadd.f32 %v358, %v361
  %v379 = vmax.f32 %v363, 0.0
  %v380 = vmax.f32 %v364, 0.0
  %v381 = vmax.f32 %v365, 0.0
  %v382 = vmax.f32 %v366, 0.0
  %v383 = vmax.f32 %v367, 0.0
  %v384 = vmax.f32 %v368, 0.0
  %v385 = vmax.f32 %v369, 0.0
  %v386 = vmax.f32 %v370, 0.0
  %v387 = vmax.f32 %v371, 0.0
  %v388 = vmax.f32 %v372, 0.0
  %v389 = vmax.f32 %v373, 0.0
  %v390 = vmax.f32 %v374, 0.0
  %v391 = vmax.f32 %v375, 0.0
  %v392 = vmax.f32 %v376, 0.0
  %v393 = vmax.f32 %v377, 0.0
  %v394 = vmax.f32 %v378, 0.0
  %v395 = vpack.c.bf16 %v379, %v379
  %v396 = vpack.c.bf16 %v380, %v380
  %v397 = vpack.c.bf16 %v381, %v381
  %v398 = vpack.c.bf16 %v382, %v382
  %v399 = vpack.c.bf16 %v383, %v383
  %v400 = vpack.c.bf16 %v384, %v384
  %v401 = vpack.c.bf16 %v385, %v385
  %v402 = vpack.c.bf16 %v386, %v386
  %v403 = vpack.c.bf16 %v387, %v387
  %v404 = vpack.c.bf16 %v388, %v388
  %v405 = vpack.c.bf16 %v389, %v389
  %v406 = vpack.c.bf16 %v390, %v390
  %v407 = vpack.c.bf16 %v391, %v391
  %v408 = vpack.c.bf16 %v392, %v392
  %v409 = vpack.c.bf16 %v393, %v393
  %v410 = vpack.c.bf16 %v394, %v394
  %411 = vst [vmem:[%s4] sm:$0xf] %v395
  %412 = vst [vmem:[%s4 + $0x4] sm:$0xf] %v396
  %413 = vst [vmem:[%s4 + $0x8] sm:$0xf] %v397
  %414 = vst [vmem:[%s4 + $0xc] sm:$0xf] %v398
  %415 = vst [vmem:[%s4 + $0x10] sm:$0xf] %v399
  %416 = vst [vmem:[%s4 + $0x14] sm:$0xf] %v400
  %417 = vst [vmem:[%s4 + $0x18] sm:$0xf] %v401
  %418 = vst [vmem:[%s4 + $0x1c] sm:$0xf] %v402
  %419 = vst [vmem:[%s4 + $0x20] sm:$0xf] %v403
  %420 = vst [vmem:[%s4 + $0x24] sm:$0xf] %v404
  %421 = vst [vmem:[%s4 + $0x28] sm:$0xf] %v405
  %422 = vst [vmem:[%s4 + $0x2c] sm:$0xf] %v406
  %423 = vst [vmem:[%s4 + $0x30] sm:$0xf] %v407
  %424 = vst [vmem:[%s4 + $0x34] sm:$0xf] %v408
  %425 = vst [vmem:[%s4 + $0x38] sm:$0xf] %v409
  %426 = vst [vmem:[%s4 + $0x3c] sm:$0xf] %v410
  // Predicated region
  $region18: #{generator_forward.12} parent=0 // pred_check
    _
  $region19: #{generator_forward.12} parent=0 // pred_check_branch
    %428 = sbr.rel (0) target = $region21
  $region20: #{generator_forward.12} parent=0 // pred_region
    _
  $region21: #{generator_forward.12} parent=0 // pred_fallthru
    _
  // Predicated region
  $region22: #{generator_forward.12} parent=0 // pred_check
    _
  $region23: #{generator_forward.12} parent=0 // pred_check_branch
    %430 = sbr.rel (0) target = $region25
  $region24: #{generator_forward.12} parent=0 // pred_region
    _
  $region25: #{generator_forward.12} parent=0 // pred_fallthru
    _

// kernel: generator_forward.10
$region0: #{generator_forward.10}
  #allocation0 [shape = 'u32[]', space=smem, size = 0x4, offset = 0x4, fixed_abs, tag = 'smem constant byte address 0x4 - core index']
  #allocation1 [shape = 'u32[72,128]{1,0:T(1,128)}', space=vmem, size = 0x9000, scoped, tag = 'internal scratch']
  #allocation2 [shape = 'f32[32,128]{1,0:T(8,128)}', space=vmem, size = 0x4000, scoped, tag = 'scratch operand']
  %s0 = inlined_call_operand.vmem [shape: bf16[32,128], index: 0, kind: input, shape index: {}]
  %s1 = inlined_call_operand.hbm [shape: bf16[9,32,32], index: 1, kind: input, shape index: {}]
  %s2 = inlined_call_operand.vmem [shape: bf16[9,9,128,128], index: 2, kind: input, shape index: {}]
  %s3 = inlined_call_operand.vmem [shape: bf16[9,9,128,128], index: 3, kind: input, shape index: {}]
  %s4 = inlined_call_operand.vmem [shape: f32[9,1,128], index: 4, kind: input, shape index: {}]
  %s5 = inlined_call_operand.vmem [shape: f32[9,1,128], index: 5, kind: input, shape index: {}]
  %s6 = inlined_call_operand.vmem [shape: f32[9,1,128], index: 6, kind: input, shape index: {}]
  %s7 = inlined_call_operand.vmem [shape: f32[9,1,128], index: 7, kind: input, shape index: {}]
  %s8 = inlined_call_operand.vmem [shape: bf16[32,128], index: 8, kind: output, shape index: {}]
  %s9 = sld [smem:[#allocation0]]
  $region73: #{generator_forward.10} parent=0
    _
  %s11 = ssub.s32 1, %s9
  %s12 = scalar_select 0, %s11, %s9
  $region1: #{generator_forward.10} parent=0
    #allocation3 [shape = 'u8[73728]{0}', space=vmem, size = 0x12000, scoped, tag = 'input window, operand 1, single buffered']
    #allocation4 [shape = 's32[2]{0}', space=sflag, size = 0x8, scoped, tag = 'scoped memory for generator_forward.10']
    %13 = vsyncpa [#allocation4], 0
    loop: start=0, step=1, limit=11
    $region2: #{generator_forward.10} parent=1 // loop_pre_header
      _
    $region3: #{generator_forward.10} parent=1 // loop_header
      %s15 = sphi 0, %s19
      %p16 = scmp.ge.s32.totalorder %s15, 11
      %s23 = sphi 0, %s23
      %s25 = sphi 0, %s23
      %s26 = sphi 0, %s25
      %s40 = sphi 0, %s26
      %s44 = sphi 0, %s44
      %s46 = sphi 0, %s44
      %s47 = sphi 0, %s46
      %s61 = sphi 0, %s47
      %s67 = sphi 0, %s69
      %s70 = sphi 0, %s67
      %s71 = sphi 0, %s70
      %s87 = sphi 0, %s71
      %s93 = sphi 0, %s95
      %s96 = sphi 0, %s93
      %s97 = sphi 0, %s96
      %s113 = sphi 0, %s97
      %s119 = sphi 0, %s121
      %s122 = sphi 0, %s119
      %s123 = sphi 0, %s122
      %s139 = sphi 0, %s123
      %s145 = sphi 0, %s147
      %s148 = sphi 0, %s145
      %s149 = sphi 0, %s148
      %s165 = sphi 0, %s149
      %s171 = sphi 0, %s173
      %s174 = sphi 0, %s171
      %s175 = sphi 0, %s174
      %s191 = sphi 0, %s175
      %s197 = sphi 0, %s199
      %s200 = sphi 0, %s197
      %s201 = sphi 0, %s200
      %s217 = sphi 0, %s201
      %s221 = sphi 0, %s221
      %s223 = sphi 0, %s221
      %s224 = sphi 0, %s223
      %s238 = sphi 0, %s224
    $region4: #{generator_forward.10} parent=1 // loop_header_branch
      %18 = sbr.rel (%p16) target = $region8
    $region5: #{generator_forward.10} parent=1 // loop_body
      %s20 = ssub.s32 %s15, 1
      %s21 = ssub.s32 %s15, 2
      %s22 = sadd.s32 %s15, 1
      %s24 = sadd.s32 %s23, 1
      %p27 = scmp.eq.s32.totalorder %s15, 8
      %p28 = scmp.ne.s32.totalorder %s23, %s25
      %p29 = scmp.eq.s32.totalorder %s15, 0
      %p30 = por %p28, %p29
      %p31 = scmp.ne.s32.totalorder %s23, %s25
      %p32 = scmp.eq.s32.totalorder %s20, 8
      %p33 = por %p31, %p32
      %p34 = scmp.ne.s32.totalorder %s25, %s26
      %p35 = scmp.eq.s32.totalorder %s20, 0
      %p36 = por %p34, %p35
      %p37 = scmp.ne.s32.totalorder %s25, %s26
      %p38 = scmp.eq.s32.totalorder %s21, 8
      %p39 = por %p37, %p38
      %p41 = scmp.ne.s32.totalorder %s26, %s40
      %p42 = scmp.eq.s32.totalorder %s21, 0
      %p43 = por %p41, %p42
      %s45 = sadd.s32 %s44, 1
      %p48 = scmp.eq.s32.totalorder %s15, 8
      %p49 = scmp.ne.s32.totalorder %s44, %s46
      %p50 = scmp.eq.s32.totalorder %s15, 0
      %p51 = por %p49, %p50
      %p52 = scmp.ne.s32.totalorder %s44, %s46
      %p53 = scmp.eq.s32.totalorder %s20, 8
      %p54 = por %p52, %p53
      %p55 = scmp.ne.s32.totalorder %s46, %s47
      %p56 = scmp.eq.s32.totalorder %s20, 0
      %p57 = por %p55, %p56
      %p58 = scmp.ne.s32.totalorder %s46, %s47
      %p59 = scmp.eq.s32.totalorder %s21, 8
      %p60 = por %p58, %p59
      %p62 = scmp.ne.s32.totalorder %s47, %s61
      %p63 = scmp.eq.s32.totalorder %s21, 0
      %p64 = por %p62, %p63
      %s65 = ssub.s32 %s15, %s22
      %p66 = scmp.eq.s32.totalorder %s65, 0
      %s68 = sadd.s32 %s67, 1
      %s69 = scalar_select %p66, %s67, %s68
      %p72 = pneg %p66
      %p73 = scmp.eq.s32.totalorder %s15, 8
      %p74 = por %p72, %p73
      %p75 = scmp.ne.s32.totalorder %s67, %s70
      %p76 = scmp.eq.s32.totalorder %s15, 0
      %p77 = por %p75, %p76
      %p78 = scmp.ne.s32.totalorder %s67, %s70
      %p79 = scmp.eq.s32.totalorder %s20, 8
      %p80 = por %p78, %p79
      %p81 = scmp.ne.s32.totalorder %s70, %s71
      %p82 = scmp.eq.s32.totalorder %s20, 0
      %p83 = por %p81, %p82
      %p84 = scmp.ne.s32.totalorder %s70, %s71
      %p85 = scmp.eq.s32.totalorder %s21, 8
      %p86 = por %p84, %p85
      %p88 = scmp.ne.s32.totalorder %s71, %s87
      %p89 = scmp.eq.s32.totalorder %s21, 0
      %p90 = por %p88, %p89
      %s91 = ssub.s32 %s15, %s22
      %p92 = scmp.eq.s32.totalorder %s91, 0
      %s94 = sadd.s32 %s93, 1
      %s95 = scalar_select %p92, %s93, %s94
      %p98 = pneg %p92
      %p99 = scmp.eq.s32.totalorder %s15, 8
      %p100 = por %p98, %p99
      %p101 = scmp.ne.s32.totalorder %s93, %s96
      %p102 = scmp.eq.s32.totalorder %s15, 0
      %p103 = por %p101, %p102
      %p104 = scmp.ne.s32.totalorder %s93, %s96
      %p105 = scmp.eq.s32.totalorder %s20, 8
      %p106 = por %p104, %p105
      %p107 = scmp.ne.s32.totalorder %s96, %s97
      %p108 = scmp.eq.s32.totalorder %s20, 0
      %p109 = por %p107, %p108
      %p110 = scmp.ne.s32.totalorder %s96, %s97
      %p111 = scmp.eq.s32.totalorder %s21, 8
      %p112 = por %p110, %p111
      %p114 = scmp.ne.s32.totalorder %s97, %s113
      %p115 = scmp.eq.s32.totalorder %s21, 0
      %p116 = por %p114, %p115
      %s117 = ssub.s32 %s15, %s22
      %p118 = scmp.eq.s32.totalorder %s117, 0
      %s120 = sadd.s32 %s119, 1
      %s121 = scalar_select %p118, %s119, %s120
      %p124 = pneg %p118
      %p125 = scmp.eq.s32.totalorder %s15, 8
      %p126 = por %p124, %p125
      %p127 = scmp.ne.s32.totalorder %s119, %s122
      %p128 = scmp.eq.s32.totalorder %s15, 0
      %p129 = por %p127, %p128
      %p130 = scmp.ne.s32.totalorder %s119, %s122
      %p131 = scmp.eq.s32.totalorder %s20, 8
      %p132 = por %p130, %p131
      %p133 = scmp.ne.s32.totalorder %s122, %s123
      %p134 = scmp.eq.s32.totalorder %s20, 0
      %p135 = por %p133, %p134
      %p136 = scmp.ne.s32.totalorder %s122, %s123
      %p137 = scmp.eq.s32.totalorder %s21, 8
      %p138 = por %p136, %p137
      %p140 = scmp.ne.s32.totalorder %s123, %s139
      %p141 = scmp.eq.s32.totalorder %s21, 0
      %p142 = por %p140, %p141
      %s143 = ssub.s32 %s15, %s22
      %p144 = scmp.eq.s32.totalorder %s143, 0
      %s146 = sadd.s32 %s145, 1
      %s147 = scalar_select %p144, %s145, %s146
      %p150 = pneg %p144
      %p151 = scmp.eq.s32.totalorder %s15, 8
      %p152 = por %p150, %p151
      %p153 = scmp.ne.s32.totalorder %s145, %s148
      %p154 = scmp.eq.s32.totalorder %s15, 0
      %p155 = por %p153, %p154
      %p156 = scmp.ne.s32.totalorder %s145, %s148
      %p157 = scmp.eq.s32.totalorder %s20, 8
      %p158 = por %p156, %p157
      %p159 = scmp.ne.s32.totalorder %s148, %s149
      %p160 = scmp.eq.s32.totalorder %s20, 0
      %p161 = por %p159, %p160
      %p162 = scmp.ne.s32.totalorder %s148, %s149
      %p163 = scmp.eq.s32.totalorder %s21, 8
      %p164 = por %p162, %p163
      %p166 = scmp.ne.s32.totalorder %s149, %s165
      %p167 = scmp.eq.s32.totalorder %s21, 0
      %p168 = por %p166, %p167
      %s169 = ssub.s32 %s15, %s22
      %p170 = scmp.eq.s32.totalorder %s169, 0
      %s172 = sadd.s32 %s171, 1
      %s173 = scalar_select %p170, %s171, %s172
      %p176 = pneg %p170
      %p177 = scmp.eq.s32.totalorder %s15, 8
      %p178 = por %p176, %p177
      %p179 = scmp.ne.s32.totalorder %s171, %s174
      %p180 = scmp.eq.s32.totalorder %s15, 0
      %p181 = por %p179, %p180
      %p182 = scmp.ne.s32.totalorder %s171, %s174
      %p183 = scmp.eq.s32.totalorder %s20, 8
      %p184 = por %p182, %p183
      %p185 = scmp.ne.s32.totalorder %s174, %s175
      %p186 = scmp.eq.s32.totalorder %s20, 0
      %p187 = por %p185, %p186
      %p188 = scmp.ne.s32.totalorder %s174, %s175
      %p189 = scmp.eq.s32.totalorder %s21, 8
      %p190 = por %p188, %p189
      %p192 = scmp.ne.s32.totalorder %s175, %s191
      %p193 = scmp.eq.s32.totalorder %s21, 0
      %p194 = por %p192, %p193
      %s195 = ssub.s32 %s15, %s22
      %p196 = scmp.eq.s32.totalorder %s195, 0
      %s198 = sadd.s32 %s197, 1
      %s199 = scalar_select %p196, %s197, %s198
      %p202 = pneg %p196
      %p203 = scmp.eq.s32.totalorder %s15, 8
      %p204 = por %p202, %p203
      %p205 = scmp.ne.s32.totalorder %s197, %s200
      %p206 = scmp.eq.s32.totalorder %s15, 0
      %p207 = por %p205, %p206
      %p208 = scmp.ne.s32.totalorder %s197, %s200
      %p209 = scmp.eq.s32.totalorder %s20, 8
      %p210 = por %p208, %p209
      %p211 = scmp.ne.s32.totalorder %s200, %s201
      %p212 = scmp.eq.s32.totalorder %s20, 0
      %p213 = por %p211, %p212
      %p214 = scmp.ne.s32.totalorder %s200, %s201
      %p215 = scmp.eq.s32.totalorder %s21, 8
      %p216 = por %p214, %p215
      %p218 = scmp.ne.s32.totalorder %s201, %s217
      %p219 = scmp.eq.s32.totalorder %s21, 0
      %p220 = por %p218, %p219
      %s222 = sadd.s32 %s221, 1
      %p225 = scmp.eq.s32.totalorder %s15, 8
      %p226 = scmp.ne.s32.totalorder %s221, %s223
      %p227 = scmp.eq.s32.totalorder %s15, 0
      %p228 = por %p226, %p227
      %p229 = scmp.ne.s32.totalorder %s221, %s223
      %p230 = scmp.eq.s32.totalorder %s20, 8
      %p231 = por %p229, %p230
      %p232 = scmp.ne.s32.totalorder %s223, %s224
      %p233 = scmp.eq.s32.totalorder %s20, 0
      %p234 = por %p232, %p233
      %p235 = scmp.ne.s32.totalorder %s223, %s224
      %p236 = scmp.eq.s32.totalorder %s21, 8
      %p237 = por %p235, %p236
      %p239 = scmp.ne.s32.totalorder %s224, %s238
      %p240 = scmp.eq.s32.totalorder %s21, 0
      %p241 = por %p239, %p240
      %p242 = scmp.le.s32.totalorder 1, %s15
      %p243 = scmp.lt.s32.totalorder %s15, 10
      %p244 = pnand %p242, %p243
      %p245 = pneg %p244
      // Predicated region
      $region9: #{generator_forward.10} parent=5 // pred_check
        _
      $region10: #{generator_forward.10} parent=5 // pred_check_branch
        %247 = sbr.rel (%p244) target = $region12
      $region11: #{generator_forward.10} parent=5 // pred_region
        %s248 = ssub.s32 %s15, 1
        // Predicated region
        $region13: #{generator_forward.10} parent=11 // pred_check
          %p249 = pneg %p36
        $region14: #{generator_forward.10} parent=11 // pred_check_branch
          %251 = sbr.rel (%p249) target = $region16
        $region15: #{generator_forward.10} parent=11 // pred_region
          _
        $region16: #{generator_forward.10} parent=11 // pred_fallthru
          _
        // Predicated region
        $region17: #{generator_forward.10} parent=11 // pred_check
          %p252 = pneg %p57
        $region18: #{generator_forward.10} parent=11 // pred_check_branch
          %254 = sbr.rel (%p252) target = $region20
        $region19: #{generator_forward.10} parent=11 // pred_region
          %256 = vsyncadd [#allocation4], 0
          %s257 = sshll.u32 %s1, 4
          %s258 = int_to_ptr.hbm [resolvable:$true] %s257
          %s259 = sshll.u32 [#allocation3], 4
          %s260 = int_to_ptr.vmem [resolvable:$true] %s259
          %265 = dma.hbm_to_vmem [thread:$0]  %s258, 2304, %s260, [#allocation4], 64, 64, 4
        $region20: #{generator_forward.10} parent=11 // pred_fallthru
          _
      $region12: #{generator_forward.10} parent=5 // pred_fallthru
        _
      %p266 = scmp.lt.s32.totalorder %s15, 9
      // Predicated region
      $region21: #{generator_forward.10} parent=5 // pred_check
        %p267 = pneg %p266
      $region22: #{generator_forward.10} parent=5 // pred_check_branch
        %269 = sbr.rel (%p267) target = $region24
      $region23: #{generator_forward.10} parent=5 // pred_region
        // Predicated region
        $region25: #{generator_forward.10} parent=23 // pred_check
          %p270 = pneg %p77
        $region26: #{generator_forward.10} parent=23 // pred_check_branch
          %272 = sbr.rel (%p270) target = $region28
        $region27: #{generator_forward.10} parent=23 // pred_region
          %p273 = scmp.lt.s32.totalorder %s15, 8
          %s274 = scalar_select %p273, %s15, 8
          %s275 = smul.addr %s274, 144
          %s276 = smul.addr %s275, 4
          %s277 = scalar_lea.vmem %s2, %s276
        $region28: #{generator_forward.10} parent=23 // pred_fallthru
          _
        // Predicated region
        $region29: #{generator_forward.10} parent=23 // pred_check
          %p278 = pneg %p103
        $region30: #{generator_forward.10} parent=23 // pred_check_branch
          %280 = sbr.rel (%p278) target = $region32
        $region31: #{generator_forward.10} parent=23 // pred_region
          %p281 = scmp.lt.s32.totalorder %s15, 8
          %s282 = scalar_select %p281, %s15, 8
          %s283 = smul.addr %s282, 144
          %s284 = smul.addr %s283, 4
          %s285 = scalar_lea.vmem %s3, %s284
        $region32: #{generator_forward.10} parent=23 // pred_fallthru
          _
        // Predicated region
        $region33: #{generator_forward.10} parent=23 // pred_check
          %p286 = pneg %p129
        $region34: #{generator_forward.10} parent=23 // pred_check_branch
          %288 = sbr.rel (%p286) target = $region36
        $region35: #{generator_forward.10} parent=23 // pred_region
          %p289 = scmp.lt.s32.totalorder %s15, 8
          %s290 = scalar_select %p289, %s15, 8
          %s291 = scalar_lea.vmem %s4, %s290
        $region36: #{generator_forward.10} parent=23 // pred_fallthru
          _
        // Predicated region
        $region37: #{generator_forward.10} parent=23 // pred_check
          %p292 = pneg %p155
        $region38: #{generator_forward.10} parent=23 // pred_check_branch
          %294 = sbr.rel (%p292) target = $region40
        $region39: #{generator_forward.10} parent=23 // pred_region
          %p295 = scmp.lt.s32.totalorder %s15, 8
          %s296 = scalar_select %p295, %s15, 8
          %s297 = scalar_lea.vmem %s5, %s296
        $region40: #{generator_forward.10} parent=23 // pred_fallthru
          _
        // Predicated region
        $region41: #{generator_forward.10} parent=23 // pred_check
          %p298 = pneg %p181
        $region42: #{generator_forward.10} parent=23 // pred_check_branch
          %300 = sbr.rel (%p298) target = $region44
        $region43: #{generator_forward.10} parent=23 // pred_region
          %p301 = scmp.lt.s32.totalorder %s15, 8
          %s302 = scalar_select %p301, %s15, 8
          %s303 = scalar_lea.vmem %s6, %s302
        $region44: #{generator_forward.10} parent=23 // pred_fallthru
          _
        // Predicated region
        $region45: #{generator_forward.10} parent=23 // pred_check
          %p304 = pneg %p207
        $region46: #{generator_forward.10} parent=23 // pred_check_branch
          %306 = sbr.rel (%p304) target = $region48
        $region47: #{generator_forward.10} parent=23 // pred_region
          %p307 = scmp.lt.s32.totalorder %s15, 8
          %s308 = scalar_select %p307, %s15, 8
          %s309 = scalar_lea.vmem %s7, %s308
        $region48: #{generator_forward.10} parent=23 // pred_fallthru
          _
      $region24: #{generator_forward.10} parent=5 // pred_fallthru
        _
      %p310 = scmp.le.s32.totalorder 1, %s15
      %p311 = scmp.lt.s32.totalorder %s15, 10
      %p312 = pnand %p310, %p311
      %p313 = pneg %p312
      // Predicated region
      $region49: #{generator_forward.10} parent=5 // pred_check
        _
      $region50: #{generator_forward.10} parent=5 // pred_check_branch
        %315 = sbr.rel (%p312) target = $region52
      $region51: #{generator_forward.10} parent=5 // pred_region
        %s316 = ssub.s32 %s15, 1
        // Predicated region
        $region53: #{generator_forward.10} parent=51 // pred_check
          %p317 = pneg %p57
        $region54: #{generator_forward.10} parent=51 // pred_check_branch
          %319 = sbr.rel (%p317) target = $region56
        $region55: #{generator_forward.10} parent=51 // pred_region
          %321 = dma.done [#allocation4], 2304
        $region56: #{generator_forward.10} parent=51 // pred_fallthru
          _
        %p322 = pneg %p36
        %p323 = pneg %p33
        %p324 = pneg %p57
        %p325 = pneg %p54
        %p326 = scmp.lt.s32.totalorder %s20, 8
        %s327 = scalar_select %p326, %s20, 8
        %s328 = smul.addr %s327, 144
        %s329 = smul.addr %s328, 4
        %s330 = scalar_lea.vmem %s2, %s329
        %p331 = pneg %p83
        %p332 = pneg %p80
        %p333 = scmp.lt.s32.totalorder %s20, 8
        %s334 = scalar_select %p333, %s20, 8
        %s335 = smul.addr %s334, 144
        %s336 = smul.addr %s335, 4
        %s337 = scalar_lea.vmem %s3, %s336
        %p338 = pneg %p109
        %p339 = pneg %p106
        %p340 = scmp.lt.s32.totalorder %s20, 8
        %s341 = scalar_select %p340, %s20, 8
        %s342 = scalar_lea.vmem %s4, %s341
        %p343 = pneg %p135
        %p344 = pneg %p132
        %p345 = scmp.lt.s32.totalorder %s20, 8
        %s346 = scalar_select %p345, %s20, 8
        %s347 = scalar_lea.vmem %s5, %s346
        %p348 = pneg %p161
        %p349 = pneg %p158
        %p350 = scmp.lt.s32.totalorder %s20, 8
        %s351 = scalar_select %p350, %s20, 8
        %s352 = scalar_lea.vmem %s6, %s351
        %p353 = pneg %p187
        %p354 = pneg %p184
        %p355 = scmp.lt.s32.totalorder %s20, 8
        %s356 = scalar_select %p355, %s20, 8
        %s357 = scalar_lea.vmem %s7, %s356
        %p358 = pneg %p213
        %p359 = pneg %p210
        %p360 = pneg %p234
        %p361 = pneg %p231
        %p362 = scmp.lt.s32.totalorder %s20, 8
        %s363 = scalar_select %p362, %s20, 8
        %s364 = smul.addr %s363, 144
        %s365 = smul.addr %s364, 4
        %s366 = scalar_lea.vmem %s2, %s365
        %p367 = scmp.lt.s32.totalorder %s20, 8
        %s368 = scalar_select %p367, %s20, 8
        %s369 = smul.addr %s368, 144
        %s370 = smul.addr %s369, 4
        %s371 = scalar_lea.vmem %s3, %s370
        %p372 = scmp.lt.s32.totalorder %s20, 8
        %s373 = scalar_select %p372, %s20, 8
        %s374 = scalar_lea.vmem %s4, %s373
        %p375 = scmp.lt.s32.totalorder %s20, 8
        %s376 = scalar_select %p375, %s20, 8
        %s377 = scalar_lea.vmem %s5, %s376
        %p378 = scmp.lt.s32.totalorder %s20, 8
        %s379 = scalar_select %p378, %s20, 8
        %s380 = scalar_lea.vmem %s6, %s379
        %p381 = scmp.lt.s32.totalorder %s20, 8
        %s382 = scalar_select %p381, %s20, 8
        %s383 = scalar_lea.vmem %s7, %s382
        %p385 = scmp.eq.s32.totalorder %s20, 0
        // Predicated region
        $region57: #{generator_forward.10} parent=51 // pred_check
          %p386 = pneg %p385
        $region58: #{generator_forward.10} parent=51 // pred_check_branch
          %388 = sbr.rel (%p386) target = $region60
        $region59: #{generator_forward.10} parent=51 // pred_region
          %v389 = vld [vmem:[%s0] sm:$0xf]
          %v390 = vld [vmem:[%s0 + $0x4] sm:$0xf]
          %v391 = vld [vmem:[%s0 + $0x8] sm:$0xf]
          %v392 = vld [vmem:[%s0 + $0xc] sm:$0xf]
          %v393 = vunpack.c.l.bf16 %v389
          %v394 = vunpack.c.l.bf16 %v390
          %v395 = vunpack.c.l.bf16 %v391
          %v396 = vunpack.c.l.bf16 %v392
          %397 = vst [vmem:[#allocation2] sm:$0xff] %v393
          %398 = vst [vmem:[#allocation2 + $0x8] sm:$0xff] %v394
          %399 = vst [vmem:[#allocation2 + $0x10] sm:$0xff] %v395
          %400 = vst [vmem:[#allocation2 + $0x18] sm:$0xff] %v396
        $region60: #{generator_forward.10} parent=51 // pred_fallthru
          _
        %v401 = vld [vmem:[#allocation2] sm:$0xff]
        %v402 = vld [vmem:[#allocation2 + $0x8] sm:$0xff]
        %v403 = vld [vmem:[#allocation2 + $0x10] sm:$0xff]
        %v404 = vld [vmem:[#allocation2 + $0x18] sm:$0xff]
        %v405 = vpack.c.bf16 %v402, %v401
        %v406 = vpack.c.bf16 %v404, %v403
        %v407 = vld [vmem:[#allocation3] sm:$0xf]
        %v408 = vld [vmem:[#allocation3 + $0x4] sm:$0xf]
        %v409 = vld [vmem:[#allocation3 + $0x8] sm:$0xf]
        %v410 = vld [vmem:[#allocation3 + $0xc] sm:$0xf]
        %v415 = vunpack.c.l.b16 %v407
        %v416 = vunpack.c.l.b16 %v408
        %v417 = vunpack.c.l.b16 %v409
        %v418 = vunpack.c.l.b16 %v410
        %v419 = vpack.c.b16 %v416, %v415
        %v420 = vpack.c.b16 %v418, %v417
        %vm421 = vcmask 261120
        %v423 = vsel %vm421, %v419, 0
        %v426 = vsel %vm421, %v420, 0
        %428 = vmatpush.bf16.msra.mxu0 0
        %429 = vmatpush.bf16.msra.mxu0 0
        %430 = vmatpush.bf16.msra.mxu0 0
        %431 = vmatpush.bf16.msra.mxu0 0
        %432 = vmatpush.bf16.msra.mxu0 0
        %433 = vmatpush.bf16.msra.mxu0 0
        %434 = vmatpush.bf16.msra.mxu0 %v406
        %435 = vmatpush.bf16.msra.mxu0 %v405
        %436 = vmatmul.bf16.gmra.mxu0 %v423
        %v437 = vpop.f32.mrf.mxu0
        %v438 = vadd.f32 0.0, %v437
        %v439 = vpop.f32.mrf.mxu0
        %v440 = vadd.f32 0.0, %v439
        %441 = vmatmul.bf16.gmra.mxu0 %v426
        %v442 = vpop.f32.mrf.mxu0
        %v443 = vadd.f32 0.0, %v442
        %v444 = vpop.f32.mrf.mxu0
        %v445 = vadd.f32 0.0, %v444
        %446 = vdwg.mxu0
        %v447 = vpack.c.bf16 %v440, %v438
        %v448 = vpack.c.bf16 %v445, %v443
        %v449 = vld [vmem:[%s366] sm:$0xf]
        %v450 = vld [vmem:[%s366 + $0x4] sm:$0xf]
        %v451 = vld [vmem:[%s366 + $0x8] sm:$0xf]
        %v452 = vld [vmem:[%s366 + $0xc] sm:$0xf]
        %v453 = vld [vmem:[%s366 + $0x10] sm:$0xf]
        %v454 = vld [vmem:[%s366 + $0x14] sm:$0xf]
        %v455 = vld [vmem:[%s366 + $0x18] sm:$0xf]
        %v456 = vld [vmem:[%s366 + $0x1c] sm:$0xf]
        %v457 = vld [vmem:[%s366 + $0x20] sm:$0xf]
        %v458 = vld [vmem:[%s366 + $0x24] sm:$0xf]
        %v459 = vld [vmem:[%s366 + $0x28] sm:$0xf]
        %v460 = vld [vmem:[%s366 + $0x2c] sm:$0xf]
        %v461 = vld [vmem:[%s366 + $0x30] sm:$0xf]
        %v462 = vld [vmem:[%s366 + $0x34] sm:$0xf]
        %v463 = vld [vmem:[%s366 + $0x38] sm:$0xf]
        %v464 = vld [vmem:[%s366 + $0x3c] sm:$0xf]
        %s465 = scalar_lea.vmem [#allocation3], 16
        %v466 = vld [vmem:[%s465] sm:$0xf]
        %v467 = vld [vmem:[%s465 + $0x4] sm:$0xf]
        %v468 = vld [vmem:[%s465 + $0x8] sm:$0xf]
        %v469 = vld [vmem:[%s465 + $0xc] sm:$0xf]
        %v474 = vunpack.c.l.b16 %v466
        %v475 = vunpack.c.l.b16 %v467
        %v476 = vunpack.c.l.b16 %v468
        %v477 = vunpack.c.l.b16 %v469
        %v478 = vpack.c.b16 %v475, %v474
        %v479 = vpack.c.b16 %v477, %v476
        %v481 = vsel %vm421, %v478, 0
        %v484 = vsel %vm421, %v479, 0
        %486 = vmatpush.bf16.msra.mxu0 0
        %487 = vmatpush.bf16.msra.mxu0 0
        %488 = vmatpush.bf16.msra.mxu0 0
        %489 = vmatpush.bf16.msra.mxu0 0
        %490 = vmatpush.bf16.msra.mxu0 0
        %491 = vmatpush.bf16.msra.mxu0 0
        %492 = vmatpush.bf16.msra.mxu0 %v406
        %493 = vmatpush.bf16.msra.mxu0 %v405
        %494 = vmatmul.bf16.gmra.mxu0 %v481
        %v495 = vpop.f32.mrf.mxu0
        %v496 = vadd.f32 0.0, %v495
        %v497 = vpop.f32.mrf.mxu0
        %v498 = vadd.f32 0.0, %v497
        %499 = vmatmul.bf16.gmra.mxu0 %v484
        %v500 = vpop.f32.mrf.mxu0
        %v501 = vadd.f32 0.0, %v500
        %v502 = vpop.f32.mrf.mxu0
        %v503 = vadd.f32 0.0, %v502
        %504 = vdwg.mxu0
        %v505 = vpack.c.bf16 %v498, %v496
        %v506 = vpack.c.bf16 %v503, %v501
        %s507 = scalar_lea.vmem %s366, 64
        %v508 = vld [vmem:[%s507] sm:$0xf]
        %v509 = vld [vmem:[%s507 + $0x4] sm:$0xf]
        %v510 = vld [vmem:[%s507 + $0x8] sm:$0xf]
        %v511 = vld [vmem:[%s507 + $0xc] sm:$0xf]
        %v512 = vld [vmem:[%s507 + $0x10] sm:$0xf]
        %v513 = vld [vmem:[%s507 + $0x14] sm:$0xf]
        %v514 = vld [vmem:[%s507 + $0x18] sm:$0xf]
        %v515 = vld [vmem:[%s507 + $0x1c] sm:$0xf]
        %v516 = vld [vmem:[%s507 + $0x20] sm:$0xf]
        %v517 = vld [vmem:[%s507 + $0x24] sm:$0xf]
        %v518 = vld [vmem:[%s507 + $0x28] sm:$0xf]
        %v519 = vld [vmem:[%s507 + $0x2c] sm:$0xf]
        %v520 = vld [vmem:[%s507 + $0x30] sm:$0xf]
        %v521 = vld [vmem:[%s507 + $0x34] sm:$0xf]
        %v522 = vld [vmem:[%s507 + $0x38] sm:$0xf]
        %v523 = vld [vmem:[%s507 + $0x3c] sm:$0xf]
        %v540 = vunpack.c.l.b16 %v508
        %v541 = vunpack.c.l.b16 %v509
        %v542 = vunpack.c.l.b16 %v510
        %v543 = vunpack.c.l.b16 %v511
        %v544 = vunpack.c.l.b16 %v512
        %v545 = vunpack.c.l.b16 %v513
        %v546 = vunpack.c.l.b16 %v514
        %v547 = vunpack.c.l.b16 %v515
        %v548 = vunpack.c.l.b16 %v516
        %v549 = vunpack.c.l.b16 %v517
        %v550 = vunpack.c.l.b16 %v518
        %v551 = vunpack.c.l.b16 %v519
        %v552 = vunpack.c.l.b16 %v520
        %v553 = vunpack.c.l.b16 %v521
        %v554 = vunpack.c.l.b16 %v522
        %v555 = vunpack.c.l.b16 %v523
        %v556 = vpack.c.b16 %v541, %v540
        %v557 = vpack.c.b16 %v543, %v542
        %v558 = vpack.c.b16 %v545, %v544
        %v559 = vpack.c.b16 %v547, %v546
        %v560 = vpack.c.b16 %v549, %v548
        %v561 = vpack.c.b16 %v551, %v550
        %v562 = vpack.c.b16 %v553, %v552
        %v563 = vpack.c.b16 %v555, %v554
        %572 = vmatpush.bf16.msra.mxu0 %v563
        %573 = vmatpush.bf16.msra.mxu0 %v562
        %574 = vmatpush.bf16.msra.mxu0 %v561
        %575 = vmatpush.bf16.msra.mxu0 %v560
        %576 = vmatpush.bf16.msra.mxu0 %v559
        %577 = vmatpush.bf16.msra.mxu0 %v558
        %578 = vmatpush.bf16.msra.mxu0 %v557
        %579 = vmatpush.bf16.msra.mxu0 %v556
        %580 = vmatmul.bf16.gmra.mxu0 %v505
        %v581 = vpop.f32.mrf.mxu0
        %v582 = vadd.f32 0.0, %v581
        %v583 = vpop.f32.mrf.mxu0
        %v584 = vadd.f32 0.0, %v583
        %585 = vmatmul.bf16.gmra.mxu0 %v506
        %v586 = vpop.f32.mrf.mxu0
        %v587 = vadd.f32 0.0, %v586
        %v588 = vpop.f32.mrf.mxu0
        %v589 = vadd.f32 0.0, %v588
        %590 = vdwg.mxu0
        %v607 = vunpack.c.l.b16 %v449
        %v608 = vunpack.c.l.b16 %v450
        %v609 = vunpack.c.l.b16 %v451
        %v610 = vunpack.c.l.b16 %v452
        %v611 = vunpack.c.l.b16 %v453
        %v612 = vunpack.c.l.b16 %v454
        %v613 = vunpack.c.l.b16 %v455
        %v614 = vunpack.c.l.b16 %v456
        %v615 = vunpack.c.l.b16 %v457
        %v616 = vunpack.c.l.b16 %v458
        %v617 = vunpack.c.l.b16 %v459
        %v618 = vunpack.c.l.b16 %v460
        %v619 = vunpack.c.l.b16 %v461
        %v620 = vunpack.c.l.b16 %v462
        %v621 = vunpack.c.l.b16 %v463
        %v622 = vunpack.c.l.b16 %v464
        %v623 = vpack.c.b16 %v608, %v607
        %v624 = vpack.c.b16 %v610, %v609
        %v625 = vpack.c.b16 %v612, %v611
        %v626 = vpack.c.b16 %v614, %v613
        %v627 = vpack.c.b16 %v616, %v615
        %v628 = vpack.c.b16 %v618, %v617
        %v629 = vpack.c.b16 %v620, %v619
        %v630 = vpack.c.b16 %v622, %v621
        %639 = vmatpush.bf16.msra.mxu0 %v630
        %640 = vmatpush.bf16.msra.mxu0 %v629
        %641 = vmatpush.bf16.msra.mxu0 %v628
        %642 = vmatpush.bf16.msra.mxu0 %v627
        %643 = vmatpush.bf16.msra.mxu0 %v626
        %644 = vmatpush.bf16.msra.mxu0 %v625
        %645 = vmatpush.bf16.msra.mxu0 %v624
        %646 = vmatpush.bf16.msra.mxu0 %v623
        %647 = vmatmul.bf16.gmra.mxu0 %v447
        %v648 = vpop.f32.mrf.mxu0
        %v649 = vadd.f32 %v582, %v648
        %v650 = vpop.f32.mrf.mxu0
        %v651 = vadd.f32 %v584, %v650
        %652 = vmatmul.bf16.gmra.mxu0 %v448
        %v653 = vpop.f32.mrf.mxu0
        %v654 = vadd.f32 %v587, %v653
        %v655 = vpop.f32.mrf.mxu0
        %v656 = vadd.f32 %v589, %v655
        %657 = vdwg.mxu0
        %s658 = scalar_lea.vmem [#allocation3], 32
        %v659 = vld [vmem:[%s658] sm:$0xf]
        %v660 = vld [vmem:[%s658 + $0x4] sm:$0xf]
        %v661 = vld [vmem:[%s658 + $0x8] sm:$0xf]
        %v662 = vld [vmem:[%s658 + $0xc] sm:$0xf]
        %v667 = vunpack.c.l.b16 %v659
        %v668 = vunpack.c.l.b16 %v660
        %v669 = vunpack.c.l.b16 %v661
        %v670 = vunpack.c.l.b16 %v662
        %v671 = vpack.c.b16 %v668, %v667
        %v672 = vpack.c.b16 %v670, %v669
        %v674 = vsel %vm421, %v671, 0
        %v677 = vsel %vm421, %v672, 0
        %679 = vmatpush.bf16.msra.mxu0 0
        %680 = vmatpush.bf16.msra.mxu0 0
        %681 = vmatpush.bf16.msra.mxu0 0
        %682 = vmatpush.bf16.msra.mxu0 0
        %683 = vmatpush.bf16.msra.mxu0 0
        %684 = vmatpush.bf16.msra.mxu0 0
        %685 = vmatpush.bf16.msra.mxu0 %v406
        %686 = vmatpush.bf16.msra.mxu0 %v405
        %687 = vmatmul.bf16.gmra.mxu0 %v674
        %v688 = vpop.f32.mrf.mxu0
        %v689 = vadd.f32 0.0, %v688
        %v690 = vpop.f32.mrf.mxu0
        %v691 = vadd.f32 0.0, %v690
        %692 = vmatmul.bf16.gmra.mxu0 %v677
        %v693 = vpop.f32.mrf.mxu0
        %v694 = vadd.f32 0.0, %v693
        %v695 = vpop.f32.mrf.mxu0
        %v696 = vadd.f32 0.0, %v695
        %697 = vdwg.mxu0
        %v698 = vpack.c.bf16 %v691, %v689
        %v699 = vpack.c.bf16 %v696, %v694
        %s700 = scalar_lea.vmem %s366, 128
        %v701 = vld [vmem:[%s700] sm:$0xf]
        %v702 = vld [vmem:[%s700 + $0x4] sm:$0xf]
        %v703 = vld [vmem:[%s700 + $0x8] sm:$0xf]
        %v704 = vld [vmem:[%s700 + $0xc] sm:$0xf]
        %v705 = vld [vmem:[%s700 + $0x10] sm:$0xf]
        %v706 = vld [vmem:[%s700 + $0x14] sm:$0xf]
        %v707 = vld [vmem:[%s700 + $0x18] sm:$0xf]
        %v708 = vld [vmem:[%s700 + $0x1c] sm:$0xf]
        %v709 = vld [vmem:[%s700 + $0x20] sm:$0xf]
        %v710 = vld [vmem:[%s700 + $0x24] sm:$0xf]
        %v711 = vld [vmem:[%s700 + $0x28] sm:$0xf]
        %v712 = vld [vmem:[%s700 + $0x2c] sm:$0xf]
        %v713 = vld [vmem:[%s700 + $0x30] sm:$0xf]
        %v714 = vld [vmem:[%s700 + $0x34] sm:$0xf]
        %v715 = vld [vmem:[%s700 + $0x38] sm:$0xf]
        %v716 = vld [vmem:[%s700 + $0x3c] sm:$0xf]
        %v733 = vunpack.c.l.b16 %v701
        %v734 = vunpack.c.l.b16 %v702
        %v735 = vunpack.c.l.b16 %v703
        %v736 = vunpack.c.l.b16 %v704
        %v737 = vunpack.c.l.b16 %v705
        %v738 = vunpack.c.l.b16 %v706
        %v739 = vunpack.c.l.b16 %v707
        %v740 = vunpack.c.l.b16 %v708
        %v741 = vunpack.c.l.b16 %v709
        %v742 = vunpack.c.l.b16 %v710
        %v743 = vunpack.c.l.b16 %v711
        %v744 = vunpack.c.l.b16 %v712
        %v745 = vunpack.c.l.b16 %v713
        %v746 = vunpack.c.l.b16 %v714
        %v747 = vunpack.c.l.b16 %v715
        %v748 = vunpack.c.l.b16 %v716
        %v749 = vpack.c.b16 %v734, %v733
        %v750 = vpack.c.b16 %v736, %v735
        %v751 = vpack.c.b16 %v738, %v737
        %v752 = vpack.c.b16 %v740, %v739
        %v753 = vpack.c.b16 %v742, %v741
        %v754 = vpack.c.b16 %v744, %v743
        %v755 = vpack.c.b16 %v746, %v745
        %v756 = vpack.c.b16 %v748, %v747
        %765 = vmatpush.bf16.msra.mxu0 %v756
        %766 = vmatpush.bf16.msra.mxu0 %v755
        %767 = vmatpush.bf16.msra.mxu0 %v754
        %768 = vmatpush.bf16.msra.mxu0 %v753
        %769 = vmatpush.bf16.msra.mxu0 %v752
        %770 = vmatpush.bf16.msra.mxu0 %v751
        %771 = vmatpush.bf16.msra.mxu0 %v750
        %772 = vmatpush.bf16.msra.mxu0 %v749
        %773 = vmatmul.bf16.gmra.mxu0 %v698
        %v774 = vpop.f32.mrf.mxu0
        %v775 = vadd.f32 0.0, %v774
        %v776 = vpop.f32.mrf.mxu0
        %v777 = vadd.f32 0.0, %v776
        %778 = vmatmul.bf16.gmra.mxu0 %v699
        %v779 = vpop.f32.mrf.mxu0
        %v780 = vadd.f32 0.0, %v779
        %v781 = vpop.f32.mrf.mxu0
        %v782 = vadd.f32 0.0, %v781
        %783 = vdwg.mxu0
        %v784 = vadd.f32 %v649, %v775
        %v785 = vadd.f32 %v651, %v777
        %v786 = vadd.f32 %v654, %v780
        %v787 = vadd.f32 %v656, %v782
        %s788 = scalar_lea.vmem [#allocation3], 48
        %v789 = vld [vmem:[%s788] sm:$0xf]
        %v790 = vld [vmem:[%s788 + $0x4] sm:$0xf]
        %v791 = vld [vmem:[%s788 + $0x8] sm:$0xf]
        %v792 = vld [vmem:[%s788 + $0xc] sm:$0xf]
        %v797 = vunpack.c.l.b16 %v789
        %v798 = vunpack.c.l.b16 %v790
        %v799 = vunpack.c.l.b16 %v791
        %v800 = vunpack.c.l.b16 %v792
        %v801 = vpack.c.b16 %v798, %v797
        %v802 = vpack.c.b16 %v800, %v799
        %v804 = vsel %vm421, %v801, 0
        %v807 = vsel %vm421, %v802, 0
        %809 = vmatpush.bf16.msra.mxu0 0
        %810 = vmatpush.bf16.msra.mxu0 0
        %811 = vmatpush.bf16.msra.mxu0 0
        %812 = vmatpush.bf16.msra.mxu0 0
        %813 = vmatpush.bf16.msra.mxu0 0
        %814 = vmatpush.bf16.msra.mxu0 0
        %815 = vmatpush.bf16.msra.mxu0 %v406
        %816 = vmatpush.bf16.msra.mxu0 %v405
        %817 = vmatmul.bf16.gmra.mxu0 %v804
        %v818 = vpop.f32.mrf.mxu0
        %v819 = vadd.f32 0.0, %v818
        %v820 = vpop.f32.mrf.mxu0
        %v821 = vadd.f32 0.0, %v820
        %822 = vmatmul.bf16.gmra.mxu0 %v807
        %v823 = vpop.f32.mrf.mxu0
        %v824 = vadd.f32 0.0, %v823
        %v825 = vpop.f32.mrf.mxu0
        %v826 = vadd.f32 0.0, %v825
        %827 = vdwg.mxu0
        %v828 = vpack.c.bf16 %v821, %v819
        %v829 = vpack.c.bf16 %v826, %v824
        %s830 = scalar_lea.vmem %s366, 192
        %v831 = vld [vmem:[%s830] sm:$0xf]
        %v832 = vld [vmem:[%s830 + $0x4] sm:$0xf]
        %v833 = vld [vmem:[%s830 + $0x8] sm:$0xf]
        %v834 = vld [vmem:[%s830 + $0xc] sm:$0xf]
        %v835 = vld [vmem:[%s830 + $0x10] sm:$0xf]
        %v836 = vld [vmem:[%s830 + $0x14] sm:$0xf]
        %v837 = vld [vmem:[%s830 + $0x18] sm:$0xf]
        %v838 = vld [vmem:[%s830 + $0x1c] sm:$0xf]
        %v839 = vld [vmem:[%s830 + $0x20] sm:$0xf]
        %v840 = vld [vmem:[%s830 + $0x24] sm:$0xf]
        %v841 = vld [vmem:[%s830 + $0x28] sm:$0xf]
        %v842 = vld [vmem:[%s830 + $0x2c] sm:$0xf]
        %v843 = vld [vmem:[%s830 + $0x30] sm:$0xf]
        %v844 = vld [vmem:[%s830 + $0x34] sm:$0xf]
        %v845 = vld [vmem:[%s830 + $0x38] sm:$0xf]
        %v846 = vld [vmem:[%s830 + $0x3c] sm:$0xf]
        %v863 = vunpack.c.l.b16 %v831
        %v864 = vunpack.c.l.b16 %v832
        %v865 = vunpack.c.l.b16 %v833
        %v866 = vunpack.c.l.b16 %v834
        %v867 = vunpack.c.l.b16 %v835
        %v868 = vunpack.c.l.b16 %v836
        %v869 = vunpack.c.l.b16 %v837
        %v870 = vunpack.c.l.b16 %v838
        %v871 = vunpack.c.l.b16 %v839
        %v872 = vunpack.c.l.b16 %v840
        %v873 = vunpack.c.l.b16 %v841
        %v874 = vunpack.c.l.b16 %v842
        %v875 = vunpack.c.l.b16 %v843
        %v876 = vunpack.c.l.b16 %v844
        %v877 = vunpack.c.l.b16 %v845
        %v878 = vunpack.c.l.b16 %v846
        %v879 = vpack.c.b16 %v864, %v863
        %v880 = vpack.c.b16 %v866, %v865
        %v881 = vpack.c.b16 %v868, %v867
        %v882 = vpack.c.b16 %v870, %v869
        %v883 = vpack.c.b16 %v872, %v871
        %v884 = vpack.c.b16 %v874, %v873
        %v885 = vpack.c.b16 %v876, %v875
        %v886 = vpack.c.b16 %v878, %v877
        %895 = vmatpush.bf16.msra.mxu0 %v886
        %896 = vmatpush.bf16.msra.mxu0 %v885
        %897 = vmatpush.bf16.msra.mxu0 %v884
        %898 = vmatpush.bf16.msra.mxu0 %v883
        %899 = vmatpush.bf16.msra.mxu0 %v882
        %900 = vmatpush.bf16.msra.mxu0 %v881
        %901 = vmatpush.bf16.msra.mxu0 %v880
        %902 = vmatpush.bf16.msra.mxu0 %v879
        %903 = vmatmul.bf16.gmra.mxu0 %v828
        %v904 = vpop.f32.mrf.mxu0
        %v905 = vadd.f32 0.0, %v904
        %v906 = vpop.f32.mrf.mxu0
        %v907 = vadd.f32 0.0, %v906
        %908 = vmatmul.bf16.gmra.mxu0 %v829
        %v909 = vpop.f32.mrf.mxu0
        %v910 = vadd.f32 0.0, %v909
        %v911 = vpop.f32.mrf.mxu0
        %v912 = vadd.f32 0.0, %v911
        %913 = vdwg.mxu0
        %v914 = vadd.f32 %v784, %v905
        %v915 = vadd.f32 %v785, %v907
        %v916 = vadd.f32 %v786, %v910
        %v917 = vadd.f32 %v787, %v912
        %s918 = scalar_lea.vmem [#allocation3], 64
        %v919 = vld [vmem:[%s918] sm:$0xf]
        %v920 = vld [vmem:[%s918 + $0x4] sm:$0xf]
        %v921 = vld [vmem:[%s918 + $0x8] sm:$0xf]
        %v922 = vld [vmem:[%s918 + $0xc] sm:$0xf]
        %v927 = vunpack.c.l.b16 %v919
        %v928 = vunpack.c.l.b16 %v920
        %v929 = vunpack.c.l.b16 %v921
        %v930 = vunpack.c.l.b16 %v922
        %v931 = vpack.c.b16 %v928, %v927
        %v932 = vpack.c.b16 %v930, %v929
        %v934 = vsel %vm421, %v931, 0
        %v937 = vsel %vm421, %v932, 0
        %939 = vmatpush.bf16.msra.mxu0 0
        %940 = vmatpush.bf16.msra.mxu0 0
        %941 = vmatpush.bf16.msra.mxu0 0
        %942 = vmatpush.bf16.msra.mxu0 0
        %943 = vmatpush.bf16.msra.mxu0 0
        %944 = vmatpush.bf16.msra.mxu0 0
        %945 = vmatpush.bf16.msra.mxu0 %v406
        %946 = vmatpush.bf16.msra.mxu0 %v405
        %947 = vmatmul.bf16.gmra.mxu0 %v934
        %v948 = vpop.f32.mrf.mxu0
        %v949 = vadd.f32 0.0, %v948
        %v950 = vpop.f32.mrf.mxu0
        %v951 = vadd.f32 0.0, %v950
        %952 = vmatmul.bf16.gmra.mxu0 %v937
        %v953 = vpop.f32.mrf.mxu0
        %v954 = vadd.f32 0.0, %v953
        %v955 = vpop.f32.mrf.mxu0
        %v956 = vadd.f32 0.0, %v955
        %957 = vdwg.mxu0
        %v958 = vpack.c.bf16 %v951, %v949
        %v959 = vpack.c.bf16 %v956, %v954
        %s960 = scalar_lea.vmem %s366, 256
        %v961 = vld [vmem:[%s960] sm:$0xf]
        %v962 = vld [vmem:[%s960 + $0x4] sm:$0xf]
        %v963 = vld [vmem:[%s960 + $0x8] sm:$0xf]
        %v964 = vld [vmem:[%s960 + $0xc] sm:$0xf]
        %v965 = vld [vmem:[%s960 + $0x10] sm:$0xf]
        %v966 = vld [vmem:[%s960 + $0x14] sm:$0xf]
        %v967 = vld [vmem:[%s960 + $0x18] sm:$0xf]
        %v968 = vld [vmem:[%s960 + $0x1c] sm:$0xf]
        %v969 = vld [vmem:[%s960 + $0x20] sm:$0xf]
        %v970 = vld [vmem:[%s960 + $0x24] sm:$0xf]
        %v971 = vld [vmem:[%s960 + $0x28] sm:$0xf]
        %v972 = vld [vmem:[%s960 + $0x2c] sm:$0xf]
        %v973 = vld [vmem:[%s960 + $0x30] sm:$0xf]
        %v974 = vld [vmem:[%s960 + $0x34] sm:$0xf]
        %v975 = vld [vmem:[%s960 + $0x38] sm:$0xf]
        %v976 = vld [vmem:[%s960 + $0x3c] sm:$0xf]
        %v993 = vunpack.c.l.b16 %v961
        %v994 = vunpack.c.l.b16 %v962
        %v995 = vunpack.c.l.b16 %v963
        %v996 = vunpack.c.l.b16 %v964
        %v997 = vunpack.c.l.b16 %v965
        %v998 = vunpack.c.l.b16 %v966
        %v999 = vunpack.c.l.b16 %v967
        %v1000 = vunpack.c.l.b16 %v968
        %v1001 = vunpack.c.l.b16 %v969
        %v1002 = vunpack.c.l.b16 %v970
        %v1003 = vunpack.c.l.b16 %v971
        %v1004 = vunpack.c.l.b16 %v972
        %v1005 = vunpack.c.l.b16 %v973
        %v1006 = vunpack.c.l.b16 %v974
        %v1007 = vunpack.c.l.b16 %v975
        %v1008 = vunpack.c.l.b16 %v976
        %v1009 = vpack.c.b16 %v994, %v993
        %v1010 = vpack.c.b16 %v996, %v995
        %v1011 = vpack.c.b16 %v998, %v997
        %v1012 = vpack.c.b16 %v1000, %v999
        %v1013 = vpack.c.b16 %v1002, %v1001
        %v1014 = vpack.c.b16 %v1004, %v1003
        %v1015 = vpack.c.b16 %v1006, %v1005
        %v1016 = vpack.c.b16 %v1008, %v1007
        %1025 = vmatpush.bf16.msra.mxu0 %v1016
        %1026 = vmatpush.bf16.msra.mxu0 %v1015
        %1027 = vmatpush.bf16.msra.mxu0 %v1014
        %1028 = vmatpush.bf16.msra.mxu0 %v1013
        %1029 = vmatpush.bf16.msra.mxu0 %v1012
        %1030 = vmatpush.bf16.msra.mxu0 %v1011
        %1031 = vmatpush.bf16.msra.mxu0 %v1010
        %1032 = vmatpush.bf16.msra.mxu0 %v1009
        %1033 = vmatmul.bf16.gmra.mxu0 %v958
        %v1034 = vpop.f32.mrf.mxu0
        %v1035 = vadd.f32 0.0, %v1034
        %v1036 = vpop.f32.mrf.mxu0
        %v1037 = vadd.f32 0.0, %v1036
        %1038 = vmatmul.bf16.gmra.mxu0 %v959
        %v1039 = vpop.f32.mrf.mxu0
        %v1040 = vadd.f32 0.0, %v1039
        %v1041 = vpop.f32.mrf.mxu0
        %v1042 = vadd.f32 0.0, %v1041
        %1043 = vdwg.mxu0
        %v1044 = vadd.f32 %v914, %v1035
        %v1045 = vadd.f32 %v915, %v1037
        %v1046 = vadd.f32 %v916, %v1040
        %v1047 = vadd.f32 %v917, %v1042
        %s1048 = scalar_lea.vmem [#allocation3], 80
        %v1049 = vld [vmem:[%s1048] sm:$0xf]
        %v1050 = vld [vmem:[%s1048 + $0x4] sm:$0xf]
        %v1051 = vld [vmem:[%s1048 + $0x8] sm:$0xf]
        %v1052 = vld [vmem:[%s1048 + $0xc] sm:$0xf]
        %v1057 = vunpack.c.l.b16 %v1049
        %v1058 = vunpack.c.l.b16 %v1050
        %v1059 = vunpack.c.l.b16 %v1051
        %v1060 = vunpack.c.l.b16 %v1052
        %v1061 = vpack.c.b16 %v1058, %v1057
        %v1062 = vpack.c.b16 %v1060, %v1059
        %v1064 = vsel %vm421, %v1061, 0
        %v1067 = vsel %vm421, %v1062, 0
        %1069 = vmatpush.bf16.msra.mxu0 0
        %1070 = vmatpush.bf16.msra.mxu0 0
        %1071 = vmatpush.bf16.msra.mxu0 0
        %1072 = vmatpush.bf16.msra.mxu0 0
        %1073 = vmatpush.bf16.msra.mxu0 0
        %1074 = vmatpush.bf16.msra.mxu0 0
        %1075 = vmatpush.bf16.msra.mxu0 %v406
        %1076 = vmatpush.bf16.msra.mxu0 %v405
        %1077 = vmatmul.bf16.gmra.mxu0 %v1064
        %v1078 = vpop.f32.mrf.mxu0
        %v1079 = vadd.f32 0.0, %v1078
        %v1080 = vpop.f32.mrf.mxu0
        %v1081 = vadd.f32 0.0, %v1080
        %1082 = vmatmul.bf16.gmra.mxu0 %v1067
        %v1083 = vpop.f32.mrf.mxu0
        %v1084 = vadd.f32 0.0, %v1083
        %v1085 = vpop.f32.mrf.mxu0
        %v1086 = vadd.f32 0.0, %v1085
        %1087 = vdwg.mxu0
        %v1088 = vpack.c.bf16 %v1081, %v1079
        %v1089 = vpack.c.bf16 %v1086, %v1084
        %s1090 = scalar_lea.vmem %s366, 320
        %v1091 = vld [vmem:[%s1090] sm:$0xf]
        %v1092 = vld [vmem:[%s1090 + $0x4] sm:$0xf]
        %v1093 = vld [vmem:[%s1090 + $0x8] sm:$0xf]
        %v1094 = vld [vmem:[%s1090 + $0xc] sm:$0xf]
        %v1095 = vld [vmem:[%s1090 + $0x10] sm:$0xf]
        %v1096 = vld [vmem:[%s1090 + $0x14] sm:$0xf]
        %v1097 = vld [vmem:[%s1090 + $0x18] sm:$0xf]
        %v1098 = vld [vmem:[%s1090 + $0x1c] sm:$0xf]
        %v1099 = vld [vmem:[%s1090 + $0x20] sm:$0xf]
        %v1100 = vld [vmem:[%s1090 + $0x24] sm:$0xf]
        %v1101 = vld [vmem:[%s1090 + $0x28] sm:$0xf]
        %v1102 = vld [vmem:[%s1090 + $0x2c] sm:$0xf]
        %v1103 = vld [vmem:[%s1090 + $0x30] sm:$0xf]
        %v1104 = vld [vmem:[%s1090 + $0x34] sm:$0xf]
        %v1105 = vld [vmem:[%s1090 + $0x38] sm:$0xf]
        %v1106 = vld [vmem:[%s1090 + $0x3c] sm:$0xf]
        %v1123 = vunpack.c.l.b16 %v1091
        %v1124 = vunpack.c.l.b16 %v1092
        %v1125 = vunpack.c.l.b16 %v1093
        %v1126 = vunpack.c.l.b16 %v1094
        %v1127 = vunpack.c.l.b16 %v1095
        %v1128 = vunpack.c.l.b16 %v1096
        %v1129 = vunpack.c.l.b16 %v1097
        %v1130 = vunpack.c.l.b16 %v1098
        %v1131 = vunpack.c.l.b16 %v1099
        %v1132 = vunpack.c.l.b16 %v1100
        %v1133 = vunpack.c.l.b16 %v1101
        %v1134 = vunpack.c.l.b16 %v1102
        %v1135 = vunpack.c.l.b16 %v1103
        %v1136 = vunpack.c.l.b16 %v1104
        %v1137 = vunpack.c.l.b16 %v1105
        %v1138 = vunpack.c.l.b16 %v1106
        %v1139 = vpack.c.b16 %v1124, %v1123
        %v1140 = vpack.c.b16 %v1126, %v1125
        %v1141 = vpack.c.b16 %v1128, %v1127
        %v1142 = vpack.c.b16 %v1130, %v1129
        %v1143 = vpack.c.b16 %v1132, %v1131
        %v1144 = vpack.c.b16 %v1134, %v1133
        %v1145 = vpack.c.b16 %v1136, %v1135
        %v1146 = vpack.c.b16 %v1138, %v1137
        %1155 = vmatpush.bf16.msra.mxu0 %v1146
        %1156 = vmatpush.bf16.msra.mxu0 %v1145
        %1157 = vmatpush.bf16.msra.mxu0 %v1144
        %1158 = vmatpush.bf16.msra.mxu0 %v1143
        %1159 = vmatpush.bf16.msra.mxu0 %v1142
        %1160 = vmatpush.bf16.msra.mxu0 %v1141
        %1161 = vmatpush.bf16.msra.mxu0 %v1140
        %1162 = vmatpush.bf16.msra.mxu0 %v1139
        %1163 = vmatmul.bf16.gmra.mxu0 %v1088
        %v1164 = vpop.f32.mrf.mxu0
        %v1165 = vadd.f32 0.0, %v1164
        %v1166 = vpop.f32.mrf.mxu0
        %v1167 = vadd.f32 0.0, %v1166
        %1168 = vmatmul.bf16.gmra.mxu0 %v1089
        %v1169 = vpop.f32.mrf.mxu0
        %v1170 = vadd.f32 0.0, %v1169
        %v1171 = vpop.f32.mrf.mxu0
        %v1172 = vadd.f32 0.0, %v1171
        %1173 = vdwg.mxu0
        %v1174 = vadd.f32 %v1044, %v1165
        %v1175 = vadd.f32 %v1045, %v1167
        %v1176 = vadd.f32 %v1046, %v1170
        %v1177 = vadd.f32 %v1047, %v1172
        %s1178 = scalar_lea.vmem [#allocation3], 96
        %v1179 = vld [vmem:[%s1178] sm:$0xf]
        %v1180 = vld [vmem:[%s1178 + $0x4] sm:$0xf]
        %v1181 = vld [vmem:[%s1178 + $0x8] sm:$0xf]
        %v1182 = vld [vmem:[%s1178 + $0xc] sm:$0xf]
        %v1187 = vunpack.c.l.b16 %v1179
        %v1188 = vunpack.c.l.b16 %v1180
        %v1189 = vunpack.c.l.b16 %v1181
        %v1190 = vunpack.c.l.b16 %v1182
        %v1191 = vpack.c.b16 %v1188, %v1187
        %v1192 = vpack.c.b16 %v1190, %v1189
        %v1194 = vsel %vm421, %v1191, 0
        %v1197 = vsel %vm421, %v1192, 0
        %1199 = vmatpush.bf16.msra.mxu0 0
        %1200 = vmatpush.bf16.msra.mxu0 0
        %1201 = vmatpush.bf16.msra.mxu0 0
        %1202 = vmatpush.bf16.msra.mxu0 0
        %1203 = vmatpush.bf16.msra.mxu0 0
        %1204 = vmatpush.bf16.msra.mxu0 0
        %1205 = vmatpush.bf16.msra.mxu0 %v406
        %1206 = vmatpush.bf16.msra.mxu0 %v405
        %1207 = vmatmul.bf16.gmra.mxu0 %v1194
        %v1208 = vpop.f32.mrf.mxu0
        %v1209 = vadd.f32 0.0, %v1208
        %v1210 = vpop.f32.mrf.mxu0
        %v1211 = vadd.f32 0.0, %v1210
        %1212 = vmatmul.bf16.gmra.mxu0 %v1197
        %v1213 = vpop.f32.mrf.mxu0
        %v1214 = vadd.f32 0.0, %v1213
        %v1215 = vpop.f32.mrf.mxu0
        %v1216 = vadd.f32 0.0, %v1215
        %1217 = vdwg.mxu0
        %v1218 = vpack.c.bf16 %v1211, %v1209
        %v1219 = vpack.c.bf16 %v1216, %v1214
        %s1220 = scalar_lea.vmem %s366, 384
        %v1221 = vld [vmem:[%s1220] sm:$0xf]
        %v1222 = vld [vmem:[%s1220 + $0x4] sm:$0xf]
        %v1223 = vld [vmem:[%s1220 + $0x8] sm:$0xf]
        %v1224 = vld [vmem:[%s1220 + $0xc] sm:$0xf]
        %v1225 = vld [vmem:[%s1220 + $0x10] sm:$0xf]
        %v1226 = vld [vmem:[%s1220 + $0x14] sm:$0xf]
        %v1227 = vld [vmem:[%s1220 + $0x18] sm:$0xf]
        %v1228 = vld [vmem:[%s1220 + $0x1c] sm:$0xf]
        %v1229 = vld [vmem:[%s1220 + $0x20] sm:$0xf]
        %v1230 = vld [vmem:[%s1220 + $0x24] sm:$0xf]
        %v1231 = vld [vmem:[%s1220 + $0x28] sm:$0xf]
        %v1232 = vld [vmem:[%s1220 + $0x2c] sm:$0xf]
        %v1233 = vld [vmem:[%s1220 + $0x30] sm:$0xf]
        %v1234 = vld [vmem:[%s1220 + $0x34] sm:$0xf]
        %v1235 = vld [vmem:[%s1220 + $0x38] sm:$0xf]
        %v1236 = vld [vmem:[%s1220 + $0x3c] sm:$0xf]
        %v1253 = vunpack.c.l.b16 %v1221
        %v1254 = vunpack.c.l.b16 %v1222
        %v1255 = vunpack.c.l.b16 %v1223
        %v1256 = vunpack.c.l.b16 %v1224
        %v1257 = vunpack.c.l.b16 %v1225
        %v1258 = vunpack.c.l.b16 %v1226
        %v1259 = vunpack.c.l.b16 %v1227
        %v1260 = vunpack.c.l.b16 %v1228
        %v1261 = vunpack.c.l.b16 %v1229
        %v1262 = vunpack.c.l.b16 %v1230
        %v1263 = vunpack.c.l.b16 %v1231
        %v1264 = vunpack.c.l.b16 %v1232
        %v1265 = vunpack.c.l.b16 %v1233
        %v1266 = vunpack.c.l.b16 %v1234
        %v1267 = vunpack.c.l.b16 %v1235
        %v1268 = vunpack.c.l.b16 %v1236
        %v1269 = vpack.c.b16 %v1254, %v1253
        %v1270 = vpack.c.b16 %v1256, %v1255
        %v1271 = vpack.c.b16 %v1258, %v1257
        %v1272 = vpack.c.b16 %v1260, %v1259
        %v1273 = vpack.c.b16 %v1262, %v1261
        %v1274 = vpack.c.b16 %v1264, %v1263
        %v1275 = vpack.c.b16 %v1266, %v1265
        %v1276 = vpack.c.b16 %v1268, %v1267
        %1285 = vmatpush.bf16.msra.mxu0 %v1276
        %1286 = vmatpush.bf16.msra.mxu0 %v1275
        %1287 = vmatpush.bf16.msra.mxu0 %v1274
        %1288 = vmatpush.bf16.msra.mxu0 %v1273
        %1289 = vmatpush.bf16.msra.mxu0 %v1272
        %1290 = vmatpush.bf16.msra.mxu0 %v1271
        %1291 = vmatpush.bf16.msra.mxu0 %v1270
        %1292 = vmatpush.bf16.msra.mxu0 %v1269
        %1293 = vmatmul.bf16.gmra.mxu0 %v1218
        %v1294 = vpop.f32.mrf.mxu0
        %v1295 = vadd.f32 0.0, %v1294
        %v1296 = vpop.f32.mrf.mxu0
        %v1297 = vadd.f32 0.0, %v1296
        %1298 = vmatmul.bf16.gmra.mxu0 %v1219
        %v1299 = vpop.f32.mrf.mxu0
        %v1300 = vadd.f32 0.0, %v1299
        %v1301 = vpop.f32.mrf.mxu0
        %v1302 = vadd.f32 0.0, %v1301
        %1303 = vdwg.mxu0
        %v1304 = vadd.f32 %v1174, %v1295
        %v1305 = vadd.f32 %v1175, %v1297
        %v1306 = vadd.f32 %v1176, %v1300
        %v1307 = vadd.f32 %v1177, %v1302
        %s1308 = scalar_lea.vmem [#allocation3], 112
        %v1309 = vld [vmem:[%s1308] sm:$0xf]
        %v1310 = vld [vmem:[%s1308 + $0x4] sm:$0xf]
        %v1311 = vld [vmem:[%s1308 + $0x8] sm:$0xf]
        %v1312 = vld [vmem:[%s1308 + $0xc] sm:$0xf]
        %v1317 = vunpack.c.l.b16 %v1309
        %v1318 = vunpack.c.l.b16 %v1310
        %v1319 = vunpack.c.l.b16 %v1311
        %v1320 = vunpack.c.l.b16 %v1312
        %v1321 = vpack.c.b16 %v1318, %v1317
        %v1322 = vpack.c.b16 %v1320, %v1319
        %v1324 = vsel %vm421, %v1321, 0
        %v1327 = vsel %vm421, %v1322, 0
        %1329 = vmatpush.bf16.msra.mxu0 0
        %1330 = vmatpush.bf16.msra.mxu0 0
        %1331 = vmatpush.bf16.msra.mxu0 0
        %1332 = vmatpush.bf16.msra.mxu0 0
        %1333 = vmatpush.bf16.msra.mxu0 0
        %1334 = vmatpush.bf16.msra.mxu0 0
        %1335 = vmatpush.bf16.msra.mxu0 %v406
        %1336 = vmatpush.bf16.msra.mxu0 %v405
        %1337 = vmatmul.bf16.gmra.mxu0 %v1324
        %v1338 = vpop.f32.mrf.mxu0
        %v1339 = vadd.f32 0.0, %v1338
        %v1340 = vpop.f32.mrf.mxu0
        %v1341 = vadd.f32 0.0, %v1340
        %1342 = vmatmul.bf16.gmra.mxu0 %v1327
        %v1343 = vpop.f32.mrf.mxu0
        %v1344 = vadd.f32 0.0, %v1343
        %v1345 = vpop.f32.mrf.mxu0
        %v1346 = vadd.f32 0.0, %v1345
        %1347 = vdwg.mxu0
        %v1348 = vpack.c.bf16 %v1341, %v1339
        %v1349 = vpack.c.bf16 %v1346, %v1344
        %s1350 = scalar_lea.vmem %s366, 448
        %v1351 = vld [vmem:[%s1350] sm:$0xf]
        %v1352 = vld [vmem:[%s1350 + $0x4] sm:$0xf]
        %v1353 = vld [vmem:[%s1350 + $0x8] sm:$0xf]
        %v1354 = vld [vmem:[%s1350 + $0xc] sm:$0xf]
        %v1355 = vld [vmem:[%s1350 + $0x10] sm:$0xf]
        %v1356 = vld [vmem:[%s1350 + $0x14] sm:$0xf]
        %v1357 = vld [vmem:[%s1350 + $0x18] sm:$0xf]
        %v1358 = vld [vmem:[%s1350 + $0x1c] sm:$0xf]
        %v1359 = vld [vmem:[%s1350 + $0x20] sm:$0xf]
        %v1360 = vld [vmem:[%s1350 + $0x24] sm:$0xf]
        %v1361 = vld [vmem:[%s1350 + $0x28] sm:$0xf]
        %v1362 = vld [vmem:[%s1350 + $0x2c] sm:$0xf]
        %v1363 = vld [vmem:[%s1350 + $0x30] sm:$0xf]
        %v1364 = vld [vmem:[%s1350 + $0x34] sm:$0xf]
        %v1365 = vld [vmem:[%s1350 + $0x38] sm:$0xf]
        %v1366 = vld [vmem:[%s1350 + $0x3c] sm:$0xf]
        %v1383 = vunpack.c.l.b16 %v1351
        %v1384 = vunpack.c.l.b16 %v1352
        %v1385 = vunpack.c.l.b16 %v1353
        %v1386 = vunpack.c.l.b16 %v1354
        %v1387 = vunpack.c.l.b16 %v1355
        %v1388 = vunpack.c.l.b16 %v1356
        %v1389 = vunpack.c.l.b16 %v1357
        %v1390 = vunpack.c.l.b16 %v1358
        %v1391 = vunpack.c.l.b16 %v1359
        %v1392 = vunpack.c.l.b16 %v1360
        %v1393 = vunpack.c.l.b16 %v1361
        %v1394 = vunpack.c.l.b16 %v1362
        %v1395 = vunpack.c.l.b16 %v1363
        %v1396 = vunpack.c.l.b16 %v1364
        %v1397 = vunpack.c.l.b16 %v1365
        %v1398 = vunpack.c.l.b16 %v1366
        %v1399 = vpack.c.b16 %v1384, %v1383
        %v1400 = vpack.c.b16 %v1386, %v1385
        %v1401 = vpack.c.b16 %v1388, %v1387
        %v1402 = vpack.c.b16 %v1390, %v1389
        %v1403 = vpack.c.b16 %v1392, %v1391
        %v1404 = vpack.c.b16 %v1394, %v1393
        %v1405 = vpack.c.b16 %v1396, %v1395
        %v1406 = vpack.c.b16 %v1398, %v1397
        %1415 = vmatpush.bf16.msra.mxu0 %v1406
        %1416 = vmatpush.bf16.msra.mxu0 %v1405
        %1417 = vmatpush.bf16.msra.mxu0 %v1404
        %1418 = vmatpush.bf16.msra.mxu0 %v1403
        %1419 = vmatpush.bf16.msra.mxu0 %v1402
        %1420 = vmatpush.bf16.msra.mxu0 %v1401
        %1421 = vmatpush.bf16.msra.mxu0 %v1400
        %1422 = vmatpush.bf16.msra.mxu0 %v1399
        %1423 = vmatmul.bf16.gmra.mxu0 %v1348
        %v1424 = vpop.f32.mrf.mxu0
        %v1425 = vadd.f32 0.0, %v1424
        %v1426 = vpop.f32.mrf.mxu0
        %v1427 = vadd.f32 0.0, %v1426
        %1428 = vmatmul.bf16.gmra.mxu0 %v1349
        %v1429 = vpop.f32.mrf.mxu0
        %v1430 = vadd.f32 0.0, %v1429
        %v1431 = vpop.f32.mrf.mxu0
        %v1432 = vadd.f32 0.0, %v1431
        %1433 = vdwg.mxu0
        %v1434 = vadd.f32 %v1304, %v1425
        %v1435 = vadd.f32 %v1305, %v1427
        %v1436 = vadd.f32 %v1306, %v1430
        %v1437 = vadd.f32 %v1307, %v1432
        %s1438 = scalar_lea.vmem [#allocation3], 128
        %v1439 = vld [vmem:[%s1438] sm:$0xf]
        %v1440 = vld [vmem:[%s1438 + $0x4] sm:$0xf]
        %v1441 = vld [vmem:[%s1438 + $0x8] sm:$0xf]
        %v1442 = vld [vmem:[%s1438 + $0xc] sm:$0xf]
        %v1447 = vunpack.c.l.b16 %v1439
        %v1448 = vunpack.c.l.b16 %v1440
        %v1449 = vunpack.c.l.b16 %v1441
        %v1450 = vunpack.c.l.b16 %v1442
        %v1451 = vpack.c.b16 %v1448, %v1447
        %v1452 = vpack.c.b16 %v1450, %v1449
        %v1454 = vsel %vm421, %v1451, 0
        %v1457 = vsel %vm421, %v1452, 0
        %1459 = vmatpush.bf16.msra.mxu0 0
        %1460 = vmatpush.bf16.msra.mxu0 0
        %1461 = vmatpush.bf16.msra.mxu0 0
        %1462 = vmatpush.bf16.msra.mxu0 0
        %1463 = vmatpush.bf16.msra.mxu0 0
        %1464 = vmatpush.bf16.msra.mxu0 0
        %1465 = vmatpush.bf16.msra.mxu0 %v406
        %1466 = vmatpush.bf16.msra.mxu0 %v405
        %1467 = vmatmul.bf16.gmra.mxu0 %v1454
        %v1468 = vpop.f32.mrf.mxu0
        %v1469 = vadd.f32 0.0, %v1468
        %v1470 = vpop.f32.mrf.mxu0
        %v1471 = vadd.f32 0.0, %v1470
        %1472 = vmatmul.bf16.gmra.mxu0 %v1457
        %v1473 = vpop.f32.mrf.mxu0
        %v1474 = vadd.f32 0.0, %v1473
        %v1475 = vpop.f32.mrf.mxu0
        %v1476 = vadd.f32 0.0, %v1475
        %1477 = vdwg.mxu0
        %v1478 = vpack.c.bf16 %v1471, %v1469
        %v1479 = vpack.c.bf16 %v1476, %v1474
        %s1480 = scalar_lea.vmem %s366, 512
        %v1481 = vld [vmem:[%s1480] sm:$0xf]
        %v1482 = vld [vmem:[%s1480 + $0x4] sm:$0xf]
        %v1483 = vld [vmem:[%s1480 + $0x8] sm:$0xf]
        %v1484 = vld [vmem:[%s1480 + $0xc] sm:$0xf]
        %v1485 = vld [vmem:[%s1480 + $0x10] sm:$0xf]
        %v1486 = vld [vmem:[%s1480 + $0x14] sm:$0xf]
        %v1487 = vld [vmem:[%s1480 + $0x18] sm:$0xf]
        %v1488 = vld [vmem:[%s1480 + $0x1c] sm:$0xf]
        %v1489 = vld [vmem:[%s1480 + $0x20] sm:$0xf]
        %v1490 = vld [vmem:[%s1480 + $0x24] sm:$0xf]
        %v1491 = vld [vmem:[%s1480 + $0x28] sm:$0xf]
        %v1492 = vld [vmem:[%s1480 + $0x2c] sm:$0xf]
        %v1493 = vld [vmem:[%s1480 + $0x30] sm:$0xf]
        %v1494 = vld [vmem:[%s1480 + $0x34] sm:$0xf]
        %v1495 = vld [vmem:[%s1480 + $0x38] sm:$0xf]
        %v1496 = vld [vmem:[%s1480 + $0x3c] sm:$0xf]
        %v1513 = vunpack.c.l.b16 %v1481
        %v1514 = vunpack.c.l.b16 %v1482
        %v1515 = vunpack.c.l.b16 %v1483
        %v1516 = vunpack.c.l.b16 %v1484
        %v1517 = vunpack.c.l.b16 %v1485
        %v1518 = vunpack.c.l.b16 %v1486
        %v1519 = vunpack.c.l.b16 %v1487
        %v1520 = vunpack.c.l.b16 %v1488
        %v1521 = vunpack.c.l.b16 %v1489
        %v1522 = vunpack.c.l.b16 %v1490
        %v1523 = vunpack.c.l.b16 %v1491
        %v1524 = vunpack.c.l.b16 %v1492
        %v1525 = vunpack.c.l.b16 %v1493
        %v1526 = vunpack.c.l.b16 %v1494
        %v1527 = vunpack.c.l.b16 %v1495
        %v1528 = vunpack.c.l.b16 %v1496
        %v1529 = vpack.c.b16 %v1514, %v1513
        %v1530 = vpack.c.b16 %v1516, %v1515
        %v1531 = vpack.c.b16 %v1518, %v1517
        %v1532 = vpack.c.b16 %v1520, %v1519
        %v1533 = vpack.c.b16 %v1522, %v1521
        %v1534 = vpack.c.b16 %v1524, %v1523
        %v1535 = vpack.c.b16 %v1526, %v1525
        %v1536 = vpack.c.b16 %v1528, %v1527
        %1545 = vmatpush.bf16.msra.mxu0 %v1536
        %1546 = vmatpush.bf16.msra.mxu0 %v1535
        %1547 = vmatpush.bf16.msra.mxu0 %v1534
        %1548 = vmatpush.bf16.msra.mxu0 %v1533
        %1549 = vmatpush.bf16.msra.mxu0 %v1532
        %1550 = vmatpush.bf16.msra.mxu0 %v1531
        %1551 = vmatpush.bf16.msra.mxu0 %v1530
        %1552 = vmatpush.bf16.msra.mxu0 %v1529
        %1553 = vmatmul.bf16.gmra.mxu0 %v1478
        %v1554 = vpop.f32.mrf.mxu0
        %v1555 = vadd.f32 0.0, %v1554
        %v1556 = vpop.f32.mrf.mxu0
        %v1557 = vadd.f32 0.0, %v1556
        %1558 = vmatmul.bf16.gmra.mxu0 %v1479
        %v1559 = vpop.f32.mrf.mxu0
        %v1560 = vadd.f32 0.0, %v1559
        %v1561 = vpop.f32.mrf.mxu0
        %v1562 = vadd.f32 0.0, %v1561
        %1563 = vdwg.mxu0
        %v1564 = vadd.f32 %v1434, %v1555
        %v1565 = vadd.f32 %v1435, %v1557
        %v1566 = vadd.f32 %v1436, %v1560
        %v1567 = vadd.f32 %v1437, %v1562
        %v1568 = vld [vmem:[%s374] sm:$0x1]
        %v1570 = vperm.slane %v1568, 0
        %v1572 = vmul.f32 %v1564, %v1570
        %v1573 = vmul.f32 %v1565, %v1570
        %v1574 = vmul.f32 %v1566, %v1570
        %v1575 = vmul.f32 %v1567, %v1570
        %v1576 = vld [vmem:[%s377] sm:$0x1]
        %v1578 = vperm.slane %v1576, 0
        %v1580 = vadd.f32 %v1572, %v1578
        %v1581 = vadd.f32 %v1573, %v1578
        %v1582 = vadd.f32 %v1574, %v1578
        %v1583 = vadd.f32 %v1575, %v1578
        %v1584 = vmax.f32 %v1580, 0.0
        %v1585 = vmax.f32 %v1581, 0.0
        %v1586 = vmax.f32 %v1582, 0.0
        %v1587 = vmax.f32 %v1583, 0.0
        %v1588 = vpack.c.bf16 %v1585, %v1584
        %v1589 = vpack.c.bf16 %v1587, %v1586
        %1590 = vmatpush.bf16.msra.mxu0 0
        %1591 = vmatpush.bf16.msra.mxu0 0
        %1592 = vmatpush.bf16.msra.mxu0 0
        %1593 = vmatpush.bf16.msra.mxu0 0
        %1594 = vmatpush.bf16.msra.mxu0 0
        %1595 = vmatpush.bf16.msra.mxu0 0
        %1596 = vmatpush.bf16.msra.mxu0 %v1589
        %1597 = vmatpush.bf16.msra.mxu0 %v1588
        %1598 = vmatmul.bf16.gmra.mxu0 %v423
        %v1599 = vpop.f32.mrf.mxu0
        %v1600 = vadd.f32 0.0, %v1599
        %v1601 = vpop.f32.mrf.mxu0
        %v1602 = vadd.f32 0.0, %v1601
        %1603 = vmatmul.bf16.gmra.mxu0 %v426
        %v1604 = vpop.f32.mrf.mxu0
        %v1605 = vadd.f32 0.0, %v1604
        %v1606 = vpop.f32.mrf.mxu0
        %v1607 = vadd.f32 0.0, %v1606
        %1608 = vdwg.mxu0
        %v1609 = vpack.c.bf16 %v1602, %v1600
        %v1610 = vpack.c.bf16 %v1607, %v1605
        %v1611 = vld [vmem:[%s371] sm:$0xf]
        %v1612 = vld [vmem:[%s371 + $0x4] sm:$0xf]
        %v1613 = vld [vmem:[%s371 + $0x8] sm:$0xf]
        %v1614 = vld [vmem:[%s371 + $0xc] sm:$0xf]
        %v1615 = vld [vmem:[%s371 + $0x10] sm:$0xf]
        %v1616 = vld [vmem:[%s371 + $0x14] sm:$0xf]
        %v1617 = vld [vmem:[%s371 + $0x18] sm:$0xf]
        %v1618 = vld [vmem:[%s371 + $0x1c] sm:$0xf]
        %v1619 = vld [vmem:[%s371 + $0x20] sm:$0xf]
        %v1620 = vld [vmem:[%s371 + $0x24] sm:$0xf]
        %v1621 = vld [vmem:[%s371 + $0x28] sm:$0xf]
        %v1622 = vld [vmem:[%s371 + $0x2c] sm:$0xf]
        %v1623 = vld [vmem:[%s371 + $0x30] sm:$0xf]
        %v1624 = vld [vmem:[%s371 + $0x34] sm:$0xf]
        %v1625 = vld [vmem:[%s371 + $0x38] sm:$0xf]
        %v1626 = vld [vmem:[%s371 + $0x3c] sm:$0xf]
        %1627 = vmatpush.bf16.msra.mxu0 0
        %1628 = vmatpush.bf16.msra.mxu0 0
        %1629 = vmatpush.bf16.msra.mxu0 0
        %1630 = vmatpush.bf16.msra.mxu0 0
        %1631 = vmatpush.bf16.msra.mxu0 0
        %1632 = vmatpush.bf16.msra.mxu0 0
        %1633 = vmatpush.bf16.msra.mxu0 %v1589
        %1634 = vmatpush.bf16.msra.mxu0 %v1588
        %1635 = vmatmul.bf16.gmra.mxu0 %v481
        %v1636 = vpop.f32.mrf.mxu0
        %v1637 = vadd.f32 0.0, %v1636
        %v1638 = vpop.f32.mrf.mxu0
        %v1639 = vadd.f32 0.0, %v1638
        %1640 = vmatmul.bf16.gmra.mxu0 %v484
        %v1641 = vpop.f32.mrf.mxu0
        %v1642 = vadd.f32 0.0, %v1641
        %v1643 = vpop.f32.mrf.mxu0
        %v1644 = vadd.f32 0.0, %v1643
        %1645 = vdwg.mxu0
        %v1646 = vpack.c.bf16 %v1639, %v1637
        %v1647 = vpack.c.bf16 %v1644, %v1642
        %s1648 = scalar_lea.vmem %s371, 64
        %v1649 = vld [vmem:[%s1648] sm:$0xf]
        %v1650 = vld [vmem:[%s1648 + $0x4] sm:$0xf]
        %v1651 = vld [vmem:[%s1648 + $0x8] sm:$0xf]
        %v1652 = vld [vmem:[%s1648 + $0xc] sm:$0xf]
        %v1653 = vld [vmem:[%s1648 + $0x10] sm:$0xf]
        %v1654 = vld [vmem:[%s1648 + $0x14] sm:$0xf]
        %v1655 = vld [vmem:[%s1648 + $0x18] sm:$0xf]
        %v1656 = vld [vmem:[%s1648 + $0x1c] sm:$0xf]
        %v1657 = vld [vmem:[%s1648 + $0x20] sm:$0xf]
        %v1658 = vld [vmem:[%s1648 + $0x24] sm:$0xf]
        %v1659 = vld [vmem:[%s1648 + $0x28] sm:$0xf]
        %v1660 = vld [vmem:[%s1648 + $0x2c] sm:$0xf]
        %v1661 = vld [vmem:[%s1648 + $0x30] sm:$0xf]
        %v1662 = vld [vmem:[%s1648 + $0x34] sm:$0xf]
        %v1663 = vld [vmem:[%s1648 + $0x38] sm:$0xf]
        %v1664 = vld [vmem:[%s1648 + $0x3c] sm:$0xf]
        %v1681 = vunpack.c.l.b16 %v1649
        %v1682 = vunpack.c.l.b16 %v1650
        %v1683 = vunpack.c.l.b16 %v1651
        %v1684 = vunpack.c.l.b16 %v1652
        %v1685 = vunpack.c.l.b16 %v1653
        %v1686 = vunpack.c.l.b16 %v1654
        %v1687 = vunpack.c.l.b16 %v1655
        %v1688 = vunpack.c.l.b16 %v1656
        %v1689 = vunpack.c.l.b16 %v1657
        %v1690 = vunpack.c.l.b16 %v1658
        %v1691 = vunpack.c.l.b16 %v1659
        %v1692 = vunpack.c.l.b16 %v1660
        %v1693 = vunpack.c.l.b16 %v1661
        %v1694 = vunpack.c.l.b16 %v1662
        %v1695 = vunpack.c.l.b16 %v1663
        %v1696 = vunpack.c.l.b16 %v1664
        %v1697 = vpack.c.b16 %v1682, %v1681
        %v1698 = vpack.c.b16 %v1684, %v1683
        %v1699 = vpack.c.b16 %v1686, %v1685
        %v1700 = vpack.c.b16 %v1688, %v1687
        %v1701 = vpack.c.b16 %v1690, %v1689
        %v1702 = vpack.c.b16 %v1692, %v1691
        %v1703 = vpack.c.b16 %v1694, %v1693
        %v1704 = vpack.c.b16 %v1696, %v1695
        %1713 = vmatpush.bf16.msra.mxu0 %v1704
        %1714 = vmatpush.bf16.msra.mxu0 %v1703
        %1715 = vmatpush.bf16.msra.mxu0 %v1702
        %1716 = vmatpush.bf16.msra.mxu0 %v1701
        %1717 = vmatpush.bf16.msra.mxu0 %v1700
        %1718 = vmatpush.bf16.msra.mxu0 %v1699
        %1719 = vmatpush.bf16.msra.mxu0 %v1698
        %1720 = vmatpush.bf16.msra.mxu0 %v1697
        %1721 = vmatmul.bf16.gmra.mxu0 %v1646
        %v1722 = vpop.f32.mrf.mxu0
        %v1723 = vadd.f32 0.0, %v1722
        %v1724 = vpop.f32.mrf.mxu0
        %v1725 = vadd.f32 0.0, %v1724
        %1726 = vmatmul.bf16.gmra.mxu0 %v1647
        %v1727 = vpop.f32.mrf.mxu0
        %v1728 = vadd.f32 0.0, %v1727
        %v1729 = vpop.f32.mrf.mxu0
        %v1730 = vadd.f32 0.0, %v1729
        %1731 = vdwg.mxu0
        %v1748 = vunpack.c.l.b16 %v1611
        %v1749 = vunpack.c.l.b16 %v1612
        %v1750 = vunpack.c.l.b16 %v1613
        %v1751 = vunpack.c.l.b16 %v1614
        %v1752 = vunpack.c.l.b16 %v1615
        %v1753 = vunpack.c.l.b16 %v1616
        %v1754 = vunpack.c.l.b16 %v1617
        %v1755 = vunpack.c.l.b16 %v1618
        %v1756 = vunpack.c.l.b16 %v1619
        %v1757 = vunpack.c.l.b16 %v1620
        %v1758 = vunpack.c.l.b16 %v1621
        %v1759 = vunpack.c.l.b16 %v1622
        %v1760 = vunpack.c.l.b16 %v1623
        %v1761 = vunpack.c.l.b16 %v1624
        %v1762 = vunpack.c.l.b16 %v1625
        %v1763 = vunpack.c.l.b16 %v1626
        %v1764 = vpack.c.b16 %v1749, %v1748
        %v1765 = vpack.c.b16 %v1751, %v1750
        %v1766 = vpack.c.b16 %v1753, %v1752
        %v1767 = vpack.c.b16 %v1755, %v1754
        %v1768 = vpack.c.b16 %v1757, %v1756
        %v1769 = vpack.c.b16 %v1759, %v1758
        %v1770 = vpack.c.b16 %v1761, %v1760
        %v1771 = vpack.c.b16 %v1763, %v1762
        %1780 = vmatpush.bf16.msra.mxu0 %v1771
        %1781 = vmatpush.bf16.msra.mxu0 %v1770
        %1782 = vmatpush.bf16.msra.mxu0 %v1769
        %1783 = vmatpush.bf16.msra.mxu0 %v1768
        %1784 = vmatpush.bf16.msra.mxu0 %v1767
        %1785 = vmatpush.bf16.msra.mxu0 %v1766
        %1786 = vmatpush.bf16.msra.mxu0 %v1765
        %1787 = vmatpush.bf16.msra.mxu0 %v1764
        %1788 = vmatmul.bf16.gmra.mxu0 %v1609
        %v1789 = vpop.f32.mrf.mxu0
        %v1790 = vadd.f32 %v1723, %v1789
        %v1791 = vpop.f32.mrf.mxu0
        %v1792 = vadd.f32 %v1725, %v1791
        %1793 = vmatmul.bf16.gmra.mxu0 %v1610
        %v1794 = vpop.f32.mrf.mxu0
        %v1795 = vadd.f32 %v1728, %v1794
        %v1796 = vpop.f32.mrf.mxu0
        %v1797 = vadd.f32 %v1730, %v1796
        %1798 = vdwg.mxu0
        %1799 = vmatpush.bf16.msra.mxu0 0
        %1800 = vmatpush.bf16.msra.mxu0 0
        %1801 = vmatpush.bf16.msra.mxu0 0
        %1802 = vmatpush.bf16.msra.mxu0 0
        %1803 = vmatpush.bf16.msra.mxu0 0
        %1804 = vmatpush.bf16.msra.mxu0 0
        %1805 = vmatpush.bf16.msra.mxu0 %v1589
        %1806 = vmatpush.bf16.msra.mxu0 %v1588
        %1807 = vmatmul.bf16.gmra.mxu0 %v674
        %v1808 = vpop.f32.mrf.mxu0
        %v1809 = vadd.f32 0.0, %v1808
        %v1810 = vpop.f32.mrf.mxu0
        %v1811 = vadd.f32 0.0, %v1810
        %1812 = vmatmul.bf16.gmra.mxu0 %v677
        %v1813 = vpop.f32.mrf.mxu0
        %v1814 = vadd.f32 0.0, %v1813
        %v1815 = vpop.f32.mrf.mxu0
        %v1816 = vadd.f32 0.0, %v1815
        %1817 = vdwg.mxu0
        %v1818 = vpack.c.bf16 %v1811, %v1809
        %v1819 = vpack.c.bf16 %v1816, %v1814
        %s1820 = scalar_lea.vmem %s371, 128
        %v1821 = vld [vmem:[%s1820] sm:$0xf]
        %v1822 = vld [vmem:[%s1820 + $0x4] sm:$0xf]
        %v1823 = vld [vmem:[%s1820 + $0x8] sm:$0xf]
        %v1824 = vld [vmem:[%s1820 + $0xc] sm:$0xf]
        %v1825 = vld [vmem:[%s1820 + $0x10] sm:$0xf]
        %v1826 = vld [vmem:[%s1820 + $0x14] sm:$0xf]
        %v1827 = vld [vmem:[%s1820 + $0x18] sm:$0xf]
        %v1828 = vld [vmem:[%s1820 + $0x1c] sm:$0xf]
        %v1829 = vld [vmem:[%s1820 + $0x20] sm:$0xf]
        %v1830 = vld [vmem:[%s1820 + $0x24] sm:$0xf]
        %v1831 = vld [vmem:[%s1820 + $0x28] sm:$0xf]
        %v1832 = vld [vmem:[%s1820 + $0x2c] sm:$0xf]
        %v1833 = vld [vmem:[%s1820 + $0x30] sm:$0xf]
        %v1834 = vld [vmem:[%s1820 + $0x34] sm:$0xf]
        %v1835 = vld [vmem:[%s1820 + $0x38] sm:$0xf]
        %v1836 = vld [vmem:[%s1820 + $0x3c] sm:$0xf]
        %v1853 = vunpack.c.l.b16 %v1821
        %v1854 = vunpack.c.l.b16 %v1822
        %v1855 = vunpack.c.l.b16 %v1823
        %v1856 = vunpack.c.l.b16 %v1824
        %v1857 = vunpack.c.l.b16 %v1825
        %v1858 = vunpack.c.l.b16 %v1826
        %v1859 = vunpack.c.l.b16 %v1827
        %v1860 = vunpack.c.l.b16 %v1828
        %v1861 = vunpack.c.l.b16 %v1829
        %v1862 = vunpack.c.l.b16 %v1830
        %v1863 = vunpack.c.l.b16 %v1831
        %v1864 = vunpack.c.l.b16 %v1832
        %v1865 = vunpack.c.l.b16 %v1833
        %v1866 = vunpack.c.l.b16 %v1834
        %v1867 = vunpack.c.l.b16 %v1835
        %v1868 = vunpack.c.l.b16 %v1836
        %v1869 = vpack.c.b16 %v1854, %v1853
        %v1870 = vpack.c.b16 %v1856, %v1855
        %v1871 = vpack.c.b16 %v1858, %v1857
        %v1872 = vpack.c.b16 %v1860, %v1859
        %v1873 = vpack.c.b16 %v1862, %v1861
        %v1874 = vpack.c.b16 %v1864, %v1863
        %v1875 = vpack.c.b16 %v1866, %v1865
        %v1876 = vpack.c.b16 %v1868, %v1867
        %1885 = vmatpush.bf16.msra.mxu0 %v1876
        %1886 = vmatpush.bf16.msra.mxu0 %v1875
        %1887 = vmatpush.bf16.msra.mxu0 %v1874
        %1888 = vmatpush.bf16.msra.mxu0 %v1873
        %1889 = vmatpush.bf16.msra.mxu0 %v1872
        %1890 = vmatpush.bf16.msra.mxu0 %v1871
        %1891 = vmatpush.bf16.msra.mxu0 %v1870
        %1892 = vmatpush.bf16.msra.mxu0 %v1869
        %1893 = vmatmul.bf16.gmra.mxu0 %v1818
        %v1894 = vpop.f32.mrf.mxu0
        %v1895 = vadd.f32 0.0, %v1894
        %v1896 = vpop.f32.mrf.mxu0
        %v1897 = vadd.f32 0.0, %v1896
        %1898 = vmatmul.bf16.gmra.mxu0 %v1819
        %v1899 = vpop.f32.mrf.mxu0
        %v1900 = vadd.f32 0.0, %v1899
        %v1901 = vpop.f32.mrf.mxu0
        %v1902 = vadd.f32 0.0, %v1901
        %1903 = vdwg.mxu0
        %v1904 = vadd.f32 %v1790, %v1895
        %v1905 = vadd.f32 %v1792, %v1897
        %v1906 = vadd.f32 %v1795, %v1900
        %v1907 = vadd.f32 %v1797, %v1902
        %1908 = vmatpush.bf16.msra.mxu0 0
        %1909 = vmatpush.bf16.msra.mxu0 0
        %1910 = vmatpush.bf16.msra.mxu0 0
        %1911 = vmatpush.bf16.msra.mxu0 0
        %1912 = vmatpush.bf16.msra.mxu0 0
        %1913 = vmatpush.bf16.msra.mxu0 0
        %1914 = vmatpush.bf16.msra.mxu0 %v1589
        %1915 = vmatpush.bf16.msra.mxu0 %v1588
        %1916 = vmatmul.bf16.gmra.mxu0 %v804
        %v1917 = vpop.f32.mrf.mxu0
        %v1918 = vadd.f32 0.0, %v1917
        %v1919 = vpop.f32.mrf.mxu0
        %v1920 = vadd.f32 0.0, %v1919
        %1921 = vmatmul.bf16.gmra.mxu0 %v807
        %v1922 = vpop.f32.mrf.mxu0
        %v1923 = vadd.f32 0.0, %v1922
        %v1924 = vpop.f32.mrf.mxu0
        %v1925 = vadd.f32 0.0, %v1924
        %1926 = vdwg.mxu0
        %v1927 = vpack.c.bf16 %v1920, %v1918
        %v1928 = vpack.c.bf16 %v1925, %v1923
        %s1929 = scalar_lea.vmem %s371, 192
        %v1930 = vld [vmem:[%s1929] sm:$0xf]
        %v1931 = vld [vmem:[%s1929 + $0x4] sm:$0xf]
        %v1932 = vld [vmem:[%s1929 + $0x8] sm:$0xf]
        %v1933 = vld [vmem:[%s1929 + $0xc] sm:$0xf]
        %v1934 = vld [vmem:[%s1929 + $0x10] sm:$0xf]
        %v1935 = vld [vmem:[%s1929 + $0x14] sm:$0xf]
        %v1936 = vld [vmem:[%s1929 + $0x18] sm:$0xf]
        %v1937 = vld [vmem:[%s1929 + $0x1c] sm:$0xf]
        %v1938 = vld [vmem:[%s1929 + $0x20] sm:$0xf]
        %v1939 = vld [vmem:[%s1929 + $0x24] sm:$0xf]
        %v1940 = vld [vmem:[%s1929 + $0x28] sm:$0xf]
        %v1941 = vld [vmem:[%s1929 + $0x2c] sm:$0xf]
        %v1942 = vld [vmem:[%s1929 + $0x30] sm:$0xf]
        %v1943 = vld [vmem:[%s1929 + $0x34] sm:$0xf]
        %v1944 = vld [vmem:[%s1929 + $0x38] sm:$0xf]
        %v1945 = vld [vmem:[%s1929 + $0x3c] sm:$0xf]
        %v1962 = vunpack.c.l.b16 %v1930
        %v1963 = vunpack.c.l.b16 %v1931
        %v1964 = vunpack.c.l.b16 %v1932
        %v1965 = vunpack.c.l.b16 %v1933
        %v1966 = vunpack.c.l.b16 %v1934
        %v1967 = vunpack.c.l.b16 %v1935
        %v1968 = vunpack.c.l.b16 %v1936
        %v1969 = vunpack.c.l.b16 %v1937
        %v1970 = vunpack.c.l.b16 %v1938
        %v1971 = vunpack.c.l.b16 %v1939
        %v1972 = vunpack.c.l.b16 %v1940
        %v1973 = vunpack.c.l.b16 %v1941
        %v1974 = vunpack.c.l.b16 %v1942
        %v1975 = vunpack.c.l.b16 %v1943
        %v1976 = vunpack.c.l.b16 %v1944
        %v1977 = vunpack.c.l.b16 %v1945
        %v1978 = vpack.c.b16 %v1963, %v1962
        %v1979 = vpack.c.b16 %v1965, %v1964
        %v1980 = vpack.c.b16 %v1967, %v1966
        %v1981 = vpack.c.b16 %v1969, %v1968
        %v1982 = vpack.c.b16 %v1971, %v1970
        %v1983 = vpack.c.b16 %v1973, %v1972
        %v1984 = vpack.c.b16 %v1975, %v1974
        %v1985 = vpack.c.b16 %v1977, %v1976
        %1994 = vmatpush.bf16.msra.mxu0 %v1985
        %1995 = vmatpush.bf16.msra.mxu0 %v1984
        %1996 = vmatpush.bf16.msra.mxu0 %v1983
        %1997 = vmatpush.bf16.msra.mxu0 %v1982
        %1998 = vmatpush.bf16.msra.mxu0 %v1981
        %1999 = vmatpush.bf16.msra.mxu0 %v1980
        %2000 = vmatpush.bf16.msra.mxu0 %v1979
        %2001 = vmatpush.bf16.msra.mxu0 %v1978
        %2002 = vmatmul.bf16.gmra.mxu0 %v1927
        %v2003 = vpop.f32.mrf.mxu0
        %v2004 = vadd.f32 0.0, %v2003
        %v2005 = vpop.f32.mrf.mxu0
        %v2006 = vadd.f32 0.0, %v2005
        %2007 = vmatmul.bf16.gmra.mxu0 %v1928
        %v2008 = vpop.f32.mrf.mxu0
        %v2009 = vadd.f32 0.0, %v2008
        %v2010 = vpop.f32.mrf.mxu0
        %v2011 = vadd.f32 0.0, %v2010
        %2012 = vdwg.mxu0
        %v2013 = vadd.f32 %v1904, %v2004
        %v2014 = vadd.f32 %v1905, %v2006
        %v2015 = vadd.f32 %v1906, %v2009
        %v2016 = vadd.f32 %v1907, %v2011
        %2017 = vmatpush.bf16.msra.mxu0 0
        %2018 = vmatpush.bf16.msra.mxu0 0
        %2019 = vmatpush.bf16.msra.mxu0 0
        %2020 = vmatpush.bf16.msra.mxu0 0
        %2021 = vmatpush.bf16.msra.mxu0 0
        %2022 = vmatpush.bf16.msra.mxu0 0
        %2023 = vmatpush.bf16.msra.mxu0 %v1589
        %2024 = vmatpush.bf16.msra.mxu0 %v1588
        %2025 = vmatmul.bf16.gmra.mxu0 %v934
        %v2026 = vpop.f32.mrf.mxu0
        %v2027 = vadd.f32 0.0, %v2026
        %v2028 = vpop.f32.mrf.mxu0
        %v2029 = vadd.f32 0.0, %v2028
        %2030 = vmatmul.bf16.gmra.mxu0 %v937
        %v2031 = vpop.f32.mrf.mxu0
        %v2032 = vadd.f32 0.0, %v2031
        %v2033 = vpop.f32.mrf.mxu0
        %v2034 = vadd.f32 0.0, %v2033
        %2035 = vdwg.mxu0
        %v2036 = vpack.c.bf16 %v2029, %v2027
        %v2037 = vpack.c.bf16 %v2034, %v2032
        %s2038 = scalar_lea.vmem %s371, 256
        %v2039 = vld [vmem:[%s2038] sm:$0xf]
        %v2040 = vld [vmem:[%s2038 + $0x4] sm:$0xf]
        %v2041 = vld [vmem:[%s2038 + $0x8] sm:$0xf]
        %v2042 = vld [vmem:[%s2038 + $0xc] sm:$0xf]
        %v2043 = vld [vmem:[%s2038 + $0x10] sm:$0xf]
        %v2044 = vld [vmem:[%s2038 + $0x14] sm:$0xf]
        %v2045 = vld [vmem:[%s2038 + $0x18] sm:$0xf]
        %v2046 = vld [vmem:[%s2038 + $0x1c] sm:$0xf]
        %v2047 = vld [vmem:[%s2038 + $0x20] sm:$0xf]
        %v2048 = vld [vmem:[%s2038 + $0x24] sm:$0xf]
        %v2049 = vld [vmem:[%s2038 + $0x28] sm:$0xf]
        %v2050 = vld [vmem:[%s2038 + $0x2c] sm:$0xf]
        %v2051 = vld [vmem:[%s2038 + $0x30] sm:$0xf]
        %v2052 = vld [vmem:[%s2038 + $0x34] sm:$0xf]
        %v2053 = vld [vmem:[%s2038 + $0x38] sm:$0xf]
        %v2054 = vld [vmem:[%s2038 + $0x3c] sm:$0xf]
        %v2071 = vunpack.c.l.b16 %v2039
        %v2072 = vunpack.c.l.b16 %v2040
        %v2073 = vunpack.c.l.b16 %v2041
        %v2074 = vunpack.c.l.b16 %v2042
        %v2075 = vunpack.c.l.b16 %v2043
        %v2076 = vunpack.c.l.b16 %v2044
        %v2077 = vunpack.c.l.b16 %v2045
        %v2078 = vunpack.c.l.b16 %v2046
        %v2079 = vunpack.c.l.b16 %v2047
        %v2080 = vunpack.c.l.b16 %v2048
        %v2081 = vunpack.c.l.b16 %v2049
        %v2082 = vunpack.c.l.b16 %v2050
        %v2083 = vunpack.c.l.b16 %v2051
        %v2084 = vunpack.c.l.b16 %v2052
        %v2085 = vunpack.c.l.b16 %v2053
        %v2086 = vunpack.c.l.b16 %v2054
        %v2087 = vpack.c.b16 %v2072, %v2071
        %v2088 = vpack.c.b16 %v2074, %v2073
        %v2089 = vpack.c.b16 %v2076, %v2075
        %v2090 = vpack.c.b16 %v2078, %v2077
        %v2091 = vpack.c.b16 %v2080, %v2079
        %v2092 = vpack.c.b16 %v2082, %v2081
        %v2093 = vpack.c.b16 %v2084, %v2083
        %v2094 = vpack.c.b16 %v2086, %v2085
        %2103 = vmatpush.bf16.msra.mxu0 %v2094
        %2104 = vmatpush.bf16.msra.mxu0 %v2093
        %2105 = vmatpush.bf16.msra.mxu0 %v2092
        %2106 = vmatpush.bf16.msra.mxu0 %v2091
        %2107 = vmatpush.bf16.msra.mxu0 %v2090
        %2108 = vmatpush.bf16.msra.mxu0 %v2089
        %2109 = vmatpush.bf16.msra.mxu0 %v2088
        %2110 = vmatpush.bf16.msra.mxu0 %v2087
        %2111 = vmatmul.bf16.gmra.mxu0 %v2036
        %v2112 = vpop.f32.mrf.mxu0
        %v2113 = vadd.f32 0.0, %v2112
        %v2114 = vpop.f32.mrf.mxu0
        %v2115 = vadd.f32 0.0, %v2114
        %2116 = vmatmul.bf16.gmra.mxu0 %v2037
        %v2117 = vpop.f32.mrf.mxu0
        %v2118 = vadd.f32 0.0, %v2117
        %v2119 = vpop.f32.mrf.mxu0
        %v2120 = vadd.f32 0.0, %v2119
        %2121 = vdwg.mxu0
        %v2122 = vadd.f32 %v2013, %v2113
        %v2123 = vadd.f32 %v2014, %v2115
        %v2124 = vadd.f32 %v2015, %v2118
        %v2125 = vadd.f32 %v2016, %v2120
        %2126 = vmatpush.bf16.msra.mxu0 0
        %2127 = vmatpush.bf16.msra.mxu0 0
        %2128 = vmatpush.bf16.msra.mxu0 0
        %2129 = vmatpush.bf16.msra.mxu0 0
        %2130 = vmatpush.bf16.msra.mxu0 0
        %2131 = vmatpush.bf16.msra.mxu0 0
        %2132 = vmatpush.bf16.msra.mxu0 %v1589
        %2133 = vmatpush.bf16.msra.mxu0 %v1588
        %2134 = vmatmul.bf16.gmra.mxu0 %v1064
        %v2135 = vpop.f32.mrf.mxu0
        %v2136 = vadd.f32 0.0, %v2135
        %v2137 = vpop.f32.mrf.mxu0
        %v2138 = vadd.f32 0.0, %v2137
        %2139 = vmatmul.bf16.gmra.mxu0 %v1067
        %v2140 = vpop.f32.mrf.mxu0
        %v2141 = vadd.f32 0.0, %v2140
        %v2142 = vpop.f32.mrf.mxu0
        %v2143 = vadd.f32 0.0, %v2142
        %2144 = vdwg.mxu0
        %v2145 = vpack.c.bf16 %v2138, %v2136
        %v2146 = vpack.c.bf16 %v2143, %v2141
        %s2147 = scalar_lea.vmem %s371, 320
        %v2148 = vld [vmem:[%s2147] sm:$0xf]
        %v2149 = vld [vmem:[%s2147 + $0x4] sm:$0xf]
        %v2150 = vld [vmem:[%s2147 + $0x8] sm:$0xf]
        %v2151 = vld [vmem:[%s2147 + $0xc] sm:$0xf]
        %v2152 = vld [vmem:[%s2147 + $0x10] sm:$0xf]
        %v2153 = vld [vmem:[%s2147 + $0x14] sm:$0xf]
        %v2154 = vld [vmem:[%s2147 + $0x18] sm:$0xf]
        %v2155 = vld [vmem:[%s2147 + $0x1c] sm:$0xf]
        %v2156 = vld [vmem:[%s2147 + $0x20] sm:$0xf]
        %v2157 = vld [vmem:[%s2147 + $0x24] sm:$0xf]
        %v2158 = vld [vmem:[%s2147 + $0x28] sm:$0xf]
        %v2159 = vld [vmem:[%s2147 + $0x2c] sm:$0xf]
        %v2160 = vld [vmem:[%s2147 + $0x30] sm:$0xf]
        %v2161 = vld [vmem:[%s2147 + $0x34] sm:$0xf]
        %v2162 = vld [vmem:[%s2147 + $0x38] sm:$0xf]
        %v2163 = vld [vmem:[%s2147 + $0x3c] sm:$0xf]
        %v2180 = vunpack.c.l.b16 %v2148
        %v2181 = vunpack.c.l.b16 %v2149
        %v2182 = vunpack.c.l.b16 %v2150
        %v2183 = vunpack.c.l.b16 %v2151
        %v2184 = vunpack.c.l.b16 %v2152
        %v2185 = vunpack.c.l.b16 %v2153
        %v2186 = vunpack.c.l.b16 %v2154
        %v2187 = vunpack.c.l.b16 %v2155
        %v2188 = vunpack.c.l.b16 %v2156
        %v2189 = vunpack.c.l.b16 %v2157
        %v2190 = vunpack.c.l.b16 %v2158
        %v2191 = vunpack.c.l.b16 %v2159
        %v2192 = vunpack.c.l.b16 %v2160
        %v2193 = vunpack.c.l.b16 %v2161
        %v2194 = vunpack.c.l.b16 %v2162
        %v2195 = vunpack.c.l.b16 %v2163
        %v2196 = vpack.c.b16 %v2181, %v2180
        %v2197 = vpack.c.b16 %v2183, %v2182
        %v2198 = vpack.c.b16 %v2185, %v2184
        %v2199 = vpack.c.b16 %v2187, %v2186
        %v2200 = vpack.c.b16 %v2189, %v2188
        %v2201 = vpack.c.b16 %v2191, %v2190
        %v2202 = vpack.c.b16 %v2193, %v2192
        %v2203 = vpack.c.b16 %v2195, %v2194
        %2212 = vmatpush.bf16.msra.mxu0 %v2203
        %2213 = vmatpush.bf16.msra.mxu0 %v2202
        %2214 = vmatpush.bf16.msra.mxu0 %v2201
        %2215 = vmatpush.bf16.msra.mxu0 %v2200
        %2216 = vmatpush.bf16.msra.mxu0 %v2199
        %2217 = vmatpush.bf16.msra.mxu0 %v2198
        %2218 = vmatpush.bf16.msra.mxu0 %v2197
        %2219 = vmatpush.bf16.msra.mxu0 %v2196
        %2220 = vmatmul.bf16.gmra.mxu0 %v2145
        %v2221 = vpop.f32.mrf.mxu0
        %v2222 = vadd.f32 0.0, %v2221
        %v2223 = vpop.f32.mrf.mxu0
        %v2224 = vadd.f32 0.0, %v2223
        %2225 = vmatmul.bf16.gmra.mxu0 %v2146
        %v2226 = vpop.f32.mrf.mxu0
        %v2227 = vadd.f32 0.0, %v2226
        %v2228 = vpop.f32.mrf.mxu0
        %v2229 = vadd.f32 0.0, %v2228
        %2230 = vdwg.mxu0
        %v2231 = vadd.f32 %v2122, %v2222
        %v2232 = vadd.f32 %v2123, %v2224
        %v2233 = vadd.f32 %v2124, %v2227
        %v2234 = vadd.f32 %v2125, %v2229
        %2235 = vmatpush.bf16.msra.mxu0 0
        %2236 = vmatpush.bf16.msra.mxu0 0
        %2237 = vmatpush.bf16.msra.mxu0 0
        %2238 = vmatpush.bf16.msra.mxu0 0
        %2239 = vmatpush.bf16.msra.mxu0 0
        %2240 = vmatpush.bf16.msra.mxu0 0
        %2241 = vmatpush.bf16.msra.mxu0 %v1589
        %2242 = vmatpush.bf16.msra.mxu0 %v1588
        %2243 = vmatmul.bf16.gmra.mxu0 %v1194
        %v2244 = vpop.f32.mrf.mxu0
        %v2245 = vadd.f32 0.0, %v2244
        %v2246 = vpop.f32.mrf.mxu0
        %v2247 = vadd.f32 0.0, %v2246
        %2248 = vmatmul.bf16.gmra.mxu0 %v1197
        %v2249 = vpop.f32.mrf.mxu0
        %v2250 = vadd.f32 0.0, %v2249
        %v2251 = vpop.f32.mrf.mxu0
        %v2252 = vadd.f32 0.0, %v2251
        %2253 = vdwg.mxu0
        %v2254 = vpack.c.bf16 %v2247, %v2245
        %v2255 = vpack.c.bf16 %v2252, %v2250
        %s2256 = scalar_lea.vmem %s371, 384
        %v2257 = vld [vmem:[%s2256] sm:$0xf]
        %v2258 = vld [vmem:[%s2256 + $0x4] sm:$0xf]
        %v2259 = vld [vmem:[%s2256 + $0x8] sm:$0xf]
        %v2260 = vld [vmem:[%s2256 + $0xc] sm:$0xf]
        %v2261 = vld [vmem:[%s2256 + $0x10] sm:$0xf]
        %v2262 = vld [vmem:[%s2256 + $0x14] sm:$0xf]
        %v2263 = vld [vmem:[%s2256 + $0x18] sm:$0xf]
        %v2264 = vld [vmem:[%s2256 + $0x1c] sm:$0xf]
        %v2265 = vld [vmem:[%s2256 + $0x20] sm:$0xf]
        %v2266 = vld [vmem:[%s2256 + $0x24] sm:$0xf]
        %v2267 = vld [vmem:[%s2256 + $0x28] sm:$0xf]
        %v2268 = vld [vmem:[%s2256 + $0x2c] sm:$0xf]
        %v2269 = vld [vmem:[%s2256 + $0x30] sm:$0xf]
        %v2270 = vld [vmem:[%s2256 + $0x34] sm:$0xf]
        %v2271 = vld [vmem:[%s2256 + $0x38] sm:$0xf]
        %v2272 = vld [vmem:[%s2256 + $0x3c] sm:$0xf]
        %v2289 = vunpack.c.l.b16 %v2257
        %v2290 = vunpack.c.l.b16 %v2258
        %v2291 = vunpack.c.l.b16 %v2259
        %v2292 = vunpack.c.l.b16 %v2260
        %v2293 = vunpack.c.l.b16 %v2261
        %v2294 = vunpack.c.l.b16 %v2262
        %v2295 = vunpack.c.l.b16 %v2263
        %v2296 = vunpack.c.l.b16 %v2264
        %v2297 = vunpack.c.l.b16 %v2265
        %v2298 = vunpack.c.l.b16 %v2266
        %v2299 = vunpack.c.l.b16 %v2267
        %v2300 = vunpack.c.l.b16 %v2268
        %v2301 = vunpack.c.l.b16 %v2269
        %v2302 = vunpack.c.l.b16 %v2270
        %v2303 = vunpack.c.l.b16 %v2271
        %v2304 = vunpack.c.l.b16 %v2272
        %v2305 = vpack.c.b16 %v2290, %v2289
        %v2306 = vpack.c.b16 %v2292, %v2291
        %v2307 = vpack.c.b16 %v2294, %v2293
        %v2308 = vpack.c.b16 %v2296, %v2295
        %v2309 = vpack.c.b16 %v2298, %v2297
        %v2310 = vpack.c.b16 %v2300, %v2299
        %v2311 = vpack.c.b16 %v2302, %v2301
        %v2312 = vpack.c.b16 %v2304, %v2303
        %2321 = vmatpush.bf16.msra.mxu0 %v2312
        %2322 = vmatpush.bf16.msra.mxu0 %v2311
        %2323 = vmatpush.bf16.msra.mxu0 %v2310
        %2324 = vmatpush.bf16.msra.mxu0 %v2309
        %2325 = vmatpush.bf16.msra.mxu0 %v2308
        %2326 = vmatpush.bf16.msra.mxu0 %v2307
        %2327 = vmatpush.bf16.msra.mxu0 %v2306
        %2328 = vmatpush.bf16.msra.mxu0 %v2305
        %2329 = vmatmul.bf16.gmra.mxu0 %v2254
        %v2330 = vpop.f32.mrf.mxu0
        %v2331 = vadd.f32 0.0, %v2330
        %v2332 = vpop.f32.mrf.mxu0
        %v2333 = vadd.f32 0.0, %v2332
        %2334 = vmatmul.bf16.gmra.mxu0 %v2255
        %v2335 = vpop.f32.mrf.mxu0
        %v2336 = vadd.f32 0.0, %v2335
        %v2337 = vpop.f32.mrf.mxu0
        %v2338 = vadd.f32 0.0, %v2337
        %2339 = vdwg.mxu0
        %v2340 = vadd.f32 %v2231, %v2331
        %v2341 = vadd.f32 %v2232, %v2333
        %v2342 = vadd.f32 %v2233, %v2336
        %v2343 = vadd.f32 %v2234, %v2338
        %2344 = vmatpush.bf16.msra.mxu0 0
        %2345 = vmatpush.bf16.msra.mxu0 0
        %2346 = vmatpush.bf16.msra.mxu0 0
        %2347 = vmatpush.bf16.msra.mxu0 0
        %2348 = vmatpush.bf16.msra.mxu0 0
        %2349 = vmatpush.bf16.msra.mxu0 0
        %2350 = vmatpush.bf16.msra.mxu0 %v1589
        %2351 = vmatpush.bf16.msra.mxu0 %v1588
        %2352 = vmatmul.bf16.gmra.mxu0 %v1324
        %v2353 = vpop.f32.mrf.mxu0
        %v2354 = vadd.f32 0.0, %v2353
        %v2355 = vpop.f32.mrf.mxu0
        %v2356 = vadd.f32 0.0, %v2355
        %2357 = vmatmul.bf16.gmra.mxu0 %v1327
        %v2358 = vpop.f32.mrf.mxu0
        %v2359 = vadd.f32 0.0, %v2358
        %v2360 = vpop.f32.mrf.mxu0
        %v2361 = vadd.f32 0.0, %v2360
        %2362 = vdwg.mxu0
        %v2363 = vpack.c.bf16 %v2356, %v2354
        %v2364 = vpack.c.bf16 %v2361, %v2359
        %s2365 = scalar_lea.vmem %s371, 448
        %v2366 = vld [vmem:[%s2365] sm:$0xf]
        %v2367 = vld [vmem:[%s2365 + $0x4] sm:$0xf]
        %v2368 = vld [vmem:[%s2365 + $0x8] sm:$0xf]
        %v2369 = vld [vmem:[%s2365 + $0xc] sm:$0xf]
        %v2370 = vld [vmem:[%s2365 + $0x10] sm:$0xf]
        %v2371 = vld [vmem:[%s2365 + $0x14] sm:$0xf]
        %v2372 = vld [vmem:[%s2365 + $0x18] sm:$0xf]
        %v2373 = vld [vmem:[%s2365 + $0x1c] sm:$0xf]
        %v2374 = vld [vmem:[%s2365 + $0x20] sm:$0xf]
        %v2375 = vld [vmem:[%s2365 + $0x24] sm:$0xf]
        %v2376 = vld [vmem:[%s2365 + $0x28] sm:$0xf]
        %v2377 = vld [vmem:[%s2365 + $0x2c] sm:$0xf]
        %v2378 = vld [vmem:[%s2365 + $0x30] sm:$0xf]
        %v2379 = vld [vmem:[%s2365 + $0x34] sm:$0xf]
        %v2380 = vld [vmem:[%s2365 + $0x38] sm:$0xf]
        %v2381 = vld [vmem:[%s2365 + $0x3c] sm:$0xf]
        %v2398 = vunpack.c.l.b16 %v2366
        %v2399 = vunpack.c.l.b16 %v2367
        %v2400 = vunpack.c.l.b16 %v2368
        %v2401 = vunpack.c.l.b16 %v2369
        %v2402 = vunpack.c.l.b16 %v2370
        %v2403 = vunpack.c.l.b16 %v2371
        %v2404 = vunpack.c.l.b16 %v2372
        %v2405 = vunpack.c.l.b16 %v2373
        %v2406 = vunpack.c.l.b16 %v2374
        %v2407 = vunpack.c.l.b16 %v2375
        %v2408 = vunpack.c.l.b16 %v2376
        %v2409 = vunpack.c.l.b16 %v2377
        %v2410 = vunpack.c.l.b16 %v2378
        %v2411 = vunpack.c.l.b16 %v2379
        %v2412 = vunpack.c.l.b16 %v2380
        %v2413 = vunpack.c.l.b16 %v2381
        %v2414 = vpack.c.b16 %v2399, %v2398
        %v2415 = vpack.c.b16 %v2401, %v2400
        %v2416 = vpack.c.b16 %v2403, %v2402
        %v2417 = vpack.c.b16 %v2405, %v2404
        %v2418 = vpack.c.b16 %v2407, %v2406
        %v2419 = vpack.c.b16 %v2409, %v2408
        %v2420 = vpack.c.b16 %v2411, %v2410
        %v2421 = vpack.c.b16 %v2413, %v2412
        %2430 = vmatpush.bf16.msra.mxu0 %v2421
        %2431 = vmatpush.bf16.msra.mxu0 %v2420
        %2432 = vmatpush.bf16.msra.mxu0 %v2419
        %2433 = vmatpush.bf16.msra.mxu0 %v2418
        %2434 = vmatpush.bf16.msra.mxu0 %v2417
        %2435 = vmatpush.bf16.msra.mxu0 %v2416
        %2436 = vmatpush.bf16.msra.mxu0 %v2415
        %2437 = vmatpush.bf16.msra.mxu0 %v2414
        %2438 = vmatmul.bf16.gmra.mxu0 %v2363
        %v2439 = vpop.f32.mrf.mxu0
        %v2440 = vadd.f32 0.0, %v2439
        %v2441 = vpop.f32.mrf.mxu0
        %v2442 = vadd.f32 0.0, %v2441
        %2443 = vmatmul.bf16.gmra.mxu0 %v2364
        %v2444 = vpop.f32.mrf.mxu0
        %v2445 = vadd.f32 0.0, %v2444
        %v2446 = vpop.f32.mrf.mxu0
        %v2447 = vadd.f32 0.0, %v2446
        %2448 = vdwg.mxu0
        %v2449 = vadd.f32 %v2340, %v2440
        %v2450 = vadd.f32 %v2341, %v2442
        %v2451 = vadd.f32 %v2342, %v2445
        %v2452 = vadd.f32 %v2343, %v2447
        %2453 = vmatpush.bf16.msra.mxu0 0
        %2454 = vmatpush.bf16.msra.mxu0 0
        %2455 = vmatpush.bf16.msra.mxu0 0
        %2456 = vmatpush.bf16.msra.mxu0 0
        %2457 = vmatpush.bf16.msra.mxu0 0
        %2458 = vmatpush.bf16.msra.mxu0 0
        %2459 = vmatpush.bf16.msra.mxu0 %v1589
        %2460 = vmatpush.bf16.msra.mxu0 %v1588
        %2461 = vmatmul.bf16.gmra.mxu0 %v1454
        %v2462 = vpop.f32.mrf.mxu0
        %v2463 = vadd.f32 0.0, %v2462
        %v2464 = vpop.f32.mrf.mxu0
        %v2465 = vadd.f32 0.0, %v2464
        %2466 = vmatmul.bf16.gmra.mxu0 %v1457
        %v2467 = vpop.f32.mrf.mxu0
        %v2468 = vadd.f32 0.0, %v2467
        %v2469 = vpop.f32.mrf.mxu0
        %v2470 = vadd.f32 0.0, %v2469
        %2471 = vdwg.mxu0
        %v2472 = vpack.c.bf16 %v2465, %v2463
        %v2473 = vpack.c.bf16 %v2470, %v2468
        %s2474 = scalar_lea.vmem %s371, 512
        %v2475 = vld [vmem:[%s2474] sm:$0xf]
        %v2476 = vld [vmem:[%s2474 + $0x4] sm:$0xf]
        %v2477 = vld [vmem:[%s2474 + $0x8] sm:$0xf]
        %v2478 = vld [vmem:[%s2474 + $0xc] sm:$0xf]
        %v2479 = vld [vmem:[%s2474 + $0x10] sm:$0xf]
        %v2480 = vld [vmem:[%s2474 + $0x14] sm:$0xf]
        %v2481 = vld [vmem:[%s2474 + $0x18] sm:$0xf]
        %v2482 = vld [vmem:[%s2474 + $0x1c] sm:$0xf]
        %v2483 = vld [vmem:[%s2474 + $0x20] sm:$0xf]
        %v2484 = vld [vmem:[%s2474 + $0x24] sm:$0xf]
        %v2485 = vld [vmem:[%s2474 + $0x28] sm:$0xf]
        %v2486 = vld [vmem:[%s2474 + $0x2c] sm:$0xf]
        %v2487 = vld [vmem:[%s2474 + $0x30] sm:$0xf]
        %v2488 = vld [vmem:[%s2474 + $0x34] sm:$0xf]
        %v2489 = vld [vmem:[%s2474 + $0x38] sm:$0xf]
        %v2490 = vld [vmem:[%s2474 + $0x3c] sm:$0xf]
        %v2507 = vunpack.c.l.b16 %v2475
        %v2508 = vunpack.c.l.b16 %v2476
        %v2509 = vunpack.c.l.b16 %v2477
        %v2510 = vunpack.c.l.b16 %v2478
        %v2511 = vunpack.c.l.b16 %v2479
        %v2512 = vunpack.c.l.b16 %v2480
        %v2513 = vunpack.c.l.b16 %v2481
        %v2514 = vunpack.c.l.b16 %v2482
        %v2515 = vunpack.c.l.b16 %v2483
        %v2516 = vunpack.c.l.b16 %v2484
        %v2517 = vunpack.c.l.b16 %v2485
        %v2518 = vunpack.c.l.b16 %v2486
        %v2519 = vunpack.c.l.b16 %v2487
        %v2520 = vunpack.c.l.b16 %v2488
        %v2521 = vunpack.c.l.b16 %v2489
        %v2522 = vunpack.c.l.b16 %v2490
        %v2523 = vpack.c.b16 %v2508, %v2507
        %v2524 = vpack.c.b16 %v2510, %v2509
        %v2525 = vpack.c.b16 %v2512, %v2511
        %v2526 = vpack.c.b16 %v2514, %v2513
        %v2527 = vpack.c.b16 %v2516, %v2515
        %v2528 = vpack.c.b16 %v2518, %v2517
        %v2529 = vpack.c.b16 %v2520, %v2519
        %v2530 = vpack.c.b16 %v2522, %v2521
        %2539 = vmatpush.bf16.msra.mxu0 %v2530
        %2540 = vmatpush.bf16.msra.mxu0 %v2529
        %2541 = vmatpush.bf16.msra.mxu0 %v2528
        %2542 = vmatpush.bf16.msra.mxu0 %v2527
        %2543 = vmatpush.bf16.msra.mxu0 %v2526
        %2544 = vmatpush.bf16.msra.mxu0 %v2525
        %2545 = vmatpush.bf16.msra.mxu0 %v2524
        %2546 = vmatpush.bf16.msra.mxu0 %v2523
        %2547 = vmatmul.bf16.gmra.mxu0 %v2472
        %v2548 = vpop.f32.mrf.mxu0
        %v2549 = vadd.f32 0.0, %v2548
        %v2550 = vpop.f32.mrf.mxu0
        %v2551 = vadd.f32 0.0, %v2550
        %2552 = vmatmul.bf16.gmra.mxu0 %v2473
        %v2553 = vpop.f32.mrf.mxu0
        %v2554 = vadd.f32 0.0, %v2553
        %v2555 = vpop.f32.mrf.mxu0
        %v2556 = vadd.f32 0.0, %v2555
        %2557 = vdwg.mxu0
        %v2558 = vadd.f32 %v2449, %v2549
        %v2559 = vadd.f32 %v2450, %v2551
        %v2560 = vadd.f32 %v2451, %v2554
        %v2561 = vadd.f32 %v2452, %v2556
        %v2562 = vld [vmem:[%s380] sm:$0x1]
        %v2564 = vperm.slane %v2562, 0
        %v2566 = vmul.f32 %v2558, %v2564
        %v2567 = vmul.f32 %v2559, %v2564
        %v2568 = vmul.f32 %v2560, %v2564
        %v2569 = vmul.f32 %v2561, %v2564
        %v2570 = vld [vmem:[%s383] sm:$0x1]
        %v2572 = vperm.slane %v2570, 0
        %v2574 = vadd.f32 %v2566, %v2572
        %v2575 = vadd.f32 %v2567, %v2572
        %v2576 = vadd.f32 %v2568, %v2572
        %v2577 = vadd.f32 %v2569, %v2572
        %v2578 = vadd.f32 %v2574, %v401
        %v2579 = vadd.f32 %v2575, %v402
        %v2580 = vadd.f32 %v2576, %v403
        %v2581 = vadd.f32 %v2577, %v404
        %2582 = vst [vmem:[#allocation2] sm:$0xff] %v2578
        %2583 = vst [vmem:[#allocation2 + $0x8] sm:$0xff] %v2579
        %2584 = vst [vmem:[#allocation2 + $0x10] sm:$0xff] %v2580
        %2585 = vst [vmem:[#allocation2 + $0x18] sm:$0xff] %v2581
        %v2586 = vpack.c.bf16 %v2578, %v2578
        %v2587 = vpack.c.bf16 %v2579, %v2579
        %v2588 = vpack.c.bf16 %v2580, %v2580
        %v2589 = vpack.c.bf16 %v2581, %v2581
        %2590 = vst [vmem:[%s8] sm:$0xf] %v2586
        %2591 = vst [vmem:[%s8 + $0x4] sm:$0xf] %v2587
        %2592 = vst [vmem:[%s8 + $0x8] sm:$0xf] %v2588
        %2593 = vst [vmem:[%s8 + $0xc] sm:$0xf] %v2589
        // Predicated region
        $region61: #{generator_forward.10} parent=51 // pred_check
          %p2594 = pneg %p231
        $region62: #{generator_forward.10} parent=51 // pred_check_branch
          %2596 = sbr.rel (%p2594) target = $region64
        $region63: #{generator_forward.10} parent=51 // pred_region
          _
        $region64: #{generator_forward.10} parent=51 // pred_fallthru
          _
        // Predicated region
        $region65: #{generator_forward.10} parent=51 // pred_check
          %p2597 = pneg %p231
        $region66: #{generator_forward.10} parent=51 // pred_check_branch
          %2599 = sbr.rel (%p2597) target = $region68
        $region67: #{generator_forward.10} parent=51 // pred_region
          _
        $region68: #{generator_forward.10} parent=51 // pred_fallthru
          _
      $region52: #{generator_forward.10} parent=5 // pred_fallthru
        _
      %p2600 = scmp.le.s32.totalorder 2, %s15
      // Predicated region
      $region69: #{generator_forward.10} parent=5 // pred_check
        %p2601 = pneg %p2600
      $region70: #{generator_forward.10} parent=5 // pred_check_branch
        %2603 = sbr.rel (%p2601) target = $region72
      $region71: #{generator_forward.10} parent=5 // pred_region
        %s2604 = ssub.s32 %s15, 2
      $region72: #{generator_forward.10} parent=5 // pred_fallthru
        _
    $region6: #{generator_forward.10} parent=1 // loop_footer
      %s19 = sadd.s32 1, %s15
    $region7: #{generator_forward.10} parent=1 // loop_footer_branch
      %14 = sbr.rel target = $region3
    $region8: #{generator_forward.10} parent=1 // loop_exit
      _
    %2605 = vsyncpa [#allocation4], 1
    %s2606 = scalar_lea.sflag [#allocation4], 1
    %2607 = vsyncpa %s2606, 1

// kernel: generator_forward.13
$region0: #{generator_forward.13}
  #allocation0 [shape = 'u32[]', space=smem, size = 0x4, offset = 0x4, fixed_abs, tag = 'smem constant byte address 0x4 - core index']
  #allocation1 [shape = 'u32[72,128]{1,0:T(1,128)}', space=vmem, size = 0x9000, scoped, tag = 'internal scratch']
  %s0 = inlined_call_operand.vmem [shape: bf16[512,1568], index: 0, kind: input, shape index: {}]
  %s1 = inlined_call_operand.vmem [shape: bf16[1568,128], index: 1, kind: input, shape index: {}]
  %s2 = inlined_call_operand.vmem [shape: f32[1,128], index: 2, kind: input, shape index: {}]
  %s3 = inlined_call_operand.vmem [shape: f32[1,128], index: 3, kind: input, shape index: {}]
  %s4 = inlined_call_operand.vmem [shape: f32[512,128], index: 4, kind: output, shape index: {}]
  %s5 = sld [smem:[#allocation0]]
  $region49: #{generator_forward.13} parent=0
    _
  %s7 = ssub.s32 1, %s5
  %s8 = scalar_select 0, %s7, %s5
  loop: start=0, step=1, limit=4
  $region2: #{generator_forward.13} parent=0 // loop_pre_header
    _
  $region3: #{generator_forward.13} parent=0 // loop_header
    %s10 = sphi 0, %s14
    %p11 = scmp.ge.s32.totalorder %s10, 4
    %s17 = sphi 0, %s29
    %s18 = sphi 0, %s25
    %s19 = sphi 0, %s17
    %s20 = sphi 0, %s18
    %s21 = sphi 0, %s19
    %s22 = sphi 0, %s20
    %s32 = sphi 0, %s34
    %s35 = sphi 0, %s32
    %s36 = sphi 0, %s35
    %s52 = sphi 0, %s36
    %s58 = sphi 0, %s60
    %s61 = sphi 0, %s58
    %s62 = sphi 0, %s61
    %s78 = sphi 0, %s62
    %s84 = sphi 0, %s86
    %s87 = sphi 0, %s84
    %s88 = sphi 0, %s87
    %s104 = sphi 0, %s88
    %s110 = sphi 0, %s112
    %s113 = sphi 0, %s110
    %s114 = sphi 0, %s113
    %s130 = sphi 0, %s114
    %s138 = sphi 0, %s140
    %s141 = sphi 0, %s138
    %s142 = sphi 0, %s141
    %s158 = sphi 0, %s142
  $region4: #{generator_forward.13} parent=0 // loop_header_branch
    %13 = sbr.rel (%p11) target = $region8
  $region5: #{generator_forward.13} parent=0 // loop_body
    %s15 = ssub.s32 %s10, 1
    %s16 = ssub.s32 %s10, 2
    %s23 = sadd.s32 1, %s18
    %p24 = scmp.ge.s32.totalorder %s23, 1
    %s25 = scalar_select %p24, 0, %s23
    %s26 = sadd.s32 1, %s17
    %s27 = scalar_select %p24, %s26, %s17
    %p28 = scmp.ge.s32.totalorder %s27, 2
    %s29 = scalar_select %p28, 0, %s27
    %s30 = ssub.s32 %s17, %s29
    %p31 = scmp.eq.s32.totalorder %s30, 0
    %s33 = sadd.s32 %s32, 1
    %s34 = scalar_select %p31, %s32, %s33
    %p37 = pneg %p31
    %p38 = scmp.eq.s32.totalorder %s10, 1
    %p39 = por %p37, %p38
    %p40 = scmp.ne.s32.totalorder %s32, %s35
    %p41 = scmp.eq.s32.totalorder %s10, 0
    %p42 = por %p40, %p41
    %p43 = scmp.ne.s32.totalorder %s32, %s35
    %p44 = scmp.eq.s32.totalorder %s15, 1
    %p45 = por %p43, %p44
    %p46 = scmp.ne.s32.totalorder %s35, %s36
    %p47 = scmp.eq.s32.totalorder %s15, 0
    %p48 = por %p46, %p47
    %p49 = scmp.ne.s32.totalorder %s35, %s36
    %p50 = scmp.eq.s32.totalorder %s16, 1
    %p51 = por %p49, %p50
    %p53 = scmp.ne.s32.totalorder %s36, %s52
    %p54 = scmp.eq.s32.totalorder %s16, 0
    %p55 = por %p53, %p54
    %s56 = ssub.s32 %s18, %s25
    %p57 = scmp.eq.s32.totalorder %s56, 0
    %s59 = sadd.s32 %s58, 1
    %s60 = scalar_select %p57, %s58, %s59
    %p63 = pneg %p57
    %p64 = scmp.eq.s32.totalorder %s10, 1
    %p65 = por %p63, %p64
    %p66 = scmp.ne.s32.totalorder %s58, %s61
    %p67 = scmp.eq.s32.totalorder %s10, 0
    %p68 = por %p66, %p67
    %p69 = scmp.ne.s32.totalorder %s58, %s61
    %p70 = scmp.eq.s32.totalorder %s15, 1
    %p71 = por %p69, %p70
    %p72 = scmp.ne.s32.totalorder %s61, %s62
    %p73 = scmp.eq.s32.totalorder %s15, 0
    %p74 = por %p72, %p73
    %p75 = scmp.ne.s32.totalorder %s61, %s62
    %p76 = scmp.eq.s32.totalorder %s16, 1
    %p77 = por %p75, %p76
    %p79 = scmp.ne.s32.totalorder %s62, %s78
    %p80 = scmp.eq.s32.totalorder %s16, 0
    %p81 = por %p79, %p80
    %s82 = ssub.s32 %s18, %s25
    %p83 = scmp.eq.s32.totalorder %s82, 0
    %s85 = sadd.s32 %s84, 1
    %s86 = scalar_select %p83, %s84, %s85
    %p89 = pneg %p83
    %p90 = scmp.eq.s32.totalorder %s10, 1
    %p91 = por %p89, %p90
    %p92 = scmp.ne.s32.totalorder %s84, %s87
    %p93 = scmp.eq.s32.totalorder %s10, 0
    %p94 = por %p92, %p93
    %p95 = scmp.ne.s32.totalorder %s84, %s87
    %p96 = scmp.eq.s32.totalorder %s15, 1
    %p97 = por %p95, %p96
    %p98 = scmp.ne.s32.totalorder %s87, %s88
    %p99 = scmp.eq.s32.totalorder %s15, 0
    %p100 = por %p98, %p99
    %p101 = scmp.ne.s32.totalorder %s87, %s88
    %p102 = scmp.eq.s32.totalorder %s16, 1
    %p103 = por %p101, %p102
    %p105 = scmp.ne.s32.totalorder %s88, %s104
    %p106 = scmp.eq.s32.totalorder %s16, 0
    %p107 = por %p105, %p106
    %s108 = ssub.s32 %s18, %s25
    %p109 = scmp.eq.s32.totalorder %s108, 0
    %s111 = sadd.s32 %s110, 1
    %s112 = scalar_select %p109, %s110, %s111
    %p115 = pneg %p109
    %p116 = scmp.eq.s32.totalorder %s10, 1
    %p117 = por %p115, %p116
    %p118 = scmp.ne.s32.totalorder %s110, %s113
    %p119 = scmp.eq.s32.totalorder %s10, 0
    %p120 = por %p118, %p119
    %p121 = scmp.ne.s32.totalorder %s110, %s113
    %p122 = scmp.eq.s32.totalorder %s15, 1
    %p123 = por %p121, %p122
    %p124 = scmp.ne.s32.totalorder %s113, %s114
    %p125 = scmp.eq.s32.totalorder %s15, 0
    %p126 = por %p124, %p125
    %p127 = scmp.ne.s32.totalorder %s113, %s114
    %p128 = scmp.eq.s32.totalorder %s16, 1
    %p129 = por %p127, %p128
    %p131 = scmp.ne.s32.totalorder %s114, %s130
    %p132 = scmp.eq.s32.totalorder %s16, 0
    %p133 = por %p131, %p132
    %s134 = ssub.s32 %s17, %s29
    %s135 = ssub.s32 %s18, %s25
    %s136 = sor.u32 %s134, %s135
    %p137 = scmp.eq.s32.totalorder %s136, 0
    %s139 = sadd.s32 %s138, 1
    %s140 = scalar_select %p137, %s138, %s139
    %p143 = pneg %p137
    %p144 = scmp.eq.s32.totalorder %s10, 1
    %p145 = por %p143, %p144
    %p146 = scmp.ne.s32.totalorder %s138, %s141
    %p147 = scmp.eq.s32.totalorder %s10, 0
    %p148 = por %p146, %p147
    %p149 = scmp.ne.s32.totalorder %s138, %s141
    %p150 = scmp.eq.s32.totalorder %s15, 1
    %p151 = por %p149, %p150
    %p152 = scmp.ne.s32.totalorder %s141, %s142
    %p153 = scmp.eq.s32.totalorder %s15, 0
    %p154 = por %p152, %p153
    %p155 = scmp.ne.s32.totalorder %s141, %s142
    %p156 = scmp.eq.s32.totalorder %s16, 1
    %p157 = por %p155, %p156
    %p159 = scmp.ne.s32.totalorder %s142, %s158
    %p160 = scmp.eq.s32.totalorder %s16, 0
    %p161 = por %p159, %p160
    %p162 = scmp.le.s32.totalorder 1, %s10
    %p163 = scmp.lt.s32.totalorder %s10, 3
    %p164 = pnand %p162, %p163
    %p165 = pneg %p164
    // Predicated region
    $region9: #{generator_forward.13} parent=5 // pred_check
      _
    $region10: #{generator_forward.13} parent=5 // pred_check_branch
      %167 = sbr.rel (%p164) target = $region12
    $region11: #{generator_forward.13} parent=5 // pred_region
      %s168 = ssub.s32 %s10, 1
      // Predicated region
      $region13: #{generator_forward.13} parent=11 // pred_check
        %p169 = pneg %p74
      $region14: #{generator_forward.13} parent=11 // pred_check_branch
        %171 = sbr.rel (%p169) target = $region16
      $region15: #{generator_forward.13} parent=11 // pred_region
        %p172 = scmp.lt.s32.totalorder %s20, 0
        %s173 = scalar_select %p172, %s20, 0
        %s174 = smul.addr %s173, 4
        %s175 = scalar_lea.vmem %s1, %s174
      $region16: #{generator_forward.13} parent=11 // pred_fallthru
        _
      // Predicated region
      $region17: #{generator_forward.13} parent=11 // pred_check
        %p176 = pneg %p100
      $region18: #{generator_forward.13} parent=11 // pred_check_branch
        %178 = sbr.rel (%p176) target = $region20
      $region19: #{generator_forward.13} parent=11 // pred_region
        %p179 = scmp.lt.s32.totalorder %s20, 0
        %s180 = scalar_select %p179, %s20, 0
        %s181 = scalar_lea.vmem %s2, %s180
      $region20: #{generator_forward.13} parent=11 // pred_fallthru
        _
      // Predicated region
      $region21: #{generator_forward.13} parent=11 // pred_check
        %p182 = pneg %p126
      $region22: #{generator_forward.13} parent=11 // pred_check_branch
        %184 = sbr.rel (%p182) target = $region24
      $region23: #{generator_forward.13} parent=11 // pred_region
        %p185 = scmp.lt.s32.totalorder %s20, 0
        %s186 = scalar_select %p185, %s20, 0
        %s187 = scalar_lea.vmem %s3, %s186
      $region24: #{generator_forward.13} parent=11 // pred_fallthru
        _
    $region12: #{generator_forward.13} parent=5 // pred_fallthru
      _
    %p188 = scmp.lt.s32.totalorder %s10, 2
    // Predicated region
    $region25: #{generator_forward.13} parent=5 // pred_check
      %p189 = pneg %p188
    $region26: #{generator_forward.13} parent=5 // pred_check_branch
      %191 = sbr.rel (%p189) target = $region28
    $region27: #{generator_forward.13} parent=5 // pred_region
      // Predicated region
      $region29: #{generator_forward.13} parent=27 // pred_check
        %p192 = pneg %p42
      $region30: #{generator_forward.13} parent=27 // pred_check_branch
        %194 = sbr.rel (%p192) target = $region32
      $region31: #{generator_forward.13} parent=27 // pred_region
        %s195 = smul.u32 32, %s17
        %p196 = scmp.lt.s32.totalorder %s195, 63
        %s197 = scalar_select %p196, %s195, 63
        %s198 = smul.addr %s197, 13
        %s199 = smul.addr %s198, 4
        %s200 = scalar_lea.vmem %s0, %s199
        %s201 = smul.u32 32, %s17
      $region32: #{generator_forward.13} parent=27 // pred_fallthru
        _
    $region28: #{generator_forward.13} parent=5 // pred_fallthru
      _
    %p202 = scmp.le.s32.totalorder 1, %s10
    %p203 = scmp.lt.s32.totalorder %s10, 3
    %p204 = pnand %p202, %p203
    %p205 = pneg %p204
    // Predicated region
    $region33: #{generator_forward.13} parent=5 // pred_check
      _
    $region34: #{generator_forward.13} parent=5 // pred_check_branch
      %207 = sbr.rel (%p204) target = $region36
    $region35: #{generator_forward.13} parent=5 // pred_region
      %s208 = ssub.s32 %s10, 1
      %s209 = smul.u32 32, %s19
      %p210 = scmp.lt.s32.totalorder %s209, 63
      %s211 = scalar_select %p210, %s209, 63
      %s212 = smul.addr %s211, 13
      %s213 = smul.addr %s212, 4
      %s214 = scalar_lea.vmem %s0, %s213
      %p215 = pneg %p48
      %p216 = pneg %p45
      %p217 = scmp.lt.s32.totalorder %s20, 0
      %s218 = scalar_select %p217, %s20, 0
      %s219 = smul.addr %s218, 4
      %s220 = scalar_lea.vmem %s1, %s219
      %p221 = pneg %p74
      %p222 = pneg %p71
      %p223 = scmp.lt.s32.totalorder %s20, 0
      %s224 = scalar_select %p223, %s20, 0
      %s225 = scalar_lea.vmem %s2, %s224
      %p226 = pneg %p100
      %p227 = pneg %p97
      %p228 = scmp.lt.s32.totalorder %s20, 0
      %s229 = scalar_select %p228, %s20, 0
      %s230 = scalar_lea.vmem %s3, %s229
      %p231 = pneg %p126
      %p232 = pneg %p123
      %p233 = pneg %p154
      %p234 = pneg %p151
      %s235 = smul.u32 32, %s19
      %p236 = scmp.lt.s32.totalorder %s235, 63
      %s237 = scalar_select %p236, %s235, 63
      %p238 = scmp.lt.s32.totalorder %s20, 0
      %s239 = scalar_select %p238, %s20, 0
      %s240 = sadd.s32 %s239, %s237
      %s241 = smul.addr %s240, 8
      %s242 = scalar_lea.vmem %s4, %s241
      %s243 = smul.u32 32, %s19
      %p244 = scmp.lt.s32.totalorder %s243, 63
      %s245 = scalar_select %p244, %s243, 63
      %s246 = smul.addr %s245, 13
      %s247 = smul.addr %s246, 4
      %s248 = scalar_lea.vmem %s0, %s247
      %s249 = smul.u32 32, %s19
      %p250 = scmp.lt.s32.totalorder %s20, 0
      %s251 = scalar_select %p250, %s20, 0
      %s252 = smul.addr %s251, 4
      %s253 = scalar_lea.vmem %s1, %s252
      %p254 = scmp.lt.s32.totalorder %s20, 0
      %s255 = scalar_select %p254, %s20, 0
      %s256 = scalar_lea.vmem %s2, %s255
      %p257 = scmp.lt.s32.totalorder %s20, 0
      %s258 = scalar_select %p257, %s20, 0
      %s259 = scalar_lea.vmem %s3, %s258
      %s260 = smul.u32 32, %s19
      %p261 = scmp.lt.s32.totalorder %s260, 63
      %s262 = scalar_select %p261, %s260, 63
      %p263 = scmp.lt.s32.totalorder %s20, 0
      %s264 = scalar_select %p263, %s20, 0
      %s265 = sadd.s32 %s264, %s262
      %s266 = smul.addr %s265, 8
      %s267 = scalar_lea.vmem %s4, %s266
      %s268 = smul.u32 32, %s19
      %v270 = vld [vmem:[%s248] sm:$0xff]
      %v271 = vld [vmem:[%s248 + $0x8] sm:$0xff]
      %v272 = vld [vmem:[%s248 + $0x10] sm:$0xff]
      %v273 = vld [vmem:[%s248 + $0x18] sm:$0xff]
      %v274 = vld [vmem:[%s248 + $0x20] sm:$0xff]
      %v275 = vld [vmem:[%s248 + $0x28] sm:$0xff]
      %v276 = vld [vmem:[%s248 + $0x30] sm:$0xf]
      %v277 = vld [vmem:[%s248 + $0x34] sm:$0xff]
      %v278 = vld [vmem:[%s248 + $0x3c] sm:$0xff]
      %v279 = vld [vmem:[%s248 + $0x44] sm:$0xff]
      %v280 = vld [vmem:[%s248 + $0x4c] sm:$0xff]
      %v281 = vld [vmem:[%s248 + $0x54] sm:$0xff]
      %v282 = vld [vmem:[%s248 + $0x5c] sm:$0xff]
      %v283 = vld [vmem:[%s248 + $0x64] sm:$0xf]
      %v284 = vld [vmem:[%s248 + $0x68] sm:$0xff]
      %v285 = vld [vmem:[%s248 + $0x70] sm:$0xff]
      %v286 = vld [vmem:[%s248 + $0x78] sm:$0xff]
      %v287 = vld [vmem:[%s248 + $0x80] sm:$0xff]
      %v288 = vld [vmem:[%s248 + $0x88] sm:$0xff]
      %v289 = vld [vmem:[%s248 + $0x90] sm:$0xff]
      %v290 = vld [vmem:[%s248 + $0x98] sm:$0xf]
      %v291 = vld [vmem:[%s248 + $0x9c] sm:$0xff]
      %v292 = vld [vmem:[%s248 + $0xa4] sm:$0xff]
      %v293 = vld [vmem:[%s248 + $0xac] sm:$0xff]
      %v294 = vld [vmem:[%s248 + $0xb4] sm:$0xff]
      %v295 = vld [vmem:[%s248 + $0xbc] sm:$0xff]
      %v296 = vld [vmem:[%s248 + $0xc4] sm:$0xff]
      %v297 = vld [vmem:[%s248 + $0xcc] sm:$0xf]
      %v298 = vld [vmem:[%s248 + $0xd0] sm:$0xff]
      %v299 = vld [vmem:[%s248 + $0xd8] sm:$0xff]
      %v300 = vld [vmem:[%s248 + $0xe0] sm:$0xff]
      %v301 = vld [vmem:[%s248 + $0xe8] sm:$0xff]
      %v302 = vld [vmem:[%s248 + $0xf0] sm:$0xff]
      %v303 = vld [vmem:[%s248 + $0xf8] sm:$0xff]
      %v304 = vld [vmem:[%s248 + $0x100] sm:$0xf]
      %v305 = vld [vmem:[%s248 + $0x104] sm:$0xff]
      %v306 = vld [vmem:[%s248 + $0x10c] sm:$0xff]
      %v307 = vld [vmem:[%s248 + $0x114] sm:$0xff]
      %v308 = vld [vmem:[%s248 + $0x11c] sm:$0xff]
      %v309 = vld [vmem:[%s248 + $0x124] sm:$0xff]
      %v310 = vld [vmem:[%s248 + $0x12c] sm:$0xff]
      %v311 = vld [vmem:[%s248 + $0x134] sm:$0xf]
      %v312 = vld [vmem:[%s248 + $0x138] sm:$0xff]
      %v313 = vld [vmem:[%s248 + $0x140] sm:$0xff]
      %v314 = vld [vmem:[%s248 + $0x148] sm:$0xff]
      %v315 = vld [vmem:[%s248 + $0x150] sm:$0xff]
      %v316 = vld [vmem:[%s248 + $0x158] sm:$0xff]
      %v317 = vld [vmem:[%s248 + $0x160] sm:$0xff]
      %v318 = vld [vmem:[%s248 + $0x168] sm:$0xf]
      %v319 = vld [vmem:[%s248 + $0x16c] sm:$0xff]
      %v320 = vld [vmem:[%s248 + $0x174] sm:$0xff]
      %v321 = vld [vmem:[%s248 + $0x17c] sm:$0xff]
      %v322 = vld [vmem:[%s248 + $0x184] sm:$0xff]
      %v323 = vld [vmem:[%s248 + $0x18c] sm:$0xff]
      %v324 = vld [vmem:[%s248 + $0x194] sm:$0xff]
      %v325 = vld [vmem:[%s248 + $0x19c] sm:$0xf]
      %v326 = vld [vmem:[%s248 + $0x1a0] sm:$0xff]
      %v327 = vld [vmem:[%s248 + $0x1a8] sm:$0xff]
      %v328 = vld [vmem:[%s248 + $0x1b0] sm:$0xff]
      %v329 = vld [vmem:[%s248 + $0x1b8] sm:$0xff]
      %v330 = vld [vmem:[%s248 + $0x1c0] sm:$0xff]
      %v331 = vld [vmem:[%s248 + $0x1c8] sm:$0xff]
      %v332 = vld [vmem:[%s248 + $0x1d0] sm:$0xf]
      %v333 = vld [vmem:[%s248 + $0x1d4] sm:$0xff]
      %v334 = vld [vmem:[%s248 + $0x1dc] sm:$0xff]
      %v335 = vld [vmem:[%s248 + $0x1e4] sm:$0xff]
      %v336 = vld [vmem:[%s248 + $0x1ec] sm:$0xff]
      %v337 = vld [vmem:[%s248 + $0x1f4] sm:$0xff]
      %v338 = vld [vmem:[%s248 + $0x1fc] sm:$0xff]
      %v339 = vld [vmem:[%s248 + $0x204] sm:$0xf]
      %v340 = vld [vmem:[%s248 + $0x208] sm:$0xff]
      %v341 = vld [vmem:[%s248 + $0x210] sm:$0xff]
      %v342 = vld [vmem:[%s248 + $0x218] sm:$0xff]
      %v343 = vld [vmem:[%s248 + $0x220] sm:$0xff]
      %v344 = vld [vmem:[%s248 + $0x228] sm:$0xff]
      %v345 = vld [vmem:[%s248 + $0x230] sm:$0xff]
      %v346 = vld [vmem:[%s248 + $0x238] sm:$0xf]
      %v347 = vld [vmem:[%s248 + $0x23c] sm:$0xff]
      %v348 = vld [vmem:[%s248 + $0x244] sm:$0xff]
      %v349 = vld [vmem:[%s248 + $0x24c] sm:$0xff]
      %v350 = vld [vmem:[%s248 + $0x254] sm:$0xff]
      %v351 = vld [vmem:[%s248 + $0x25c] sm:$0xff]
      %v352 = vld [vmem:[%s248 + $0x264] sm:$0xff]
      %v353 = vld [vmem:[%s248 + $0x26c] sm:$0xf]
      %v354 = vld [vmem:[%s248 + $0x270] sm:$0xff]
      %v355 = vld [vmem:[%s248 + $0x278] sm:$0xff]
      %v356 = vld [vmem:[%s248 + $0x280] sm:$0xff]
      %v357 = vld [vmem:[%s248 + $0x288] sm:$0xff]
      %v358 = vld [vmem:[%s248 + $0x290] sm:$0xff]
      %v359 = vld [vmem:[%s248 + $0x298] sm:$0xff]
      %v360 = vld [vmem:[%s248 + $0x2a0] sm:$0xf]
      %v361 = vld [vmem:[%s248 + $0x2a4] sm:$0xff]
      %v362 = vld [vmem:[%s248 + $0x2ac] sm:$0xff]
      %v363 = vld [vmem:[%s248 + $0x2b4] sm:$0xff]
      %v364 = vld [vmem:[%s248 + $0x2bc] sm:$0xff]
      %v365 = vld [vmem:[%s248 + $0x2c4] sm:$0xff]
      %v366 = vld [vmem:[%s248 + $0x2cc] sm:$0xff]
      %v367 = vld [vmem:[%s248 + $0x2d4] sm:$0xf]
      %v368 = vld [vmem:[%s248 + $0x2d8] sm:$0xff]
      %v369 = vld [vmem:[%s248 + $0x2e0] sm:$0xff]
      %v370 = vld [vmem:[%s248 + $0x2e8] sm:$0xff]
      %v371 = vld [vmem:[%s248 + $0x2f0] sm:$0xff]
      %v372 = vld [vmem:[%s248 + $0x2f8] sm:$0xff]
      %v373 = vld [vmem:[%s248 + $0x300] sm:$0xff]
      %v374 = vld [vmem:[%s248 + $0x308] sm:$0xf]
      %v375 = vld [vmem:[%s248 + $0x30c] sm:$0xff]
      %v376 = vld [vmem:[%s248 + $0x314] sm:$0xff]
      %v377 = vld [vmem:[%s248 + $0x31c] sm:$0xff]
      %v378 = vld [vmem:[%s248 + $0x324] sm:$0xff]
      %v379 = vld [vmem:[%s248 + $0x32c] sm:$0xff]
      %v380 = vld [vmem:[%s248 + $0x334] sm:$0xff]
      %v381 = vld [vmem:[%s248 + $0x33c] sm:$0xf]
      %v382 = vld [vmem:[%s248 + $0x340] sm:$0xff]
      %v383 = vld [vmem:[%s248 + $0x348] sm:$0xff]
      %v384 = vld [vmem:[%s248 + $0x350] sm:$0xff]
      %v385 = vld [vmem:[%s248 + $0x358] sm:$0xff]
      %v386 = vld [vmem:[%s248 + $0x360] sm:$0xff]
      %v387 = vld [vmem:[%s248 + $0x368] sm:$0xff]
      %v388 = vld [vmem:[%s248 + $0x370] sm:$0xf]
      %v389 = vld [vmem:[%s248 + $0x374] sm:$0xff]
      %v390 = vld [vmem:[%s248 + $0x37c] sm:$0xff]
      %v391 = vld [vmem:[%s248 + $0x384] sm:$0xff]
      %v392 = vld [vmem:[%s248 + $0x38c] sm:$0xff]
      %v393 = vld [vmem:[%s248 + $0x394] sm:$0xff]
      %v394 = vld [vmem:[%s248 + $0x39c] sm:$0xff]
      %v395 = vld [vmem:[%s248 + $0x3a4] sm:$0xf]
      %v396 = vld [vmem:[%s248 + $0x3a8] sm:$0xff]
      %v397 = vld [vmem:[%s248 + $0x3b0] sm:$0xff]
      %v398 = vld [vmem:[%s248 + $0x3b8] sm:$0xff]
      %v399 = vld [vmem:[%s248 + $0x3c0] sm:$0xff]
      %v400 = vld [vmem:[%s248 + $0x3c8] sm:$0xff]
      %v401 = vld [vmem:[%s248 + $0x3d0] sm:$0xff]
      %v402 = vld [vmem:[%s248 + $0x3d8] sm:$0xf]
      %v403 = vld [vmem:[%s248 + $0x3dc] sm:$0xff]
      %v404 = vld [vmem:[%s248 + $0x3e4] sm:$0xff]
      %v405 = vld [vmem:[%s248 + $0x3ec] sm:$0xff]
      %v406 = vld [vmem:[%s248 + $0x3f4] sm:$0xff]
      %v407 = vld [vmem:[%s248 + $0x3fc] sm:$0xff]
      %v408 = vld [vmem:[%s248 + $0x404] sm:$0xff]
      %v409 = vld [vmem:[%s248 + $0x40c] sm:$0xf]
      %v410 = vld [vmem:[%s248 + $0x410] sm:$0xff]
      %v411 = vld [vmem:[%s248 + $0x418] sm:$0xff]
      %v412 = vld [vmem:[%s248 + $0x420] sm:$0xff]
      %v413 = vld [vmem:[%s248 + $0x428] sm:$0xff]
      %v414 = vld [vmem:[%s248 + $0x430] sm:$0xff]
      %v415 = vld [vmem:[%s248 + $0x438] sm:$0xff]
      %v416 = vld [vmem:[%s248 + $0x440] sm:$0xf]
      %v417 = vld [vmem:[%s248 + $0x444] sm:$0xff]
      %v418 = vld [vmem:[%s248 + $0x44c] sm:$0xff]
      %v419 = vld [vmem:[%s248 + $0x454] sm:$0xff]
      %v420 = vld [vmem:[%s248 + $0x45c] sm:$0xff]
      %v421 = vld [vmem:[%s248 + $0x464] sm:$0xff]
      %v422 = vld [vmem:[%s248 + $0x46c] sm:$0xff]
      %v423 = vld [vmem:[%s248 + $0x474] sm:$0xf]
      %v424 = vld [vmem:[%s248 + $0x478] sm:$0xff]
      %v425 = vld [vmem:[%s248 + $0x480] sm:$0xff]
      %v426 = vld [vmem:[%s248 + $0x488] sm:$0xff]
      %v427 = vld [vmem:[%s248 + $0x490] sm:$0xff]
      %v428 = vld [vmem:[%s248 + $0x498] sm:$0xff]
      %v429 = vld [vmem:[%s248 + $0x4a0] sm:$0xff]
      %v430 = vld [vmem:[%s248 + $0x4a8] sm:$0xf]
      %v431 = vld [vmem:[%s248 + $0x4ac] sm:$0xff]
      %v432 = vld [vmem:[%s248 + $0x4b4] sm:$0xff]
      %v433 = vld [vmem:[%s248 + $0x4bc] sm:$0xff]
      %v434 = vld [vmem:[%s248 + $0x4c4] sm:$0xff]
      %v435 = vld [vmem:[%s248 + $0x4cc] sm:$0xff]
      %v436 = vld [vmem:[%s248 + $0x4d4] sm:$0xff]
      %v437 = vld [vmem:[%s248 + $0x4dc] sm:$0xf]
      %v438 = vld [vmem:[%s248 + $0x4e0] sm:$0xff]
      %v439 = vld [vmem:[%s248 + $0x4e8] sm:$0xff]
      %v440 = vld [vmem:[%s248 + $0x4f0] sm:$0xff]
      %v441 = vld [vmem:[%s248 + $0x4f8] sm:$0xff]
      %v442 = vld [vmem:[%s248 + $0x500] sm:$0xff]
      %v443 = vld [vmem:[%s248 + $0x508] sm:$0xff]
      %v444 = vld [vmem:[%s248 + $0x510] sm:$0xf]
      %v445 = vld [vmem:[%s248 + $0x514] sm:$0xff]
      %v446 = vld [vmem:[%s248 + $0x51c] sm:$0xff]
      %v447 = vld [vmem:[%s248 + $0x524] sm:$0xff]
      %v448 = vld [vmem:[%s248 + $0x52c] sm:$0xff]
      %v449 = vld [vmem:[%s248 + $0x534] sm:$0xff]
      %v450 = vld [vmem:[%s248 + $0x53c] sm:$0xff]
      %v451 = vld [vmem:[%s248 + $0x544] sm:$0xf]
      %v452 = vld [vmem:[%s248 + $0x548] sm:$0xff]
      %v453 = vld [vmem:[%s248 + $0x550] sm:$0xff]
      %v454 = vld [vmem:[%s248 + $0x558] sm:$0xff]
      %v455 = vld [vmem:[%s248 + $0x560] sm:$0xff]
      %v456 = vld [vmem:[%s248 + $0x568] sm:$0xff]
      %v457 = vld [vmem:[%s248 + $0x570] sm:$0xff]
      %v458 = vld [vmem:[%s248 + $0x578] sm:$0xf]
      %v459 = vld [vmem:[%s248 + $0x57c] sm:$0xff]
      %v460 = vld [vmem:[%s248 + $0x584] sm:$0xff]
      %v461 = vld [vmem:[%s248 + $0x58c] sm:$0xff]
      %v462 = vld [vmem:[%s248 + $0x594] sm:$0xff]
      %v463 = vld [vmem:[%s248 + $0x59c] sm:$0xff]
      %v464 = vld [vmem:[%s248 + $0x5a4] sm:$0xff]
      %v465 = vld [vmem:[%s248 + $0x5ac] sm:$0xf]
      %v466 = vld [vmem:[%s248 + $0x5b0] sm:$0xff]
      %v467 = vld [vmem:[%s248 + $0x5b8] sm:$0xff]
      %v468 = vld [vmem:[%s248 + $0x5c0] sm:$0xff]
      %v469 = vld [vmem:[%s248 + $0x5c8] sm:$0xff]
      %v470 = vld [vmem:[%s248 + $0x5d0] sm:$0xff]
      %v471 = vld [vmem:[%s248 + $0x5d8] sm:$0xff]
      %v472 = vld [vmem:[%s248 + $0x5e0] sm:$0xf]
      %v473 = vld [vmem:[%s248 + $0x5e4] sm:$0xff]
      %v474 = vld [vmem:[%s248 + $0x5ec] sm:$0xff]
      %v475 = vld [vmem:[%s248 + $0x5f4] sm:$0xff]
      %v476 = vld [vmem:[%s248 + $0x5fc] sm:$0xff]
      %v477 = vld [vmem:[%s248 + $0x604] sm:$0xff]
      %v478 = vld [vmem:[%s248 + $0x60c] sm:$0xff]
      %v479 = vld [vmem:[%s248 + $0x614] sm:$0xf]
      %v480 = vld [vmem:[%s248 + $0x618] sm:$0xff]
      %v481 = vld [vmem:[%s248 + $0x620] sm:$0xff]
      %v482 = vld [vmem:[%s248 + $0x628] sm:$0xff]
      %v483 = vld [vmem:[%s248 + $0x630] sm:$0xff]
      %v484 = vld [vmem:[%s248 + $0x638] sm:$0xff]
      %v485 = vld [vmem:[%s248 + $0x640] sm:$0xff]
      %v486 = vld [vmem:[%s248 + $0x648] sm:$0xf]
      %v487 = vld [vmem:[%s248 + $0x64c] sm:$0xff]
      %v488 = vld [vmem:[%s248 + $0x654] sm:$0xff]
      %v489 = vld [vmem:[%s248 + $0x65c] sm:$0xff]
      %v490 = vld [vmem:[%s248 + $0x664] sm:$0xff]
      %v491 = vld [vmem:[%s248 + $0x66c] sm:$0xff]
      %v492 = vld [vmem:[%s248 + $0x674] sm:$0xff]
      %v493 = vld [vmem:[%s248 + $0x67c] sm:$0xf]
      %v494 = vld [vmem:[%s253] sm:$0xf]
      %v495 = vld [vmem:[%s253 + $0x4] sm:$0xf]
      %v496 = vld [vmem:[%s253 + $0x8] sm:$0xf]
      %v497 = vld [vmem:[%s253 + $0xc] sm:$0xf]
      %v498 = vld [vmem:[%s253 + $0x10] sm:$0xf]
      %v499 = vld [vmem:[%s253 + $0x14] sm:$0xf]
      %v500 = vld [vmem:[%s253 + $0x18] sm:$0xf]
      %v501 = vld [vmem:[%s253 + $0x1c] sm:$0xf]
      %v502 = vld [vmem:[%s253 + $0x20] sm:$0xf]
      %v503 = vld [vmem:[%s253 + $0x24] sm:$0xf]
      %v504 = vld [vmem:[%s253 + $0x28] sm:$0xf]
      %v505 = vld [vmem:[%s253 + $0x2c] sm:$0xf]
      %v506 = vld [vmem:[%s253 + $0x30] sm:$0xf]
      %v507 = vld [vmem:[%s253 + $0x34] sm:$0xf]
      %v508 = vld [vmem:[%s253 + $0x38] sm:$0xf]
      %v509 = vld [vmem:[%s253 + $0x3c] sm:$0xf]
      %v510 = vld [vmem:[%s253 + $0x40] sm:$0xf]
      %v511 = vld [vmem:[%s253 + $0x44] sm:$0xf]
      %v512 = vld [vmem:[%s253 + $0x48] sm:$0xf]
      %v513 = vld [vmem:[%s253 + $0x4c] sm:$0xf]
      %v514 = vld [vmem:[%s253 + $0x50] sm:$0xf]
      %v515 = vld [vmem:[%s253 + $0x54] sm:$0xf]
      %v516 = vld [vmem:[%s253 + $0x58] sm:$0xf]
      %v517 = vld [vmem:[%s253 + $0x5c] sm:$0xf]
      %v518 = vld [vmem:[%s253 + $0x60] sm:$0xf]
      %v519 = vld [vmem:[%s253 + $0x64] sm:$0xf]
      %v520 = vld [vmem:[%s253 + $0x68] sm:$0xf]
      %v521 = vld [vmem:[%s253 + $0x6c] sm:$0xf]
      %v522 = vld [vmem:[%s253 + $0x70] sm:$0xf]
      %v523 = vld [vmem:[%s253 + $0x74] sm:$0xf]
      %v524 = vld [vmem:[%s253 + $0x78] sm:$0xf]
      %v525 = vld [vmem:[%s253 + $0x7c] sm:$0xf]
      %v526 = vld [vmem:[%s253 + $0x80] sm:$0xf]
      %v527 = vld [vmem:[%s253 + $0x84] sm:$0xf]
      %v528 = vld [vmem:[%s253 + $0x88] sm:$0xf]
      %v529 = vld [vmem:[%s253 + $0x8c] sm:$0xf]
      %v530 = vld [vmem:[%s253 + $0x90] sm:$0xf]
      %v531 = vld [vmem:[%s253 + $0x94] sm:$0xf]
      %v532 = vld [vmem:[%s253 + $0x98] sm:$0xf]
      %v533 = vld [vmem:[%s253 + $0x9c] sm:$0xf]
      %v534 = vld [vmem:[%s253 + $0xa0] sm:$0xf]
      %v535 = vld [vmem:[%s253 + $0xa4] sm:$0xf]
      %v536 = vld [vmem:[%s253 + $0xa8] sm:$0xf]
      %v537 = vld [vmem:[%s253 + $0xac] sm:$0xf]
      %v538 = vld [vmem:[%s253 + $0xb0] sm:$0xf]
      %v539 = vld [vmem:[%s253 + $0xb4] sm:$0xf]
      %v540 = vld [vmem:[%s253 + $0xb8] sm:$0xf]
      %v541 = vld [vmem:[%s253 + $0xbc] sm:$0xf]
      %v542 = vld [vmem:[%s253 + $0xc0] sm:$0xf]
      %v543 = vld [vmem:[%s253 + $0xc4] sm:$0xf]
      %v544 = vld [vmem:[%s253 + $0xc8] sm:$0xf]
      %v545 = vld [vmem:[%s253 + $0xcc] sm:$0xf]
      %v546 = vld [vmem:[%s253 + $0xd0] sm:$0xf]
      %v547 = vld [vmem:[%s253 + $0xd4] sm:$0xf]
      %v548 = vld [vmem:[%s253 + $0xd8] sm:$0xf]
      %v549 = vld [vmem:[%s253 + $0xdc] sm:$0xf]
      %v550 = vld [vmem:[%s253 + $0xe0] sm:$0xf]
      %v551 = vld [vmem:[%s253 + $0xe4] sm:$0xf]
      %v552 = vld [vmem:[%s253 + $0xe8] sm:$0xf]
      %v553 = vld [vmem:[%s253 + $0xec] sm:$0xf]
      %v554 = vld [vmem:[%s253 + $0xf0] sm:$0xf]
      %v555 = vld [vmem:[%s253 + $0xf4] sm:$0xf]
      %v556 = vld [vmem:[%s253 + $0xf8] sm:$0xf]
      %v557 = vld [vmem:[%s253 + $0xfc] sm:$0xf]
      %v558 = vld [vmem:[%s253 + $0x100] sm:$0xf]
      %v559 = vld [vmem:[%s253 + $0x104] sm:$0xf]
      %v560 = vld [vmem:[%s253 + $0x108] sm:$0xf]
      %v561 = vld [vmem:[%s253 + $0x10c] sm:$0xf]
      %v562 = vld [vmem:[%s253 + $0x110] sm:$0xf]
      %v563 = vld [vmem:[%s253 + $0x114] sm:$0xf]
      %v564 = vld [vmem:[%s253 + $0x118] sm:$0xf]
      %v565 = vld [vmem:[%s253 + $0x11c] sm:$0xf]
      %v566 = vld [vmem:[%s253 + $0x120] sm:$0xf]
      %v567 = vld [vmem:[%s253 + $0x124] sm:$0xf]
      %v568 = vld [vmem:[%s253 + $0x128] sm:$0xf]
      %v569 = vld [vmem:[%s253 + $0x12c] sm:$0xf]
      %v570 = vld [vmem:[%s253 + $0x130] sm:$0xf]
      %v571 = vld [vmem:[%s253 + $0x134] sm:$0xf]
      %v572 = vld [vmem:[%s253 + $0x138] sm:$0xf]
      %v573 = vld [vmem:[%s253 + $0x13c] sm:$0xf]
      %v574 = vld [vmem:[%s253 + $0x140] sm:$0xf]
      %v575 = vld [vmem:[%s253 + $0x144] sm:$0xf]
      %v576 = vld [vmem:[%s253 + $0x148] sm:$0xf]
      %v577 = vld [vmem:[%s253 + $0x14c] sm:$0xf]
      %v578 = vld [vmem:[%s253 + $0x150] sm:$0xf]
      %v579 = vld [vmem:[%s253 + $0x154] sm:$0xf]
      %v580 = vld [vmem:[%s253 + $0x158] sm:$0xf]
      %v581 = vld [vmem:[%s253 + $0x15c] sm:$0xf]
      %v582 = vld [vmem:[%s253 + $0x160] sm:$0xf]
      %v583 = vld [vmem:[%s253 + $0x164] sm:$0xf]
      %v584 = vld [vmem:[%s253 + $0x168] sm:$0xf]
      %v585 = vld [vmem:[%s253 + $0x16c] sm:$0xf]
      %v586 = vld [vmem:[%s253 + $0x170] sm:$0xf]
      %v587 = vld [vmem:[%s253 + $0x174] sm:$0xf]
      %v588 = vld [vmem:[%s253 + $0x178] sm:$0xf]
      %v589 = vld [vmem:[%s253 + $0x17c] sm:$0xf]
      %v590 = vld [vmem:[%s253 + $0x180] sm:$0xf]
      %v591 = vld [vmem:[%s253 + $0x184] sm:$0xf]
      %v592 = vld [vmem:[%s253 + $0x188] sm:$0xf]
      %v593 = vld [vmem:[%s253 + $0x18c] sm:$0xf]
      %v594 = vld [vmem:[%s253 + $0x190] sm:$0xf]
      %v595 = vld [vmem:[%s253 + $0x194] sm:$0xf]
      %v596 = vld [vmem:[%s253 + $0x198] sm:$0xf]
      %v597 = vld [vmem:[%s253 + $0x19c] sm:$0xf]
      %v598 = vld [vmem:[%s253 + $0x1a0] sm:$0xf]
      %v599 = vld [vmem:[%s253 + $0x1a4] sm:$0xf]
      %v600 = vld [vmem:[%s253 + $0x1a8] sm:$0xf]
      %v601 = vld [vmem:[%s253 + $0x1ac] sm:$0xf]
      %v602 = vld [vmem:[%s253 + $0x1b0] sm:$0xf]
      %v603 = vld [vmem:[%s253 + $0x1b4] sm:$0xf]
      %v604 = vld [vmem:[%s253 + $0x1b8] sm:$0xf]
      %v605 = vld [vmem:[%s253 + $0x1bc] sm:$0xf]
      %v606 = vld [vmem:[%s253 + $0x1c0] sm:$0xf]
      %v607 = vld [vmem:[%s253 + $0x1c4] sm:$0xf]
      %v608 = vld [vmem:[%s253 + $0x1c8] sm:$0xf]
      %v609 = vld [vmem:[%s253 + $0x1cc] sm:$0xf]
      %v610 = vld [vmem:[%s253 + $0x1d0] sm:$0xf]
      %v611 = vld [vmem:[%s253 + $0x1d4] sm:$0xf]
      %v612 = vld [vmem:[%s253 + $0x1d8] sm:$0xf]
      %v613 = vld [vmem:[%s253 + $0x1dc] sm:$0xf]
      %v614 = vld [vmem:[%s253 + $0x1e0] sm:$0xf]
      %v615 = vld [vmem:[%s253 + $0x1e4] sm:$0xf]
      %v616 = vld [vmem:[%s253 + $0x1e8] sm:$0xf]
      %v617 = vld [vmem:[%s253 + $0x1ec] sm:$0xf]
      %v618 = vld [vmem:[%s253 + $0x1f0] sm:$0xf]
      %v619 = vld [vmem:[%s253 + $0x1f4] sm:$0xf]
      %v620 = vld [vmem:[%s253 + $0x1f8] sm:$0xf]
      %v621 = vld [vmem:[%s253 + $0x1fc] sm:$0xf]
      %v622 = vld [vmem:[%s253 + $0x200] sm:$0xf]
      %v623 = vld [vmem:[%s253 + $0x204] sm:$0xf]
      %v624 = vld [vmem:[%s253 + $0x208] sm:$0xf]
      %v625 = vld [vmem:[%s253 + $0x20c] sm:$0xf]
      %v626 = vld [vmem:[%s253 + $0x210] sm:$0xf]
      %v627 = vld [vmem:[%s253 + $0x214] sm:$0xf]
      %v628 = vld [vmem:[%s253 + $0x218] sm:$0xf]
      %v629 = vld [vmem:[%s253 + $0x21c] sm:$0xf]
      %v630 = vld [vmem:[%s253 + $0x220] sm:$0xf]
      %v631 = vld [vmem:[%s253 + $0x224] sm:$0xf]
      %v632 = vld [vmem:[%s253 + $0x228] sm:$0xf]
      %v633 = vld [vmem:[%s253 + $0x22c] sm:$0xf]
      %v634 = vld [vmem:[%s253 + $0x230] sm:$0xf]
      %v635 = vld [vmem:[%s253 + $0x234] sm:$0xf]
      %v636 = vld [vmem:[%s253 + $0x238] sm:$0xf]
      %v637 = vld [vmem:[%s253 + $0x23c] sm:$0xf]
      %v638 = vld [vmem:[%s253 + $0x240] sm:$0xf]
      %v639 = vld [vmem:[%s253 + $0x244] sm:$0xf]
      %v640 = vld [vmem:[%s253 + $0x248] sm:$0xf]
      %v641 = vld [vmem:[%s253 + $0x24c] sm:$0xf]
      %v642 = vld [vmem:[%s253 + $0x250] sm:$0xf]
      %v643 = vld [vmem:[%s253 + $0x254] sm:$0xf]
      %v644 = vld [vmem:[%s253 + $0x258] sm:$0xf]
      %v645 = vld [vmem:[%s253 + $0x25c] sm:$0xf]
      %v646 = vld [vmem:[%s253 + $0x260] sm:$0xf]
      %v647 = vld [vmem:[%s253 + $0x264] sm:$0xf]
      %v648 = vld [vmem:[%s253 + $0x268] sm:$0xf]
      %v649 = vld [vmem:[%s253 + $0x26c] sm:$0xf]
      %v650 = vld [vmem:[%s253 + $0x270] sm:$0xf]
      %v651 = vld [vmem:[%s253 + $0x274] sm:$0xf]
      %v652 = vld [vmem:[%s253 + $0x278] sm:$0xf]
      %v653 = vld [vmem:[%s253 + $0x27c] sm:$0xf]
      %v654 = vld [vmem:[%s253 + $0x280] sm:$0xf]
      %v655 = vld [vmem:[%s253 + $0x284] sm:$0xf]
      %v656 = vld [vmem:[%s253 + $0x288] sm:$0xf]
      %v657 = vld [vmem:[%s253 + $0x28c] sm:$0xf]
      %v658 = vld [vmem:[%s253 + $0x290] sm:$0xf]
      %v659 = vld [vmem:[%s253 + $0x294] sm:$0xf]
      %v660 = vld [vmem:[%s253 + $0x298] sm:$0xf]
      %v661 = vld [vmem:[%s253 + $0x29c] sm:$0xf]
      %v662 = vld [vmem:[%s253 + $0x2a0] sm:$0xf]
      %v663 = vld [vmem:[%s253 + $0x2a4] sm:$0xf]
      %v664 = vld [vmem:[%s253 + $0x2a8] sm:$0xf]
      %v665 = vld [vmem:[%s253 + $0x2ac] sm:$0xf]
      %v666 = vld [vmem:[%s253 + $0x2b0] sm:$0xf]
      %v667 = vld [vmem:[%s253 + $0x2b4] sm:$0xf]
      %v668 = vld [vmem:[%s253 + $0x2b8] sm:$0xf]
      %v669 = vld [vmem:[%s253 + $0x2bc] sm:$0xf]
      %v670 = vld [vmem:[%s253 + $0x2c0] sm:$0xf]
      %v671 = vld [vmem:[%s253 + $0x2c4] sm:$0xf]
      %v672 = vld [vmem:[%s253 + $0x2c8] sm:$0xf]
      %v673 = vld [vmem:[%s253 + $0x2cc] sm:$0xf]
      %v674 = vld [vmem:[%s253 + $0x2d0] sm:$0xf]
      %v675 = vld [vmem:[%s253 + $0x2d4] sm:$0xf]
      %v676 = vld [vmem:[%s253 + $0x2d8] sm:$0xf]
      %v677 = vld [vmem:[%s253 + $0x2dc] sm:$0xf]
      %v678 = vld [vmem:[%s253 + $0x2e0] sm:$0xf]
      %v679 = vld [vmem:[%s253 + $0x2e4] sm:$0xf]
      %v680 = vld [vmem:[%s253 + $0x2e8] sm:$0xf]
      %v681 = vld [vmem:[%s253 + $0x2ec] sm:$0xf]
      %v682 = vld [vmem:[%s253 + $0x2f0] sm:$0xf]
      %v683 = vld [vmem:[%s253 + $0x2f4] sm:$0xf]
      %v684 = vld [vmem:[%s253 + $0x2f8] sm:$0xf]
      %v685 = vld [vmem:[%s253 + $0x2fc] sm:$0xf]
      %v686 = vld [vmem:[%s253 + $0x300] sm:$0xf]
      %v687 = vld [vmem:[%s253 + $0x304] sm:$0xf]
      %v688 = vld [vmem:[%s253 + $0x308] sm:$0xf]
      %v689 = vld [vmem:[%s253 + $0x30c] sm:$0xf]
      %v914 = vunpack.c.l.b16 %v270
      %v915 = vunpack.c.h.b16 %v270
      %v916 = vunpack.c.l.b16 %v271
      %v917 = vunpack.c.h.b16 %v271
      %v918 = vunpack.c.l.b16 %v272
      %v919 = vunpack.c.h.b16 %v272
      %v920 = vunpack.c.l.b16 %v273
      %v921 = vunpack.c.h.b16 %v273
      %v922 = vunpack.c.l.b16 %v274
      %v923 = vunpack.c.h.b16 %v274
      %v924 = vunpack.c.l.b16 %v275
      %v925 = vunpack.c.h.b16 %v275
      %v926 = vunpack.c.l.b16 %v276
      %v927 = vunpack.c.l.b16 %v277
      %v928 = vunpack.c.h.b16 %v277
      %v929 = vunpack.c.l.b16 %v278
      %v930 = vunpack.c.h.b16 %v278
      %v931 = vunpack.c.l.b16 %v279
      %v932 = vunpack.c.h.b16 %v279
      %v933 = vunpack.c.l.b16 %v280
      %v934 = vunpack.c.h.b16 %v280
      %v935 = vunpack.c.l.b16 %v281
      %v936 = vunpack.c.h.b16 %v281
      %v937 = vunpack.c.l.b16 %v282
      %v938 = vunpack.c.h.b16 %v282
      %v939 = vunpack.c.l.b16 %v283
      %v940 = vunpack.c.l.b16 %v284
      %v941 = vunpack.c.h.b16 %v284
      %v942 = vunpack.c.l.b16 %v285
      %v943 = vunpack.c.h.b16 %v285
      %v944 = vunpack.c.l.b16 %v286
      %v945 = vunpack.c.h.b16 %v286
      %v946 = vunpack.c.l.b16 %v287
      %v947 = vunpack.c.h.b16 %v287
      %v948 = vunpack.c.l.b16 %v288
      %v949 = vunpack.c.h.b16 %v288
      %v950 = vunpack.c.l.b16 %v289
      %v951 = vunpack.c.h.b16 %v289
      %v952 = vunpack.c.l.b16 %v290
      %v953 = vunpack.c.l.b16 %v291
      %v954 = vunpack.c.h.b16 %v291
      %v955 = vunpack.c.l.b16 %v292
      %v956 = vunpack.c.h.b16 %v292
      %v957 = vunpack.c.l.b16 %v293
      %v958 = vunpack.c.h.b16 %v293
      %v959 = vunpack.c.l.b16 %v294
      %v960 = vunpack.c.h.b16 %v294
      %v961 = vunpack.c.l.b16 %v295
      %v962 = vunpack.c.h.b16 %v295
      %v963 = vunpack.c.l.b16 %v296
      %v964 = vunpack.c.h.b16 %v296
      %v965 = vunpack.c.l.b16 %v297
      %v966 = vunpack.c.l.b16 %v298
      %v967 = vunpack.c.h.b16 %v298
      %v968 = vunpack.c.l.b16 %v299
      %v969 = vunpack.c.h.b16 %v299
      %v970 = vunpack.c.l.b16 %v300
      %v971 = vunpack.c.h.b16 %v300
      %v972 = vunpack.c.l.b16 %v301
      %v973 = vunpack.c.h.b16 %v301
      %v974 = vunpack.c.l.b16 %v302
      %v975 = vunpack.c.h.b16 %v302
      %v976 = vunpack.c.l.b16 %v303
      %v977 = vunpack.c.h.b16 %v303
      %v978 = vunpack.c.l.b16 %v304
      %v979 = vunpack.c.l.b16 %v305
      %v980 = vunpack.c.h.b16 %v305
      %v981 = vunpack.c.l.b16 %v306
      %v982 = vunpack.c.h.b16 %v306
      %v983 = vunpack.c.l.b16 %v307
      %v984 = vunpack.c.h.b16 %v307
      %v985 = vunpack.c.l.b16 %v308
      %v986 = vunpack.c.h.b16 %v308
      %v987 = vunpack.c.l.b16 %v309
      %v988 = vunpack.c.h.b16 %v309
      %v989 = vunpack.c.l.b16 %v310
      %v990 = vunpack.c.h.b16 %v310
      %v991 = vunpack.c.l.b16 %v311
      %v992 = vunpack.c.l.b16 %v312
      %v993 = vunpack.c.h.b16 %v312
      %v994 = vunpack.c.l.b16 %v313
      %v995 = vunpack.c.h.b16 %v313
      %v996 = vunpack.c.l.b16 %v314
      %v997 = vunpack.c.h.b16 %v314
      %v998 = vunpack.c.l.b16 %v315
      %v999 = vunpack.c.h.b16 %v315
      %v1000 = vunpack.c.l.b16 %v316
      %v1001 = vunpack.c.h.b16 %v316
      %v1002 = vunpack.c.l.b16 %v317
      %v1003 = vunpack.c.h.b16 %v317
      %v1004 = vunpack.c.l.b16 %v318
      %v1005 = vunpack.c.l.b16 %v319
      %v1006 = vunpack.c.h.b16 %v319
      %v1007 = vunpack.c.l.b16 %v320
      %v1008 = vunpack.c.h.b16 %v320
      %v1009 = vunpack.c.l.b16 %v321
      %v1010 = vunpack.c.h.b16 %v321
      %v1011 = vunpack.c.l.b16 %v322
      %v1012 = vunpack.c.h.b16 %v322
      %v1013 = vunpack.c.l.b16 %v323
      %v1014 = vunpack.c.h.b16 %v323
      %v1015 = vunpack.c.l.b16 %v324
      %v1016 = vunpack.c.h.b16 %v324
      %v1017 = vunpack.c.l.b16 %v325
      %v1018 = vunpack.c.l.b16 %v326
      %v1019 = vunpack.c.h.b16 %v326
      %v1020 = vunpack.c.l.b16 %v327
      %v1021 = vunpack.c.h.b16 %v327
      %v1022 = vunpack.c.l.b16 %v328
      %v1023 = vunpack.c.h.b16 %v328
      %v1024 = vunpack.c.l.b16 %v329
      %v1025 = vunpack.c.h.b16 %v329
      %v1026 = vunpack.c.l.b16 %v330
      %v1027 = vunpack.c.h.b16 %v330
      %v1028 = vunpack.c.l.b16 %v331
      %v1029 = vunpack.c.h.b16 %v331
      %v1030 = vunpack.c.l.b16 %v332
      %v1031 = vunpack.c.l.b16 %v333
      %v1032 = vunpack.c.h.b16 %v333
      %v1033 = vunpack.c.l.b16 %v334
      %v1034 = vunpack.c.h.b16 %v334
      %v1035 = vunpack.c.l.b16 %v335
      %v1036 = vunpack.c.h.b16 %v335
      %v1037 = vunpack.c.l.b16 %v336
      %v1038 = vunpack.c.h.b16 %v336
      %v1039 = vunpack.c.l.b16 %v337
      %v1040 = vunpack.c.h.b16 %v337
      %v1041 = vunpack.c.l.b16 %v338
      %v1042 = vunpack.c.h.b16 %v338
      %v1043 = vunpack.c.l.b16 %v339
      %v1044 = vunpack.c.l.b16 %v340
      %v1045 = vunpack.c.h.b16 %v340
      %v1046 = vunpack.c.l.b16 %v341
      %v1047 = vunpack.c.h.b16 %v341
      %v1048 = vunpack.c.l.b16 %v342
      %v1049 = vunpack.c.h.b16 %v342
      %v1050 = vunpack.c.l.b16 %v343
      %v1051 = vunpack.c.h.b16 %v343
      %v1052 = vunpack.c.l.b16 %v344
      %v1053 = vunpack.c.h.b16 %v344
      %v1054 = vunpack.c.l.b16 %v345
      %v1055 = vunpack.c.h.b16 %v345
      %v1056 = vunpack.c.l.b16 %v346
      %v1057 = vunpack.c.l.b16 %v347
      %v1058 = vunpack.c.h.b16 %v347
      %v1059 = vunpack.c.l.b16 %v348
      %v1060 = vunpack.c.h.b16 %v348
      %v1061 = vunpack.c.l.b16 %v349
      %v1062 = vunpack.c.h.b16 %v349
      %v1063 = vunpack.c.l.b16 %v350
      %v1064 = vunpack.c.h.b16 %v350
      %v1065 = vunpack.c.l.b16 %v351
      %v1066 = vunpack.c.h.b16 %v351
      %v1067 = vunpack.c.l.b16 %v352
      %v1068 = vunpack.c.h.b16 %v352
      %v1069 = vunpack.c.l.b16 %v353
      %v1070 = vunpack.c.l.b16 %v354
      %v1071 = vunpack.c.h.b16 %v354
      %v1072 = vunpack.c.l.b16 %v355
      %v1073 = vunpack.c.h.b16 %v355
      %v1074 = vunpack.c.l.b16 %v356
      %v1075 = vunpack.c.h.b16 %v356
      %v1076 = vunpack.c.l.b16 %v357
      %v1077 = vunpack.c.h.b16 %v357
      %v1078 = vunpack.c.l.b16 %v358
      %v1079 = vunpack.c.h.b16 %v358
      %v1080 = vunpack.c.l.b16 %v359
      %v1081 = vunpack.c.h.b16 %v359
      %v1082 = vunpack.c.l.b16 %v360
      %v1083 = vunpack.c.l.b16 %v361
      %v1084 = vunpack.c.h.b16 %v361
      %v1085 = vunpack.c.l.b16 %v362
      %v1086 = vunpack.c.h.b16 %v362
      %v1087 = vunpack.c.l.b16 %v363
      %v1088 = vunpack.c.h.b16 %v363
      %v1089 = vunpack.c.l.b16 %v364
      %v1090 = vunpack.c.h.b16 %v364
      %v1091 = vunpack.c.l.b16 %v365
      %v1092 = vunpack.c.h.b16 %v365
      %v1093 = vunpack.c.l.b16 %v366
      %v1094 = vunpack.c.h.b16 %v366
      %v1095 = vunpack.c.l.b16 %v367
      %v1096 = vunpack.c.l.b16 %v368
      %v1097 = vunpack.c.h.b16 %v368
      %v1098 = vunpack.c.l.b16 %v369
      %v1099 = vunpack.c.h.b16 %v369
      %v1100 = vunpack.c.l.b16 %v370
      %v1101 = vunpack.c.h.b16 %v370
      %v1102 = vunpack.c.l.b16 %v371
      %v1103 = vunpack.c.h.b16 %v371
      %v1104 = vunpack.c.l.b16 %v372
      %v1105 = vunpack.c.h.b16 %v372
      %v1106 = vunpack.c.l.b16 %v373
      %v1107 = vunpack.c.h.b16 %v373
      %v1108 = vunpack.c.l.b16 %v374
      %v1109 = vunpack.c.l.b16 %v375
      %v1110 = vunpack.c.h.b16 %v375
      %v1111 = vunpack.c.l.b16 %v376
      %v1112 = vunpack.c.h.b16 %v376
      %v1113 = vunpack.c.l.b16 %v377
      %v1114 = vunpack.c.h.b16 %v377
      %v1115 = vunpack.c.l.b16 %v378
      %v1116 = vunpack.c.h.b16 %v378
      %v1117 = vunpack.c.l.b16 %v379
      %v1118 = vunpack.c.h.b16 %v379
      %v1119 = vunpack.c.l.b16 %v380
      %v1120 = vunpack.c.h.b16 %v380
      %v1121 = vunpack.c.l.b16 %v381
      %v1122 = vunpack.c.l.b16 %v382
      %v1123 = vunpack.c.h.b16 %v382
      %v1124 = vunpack.c.l.b16 %v383
      %v1125 = vunpack.c.h.b16 %v383
      %v1126 = vunpack.c.l.b16 %v384
      %v1127 = vunpack.c.h.b16 %v384
      %v1128 = vunpack.c.l.b16 %v385
      %v1129 = vunpack.c.h.b16 %v385
      %v1130 = vunpack.c.l.b16 %v386
      %v1131 = vunpack.c.h.b16 %v386
      %v1132 = vunpack.c.l.b16 %v387
      %v1133 = vunpack.c.h.b16 %v387
      %v1134 = vunpack.c.l.b16 %v388
      %v1135 = vunpack.c.l.b16 %v389
      %v1136 = vunpack.c.h.b16 %v389
      %v1137 = vunpack.c.l.b16 %v390
      %v1138 = vunpack.c.h.b16 %v390
      %v1139 = vunpack.c.l.b16 %v391
      %v1140 = vunpack.c.h.b16 %v391
      %v1141 = vunpack.c.l.b16 %v392
      %v1142 = vunpack.c.h.b16 %v392
      %v1143 = vunpack.c.l.b16 %v393
      %v1144 = vunpack.c.h.b16 %v393
      %v1145 = vunpack.c.l.b16 %v394
      %v1146 = vunpack.c.h.b16 %v394
      %v1147 = vunpack.c.l.b16 %v395
      %v1148 = vunpack.c.l.b16 %v396
      %v1149 = vunpack.c.h.b16 %v396
      %v1150 = vunpack.c.l.b16 %v397
      %v1151 = vunpack.c.h.b16 %v397
      %v1152 = vunpack.c.l.b16 %v398
      %v1153 = vunpack.c.h.b16 %v398
      %v1154 = vunpack.c.l.b16 %v399
      %v1155 = vunpack.c.h.b16 %v399
      %v1156 = vunpack.c.l.b16 %v400
      %v1157 = vunpack.c.h.b16 %v400
      %v1158 = vunpack.c.l.b16 %v401
      %v1159 = vunpack.c.h.b16 %v401
      %v1160 = vunpack.c.l.b16 %v402
      %v1161 = vunpack.c.l.b16 %v403
      %v1162 = vunpack.c.h.b16 %v403
      %v1163 = vunpack.c.l.b16 %v404
      %v1164 = vunpack.c.h.b16 %v404
      %v1165 = vunpack.c.l.b16 %v405
      %v1166 = vunpack.c.h.b16 %v405
      %v1167 = vunpack.c.l.b16 %v406
      %v1168 = vunpack.c.h.b16 %v406
      %v1169 = vunpack.c.l.b16 %v407
      %v1170 = vunpack.c.h.b16 %v407
      %v1171 = vunpack.c.l.b16 %v408
      %v1172 = vunpack.c.h.b16 %v408
      %v1173 = vunpack.c.l.b16 %v409
      %v1174 = vunpack.c.l.b16 %v410
      %v1175 = vunpack.c.h.b16 %v410
      %v1176 = vunpack.c.l.b16 %v411
      %v1177 = vunpack.c.h.b16 %v411
      %v1178 = vunpack.c.l.b16 %v412
      %v1179 = vunpack.c.h.b16 %v412
      %v1180 = vunpack.c.l.b16 %v413
      %v1181 = vunpack.c.h.b16 %v413
      %v1182 = vunpack.c.l.b16 %v414
      %v1183 = vunpack.c.h.b16 %v414
      %v1184 = vunpack.c.l.b16 %v415
      %v1185 = vunpack.c.h.b16 %v415
      %v1186 = vunpack.c.l.b16 %v416
      %v1187 = vunpack.c.l.b16 %v417
      %v1188 = vunpack.c.h.b16 %v417
      %v1189 = vunpack.c.l.b16 %v418
      %v1190 = vunpack.c.h.b16 %v418
      %v1191 = vunpack.c.l.b16 %v419
      %v1192 = vunpack.c.h.b16 %v419
      %v1193 = vunpack.c.l.b16 %v420
      %v1194 = vunpack.c.h.b16 %v420
      %v1195 = vunpack.c.l.b16 %v421
      %v1196 = vunpack.c.h.b16 %v421
      %v1197 = vunpack.c.l.b16 %v422
      %v1198 = vunpack.c.h.b16 %v422
      %v1199 = vunpack.c.l.b16 %v423
      %v1200 = vunpack.c.l.b16 %v424
      %v1201 = vunpack.c.h.b16 %v424
      %v1202 = vunpack.c.l.b16 %v425
      %v1203 = vunpack.c.h.b16 %v425
      %v1204 = vunpack.c.l.b16 %v426
      %v1205 = vunpack.c.h.b16 %v426
      %v1206 = vunpack.c.l.b16 %v427
      %v1207 = vunpack.c.h.b16 %v427
      %v1208 = vunpack.c.l.b16 %v428
      %v1209 = vunpack.c.h.b16 %v428
      %v1210 = vunpack.c.l.b16 %v429
      %v1211 = vunpack.c.h.b16 %v429
      %v1212 = vunpack.c.l.b16 %v430
      %v1213 = vunpack.c.l.b16 %v431
      %v1214 = vunpack.c.h.b16 %v431
      %v1215 = vunpack.c.l.b16 %v432
      %v1216 = vunpack.c.h.b16 %v432
      %v1217 = vunpack.c.l.b16 %v433
      %v1218 = vunpack.c.h.b16 %v433
      %v1219 = vunpack.c.l.b16 %v434
      %v1220 = vunpack.c.h.b16 %v434
      %v1221 = vunpack.c.l.b16 %v435
      %v1222 = vunpack.c.h.b16 %v435
      %v1223 = vunpack.c.l.b16 %v436
      %v1224 = vunpack.c.h.b16 %v436
      %v1225 = vunpack.c.l.b16 %v437
      %v1226 = vunpack.c.l.b16 %v438
      %v1227 = vunpack.c.h.b16 %v438
      %v1228 = vunpack.c.l.b16 %v439
      %v1229 = vunpack.c.h.b16 %v439
      %v1230 = vunpack.c.l.b16 %v440
      %v1231 = vunpack.c.h.b16 %v440
      %v1232 = vunpack.c.l.b16 %v441
      %v1233 = vunpack.c.h.b16 %v441
      %v1234 = vunpack.c.l.b16 %v442
      %v1235 = vunpack.c.h.b16 %v442
      %v1236 = vunpack.c.l.b16 %v443
      %v1237 = vunpack.c.h.b16 %v443
      %v1238 = vunpack.c.l.b16 %v444
      %v1239 = vunpack.c.l.b16 %v445
      %v1240 = vunpack.c.h.b16 %v445
      %v1241 = vunpack.c.l.b16 %v446
      %v1242 = vunpack.c.h.b16 %v446
      %v1243 = vunpack.c.l.b16 %v447
      %v1244 = vunpack.c.h.b16 %v447
      %v1245 = vunpack.c.l.b16 %v448
      %v1246 = vunpack.c.h.b16 %v448
      %v1247 = vunpack.c.l.b16 %v449
      %v1248 = vunpack.c.h.b16 %v449
      %v1249 = vunpack.c.l.b16 %v450
      %v1250 = vunpack.c.h.b16 %v450
      %v1251 = vunpack.c.l.b16 %v451
      %v1252 = vunpack.c.l.b16 %v452
      %v1253 = vunpack.c.h.b16 %v452
      %v1254 = vunpack.c.l.b16 %v453
      %v1255 = vunpack.c.h.b16 %v453
      %v1256 = vunpack.c.l.b16 %v454
      %v1257 = vunpack.c.h.b16 %v454
      %v1258 = vunpack.c.l.b16 %v455
      %v1259 = vunpack.c.h.b16 %v455
      %v1260 = vunpack.c.l.b16 %v456
      %v1261 = vunpack.c.h.b16 %v456
      %v1262 = vunpack.c.l.b16 %v457
      %v1263 = vunpack.c.h.b16 %v457
      %v1264 = vunpack.c.l.b16 %v458
      %v1265 = vunpack.c.l.b16 %v459
      %v1266 = vunpack.c.h.b16 %v459
      %v1267 = vunpack.c.l.b16 %v460
      %v1268 = vunpack.c.h.b16 %v460
      %v1269 = vunpack.c.l.b16 %v461
      %v1270 = vunpack.c.h.b16 %v461
      %v1271 = vunpack.c.l.b16 %v462
      %v1272 = vunpack.c.h.b16 %v462
      %v1273 = vunpack.c.l.b16 %v463
      %v1274 = vunpack.c.h.b16 %v463
      %v1275 = vunpack.c.l.b16 %v464
      %v1276 = vunpack.c.h.b16 %v464
      %v1277 = vunpack.c.l.b16 %v465
      %v1278 = vunpack.c.l.b16 %v466
      %v1279 = vunpack.c.h.b16 %v466
      %v1280 = vunpack.c.l.b16 %v467
      %v1281 = vunpack.c.h.b16 %v467
      %v1282 = vunpack.c.l.b16 %v468
      %v1283 = vunpack.c.h.b16 %v468
      %v1284 = vunpack.c.l.b16 %v469
      %v1285 = vunpack.c.h.b16 %v469
      %v1286 = vunpack.c.l.b16 %v470
      %v1287 = vunpack.c.h.b16 %v470
      %v1288 = vunpack.c.l.b16 %v471
      %v1289 = vunpack.c.h.b16 %v471
      %v1290 = vunpack.c.l.b16 %v472
      %v1291 = vunpack.c.l.b16 %v473
      %v1292 = vunpack.c.h.b16 %v473
      %v1293 = vunpack.c.l.b16 %v474
      %v1294 = vunpack.c.h.b16 %v474
      %v1295 = vunpack.c.l.b16 %v475
      %v1296 = vunpack.c.h.b16 %v475
      %v1297 = vunpack.c.l.b16 %v476
      %v1298 = vunpack.c.h.b16 %v476
      %v1299 = vunpack.c.l.b16 %v477
      %v1300 = vunpack.c.h.b16 %v477
      %v1301 = vunpack.c.l.b16 %v478
      %v1302 = vunpack.c.h.b16 %v478
      %v1303 = vunpack.c.l.b16 %v479
      %v1304 = vunpack.c.l.b16 %v480
      %v1305 = vunpack.c.h.b16 %v480
      %v1306 = vunpack.c.l.b16 %v481
      %v1307 = vunpack.c.h.b16 %v481
      %v1308 = vunpack.c.l.b16 %v482
      %v1309 = vunpack.c.h.b16 %v482
      %v1310 = vunpack.c.l.b16 %v483
      %v1311 = vunpack.c.h.b16 %v483
      %v1312 = vunpack.c.l.b16 %v484
      %v1313 = vunpack.c.h.b16 %v484
      %v1314 = vunpack.c.l.b16 %v485
      %v1315 = vunpack.c.h.b16 %v485
      %v1316 = vunpack.c.l.b16 %v486
      %v1317 = vunpack.c.l.b16 %v487
      %v1318 = vunpack.c.h.b16 %v487
      %v1319 = vunpack.c.l.b16 %v488
      %v1320 = vunpack.c.h.b16 %v488
      %v1321 = vunpack.c.l.b16 %v489
      %v1322 = vunpack.c.h.b16 %v489
      %v1323 = vunpack.c.l.b16 %v490
      %v1324 = vunpack.c.h.b16 %v490
      %v1325 = vunpack.c.l.b16 %v491
      %v1326 = vunpack.c.h.b16 %v491
      %v1327 = vunpack.c.l.b16 %v492
      %v1328 = vunpack.c.h.b16 %v492
      %v1329 = vunpack.c.l.b16 %v493
      %v1330 = vpack.c.b16 %v927, %v914
      %v1331 = vpack.c.b16 %v928, %v915
      %v1332 = vpack.c.b16 %v929, %v916
      %v1333 = vpack.c.b16 %v930, %v917
      %v1334 = vpack.c.b16 %v931, %v918
      %v1335 = vpack.c.b16 %v932, %v919
      %v1336 = vpack.c.b16 %v933, %v920
      %v1337 = vpack.c.b16 %v934, %v921
      %v1338 = vpack.c.b16 %v935, %v922
      %v1339 = vpack.c.b16 %v936, %v923
      %v1340 = vpack.c.b16 %v937, %v924
      %v1341 = vpack.c.b16 %v938, %v925
      %v1342 = vpack.c.b16 %v939, %v926
      %v1343 = vpack.c.b16 %v953, %v940
      %v1344 = vpack.c.b16 %v954, %v941
      %v1345 = vpack.c.b16 %v955, %v942
      %v1346 = vpack.c.b16 %v956, %v943
      %v1347 = vpack.c.b16 %v957, %v944
      %v1348 = vpack.c.b16 %v958, %v945
      %v1349 = vpack.c.b16 %v959, %v946
      %v1350 = vpack.c.b16 %v960, %v947
      %v1351 = vpack.c.b16 %v961, %v948
      %v1352 = vpack.c.b16 %v962, %v949
      %v1353 = vpack.c.b16 %v963, %v950
      %v1354 = vpack.c.b16 %v964, %v951
      %v1355 = vpack.c.b16 %v965, %v952
      %v1356 = vpack.c.b16 %v979, %v966
      %v1357 = vpack.c.b16 %v980, %v967
      %v1358 = vpack.c.b16 %v981, %v968
      %v1359 = vpack.c.b16 %v982, %v969
      %v1360 = vpack.c.b16 %v983, %v970
      %v1361 = vpack.c.b16 %v984, %v971
      %v1362 = vpack.c.b16 %v985, %v972
      %v1363 = vpack.c.b16 %v986, %v973
      %v1364 = vpack.c.b16 %v987, %v974
      %v1365 = vpack.c.b16 %v988, %v975
      %v1366 = vpack.c.b16 %v989, %v976
      %v1367 = vpack.c.b16 %v990, %v977
      %v1368 = vpack.c.b16 %v991, %v978
      %v1369 = vpack.c.b16 %v1005, %v992
      %v1370 = vpack.c.b16 %v1006, %v993
      %v1371 = vpack.c.b16 %v1007, %v994
      %v1372 = vpack.c.b16 %v1008, %v995
      %v1373 = vpack.c.b16 %v1009, %v996
      %v1374 = vpack.c.b16 %v1010, %v997
      %v1375 = vpack.c.b16 %v1011, %v998
      %v1376 = vpack.c.b16 %v1012, %v999
      %v1377 = vpack.c.b16 %v1013, %v1000
      %v1378 = vpack.c.b16 %v1014, %v1001
      %v1379 = vpack.c.b16 %v1015, %v1002
      %v1380 = vpack.c.b16 %v1016, %v1003
      %v1381 = vpack.c.b16 %v1017, %v1004
      %v1382 = vpack.c.b16 %v1031, %v1018
      %v1383 = vpack.c.b16 %v1032, %v1019
      %v1384 = vpack.c.b16 %v1033, %v1020
      %v1385 = vpack.c.b16 %v1034, %v1021
      %v1386 = vpack.c.b16 %v1035, %v1022
      %v1387 = vpack.c.b16 %v1036, %v1023
      %v1388 = vpack.c.b16 %v1037, %v1024
      %v1389 = vpack.c.b16 %v1038, %v1025
      %v1390 = vpack.c.b16 %v1039, %v1026
      %v1391 = vpack.c.b16 %v1040, %v1027
      %v1392 = vpack.c.b16 %v1041, %v1028
      %v1393 = vpack.c.b16 %v1042, %v1029
      %v1394 = vpack.c.b16 %v1043, %v1030
      %v1395 = vpack.c.b16 %v1057, %v1044
      %v1396 = vpack.c.b16 %v1058, %v1045
      %v1397 = vpack.c.b16 %v1059, %v1046
      %v1398 = vpack.c.b16 %v1060, %v1047
      %v1399 = vpack.c.b16 %v1061, %v1048
      %v1400 = vpack.c.b16 %v1062, %v1049
      %v1401 = vpack.c.b16 %v1063, %v1050
      %v1402 = vpack.c.b16 %v1064, %v1051
      %v1403 = vpack.c.b16 %v1065, %v1052
      %v1404 = vpack.c.b16 %v1066, %v1053
      %v1405 = vpack.c.b16 %v1067, %v1054
      %v1406 = vpack.c.b16 %v1068, %v1055
      %v1407 = vpack.c.b16 %v1069, %v1056
      %v1408 = vpack.c.b16 %v1083, %v1070
      %v1409 = vpack.c.b16 %v1084, %v1071
      %v1410 = vpack.c.b16 %v1085, %v1072
      %v1411 = vpack.c.b16 %v1086, %v1073
      %v1412 = vpack.c.b16 %v1087, %v1074
      %v1413 = vpack.c.b16 %v1088, %v1075
      %v1414 = vpack.c.b16 %v1089, %v1076
      %v1415 = vpack.c.b16 %v1090, %v1077
      %v1416 = vpack.c.b16 %v1091, %v1078
      %v1417 = vpack.c.b16 %v1092, %v1079
      %v1418 = vpack.c.b16 %v1093, %v1080
      %v1419 = vpack.c.b16 %v1094, %v1081
      %v1420 = vpack.c.b16 %v1095, %v1082
      %v1421 = vpack.c.b16 %v1109, %v1096
      %v1422 = vpack.c.b16 %v1110, %v1097
      %v1423 = vpack.c.b16 %v1111, %v1098
      %v1424 = vpack.c.b16 %v1112, %v1099
      %v1425 = vpack.c.b16 %v1113, %v1100
      %v1426 = vpack.c.b16 %v1114, %v1101
      %v1427 = vpack.c.b16 %v1115, %v1102
      %v1428 = vpack.c.b16 %v1116, %v1103
      %v1429 = vpack.c.b16 %v1117, %v1104
      %v1430 = vpack.c.b16 %v1118, %v1105
      %v1431 = vpack.c.b16 %v1119, %v1106
      %v1432 = vpack.c.b16 %v1120, %v1107
      %v1433 = vpack.c.b16 %v1121, %v1108
      %v1434 = vpack.c.b16 %v1135, %v1122
      %v1435 = vpack.c.b16 %v1136, %v1123
      %v1436 = vpack.c.b16 %v1137, %v1124
      %v1437 = vpack.c.b16 %v1138, %v1125
      %v1438 = vpack.c.b16 %v1139, %v1126
      %v1439 = vpack.c.b16 %v1140, %v1127
      %v1440 = vpack.c.b16 %v1141, %v1128
      %v1441 = vpack.c.b16 %v1142, %v1129
      %v1442 = vpack.c.b16 %v1143, %v1130
      %v1443 = vpack.c.b16 %v1144, %v1131
      %v1444 = vpack.c.b16 %v1145, %v1132
      %v1445 = vpack.c.b16 %v1146, %v1133
      %v1446 = vpack.c.b16 %v1147, %v1134
      %v1447 = vpack.c.b16 %v1161, %v1148
      %v1448 = vpack.c.b16 %v1162, %v1149
      %v1449 = vpack.c.b16 %v1163, %v1150
      %v1450 = vpack.c.b16 %v1164, %v1151
      %v1451 = vpack.c.b16 %v1165, %v1152
      %v1452 = vpack.c.b16 %v1166, %v1153
      %v1453 = vpack.c.b16 %v1167, %v1154
      %v1454 = vpack.c.b16 %v1168, %v1155
      %v1455 = vpack.c.b16 %v1169, %v1156
      %v1456 = vpack.c.b16 %v1170, %v1157
      %v1457 = vpack.c.b16 %v1171, %v1158
      %v1458 = vpack.c.b16 %v1172, %v1159
      %v1459 = vpack.c.b16 %v1173, %v1160
      %v1460 = vpack.c.b16 %v1187, %v1174
      %v1461 = vpack.c.b16 %v1188, %v1175
      %v1462 = vpack.c.b16 %v1189, %v1176
      %v1463 = vpack.c.b16 %v1190, %v1177
      %v1464 = vpack.c.b16 %v1191, %v1178
      %v1465 = vpack.c.b16 %v1192, %v1179
      %v1466 = vpack.c.b16 %v1193, %v1180
      %v1467 = vpack.c.b16 %v1194, %v1181
      %v1468 = vpack.c.b16 %v1195, %v1182
      %v1469 = vpack.c.b16 %v1196, %v1183
      %v1470 = vpack.c.b16 %v1197, %v1184
      %v1471 = vpack.c.b16 %v1198, %v1185
      %v1472 = vpack.c.b16 %v1199, %v1186
      %v1473 = vpack.c.b16 %v1213, %v1200
      %v1474 = vpack.c.b16 %v1214, %v1201
      %v1475 = vpack.c.b16 %v1215, %v1202
      %v1476 = vpack.c.b16 %v1216, %v1203
      %v1477 = vpack.c.b16 %v1217, %v1204
      %v1478 = vpack.c.b16 %v1218, %v1205
      %v1479 = vpack.c.b16 %v1219, %v1206
      %v1480 = vpack.c.b16 %v1220, %v1207
      %v1481 = vpack.c.b16 %v1221, %v1208
      %v1482 = vpack.c.b16 %v1222, %v1209
      %v1483 = vpack.c.b16 %v1223, %v1210
      %v1484 = vpack.c.b16 %v1224, %v1211
      %v1485 = vpack.c.b16 %v1225, %v1212
      %v1486 = vpack.c.b16 %v1239, %v1226
      %v1487 = vpack.c.b16 %v1240, %v1227
      %v1488 = vpack.c.b16 %v1241, %v1228
      %v1489 = vpack.c.b16 %v1242, %v1229
      %v1490 = vpack.c.b16 %v1243, %v1230
      %v1491 = vpack.c.b16 %v1244, %v1231
      %v1492 = vpack.c.b16 %v1245, %v1232
      %v1493 = vpack.c.b16 %v1246, %v1233
      %v1494 = vpack.c.b16 %v1247, %v1234
      %v1495 = vpack.c.b16 %v1248, %v1235
      %v1496 = vpack.c.b16 %v1249, %v1236
      %v1497 = vpack.c.b16 %v1250, %v1237
      %v1498 = vpack.c.b16 %v1251, %v1238
      %v1499 = vpack.c.b16 %v1265, %v1252
      %v1500 = vpack.c.b16 %v1266, %v1253
      %v1501 = vpack.c.b16 %v1267, %v1254
      %v1502 = vpack.c.b16 %v1268, %v1255
      %v1503 = vpack.c.b16 %v1269, %v1256
      %v1504 = vpack.c.b16 %v1270, %v1257
      %v1505 = vpack.c.b16 %v1271, %v1258
      %v1506 = vpack.c.b16 %v1272, %v1259
      %v1507 = vpack.c.b16 %v1273, %v1260
      %v1508 = vpack.c.b16 %v1274, %v1261
      %v1509 = vpack.c.b16 %v1275, %v1262
      %v1510 = vpack.c.b16 %v1276, %v1263
      %v1511 = vpack.c.b16 %v1277, %v1264
      %v1512 = vpack.c.b16 %v1291, %v1278
      %v1513 = vpack.c.b16 %v1292, %v1279
      %v1514 = vpack.c.b16 %v1293, %v1280
      %v1515 = vpack.c.b16 %v1294, %v1281
      %v1516 = vpack.c.b16 %v1295, %v1282
      %v1517 = vpack.c.b16 %v1296, %v1283
      %v1518 = vpack.c.b16 %v1297, %v1284
      %v1519 = vpack.c.b16 %v1298, %v1285
      %v1520 = vpack.c.b16 %v1299, %v1286
      %v1521 = vpack.c.b16 %v1300, %v1287
      %v1522 = vpack.c.b16 %v1301, %v1288
      %v1523 = vpack.c.b16 %v1302, %v1289
      %v1524 = vpack.c.b16 %v1303, %v1290
      %v1525 = vpack.c.b16 %v1317, %v1304
      %v1526 = vpack.c.b16 %v1318, %v1305
      %v1527 = vpack.c.b16 %v1319, %v1306
      %v1528 = vpack.c.b16 %v1320, %v1307
      %v1529 = vpack.c.b16 %v1321, %v1308
      %v1530 = vpack.c.b16 %v1322, %v1309
      %v1531 = vpack.c.b16 %v1323, %v1310
      %v1532 = vpack.c.b16 %v1324, %v1311
      %v1533 = vpack.c.b16 %v1325, %v1312
      %v1534 = vpack.c.b16 %v1326, %v1313
      %v1535 = vpack.c.b16 %v1327, %v1314
      %v1536 = vpack.c.b16 %v1328, %v1315
      %v1537 = vpack.c.b16 %v1329, %v1316
      %v1926 = vunpack.c.l.b16 %v494
      %v1927 = vunpack.c.l.b16 %v495
      %v1928 = vunpack.c.l.b16 %v496
      %v1929 = vunpack.c.l.b16 %v497
      %v1930 = vunpack.c.l.b16 %v498
      %v1931 = vunpack.c.l.b16 %v499
      %v1932 = vunpack.c.l.b16 %v500
      %v1933 = vunpack.c.l.b16 %v501
      %v1934 = vunpack.c.l.b16 %v502
      %v1935 = vunpack.c.l.b16 %v503
      %v1936 = vunpack.c.l.b16 %v504
      %v1937 = vunpack.c.l.b16 %v505
      %v1938 = vunpack.c.l.b16 %v506
      %v1939 = vunpack.c.l.b16 %v507
      %v1940 = vunpack.c.l.b16 %v508
      %v1941 = vunpack.c.l.b16 %v509
      %v1942 = vunpack.c.l.b16 %v510
      %v1943 = vunpack.c.l.b16 %v511
      %v1944 = vunpack.c.l.b16 %v512
      %v1945 = vunpack.c.l.b16 %v513
      %v1946 = vunpack.c.l.b16 %v514
      %v1947 = vunpack.c.l.b16 %v515
      %v1948 = vunpack.c.l.b16 %v516
      %v1949 = vunpack.c.l.b16 %v517
      %v1950 = vunpack.c.l.b16 %v518
      %v1951 = vunpack.c.l.b16 %v519
      %v1952 = vunpack.c.l.b16 %v520
      %v1953 = vunpack.c.l.b16 %v521
      %v1954 = vunpack.c.l.b16 %v522
      %v1955 = vunpack.c.l.b16 %v523
      %v1956 = vunpack.c.l.b16 %v524
      %v1957 = vunpack.c.l.b16 %v525
      %v1958 = vunpack.c.l.b16 %v526
      %v1959 = vunpack.c.l.b16 %v527
      %v1960 = vunpack.c.l.b16 %v528
      %v1961 = vunpack.c.l.b16 %v529
      %v1962 = vunpack.c.l.b16 %v530
      %v1963 = vunpack.c.l.b16 %v531
      %v1964 = vunpack.c.l.b16 %v532
      %v1965 = vunpack.c.l.b16 %v533
      %v1966 = vunpack.c.l.b16 %v534
      %v1967 = vunpack.c.l.b16 %v535
      %v1968 = vunpack.c.l.b16 %v536
      %v1969 = vunpack.c.l.b16 %v537
      %v1970 = vunpack.c.l.b16 %v538
      %v1971 = vunpack.c.l.b16 %v539
      %v1972 = vunpack.c.l.b16 %v540
      %v1973 = vunpack.c.l.b16 %v541
      %v1974 = vunpack.c.l.b16 %v542
      %v1975 = vunpack.c.l.b16 %v543
      %v1976 = vunpack.c.l.b16 %v544
      %v1977 = vunpack.c.l.b16 %v545
      %v1978 = vunpack.c.l.b16 %v546
      %v1979 = vunpack.c.l.b16 %v547
      %v1980 = vunpack.c.l.b16 %v548
      %v1981 = vunpack.c.l.b16 %v549
      %v1982 = vunpack.c.l.b16 %v550
      %v1983 = vunpack.c.l.b16 %v551
      %v1984 = vunpack.c.l.b16 %v552
      %v1985 = vunpack.c.l.b16 %v553
      %v1986 = vunpack.c.l.b16 %v554
      %v1987 = vunpack.c.l.b16 %v555
      %v1988 = vunpack.c.l.b16 %v556
      %v1989 = vunpack.c.l.b16 %v557
      %v1990 = vunpack.c.l.b16 %v558
      %v1991 = vunpack.c.l.b16 %v559
      %v1992 = vunpack.c.l.b16 %v560
      %v1993 = vunpack.c.l.b16 %v561
      %v1994 = vunpack.c.l.b16 %v562
      %v1995 = vunpack.c.l.b16 %v563
      %v1996 = vunpack.c.l.b16 %v564
      %v1997 = vunpack.c.l.b16 %v565
      %v1998 = vunpack.c.l.b16 %v566
      %v1999 = vunpack.c.l.b16 %v567
      %v2000 = vunpack.c.l.b16 %v568
      %v2001 = vunpack.c.l.b16 %v569
      %v2002 = vunpack.c.l.b16 %v570
      %v2003 = vunpack.c.l.b16 %v571
      %v2004 = vunpack.c.l.b16 %v572
      %v2005 = vunpack.c.l.b16 %v573
      %v2006 = vunpack.c.l.b16 %v574
      %v2007 = vunpack.c.l.b16 %v575
      %v2008 = vunpack.c.l.b16 %v576
      %v2009 = vunpack.c.l.b16 %v577
      %v2010 = vunpack.c.l.b16 %v578
      %v2011 = vunpack.c.l.b16 %v579
      %v2012 = vunpack.c.l.b16 %v580
      %v2013 = vunpack.c.l.b16 %v581
      %v2014 = vunpack.c.l.b16 %v582
      %v2015 = vunpack.c.l.b16 %v583
      %v2016 = vunpack.c.l.b16 %v584
      %v2017 = vunpack.c.l.b16 %v585
      %v2018 = vunpack.c.l.b16 %v586
      %v2019 = vunpack.c.l.b16 %v587
      %v2020 = vunpack.c.l.b16 %v588
      %v2021 = vunpack.c.l.b16 %v589
      %v2022 = vunpack.c.l.b16 %v590
      %v2023 = vunpack.c.l.b16 %v591
      %v2024 = vunpack.c.l.b16 %v592
      %v2025 = vunpack.c.l.b16 %v593
      %v2026 = vunpack.c.l.b16 %v594
      %v2027 = vunpack.c.l.b16 %v595
      %v2028 = vunpack.c.l.b16 %v596
      %v2029 = vunpack.c.l.b16 %v597
      %v2030 = vunpack.c.l.b16 %v598
      %v2031 = vunpack.c.l.b16 %v599
      %v2032 = vunpack.c.l.b16 %v600
      %v2033 = vunpack.c.l.b16 %v601
      %v2034 = vunpack.c.l.b16 %v602
      %v2035 = vunpack.c.l.b16 %v603
      %v2036 = vunpack.c.l.b16 %v604
      %v2037 = vunpack.c.l.b16 %v605
      %v2038 = vunpack.c.l.b16 %v606
      %v2039 = vunpack.c.l.b16 %v607
      %v2040 = vunpack.c.l.b16 %v608
      %v2041 = vunpack.c.l.b16 %v609
      %v2042 = vunpack.c.l.b16 %v610
      %v2043 = vunpack.c.l.b16 %v611
      %v2044 = vunpack.c.l.b16 %v612
      %v2045 = vunpack.c.l.b16 %v613
      %v2046 = vunpack.c.l.b16 %v614
      %v2047 = vunpack.c.l.b16 %v615
      %v2048 = vunpack.c.l.b16 %v616
      %v2049 = vunpack.c.l.b16 %v617
      %v2050 = vunpack.c.l.b16 %v618
      %v2051 = vunpack.c.l.b16 %v619
      %v2052 = vunpack.c.l.b16 %v620
      %v2053 = vunpack.c.l.b16 %v621
      %v2054 = vunpack.c.l.b16 %v622
      %v2055 = vunpack.c.l.b16 %v623
      %v2056 = vunpack.c.l.b16 %v624
      %v2057 = vunpack.c.l.b16 %v625
      %v2058 = vunpack.c.l.b16 %v626
      %v2059 = vunpack.c.l.b16 %v627
      %v2060 = vunpack.c.l.b16 %v628
      %v2061 = vunpack.c.l.b16 %v629
      %v2062 = vunpack.c.l.b16 %v630
      %v2063 = vunpack.c.l.b16 %v631
      %v2064 = vunpack.c.l.b16 %v632
      %v2065 = vunpack.c.l.b16 %v633
      %v2066 = vunpack.c.l.b16 %v634
      %v2067 = vunpack.c.l.b16 %v635
      %v2068 = vunpack.c.l.b16 %v636
      %v2069 = vunpack.c.l.b16 %v637
      %v2070 = vunpack.c.l.b16 %v638
      %v2071 = vunpack.c.l.b16 %v639
      %v2072 = vunpack.c.l.b16 %v640
      %v2073 = vunpack.c.l.b16 %v641
      %v2074 = vunpack.c.l.b16 %v642
      %v2075 = vunpack.c.l.b16 %v643
      %v2076 = vunpack.c.l.b16 %v644
      %v2077 = vunpack.c.l.b16 %v645
      %v2078 = vunpack.c.l.b16 %v646
      %v2079 = vunpack.c.l.b16 %v647
      %v2080 = vunpack.c.l.b16 %v648
      %v2081 = vunpack.c.l.b16 %v649
      %v2082 = vunpack.c.l.b16 %v650
      %v2083 = vunpack.c.l.b16 %v651
      %v2084 = vunpack.c.l.b16 %v652
      %v2085 = vunpack.c.l.b16 %v653
      %v2086 = vunpack.c.l.b16 %v654
      %v2087 = vunpack.c.l.b16 %v655
      %v2088 = vunpack.c.l.b16 %v656
      %v2089 = vunpack.c.l.b16 %v657
      %v2090 = vunpack.c.l.b16 %v658
      %v2091 = vunpack.c.l.b16 %v659
      %v2092 = vunpack.c.l.b16 %v660
      %v2093 = vunpack.c.l.b16 %v661
      %v2094 = vunpack.c.l.b16 %v662
      %v2095 = vunpack.c.l.b16 %v663
      %v2096 = vunpack.c.l.b16 %v664
      %v2097 = vunpack.c.l.b16 %v665
      %v2098 = vunpack.c.l.b16 %v666
      %v2099 = vunpack.c.l.b16 %v667
      %v2100 = vunpack.c.l.b16 %v668
      %v2101 = vunpack.c.l.b16 %v669
      %v2102 = vunpack.c.l.b16 %v670
      %v2103 = vunpack.c.l.b16 %v671
      %v2104 = vunpack.c.l.b16 %v672
      %v2105 = vunpack.c.l.b16 %v673
      %v2106 = vunpack.c.l.b16 %v674
      %v2107 = vunpack.c.l.b16 %v675
      %v2108 = vunpack.c.l.b16 %v676
      %v2109 = vunpack.c.l.b16 %v677
      %v2110 = vunpack.c.l.b16 %v678
      %v2111 = vunpack.c.l.b16 %v679
      %v2112 = vunpack.c.l.b16 %v680
      %v2113 = vunpack.c.l.b16 %v681
      %v2114 = vunpack.c.l.b16 %v682
      %v2115 = vunpack.c.l.b16 %v683
      %v2116 = vunpack.c.l.b16 %v684
      %v2117 = vunpack.c.l.b16 %v685
      %v2118 = vunpack.c.l.b16 %v686
      %v2119 = vunpack.c.l.b16 %v687
      %v2120 = vunpack.c.l.b16 %v688
      %v2121 = vunpack.c.l.b16 %v689
      %v2122 = vpack.c.b16 %v1927, %v1926
      %v2123 = vpack.c.b16 %v1929, %v1928
      %v2124 = vpack.c.b16 %v1931, %v1930
      %v2125 = vpack.c.b16 %v1933, %v1932
      %v2126 = vpack.c.b16 %v1935, %v1934
      %v2127 = vpack.c.b16 %v1937, %v1936
      %v2128 = vpack.c.b16 %v1939, %v1938
      %v2129 = vpack.c.b16 %v1941, %v1940
      %v2130 = vpack.c.b16 %v1943, %v1942
      %v2131 = vpack.c.b16 %v1945, %v1944
      %v2132 = vpack.c.b16 %v1947, %v1946
      %v2133 = vpack.c.b16 %v1949, %v1948
      %v2134 = vpack.c.b16 %v1951, %v1950
      %v2135 = vpack.c.b16 %v1953, %v1952
      %v2136 = vpack.c.b16 %v1955, %v1954
      %v2137 = vpack.c.b16 %v1957, %v1956
      %v2138 = vpack.c.b16 %v1959, %v1958
      %v2139 = vpack.c.b16 %v1961, %v1960
      %v2140 = vpack.c.b16 %v1963, %v1962
      %v2141 = vpack.c.b16 %v1965, %v1964
      %v2142 = vpack.c.b16 %v1967, %v1966
      %v2143 = vpack.c.b16 %v1969, %v1968
      %v2144 = vpack.c.b16 %v1971, %v1970
      %v2145 = vpack.c.b16 %v1973, %v1972
      %v2146 = vpack.c.b16 %v1975, %v1974
      %v2147 = vpack.c.b16 %v1977, %v1976
      %v2148 = vpack.c.b16 %v1979, %v1978
      %v2149 = vpack.c.b16 %v1981, %v1980
      %v2150 = vpack.c.b16 %v1983, %v1982
      %v2151 = vpack.c.b16 %v1985, %v1984
      %v2152 = vpack.c.b16 %v1987, %v1986
      %v2153 = vpack.c.b16 %v1989, %v1988
      %v2154 = vpack.c.b16 %v1991, %v1990
      %v2155 = vpack.c.b16 %v1993, %v1992
      %v2156 = vpack.c.b16 %v1995, %v1994
      %v2157 = vpack.c.b16 %v1997, %v1996
      %v2158 = vpack.c.b16 %v1999, %v1998
      %v2159 = vpack.c.b16 %v2001, %v2000
      %v2160 = vpack.c.b16 %v2003, %v2002
      %v2161 = vpack.c.b16 %v2005, %v2004
      %v2162 = vpack.c.b16 %v2007, %v2006
      %v2163 = vpack.c.b16 %v2009, %v2008
      %v2164 = vpack.c.b16 %v2011, %v2010
      %v2165 = vpack.c.b16 %v2013, %v2012
      %v2166 = vpack.c.b16 %v2015, %v2014
      %v2167 = vpack.c.b16 %v2017, %v2016
      %v2168 = vpack.c.b16 %v2019, %v2018
      %v2169 = vpack.c.b16 %v2021, %v2020
      %v2170 = vpack.c.b16 %v2023, %v2022
      %v2171 = vpack.c.b16 %v2025, %v2024
      %v2172 = vpack.c.b16 %v2027, %v2026
      %v2173 = vpack.c.b16 %v2029, %v2028
      %v2174 = vpack.c.b16 %v2031, %v2030
      %v2175 = vpack.c.b16 %v2033, %v2032
      %v2176 = vpack.c.b16 %v2035, %v2034
      %v2177 = vpack.c.b16 %v2037, %v2036
      %v2178 = vpack.c.b16 %v2039, %v2038
      %v2179 = vpack.c.b16 %v2041, %v2040
      %v2180 = vpack.c.b16 %v2043, %v2042
      %v2181 = vpack.c.b16 %v2045, %v2044
      %v2182 = vpack.c.b16 %v2047, %v2046
      %v2183 = vpack.c.b16 %v2049, %v2048
      %v2184 = vpack.c.b16 %v2051, %v2050
      %v2185 = vpack.c.b16 %v2053, %v2052
      %v2186 = vpack.c.b16 %v2055, %v2054
      %v2187 = vpack.c.b16 %v2057, %v2056
      %v2188 = vpack.c.b16 %v2059, %v2058
      %v2189 = vpack.c.b16 %v2061, %v2060
      %v2190 = vpack.c.b16 %v2063, %v2062
      %v2191 = vpack.c.b16 %v2065, %v2064
      %v2192 = vpack.c.b16 %v2067, %v2066
      %v2193 = vpack.c.b16 %v2069, %v2068
      %v2194 = vpack.c.b16 %v2071, %v2070
      %v2195 = vpack.c.b16 %v2073, %v2072
      %v2196 = vpack.c.b16 %v2075, %v2074
      %v2197 = vpack.c.b16 %v2077, %v2076
      %v2198 = vpack.c.b16 %v2079, %v2078
      %v2199 = vpack.c.b16 %v2081, %v2080
      %v2200 = vpack.c.b16 %v2083, %v2082
      %v2201 = vpack.c.b16 %v2085, %v2084
      %v2202 = vpack.c.b16 %v2087, %v2086
      %v2203 = vpack.c.b16 %v2089, %v2088
      %v2204 = vpack.c.b16 %v2091, %v2090
      %v2205 = vpack.c.b16 %v2093, %v2092
      %v2206 = vpack.c.b16 %v2095, %v2094
      %v2207 = vpack.c.b16 %v2097, %v2096
      %v2208 = vpack.c.b16 %v2099, %v2098
      %v2209 = vpack.c.b16 %v2101, %v2100
      %v2210 = vpack.c.b16 %v2103, %v2102
      %v2211 = vpack.c.b16 %v2105, %v2104
      %v2212 = vpack.c.b16 %v2107, %v2106
      %v2213 = vpack.c.b16 %v2109, %v2108
      %v2214 = vpack.c.b16 %v2111, %v2110
      %v2215 = vpack.c.b16 %v2113, %v2112
      %v2216 = vpack.c.b16 %v2115, %v2114
      %v2217 = vpack.c.b16 %v2117, %v2116
      %v2218 = vpack.c.b16 %v2119, %v2118
      %v2219 = vpack.c.b16 %v2121, %v2120
      %vm2318 = vcmask 261120
      %v2320 = vsel %vm2318, %v1342, 0
      %v2323 = vsel %vm2318, %v1355, 0
      %v2326 = vsel %vm2318, %v1368, 0
      %v2329 = vsel %vm2318, %v1381, 0
      %v2332 = vsel %vm2318, %v1394, 0
      %v2335 = vsel %vm2318, %v1407, 0
      %v2338 = vsel %vm2318, %v1420, 0
      %v2341 = vsel %vm2318, %v1433, 0
      %v2344 = vsel %vm2318, %v1446, 0
      %v2347 = vsel %vm2318, %v1459, 0
      %v2350 = vsel %vm2318, %v1472, 0
      %v2353 = vsel %vm2318, %v1485, 0
      %v2356 = vsel %vm2318, %v1498, 0
      %v2359 = vsel %vm2318, %v1511, 0
      %v2362 = vsel %vm2318, %v1524, 0
      %v2365 = vsel %vm2318, %v1537, 0
      %2367 = vmatpush.bf16.msra.mxu0 %v2129
      %2368 = vmatpush.bf16.msra.mxu0 %v2128
      %2369 = vmatpush.bf16.msra.mxu0 %v2127
      %2370 = vmatpush.bf16.msra.mxu0 %v2126
      %2371 = vmatpush.bf16.msra.mxu0 %v2125
      %2372 = vmatpush.bf16.msra.mxu0 %v2124
      %2373 = vmatpush.bf16.msra.mxu0 %v2123
      %2374 = vmatpush.bf16.msra.mxu0 %v2122
      %2375 = vmatmul.bf16.gmra.mxu0 %v1330
      %v2376 = vpop.f32.mrf.mxu0
      %v2377 = vadd.f32 0.0, %v2376
      %v2378 = vpop.f32.mrf.mxu0
      %v2379 = vadd.f32 0.0, %v2378
      %2380 = vmatmul.bf16.gmra.mxu0 %v1343
      %v2381 = vpop.f32.mrf.mxu0
      %v2382 = vadd.f32 0.0, %v2381
      %v2383 = vpop.f32.mrf.mxu0
      %v2384 = vadd.f32 0.0, %v2383
      %2385 = vmatmul.bf16.gmra.mxu0 %v1356
      %v2386 = vpop.f32.mrf.mxu0
      %v2387 = vadd.f32 0.0, %v2386
      %v2388 = vpop.f32.mrf.mxu0
      %v2389 = vadd.f32 0.0, %v2388
      %2390 = vmatmul.bf16.gmra.mxu0 %v1369
      %v2391 = vpop.f32.mrf.mxu0
      %v2392 = vadd.f32 0.0, %v2391
      %v2393 = vpop.f32.mrf.mxu0
      %v2394 = vadd.f32 0.0, %v2393
      %2395 = vmatmul.bf16.gmra.mxu0 %v1382
      %v2396 = vpop.f32.mrf.mxu0
      %v2397 = vadd.f32 0.0, %v2396
      %v2398 = vpop.f32.mrf.mxu0
      %v2399 = vadd.f32 0.0, %v2398
      %2400 = vmatmul.bf16.gmra.mxu0 %v1395
      %v2401 = vpop.f32.mrf.mxu0
      %v2402 = vadd.f32 0.0, %v2401
      %v2403 = vpop.f32.mrf.mxu0
      %v2404 = vadd.f32 0.0, %v2403
      %2405 = vmatmul.bf16.gmra.mxu0 %v1408
      %v2406 = vpop.f32.mrf.mxu0
      %v2407 = vadd.f32 0.0, %v2406
      %v2408 = vpop.f32.mrf.mxu0
      %v2409 = vadd.f32 0.0, %v2408
      %2410 = vmatmul.bf16.gmra.mxu0 %v1421
      %v2411 = vpop.f32.mrf.mxu0
      %v2412 = vadd.f32 0.0, %v2411
      %v2413 = vpop.f32.mrf.mxu0
      %v2414 = vadd.f32 0.0, %v2413
      %2415 = vmatmul.bf16.gmra.mxu0 %v1434
      %v2416 = vpop.f32.mrf.mxu0
      %v2417 = vadd.f32 0.0, %v2416
      %v2418 = vpop.f32.mrf.mxu0
      %v2419 = vadd.f32 0.0, %v2418
      %2420 = vmatmul.bf16.gmra.mxu0 %v1447
      %v2421 = vpop.f32.mrf.mxu0
      %v2422 = vadd.f32 0.0, %v2421
      %v2423 = vpop.f32.mrf.mxu0
      %v2424 = vadd.f32 0.0, %v2423
      %2425 = vmatmul.bf16.gmra.mxu0 %v1460
      %v2426 = vpop.f32.mrf.mxu0
      %v2427 = vadd.f32 0.0, %v2426
      %v2428 = vpop.f32.mrf.mxu0
      %v2429 = vadd.f32 0.0, %v2428
      %2430 = vmatmul.bf16.gmra.mxu0 %v1473
      %v2431 = vpop.f32.mrf.mxu0
      %v2432 = vadd.f32 0.0, %v2431
      %v2433 = vpop.f32.mrf.mxu0
      %v2434 = vadd.f32 0.0, %v2433
      %2435 = vmatmul.bf16.gmra.mxu0 %v1486
      %v2436 = vpop.f32.mrf.mxu0
      %v2437 = vadd.f32 0.0, %v2436
      %v2438 = vpop.f32.mrf.mxu0
      %v2439 = vadd.f32 0.0, %v2438
      %2440 = vmatmul.bf16.gmra.mxu0 %v1499
      %v2441 = vpop.f32.mrf.mxu0
      %v2442 = vadd.f32 0.0, %v2441
      %v2443 = vpop.f32.mrf.mxu0
      %v2444 = vadd.f32 0.0, %v2443
      %2445 = vmatmul.bf16.gmra.mxu0 %v1512
      %v2446 = vpop.f32.mrf.mxu0
      %v2447 = vadd.f32 0.0, %v2446
      %v2448 = vpop.f32.mrf.mxu0
      %v2449 = vadd.f32 0.0, %v2448
      %2450 = vmatmul.bf16.gmra.mxu0 %v1525
      %v2451 = vpop.f32.mrf.mxu0
      %v2452 = vadd.f32 0.0, %v2451
      %v2453 = vpop.f32.mrf.mxu0
      %v2454 = vadd.f32 0.0, %v2453
      %2455 = vdwg.mxu0
      %2456 = vmatpush.bf16.msra.mxu0 %v2137
      %2457 = vmatpush.bf16.msra.mxu0 %v2136
      %2458 = vmatpush.bf16.msra.mxu0 %v2135
      %2459 = vmatpush.bf16.msra.mxu0 %v2134
      %2460 = vmatpush.bf16.msra.mxu0 %v2133
      %2461 = vmatpush.bf16.msra.mxu0 %v2132
      %2462 = vmatpush.bf16.msra.mxu0 %v2131
      %2463 = vmatpush.bf16.msra.mxu0 %v2130
      %2464 = vmatmul.bf16.gmra.mxu0 %v1331
      %v2465 = vpop.f32.mrf.mxu0
      %v2466 = vadd.f32 %v2377, %v2465
      %v2467 = vpop.f32.mrf.mxu0
      %v2468 = vadd.f32 %v2379, %v2467
      %2469 = vmatmul.bf16.gmra.mxu0 %v1344
      %v2470 = vpop.f32.mrf.mxu0
      %v2471 = vadd.f32 %v2382, %v2470
      %v2472 = vpop.f32.mrf.mxu0
      %v2473 = vadd.f32 %v2384, %v2472
      %2474 = vmatmul.bf16.gmra.mxu0 %v1357
      %v2475 = vpop.f32.mrf.mxu0
      %v2476 = vadd.f32 %v2387, %v2475
      %v2477 = vpop.f32.mrf.mxu0
      %v2478 = vadd.f32 %v2389, %v2477
      %2479 = vmatmul.bf16.gmra.mxu0 %v1370
      %v2480 = vpop.f32.mrf.mxu0
      %v2481 = vadd.f32 %v2392, %v2480
      %v2482 = vpop.f32.mrf.mxu0
      %v2483 = vadd.f32 %v2394, %v2482
      %2484 = vmatmul.bf16.gmra.mxu0 %v1383
      %v2485 = vpop.f32.mrf.mxu0
      %v2486 = vadd.f32 %v2397, %v2485
      %v2487 = vpop.f32.mrf.mxu0
      %v2488 = vadd.f32 %v2399, %v2487
      %2489 = vmatmul.bf16.gmra.mxu0 %v1396
      %v2490 = vpop.f32.mrf.mxu0
      %v2491 = vadd.f32 %v2402, %v2490
      %v2492 = vpop.f32.mrf.mxu0
      %v2493 = vadd.f32 %v2404, %v2492
      %2494 = vmatmul.bf16.gmra.mxu0 %v1409
      %v2495 = vpop.f32.mrf.mxu0
      %v2496 = vadd.f32 %v2407, %v2495
      %v2497 = vpop.f32.mrf.mxu0
      %v2498 = vadd.f32 %v2409, %v2497
      %2499 = vmatmul.bf16.gmra.mxu0 %v1422
      %v2500 = vpop.f32.mrf.mxu0
      %v2501 = vadd.f32 %v2412, %v2500
      %v2502 = vpop.f32.mrf.mxu0
      %v2503 = vadd.f32 %v2414, %v2502
      %2504 = vmatmul.bf16.gmra.mxu0 %v1435
      %v2505 = vpop.f32.mrf.mxu0
      %v2506 = vadd.f32 %v2417, %v2505
      %v2507 = vpop.f32.mrf.mxu0
      %v2508 = vadd.f32 %v2419, %v2507
      %2509 = vmatmul.bf16.gmra.mxu0 %v1448
      %v2510 = vpop.f32.mrf.mxu0
      %v2511 = vadd.f32 %v2422, %v2510
      %v2512 = vpop.f32.mrf.mxu0
      %v2513 = vadd.f32 %v2424, %v2512
      %2514 = vmatmul.bf16.gmra.mxu0 %v1461
      %v2515 = vpop.f32.mrf.mxu0
      %v2516 = vadd.f32 %v2427, %v2515
      %v2517 = vpop.f32.mrf.mxu0
      %v2518 = vadd.f32 %v2429, %v2517
      %2519 = vmatmul.bf16.gmra.mxu0 %v1474
      %v2520 = vpop.f32.mrf.mxu0
      %v2521 = vadd.f32 %v2432, %v2520
      %v2522 = vpop.f32.mrf.mxu0
      %v2523 = vadd.f32 %v2434, %v2522
      %2524 = vmatmul.bf16.gmra.mxu0 %v1487
      %v2525 = vpop.f32.mrf.mxu0
      %v2526 = vadd.f32 %v2437, %v2525
      %v2527 = vpop.f32.mrf.mxu0
      %v2528 = vadd.f32 %v2439, %v2527
      %2529 = vmatmul.bf16.gmra.mxu0 %v1500
      %v2530 = vpop.f32.mrf.mxu0
      %v2531 = vadd.f32 %v2442, %v2530
      %v2532 = vpop.f32.mrf.mxu0
      %v2533 = vadd.f32 %v2444, %v2532
      %2534 = vmatmul.bf16.gmra.mxu0 %v1513
      %v2535 = vpop.f32.mrf.mxu0
      %v2536 = vadd.f32 %v2447, %v2535
      %v2537 = vpop.f32.mrf.mxu0
      %v2538 = vadd.f32 %v2449, %v2537
      %2539 = vmatmul.bf16.gmra.mxu0 %v1526
      %v2540 = vpop.f32.mrf.mxu0
      %v2541 = vadd.f32 %v2452, %v2540
      %v2542 = vpop.f32.mrf.mxu0
      %v2543 = vadd.f32 %v2454, %v2542
      %2544 = vdwg.mxu0
      %2545 = vmatpush.bf16.msra.mxu0 %v2145
      %2546 = vmatpush.bf16.msra.mxu0 %v2144
      %2547 = vmatpush.bf16.msra.mxu0 %v2143
      %2548 = vmatpush.bf16.msra.mxu0 %v2142
      %2549 = vmatpush.bf16.msra.mxu0 %v2141
      %2550 = vmatpush.bf16.msra.mxu0 %v2140
      %2551 = vmatpush.bf16.msra.mxu0 %v2139
      %2552 = vmatpush.bf16.msra.mxu0 %v2138
      %2553 = vmatmul.bf16.gmra.mxu0 %v1332
      %v2554 = vpop.f32.mrf.mxu0
      %v2555 = vadd.f32 %v2466, %v2554
      %v2556 = vpop.f32.mrf.mxu0
      %v2557 = vadd.f32 %v2468, %v2556
      %2558 = vmatmul.bf16.gmra.mxu0 %v1345
      %v2559 = vpop.f32.mrf.mxu0
      %v2560 = vadd.f32 %v2471, %v2559
      %v2561 = vpop.f32.mrf.mxu0
      %v2562 = vadd.f32 %v2473, %v2561
      %2563 = vmatmul.bf16.gmra.mxu0 %v1358
      %v2564 = vpop.f32.mrf.mxu0
      %v2565 = vadd.f32 %v2476, %v2564
      %v2566 = vpop.f32.mrf.mxu0
      %v2567 = vadd.f32 %v2478, %v2566
      %2568 = vmatmul.bf16.gmra.mxu0 %v1371
      %v2569 = vpop.f32.mrf.mxu0
      %v2570 = vadd.f32 %v2481, %v2569
      %v2571 = vpop.f32.mrf.mxu0
      %v2572 = vadd.f32 %v2483, %v2571
      %2573 = vmatmul.bf16.gmra.mxu0 %v1384
      %v2574 = vpop.f32.mrf.mxu0
      %v2575 = vadd.f32 %v2486, %v2574
      %v2576 = vpop.f32.mrf.mxu0
      %v2577 = vadd.f32 %v2488, %v2576
      %2578 = vmatmul.bf16.gmra.mxu0 %v1397
      %v2579 = vpop.f32.mrf.mxu0
      %v2580 = vadd.f32 %v2491, %v2579
      %v2581 = vpop.f32.mrf.mxu0
      %v2582 = vadd.f32 %v2493, %v2581
      %2583 = vmatmul.bf16.gmra.mxu0 %v1410
      %v2584 = vpop.f32.mrf.mxu0
      %v2585 = vadd.f32 %v2496, %v2584
      %v2586 = vpop.f32.mrf.mxu0
      %v2587 = vadd.f32 %v2498, %v2586
      %2588 = vmatmul.bf16.gmra.mxu0 %v1423
      %v2589 = vpop.f32.mrf.mxu0
      %v2590 = vadd.f32 %v2501, %v2589
      %v2591 = vpop.f32.mrf.mxu0
      %v2592 = vadd.f32 %v2503, %v2591
      %2593 = vmatmul.bf16.gmra.mxu0 %v1436
      %v2594 = vpop.f32.mrf.mxu0
      %v2595 = vadd.f32 %v2506, %v2594
      %v2596 = vpop.f32.mrf.mxu0
      %v2597 = vadd.f32 %v2508, %v2596
      %2598 = vmatmul.bf16.gmra.mxu0 %v1449
      %v2599 = vpop.f32.mrf.mxu0
      %v2600 = vadd.f32 %v2511, %v2599
      %v2601 = vpop.f32.mrf.mxu0
      %v2602 = vadd.f32 %v2513, %v2601
      %2603 = vmatmul.bf16.gmra.mxu0 %v1462
      %v2604 = vpop.f32.mrf.mxu0
      %v2605 = vadd.f32 %v2516, %v2604
      %v2606 = vpop.f32.mrf.mxu0
      %v2607 = vadd.f32 %v2518, %v2606
      %2608 = vmatmul.bf16.gmra.mxu0 %v1475
      %v2609 = vpop.f32.mrf.mxu0
      %v2610 = vadd.f32 %v2521, %v2609
      %v2611 = vpop.f32.mrf.mxu0
      %v2612 = vadd.f32 %v2523, %v2611
      %2613 = vmatmul.bf16.gmra.mxu0 %v1488
      %v2614 = vpop.f32.mrf.mxu0
      %v2615 = vadd.f32 %v2526, %v2614
      %v2616 = vpop.f32.mrf.mxu0
      %v2617 = vadd.f32 %v2528, %v2616
      %2618 = vmatmul.bf16.gmra.mxu0 %v1501
      %v2619 = vpop.f32.mrf.mxu0
      %v2620 = vadd.f32 %v2531, %v2619
      %v2621 = vpop.f32.mrf.mxu0
      %v2622 = vadd.f32 %v2533, %v2621
      %2623 = vmatmul.bf16.gmra.mxu0 %v1514
      %v2624 = vpop.f32.mrf.mxu0
      %v2625 = vadd.f32 %v2536, %v2624
      %v2626 = vpop.f32.mrf.mxu0
      %v2627 = vadd.f32 %v2538, %v2626
      %2628 = vmatmul.bf16.gmra.mxu0 %v1527
      %v2629 = vpop.f32.mrf.mxu0
      %v2630 = vadd.f32 %v2541, %v2629
      %v2631 = vpop.f32.mrf.mxu0
      %v2632 = vadd.f32 %v2543, %v2631
      %2633 = vdwg.mxu0
      %2634 = vmatpush.bf16.msra.mxu0 %v2153
      %2635 = vmatpush.bf16.msra.mxu0 %v2152
      %2636 = vmatpush.bf16.msra.mxu0 %v2151
      %2637 = vmatpush.bf16.msra.mxu0 %v2150
      %2638 = vmatpush.bf16.msra.mxu0 %v2149
      %2639 = vmatpush.bf16.msra.mxu0 %v2148
      %2640 = vmatpush.bf16.msra.mxu0 %v2147
      %2641 = vmatpush.bf16.msra.mxu0 %v2146
      %2642 = vmatmul.bf16.gmra.mxu0 %v1333
      %v2643 = vpop.f32.mrf.mxu0
      %v2644 = vadd.f32 %v2555, %v2643
      %v2645 = vpop.f32.mrf.mxu0
      %v2646 = vadd.f32 %v2557, %v2645
      %2647 = vmatmul.bf16.gmra.mxu0 %v1346
      %v2648 = vpop.f32.mrf.mxu0
      %v2649 = vadd.f32 %v2560, %v2648
      %v2650 = vpop.f32.mrf.mxu0
      %v2651 = vadd.f32 %v2562, %v2650
      %2652 = vmatmul.bf16.gmra.mxu0 %v1359
      %v2653 = vpop.f32.mrf.mxu0
      %v2654 = vadd.f32 %v2565, %v2653
      %v2655 = vpop.f32.mrf.mxu0
      %v2656 = vadd.f32 %v2567, %v2655
      %2657 = vmatmul.bf16.gmra.mxu0 %v1372
      %v2658 = vpop.f32.mrf.mxu0
      %v2659 = vadd.f32 %v2570, %v2658
      %v2660 = vpop.f32.mrf.mxu0
      %v2661 = vadd.f32 %v2572, %v2660
      %2662 = vmatmul.bf16.gmra.mxu0 %v1385
      %v2663 = vpop.f32.mrf.mxu0
      %v2664 = vadd.f32 %v2575, %v2663
      %v2665 = vpop.f32.mrf.mxu0
      %v2666 = vadd.f32 %v2577, %v2665
      %2667 = vmatmul.bf16.gmra.mxu0 %v1398
      %v2668 = vpop.f32.mrf.mxu0
      %v2669 = vadd.f32 %v2580, %v2668
      %v2670 = vpop.f32.mrf.mxu0
      %v2671 = vadd.f32 %v2582, %v2670
      %2672 = vmatmul.bf16.gmra.mxu0 %v1411
      %v2673 = vpop.f32.mrf.mxu0
      %v2674 = vadd.f32 %v2585, %v2673
      %v2675 = vpop.f32.mrf.mxu0
      %v2676 = vadd.f32 %v2587, %v2675
      %2677 = vmatmul.bf16.gmra.mxu0 %v1424
      %v2678 = vpop.f32.mrf.mxu0
      %v2679 = vadd.f32 %v2590, %v2678
      %v2680 = vpop.f32.mrf.mxu0
      %v2681 = vadd.f32 %v2592, %v2680
      %2682 = vmatmul.bf16.gmra.mxu0 %v1437
      %v2683 = vpop.f32.mrf.mxu0
      %v2684 = vadd.f32 %v2595, %v2683
      %v2685 = vpop.f32.mrf.mxu0
      %v2686 = vadd.f32 %v2597, %v2685
      %2687 = vmatmul.bf16.gmra.mxu0 %v1450
      %v2688 = vpop.f32.mrf.mxu0
      %v2689 = vadd.f32 %v2600, %v2688
      %v2690 = vpop.f32.mrf.mxu0
      %v2691 = vadd.f32 %v2602, %v2690
      %2692 = vmatmul.bf16.gmra.mxu0 %v1463
      %v2693 = vpop.f32.mrf.mxu0
      %v2694 = vadd.f32 %v2605, %v2693
      %v2695 = vpop.f32.mrf.mxu0
      %v2696 = vadd.f32 %v2607, %v2695
      %2697 = vmatmul.bf16.gmra.mxu0 %v1476
      %v2698 = vpop.f32.mrf.mxu0
      %v2699 = vadd.f32 %v2610, %v2698
      %v2700 = vpop.f32.mrf.mxu0
      %v2701 = vadd.f32 %v2612, %v2700
      %2702 = vmatmul.bf16.gmra.mxu0 %v1489
      %v2703 = vpop.f32.mrf.mxu0
      %v2704 = vadd.f32 %v2615, %v2703
      %v2705 = vpop.f32.mrf.mxu0
      %v2706 = vadd.f32 %v2617, %v2705
      %2707 = vmatmul.bf16.gmra.mxu0 %v1502
      %v2708 = vpop.f32.mrf.mxu0
      %v2709 = vadd.f32 %v2620, %v2708
      %v2710 = vpop.f32.mrf.mxu0
      %v2711 = vadd.f32 %v2622, %v2710
      %2712 = vmatmul.bf16.gmra.mxu0 %v1515
      %v2713 = vpop.f32.mrf.mxu0
      %v2714 = vadd.f32 %v2625, %v2713
      %v2715 = vpop.f32.mrf.mxu0
      %v2716 = vadd.f32 %v2627, %v2715
      %2717 = vmatmul.bf16.gmra.mxu0 %v1528
      %v2718 = vpop.f32.mrf.mxu0
      %v2719 = vadd.f32 %v2630, %v2718
      %v2720 = vpop.f32.mrf.mxu0
      %v2721 = vadd.f32 %v2632, %v2720
      %2722 = vdwg.mxu0
      %2723 = vmatpush.bf16.msra.mxu0 %v2161
      %2724 = vmatpush.bf16.msra.mxu0 %v2160
      %2725 = vmatpush.bf16.msra.mxu0 %v2159
      %2726 = vmatpush.bf16.msra.mxu0 %v2158
      %2727 = vmatpush.bf16.msra.mxu0 %v2157
      %2728 = vmatpush.bf16.msra.mxu0 %v2156
      %2729 = vmatpush.bf16.msra.mxu0 %v2155
      %2730 = vmatpush.bf16.msra.mxu0 %v2154
      %2731 = vmatmul.bf16.gmra.mxu0 %v1334
      %v2732 = vpop.f32.mrf.mxu0
      %v2733 = vadd.f32 %v2644, %v2732
      %v2734 = vpop.f32.mrf.mxu0
      %v2735 = vadd.f32 %v2646, %v2734
      %2736 = vmatmul.bf16.gmra.mxu0 %v1347
      %v2737 = vpop.f32.mrf.mxu0
      %v2738 = vadd.f32 %v2649, %v2737
      %v2739 = vpop.f32.mrf.mxu0
      %v2740 = vadd.f32 %v2651, %v2739
      %2741 = vmatmul.bf16.gmra.mxu0 %v1360
      %v2742 = vpop.f32.mrf.mxu0
      %v2743 = vadd.f32 %v2654, %v2742
      %v2744 = vpop.f32.mrf.mxu0
      %v2745 = vadd.f32 %v2656, %v2744
      %2746 = vmatmul.bf16.gmra.mxu0 %v1373
      %v2747 = vpop.f32.mrf.mxu0
      %v2748 = vadd.f32 %v2659, %v2747
      %v2749 = vpop.f32.mrf.mxu0
      %v2750 = vadd.f32 %v2661, %v2749
      %2751 = vmatmul.bf16.gmra.mxu0 %v1386
      %v2752 = vpop.f32.mrf.mxu0
      %v2753 = vadd.f32 %v2664, %v2752
      %v2754 = vpop.f32.mrf.mxu0
      %v2755 = vadd.f32 %v2666, %v2754
      %2756 = vmatmul.bf16.gmra.mxu0 %v1399
      %v2757 = vpop.f32.mrf.mxu0
      %v2758 = vadd.f32 %v2669, %v2757
      %v2759 = vpop.f32.mrf.mxu0
      %v2760 = vadd.f32 %v2671, %v2759
      %2761 = vmatmul.bf16.gmra.mxu0 %v1412
      %v2762 = vpop.f32.mrf.mxu0
      %v2763 = vadd.f32 %v2674, %v2762
      %v2764 = vpop.f32.mrf.mxu0
      %v2765 = vadd.f32 %v2676, %v2764
      %2766 = vmatmul.bf16.gmra.mxu0 %v1425
      %v2767 = vpop.f32.mrf.mxu0
      %v2768 = vadd.f32 %v2679, %v2767
      %v2769 = vpop.f32.mrf.mxu0
      %v2770 = vadd.f32 %v2681, %v2769
      %2771 = vmatmul.bf16.gmra.mxu0 %v1438
      %v2772 = vpop.f32.mrf.mxu0
      %v2773 = vadd.f32 %v2684, %v2772
      %v2774 = vpop.f32.mrf.mxu0
      %v2775 = vadd.f32 %v2686, %v2774
      %2776 = vmatmul.bf16.gmra.mxu0 %v1451
      %v2777 = vpop.f32.mrf.mxu0
      %v2778 = vadd.f32 %v2689, %v2777
      %v2779 = vpop.f32.mrf.mxu0
      %v2780 = vadd.f32 %v2691, %v2779
      %2781 = vmatmul.bf16.gmra.mxu0 %v1464
      %v2782 = vpop.f32.mrf.mxu0
      %v2783 = vadd.f32 %v2694, %v2782
      %v2784 = vpop.f32.mrf.mxu0
      %v2785 = vadd.f32 %v2696, %v2784
      %2786 = vmatmul.bf16.gmra.mxu0 %v1477
      %v2787 = vpop.f32.mrf.mxu0
      %v2788 = vadd.f32 %v2699, %v2787
      %v2789 = vpop.f32.mrf.mxu0
      %v2790 = vadd.f32 %v2701, %v2789
      %2791 = vmatmul.bf16.gmra.mxu0 %v1490
      %v2792 = vpop.f32.mrf.mxu0
      %v2793 = vadd.f32 %v2704, %v2792
      %v2794 = vpop.f32.mrf.mxu0
      %v2795 = vadd.f32 %v2706, %v2794
      %2796 = vmatmul.bf16.gmra.mxu0 %v1503
      %v2797 = vpop.f32.mrf.mxu0
      %v2798 = vadd.f32 %v2709, %v2797
      %v2799 = vpop.f32.mrf.mxu0
      %v2800 = vadd.f32 %v2711, %v2799
      %2801 = vmatmul.bf16.gmra.mxu0 %v1516
      %v2802 = vpop.f32.mrf.mxu0
      %v2803 = vadd.f32 %v2714, %v2802
      %v2804 = vpop.f32.mrf.mxu0
      %v2805 = vadd.f32 %v2716, %v2804
      %2806 = vmatmul.bf16.gmra.mxu0 %v1529
      %v2807 = vpop.f32.mrf.mxu0
      %v2808 = vadd.f32 %v2719, %v2807
      %v2809 = vpop.f32.mrf.mxu0
      %v2810 = vadd.f32 %v2721, %v2809
      %2811 = vdwg.mxu0
      %2812 = vmatpush.bf16.msra.mxu0 %v2169
      %2813 = vmatpush.bf16.msra.mxu0 %v2168
      %2814 = vmatpush.bf16.msra.mxu0 %v2167
      %2815 = vmatpush.bf16.msra.mxu0 %v2166
      %2816 = vmatpush.bf16.msra.mxu0 %v2165
      %2817 = vmatpush.bf16.msra.mxu0 %v2164
      %2818 = vmatpush.bf16.msra.mxu0 %v2163
      %2819 = vmatpush.bf16.msra.mxu0 %v2162
      %2820 = vmatmul.bf16.gmra.mxu0 %v1335
      %v2821 = vpop.f32.mrf.mxu0
      %v2822 = vadd.f32 %v2733, %v2821
      %v2823 = vpop.f32.mrf.mxu0
      %v2824 = vadd.f32 %v2735, %v2823
      %2825 = vmatmul.bf16.gmra.mxu0 %v1348
      %v2826 = vpop.f32.mrf.mxu0
      %v2827 = vadd.f32 %v2738, %v2826
      %v2828 = vpop.f32.mrf.mxu0
      %v2829 = vadd.f32 %v2740, %v2828
      %2830 = vmatmul.bf16.gmra.mxu0 %v1361
      %v2831 = vpop.f32.mrf.mxu0
      %v2832 = vadd.f32 %v2743, %v2831
      %v2833 = vpop.f32.mrf.mxu0
      %v2834 = vadd.f32 %v2745, %v2833
      %2835 = vmatmul.bf16.gmra.mxu0 %v1374
      %v2836 = vpop.f32.mrf.mxu0
      %v2837 = vadd.f32 %v2748, %v2836
      %v2838 = vpop.f32.mrf.mxu0
      %v2839 = vadd.f32 %v2750, %v2838
      %2840 = vmatmul.bf16.gmra.mxu0 %v1387
      %v2841 = vpop.f32.mrf.mxu0
      %v2842 = vadd.f32 %v2753, %v2841
      %v2843 = vpop.f32.mrf.mxu0
      %v2844 = vadd.f32 %v2755, %v2843
      %2845 = vmatmul.bf16.gmra.mxu0 %v1400
      %v2846 = vpop.f32.mrf.mxu0
      %v2847 = vadd.f32 %v2758, %v2846
      %v2848 = vpop.f32.mrf.mxu0
      %v2849 = vadd.f32 %v2760, %v2848
      %2850 = vmatmul.bf16.gmra.mxu0 %v1413
      %v2851 = vpop.f32.mrf.mxu0
      %v2852 = vadd.f32 %v2763, %v2851
      %v2853 = vpop.f32.mrf.mxu0
      %v2854 = vadd.f32 %v2765, %v2853
      %2855 = vmatmul.bf16.gmra.mxu0 %v1426
      %v2856 = vpop.f32.mrf.mxu0
      %v2857 = vadd.f32 %v2768, %v2856
      %v2858 = vpop.f32.mrf.mxu0
      %v2859 = vadd.f32 %v2770, %v2858
      %2860 = vmatmul.bf16.gmra.mxu0 %v1439
      %v2861 = vpop.f32.mrf.mxu0
      %v2862 = vadd.f32 %v2773, %v2861
      %v2863 = vpop.f32.mrf.mxu0
      %v2864 = vadd.f32 %v2775, %v2863
      %2865 = vmatmul.bf16.gmra.mxu0 %v1452
      %v2866 = vpop.f32.mrf.mxu0
      %v2867 = vadd.f32 %v2778, %v2866
      %v2868 = vpop.f32.mrf.mxu0
      %v2869 = vadd.f32 %v2780, %v2868
      %2870 = vmatmul.bf16.gmra.mxu0 %v1465
      %v2871 = vpop.f32.mrf.mxu0
      %v2872 = vadd.f32 %v2783, %v2871
      %v2873 = vpop.f32.mrf.mxu0
      %v2874 = vadd.f32 %v2785, %v2873
      %2875 = vmatmul.bf16.gmra.mxu0 %v1478
      %v2876 = vpop.f32.mrf.mxu0
      %v2877 = vadd.f32 %v2788, %v2876
      %v2878 = vpop.f32.mrf.mxu0
      %v2879 = vadd.f32 %v2790, %v2878
      %2880 = vmatmul.bf16.gmra.mxu0 %v1491
      %v2881 = vpop.f32.mrf.mxu0
      %v2882 = vadd.f32 %v2793, %v2881
      %v2883 = vpop.f32.mrf.mxu0
      %v2884 = vadd.f32 %v2795, %v2883
      %2885 = vmatmul.bf16.gmra.mxu0 %v1504
      %v2886 = vpop.f32.mrf.mxu0
      %v2887 = vadd.f32 %v2798, %v2886
      %v2888 = vpop.f32.mrf.mxu0
      %v2889 = vadd.f32 %v2800, %v2888
      %2890 = vmatmul.bf16.gmra.mxu0 %v1517
      %v2891 = vpop.f32.mrf.mxu0
      %v2892 = vadd.f32 %v2803, %v2891
      %v2893 = vpop.f32.mrf.mxu0
      %v2894 = vadd.f32 %v2805, %v2893
      %2895 = vmatmul.bf16.gmra.mxu0 %v1530
      %v2896 = vpop.f32.mrf.mxu0
      %v2897 = vadd.f32 %v2808, %v2896
      %v2898 = vpop.f32.mrf.mxu0
      %v2899 = vadd.f32 %v2810, %v2898
      %2900 = vdwg.mxu0
      %2901 = vmatpush.bf16.msra.mxu0 %v2177
      %2902 = vmatpush.bf16.msra.mxu0 %v2176
      %2903 = vmatpush.bf16.msra.mxu0 %v2175
      %2904 = vmatpush.bf16.msra.mxu0 %v2174
      %2905 = vmatpush.bf16.msra.mxu0 %v2173
      %2906 = vmatpush.bf16.msra.mxu0 %v2172
      %2907 = vmatpush.bf16.msra.mxu0 %v2171
      %2908 = vmatpush.bf16.msra.mxu0 %v2170
      %2909 = vmatmul.bf16.gmra.mxu0 %v1336
      %v2910 = vpop.f32.mrf.mxu0
      %v2911 = vadd.f32 %v2822, %v2910
      %v2912 = vpop.f32.mrf.mxu0
      %v2913 = vadd.f32 %v2824, %v2912
      %2914 = vmatmul.bf16.gmra.mxu0 %v1349
      %v2915 = vpop.f32.mrf.mxu0
      %v2916 = vadd.f32 %v2827, %v2915
      %v2917 = vpop.f32.mrf.mxu0
      %v2918 = vadd.f32 %v2829, %v2917
      %2919 = vmatmul.bf16.gmra.mxu0 %v1362
      %v2920 = vpop.f32.mrf.mxu0
      %v2921 = vadd.f32 %v2832, %v2920
      %v2922 = vpop.f32.mrf.mxu0
      %v2923 = vadd.f32 %v2834, %v2922
      %2924 = vmatmul.bf16.gmra.mxu0 %v1375
      %v2925 = vpop.f32.mrf.mxu0
      %v2926 = vadd.f32 %v2837, %v2925
      %v2927 = vpop.f32.mrf.mxu0
      %v2928 = vadd.f32 %v2839, %v2927
      %2929 = vmatmul.bf16.gmra.mxu0 %v1388
      %v2930 = vpop.f32.mrf.mxu0
      %v2931 = vadd.f32 %v2842, %v2930
      %v2932 = vpop.f32.mrf.mxu0
      %v2933 = vadd.f32 %v2844, %v2932
      %2934 = vmatmul.bf16.gmra.mxu0 %v1401
      %v2935 = vpop.f32.mrf.mxu0
      %v2936 = vadd.f32 %v2847, %v2935
      %v2937 = vpop.f32.mrf.mxu0
      %v2938 = vadd.f32 %v2849, %v2937
      %2939 = vmatmul.bf16.gmra.mxu0 %v1414
      %v2940 = vpop.f32.mrf.mxu0
      %v2941 = vadd.f32 %v2852, %v2940
      %v2942 = vpop.f32.mrf.mxu0
      %v2943 = vadd.f32 %v2854, %v2942
      %2944 = vmatmul.bf16.gmra.mxu0 %v1427
      %v2945 = vpop.f32.mrf.mxu0
      %v2946 = vadd.f32 %v2857, %v2945
      %v2947 = vpop.f32.mrf.mxu0
      %v2948 = vadd.f32 %v2859, %v2947
      %2949 = vmatmul.bf16.gmra.mxu0 %v1440
      %v2950 = vpop.f32.mrf.mxu0
      %v2951 = vadd.f32 %v2862, %v2950
      %v2952 = vpop.f32.mrf.mxu0
      %v2953 = vadd.f32 %v2864, %v2952
      %2954 = vmatmul.bf16.gmra.mxu0 %v1453
      %v2955 = vpop.f32.mrf.mxu0
      %v2956 = vadd.f32 %v2867, %v2955
      %v2957 = vpop.f32.mrf.mxu0
      %v2958 = vadd.f32 %v2869, %v2957
      %2959 = vmatmul.bf16.gmra.mxu0 %v1466
      %v2960 = vpop.f32.mrf.mxu0
      %v2961 = vadd.f32 %v2872, %v2960
      %v2962 = vpop.f32.mrf.mxu0
      %v2963 = vadd.f32 %v2874, %v2962
      %2964 = vmatmul.bf16.gmra.mxu0 %v1479
      %v2965 = vpop.f32.mrf.mxu0
      %v2966 = vadd.f32 %v2877, %v2965
      %v2967 = vpop.f32.mrf.mxu0
      %v2968 = vadd.f32 %v2879, %v2967
      %2969 = vmatmul.bf16.gmra.mxu0 %v1492
      %v2970 = vpop.f32.mrf.mxu0
      %v2971 = vadd.f32 %v2882, %v2970
      %v2972 = vpop.f32.mrf.mxu0
      %v2973 = vadd.f32 %v2884, %v2972
      %2974 = vmatmul.bf16.gmra.mxu0 %v1505
      %v2975 = vpop.f32.mrf.mxu0
      %v2976 = vadd.f32 %v2887, %v2975
      %v2977 = vpop.f32.mrf.mxu0
      %v2978 = vadd.f32 %v2889, %v2977
      %2979 = vmatmul.bf16.gmra.mxu0 %v1518
      %v2980 = vpop.f32.mrf.mxu0
      %v2981 = vadd.f32 %v2892, %v2980
      %v2982 = vpop.f32.mrf.mxu0
      %v2983 = vadd.f32 %v2894, %v2982
      %2984 = vmatmul.bf16.gmra.mxu0 %v1531
      %v2985 = vpop.f32.mrf.mxu0
      %v2986 = vadd.f32 %v2897, %v2985
      %v2987 = vpop.f32.mrf.mxu0
      %v2988 = vadd.f32 %v2899, %v2987
      %2989 = vdwg.mxu0
      %2990 = vmatpush.bf16.msra.mxu0 %v2185
      %2991 = vmatpush.bf16.msra.mxu0 %v2184
      %2992 = vmatpush.bf16.msra.mxu0 %v2183
      %2993 = vmatpush.bf16.msra.mxu0 %v2182
      %2994 = vmatpush.bf16.msra.mxu0 %v2181
      %2995 = vmatpush.bf16.msra.mxu0 %v2180
      %2996 = vmatpush.bf16.msra.mxu0 %v2179
      %2997 = vmatpush.bf16.msra.mxu0 %v2178
      %2998 = vmatmul.bf16.gmra.mxu0 %v1337
      %v2999 = vpop.f32.mrf.mxu0
      %v3000 = vadd.f32 %v2911, %v2999
      %v3001 = vpop.f32.mrf.mxu0
      %v3002 = vadd.f32 %v2913, %v3001
      %3003 = vmatmul.bf16.gmra.mxu0 %v1350
      %v3004 = vpop.f32.mrf.mxu0
      %v3005 = vadd.f32 %v2916, %v3004
      %v3006 = vpop.f32.mrf.mxu0
      %v3007 = vadd.f32 %v2918, %v3006
      %3008 = vmatmul.bf16.gmra.mxu0 %v1363
      %v3009 = vpop.f32.mrf.mxu0
      %v3010 = vadd.f32 %v2921, %v3009
      %v3011 = vpop.f32.mrf.mxu0
      %v3012 = vadd.f32 %v2923, %v3011
      %3013 = vmatmul.bf16.gmra.mxu0 %v1376
      %v3014 = vpop.f32.mrf.mxu0
      %v3015 = vadd.f32 %v2926, %v3014
      %v3016 = vpop.f32.mrf.mxu0
      %v3017 = vadd.f32 %v2928, %v3016
      %3018 = vmatmul.bf16.gmra.mxu0 %v1389
      %v3019 = vpop.f32.mrf.mxu0
      %v3020 = vadd.f32 %v2931, %v3019
      %v3021 = vpop.f32.mrf.mxu0
      %v3022 = vadd.f32 %v2933, %v3021
      %3023 = vmatmul.bf16.gmra.mxu0 %v1402
      %v3024 = vpop.f32.mrf.mxu0
      %v3025 = vadd.f32 %v2936, %v3024
      %v3026 = vpop.f32.mrf.mxu0
      %v3027 = vadd.f32 %v2938, %v3026
      %3028 = vmatmul.bf16.gmra.mxu0 %v1415
      %v3029 = vpop.f32.mrf.mxu0
      %v3030 = vadd.f32 %v2941, %v3029
      %v3031 = vpop.f32.mrf.mxu0
      %v3032 = vadd.f32 %v2943, %v3031
      %3033 = vmatmul.bf16.gmra.mxu0 %v1428
      %v3034 = vpop.f32.mrf.mxu0
      %v3035 = vadd.f32 %v2946, %v3034
      %v3036 = vpop.f32.mrf.mxu0
      %v3037 = vadd.f32 %v2948, %v3036
      %3038 = vmatmul.bf16.gmra.mxu0 %v1441
      %v3039 = vpop.f32.mrf.mxu0
      %v3040 = vadd.f32 %v2951, %v3039
      %v3041 = vpop.f32.mrf.mxu0
      %v3042 = vadd.f32 %v2953, %v3041
      %3043 = vmatmul.bf16.gmra.mxu0 %v1454
      %v3044 = vpop.f32.mrf.mxu0
      %v3045 = vadd.f32 %v2956, %v3044
      %v3046 = vpop.f32.mrf.mxu0
      %v3047 = vadd.f32 %v2958, %v3046
      %3048 = vmatmul.bf16.gmra.mxu0 %v1467
      %v3049 = vpop.f32.mrf.mxu0
      %v3050 = vadd.f32 %v2961, %v3049
      %v3051 = vpop.f32.mrf.mxu0
      %v3052 = vadd.f32 %v2963, %v3051
      %3053 = vmatmul.bf16.gmra.mxu0 %v1480
      %v3054 = vpop.f32.mrf.mxu0
      %v3055 = vadd.f32 %v2966, %v3054
      %v3056 = vpop.f32.mrf.mxu0
      %v3057 = vadd.f32 %v2968, %v3056
      %3058 = vmatmul.bf16.gmra.mxu0 %v1493
      %v3059 = vpop.f32.mrf.mxu0
      %v3060 = vadd.f32 %v2971, %v3059
      %v3061 = vpop.f32.mrf.mxu0
      %v3062 = vadd.f32 %v2973, %v3061
      %3063 = vmatmul.bf16.gmra.mxu0 %v1506
      %v3064 = vpop.f32.mrf.mxu0
      %v3065 = vadd.f32 %v2976, %v3064
      %v3066 = vpop.f32.mrf.mxu0
      %v3067 = vadd.f32 %v2978, %v3066
      %3068 = vmatmul.bf16.gmra.mxu0 %v1519
      %v3069 = vpop.f32.mrf.mxu0
      %v3070 = vadd.f32 %v2981, %v3069
      %v3071 = vpop.f32.mrf.mxu0
      %v3072 = vadd.f32 %v2983, %v3071
      %3073 = vmatmul.bf16.gmra.mxu0 %v1532
      %v3074 = vpop.f32.mrf.mxu0
      %v3075 = vadd.f32 %v2986, %v3074
      %v3076 = vpop.f32.mrf.mxu0
      %v3077 = vadd.f32 %v2988, %v3076
      %3078 = vdwg.mxu0
      %3079 = vmatpush.bf16.msra.mxu0 %v2193
      %3080 = vmatpush.bf16.msra.mxu0 %v2192
      %3081 = vmatpush.bf16.msra.mxu0 %v2191
      %3082 = vmatpush.bf16.msra.mxu0 %v2190
      %3083 = vmatpush.bf16.msra.mxu0 %v2189
      %3084 = vmatpush.bf16.msra.mxu0 %v2188
      %3085 = vmatpush.bf16.msra.mxu0 %v2187
      %3086 = vmatpush.bf16.msra.mxu0 %v2186
      %3087 = vmatmul.bf16.gmra.mxu0 %v1338
      %v3088 = vpop.f32.mrf.mxu0
      %v3089 = vadd.f32 %v3000, %v3088
      %v3090 = vpop.f32.mrf.mxu0
      %v3091 = vadd.f32 %v3002, %v3090
      %3092 = vmatmul.bf16.gmra.mxu0 %v1351
      %v3093 = vpop.f32.mrf.mxu0
      %v3094 = vadd.f32 %v3005, %v3093
      %v3095 = vpop.f32.mrf.mxu0
      %v3096 = vadd.f32 %v3007, %v3095
      %3097 = vmatmul.bf16.gmra.mxu0 %v1364
      %v3098 = vpop.f32.mrf.mxu0
      %v3099 = vadd.f32 %v3010, %v3098
      %v3100 = vpop.f32.mrf.mxu0
      %v3101 = vadd.f32 %v3012, %v3100
      %3102 = vmatmul.bf16.gmra.mxu0 %v1377
      %v3103 = vpop.f32.mrf.mxu0
      %v3104 = vadd.f32 %v3015, %v3103
      %v3105 = vpop.f32.mrf.mxu0
      %v3106 = vadd.f32 %v3017, %v3105
      %3107 = vmatmul.bf16.gmra.mxu0 %v1390
      %v3108 = vpop.f32.mrf.mxu0
      %v3109 = vadd.f32 %v3020, %v3108
      %v3110 = vpop.f32.mrf.mxu0
      %v3111 = vadd.f32 %v3022, %v3110
      %3112 = vmatmul.bf16.gmra.mxu0 %v1403
      %v3113 = vpop.f32.mrf.mxu0
      %v3114 = vadd.f32 %v3025, %v3113
      %v3115 = vpop.f32.mrf.mxu0
      %v3116 = vadd.f32 %v3027, %v3115
      %3117 = vmatmul.bf16.gmra.mxu0 %v1416
      %v3118 = vpop.f32.mrf.mxu0
      %v3119 = vadd.f32 %v3030, %v3118
      %v3120 = vpop.f32.mrf.mxu0
      %v3121 = vadd.f32 %v3032, %v3120
      %3122 = vmatmul.bf16.gmra.mxu0 %v1429
      %v3123 = vpop.f32.mrf.mxu0
      %v3124 = vadd.f32 %v3035, %v3123
      %v3125 = vpop.f32.mrf.mxu0
      %v3126 = vadd.f32 %v3037, %v3125
      %3127 = vmatmul.bf16.gmra.mxu0 %v1442
      %v3128 = vpop.f32.mrf.mxu0
      %v3129 = vadd.f32 %v3040, %v3128
      %v3130 = vpop.f32.mrf.mxu0
      %v3131 = vadd.f32 %v3042, %v3130
      %3132 = vmatmul.bf16.gmra.mxu0 %v1455
      %v3133 = vpop.f32.mrf.mxu0
      %v3134 = vadd.f32 %v3045, %v3133
      %v3135 = vpop.f32.mrf.mxu0
      %v3136 = vadd.f32 %v3047, %v3135
      %3137 = vmatmul.bf16.gmra.mxu0 %v1468
      %v3138 = vpop.f32.mrf.mxu0
      %v3139 = vadd.f32 %v3050, %v3138
      %v3140 = vpop.f32.mrf.mxu0
      %v3141 = vadd.f32 %v3052, %v3140
      %3142 = vmatmul.bf16.gmra.mxu0 %v1481
      %v3143 = vpop.f32.mrf.mxu0
      %v3144 = vadd.f32 %v3055, %v3143
      %v3145 = vpop.f32.mrf.mxu0
      %v3146 = vadd.f32 %v3057, %v3145
      %3147 = vmatmul.bf16.gmra.mxu0 %v1494
      %v3148 = vpop.f32.mrf.mxu0
      %v3149 = vadd.f32 %v3060, %v3148
      %v3150 = vpop.f32.mrf.mxu0
      %v3151 = vadd.f32 %v3062, %v3150
      %3152 = vmatmul.bf16.gmra.mxu0 %v1507
      %v3153 = vpop.f32.mrf.mxu0
      %v3154 = vadd.f32 %v3065, %v3153
      %v3155 = vpop.f32.mrf.mxu0
      %v3156 = vadd.f32 %v3067, %v3155
      %3157 = vmatmul.bf16.gmra.mxu0 %v1520
      %v3158 = vpop.f32.mrf.mxu0
      %v3159 = vadd.f32 %v3070, %v3158
      %v3160 = vpop.f32.mrf.mxu0
      %v3161 = vadd.f32 %v3072, %v3160
      %3162 = vmatmul.bf16.gmra.mxu0 %v1533
      %v3163 = vpop.f32.mrf.mxu0
      %v3164 = vadd.f32 %v3075, %v3163
      %v3165 = vpop.f32.mrf.mxu0
      %v3166 = vadd.f32 %v3077, %v3165
      %3167 = vdwg.mxu0
      %3168 = vmatpush.bf16.msra.mxu0 %v2201
      %3169 = vmatpush.bf16.msra.mxu0 %v2200
      %3170 = vmatpush.bf16.msra.mxu0 %v2199
      %3171 = vmatpush.bf16.msra.mxu0 %v2198
      %3172 = vmatpush.bf16.msra.mxu0 %v2197
      %3173 = vmatpush.bf16.msra.mxu0 %v2196
      %3174 = vmatpush.bf16.msra.mxu0 %v2195
      %3175 = vmatpush.bf16.msra.mxu0 %v2194
      %3176 = vmatmul.bf16.gmra.mxu0 %v1339
      %v3177 = vpop.f32.mrf.mxu0
      %v3178 = vadd.f32 %v3089, %v3177
      %v3179 = vpop.f32.mrf.mxu0
      %v3180 = vadd.f32 %v3091, %v3179
      %3181 = vmatmul.bf16.gmra.mxu0 %v1352
      %v3182 = vpop.f32.mrf.mxu0
      %v3183 = vadd.f32 %v3094, %v3182
      %v3184 = vpop.f32.mrf.mxu0
      %v3185 = vadd.f32 %v3096, %v3184
      %3186 = vmatmul.bf16.gmra.mxu0 %v1365
      %v3187 = vpop.f32.mrf.mxu0
      %v3188 = vadd.f32 %v3099, %v3187
      %v3189 = vpop.f32.mrf.mxu0
      %v3190 = vadd.f32 %v3101, %v3189
      %3191 = vmatmul.bf16.gmra.mxu0 %v1378
      %v3192 = vpop.f32.mrf.mxu0
      %v3193 = vadd.f32 %v3104, %v3192
      %v3194 = vpop.f32.mrf.mxu0
      %v3195 = vadd.f32 %v3106, %v3194
      %3196 = vmatmul.bf16.gmra.mxu0 %v1391
      %v3197 = vpop.f32.mrf.mxu0
      %v3198 = vadd.f32 %v3109, %v3197
      %v3199 = vpop.f32.mrf.mxu0
      %v3200 = vadd.f32 %v3111, %v3199
      %3201 = vmatmul.bf16.gmra.mxu0 %v1404
      %v3202 = vpop.f32.mrf.mxu0
      %v3203 = vadd.f32 %v3114, %v3202
      %v3204 = vpop.f32.mrf.mxu0
      %v3205 = vadd.f32 %v3116, %v3204
      %3206 = vmatmul.bf16.gmra.mxu0 %v1417
      %v3207 = vpop.f32.mrf.mxu0
      %v3208 = vadd.f32 %v3119, %v3207
      %v3209 = vpop.f32.mrf.mxu0
      %v3210 = vadd.f32 %v3121, %v3209
      %3211 = vmatmul.bf16.gmra.mxu0 %v1430
      %v3212 = vpop.f32.mrf.mxu0
      %v3213 = vadd.f32 %v3124, %v3212
      %v3214 = vpop.f32.mrf.mxu0
      %v3215 = vadd.f32 %v3126, %v3214
      %3216 = vmatmul.bf16.gmra.mxu0 %v1443
      %v3217 = vpop.f32.mrf.mxu0
      %v3218 = vadd.f32 %v3129, %v3217
      %v3219 = vpop.f32.mrf.mxu0
      %v3220 = vadd.f32 %v3131, %v3219
      %3221 = vmatmul.bf16.gmra.mxu0 %v1456
      %v3222 = vpop.f32.mrf.mxu0
      %v3223 = vadd.f32 %v3134, %v3222
      %v3224 = vpop.f32.mrf.mxu0
      %v3225 = vadd.f32 %v3136, %v3224
      %3226 = vmatmul.bf16.gmra.mxu0 %v1469
      %v3227 = vpop.f32.mrf.mxu0
      %v3228 = vadd.f32 %v3139, %v3227
      %v3229 = vpop.f32.mrf.mxu0
      %v3230 = vadd.f32 %v3141, %v3229
      %3231 = vmatmul.bf16.gmra.mxu0 %v1482
      %v3232 = vpop.f32.mrf.mxu0
      %v3233 = vadd.f32 %v3144, %v3232
      %v3234 = vpop.f32.mrf.mxu0
      %v3235 = vadd.f32 %v3146, %v3234
      %3236 = vmatmul.bf16.gmra.mxu0 %v1495
      %v3237 = vpop.f32.mrf.mxu0
      %v3238 = vadd.f32 %v3149, %v3237
      %v3239 = vpop.f32.mrf.mxu0
      %v3240 = vadd.f32 %v3151, %v3239
      %3241 = vmatmul.bf16.gmra.mxu0 %v1508
      %v3242 = vpop.f32.mrf.mxu0
      %v3243 = vadd.f32 %v3154, %v3242
      %v3244 = vpop.f32.mrf.mxu0
      %v3245 = vadd.f32 %v3156, %v3244
      %3246 = vmatmul.bf16.gmra.mxu0 %v1521
      %v3247 = vpop.f32.mrf.mxu0
      %v3248 = vadd.f32 %v3159, %v3247
      %v3249 = vpop.f32.mrf.mxu0
      %v3250 = vadd.f32 %v3161, %v3249
      %3251 = vmatmul.bf16.gmra.mxu0 %v1534
      %v3252 = vpop.f32.mrf.mxu0
      %v3253 = vadd.f32 %v3164, %v3252
      %v3254 = vpop.f32.mrf.mxu0
      %v3255 = vadd.f32 %v3166, %v3254
      %3256 = vdwg.mxu0
      %3257 = vmatpush.bf16.msra.mxu0 %v2209
      %3258 = vmatpush.bf16.msra.mxu0 %v2208
      %3259 = vmatpush.bf16.msra.mxu0 %v2207
      %3260 = vmatpush.bf16.msra.mxu0 %v2206
      %3261 = vmatpush.bf16.msra.mxu0 %v2205
      %3262 = vmatpush.bf16.msra.mxu0 %v2204
      %3263 = vmatpush.bf16.msra.mxu0 %v2203
      %3264 = vmatpush.bf16.msra.mxu0 %v2202
      %3265 = vmatmul.bf16.gmra.mxu0 %v1340
      %v3266 = vpop.f32.mrf.mxu0
      %v3267 = vadd.f32 %v3178, %v3266
      %v3268 = vpop.f32.mrf.mxu0
      %v3269 = vadd.f32 %v3180, %v3268
      %3270 = vmatmul.bf16.gmra.mxu0 %v1353
      %v3271 = vpop.f32.mrf.mxu0
      %v3272 = vadd.f32 %v3183, %v3271
      %v3273 = vpop.f32.mrf.mxu0
      %v3274 = vadd.f32 %v3185, %v3273
      %3275 = vmatmul.bf16.gmra.mxu0 %v1366
      %v3276 = vpop.f32.mrf.mxu0
      %v3277 = vadd.f32 %v3188, %v3276
      %v3278 = vpop.f32.mrf.mxu0
      %v3279 = vadd.f32 %v3190, %v3278
      %3280 = vmatmul.bf16.gmra.mxu0 %v1379
      %v3281 = vpop.f32.mrf.mxu0
      %v3282 = vadd.f32 %v3193, %v3281
      %v3283 = vpop.f32.mrf.mxu0
      %v3284 = vadd.f32 %v3195, %v3283
      %3285 = vmatmul.bf16.gmra.mxu0 %v1392
      %v3286 = vpop.f32.mrf.mxu0
      %v3287 = vadd.f32 %v3198, %v3286
      %v3288 = vpop.f32.mrf.mxu0
      %v3289 = vadd.f32 %v3200, %v3288
      %3290 = vmatmul.bf16.gmra.mxu0 %v1405
      %v3291 = vpop.f32.mrf.mxu0
      %v3292 = vadd.f32 %v3203, %v3291
      %v3293 = vpop.f32.mrf.mxu0
      %v3294 = vadd.f32 %v3205, %v3293
      %3295 = vmatmul.bf16.gmra.mxu0 %v1418
      %v3296 = vpop.f32.mrf.mxu0
      %v3297 = vadd.f32 %v3208, %v3296
      %v3298 = vpop.f32.mrf.mxu0
      %v3299 = vadd.f32 %v3210, %v3298
      %3300 = vmatmul.bf16.gmra.mxu0 %v1431
      %v3301 = vpop.f32.mrf.mxu0
      %v3302 = vadd.f32 %v3213, %v3301
      %v3303 = vpop.f32.mrf.mxu0
      %v3304 = vadd.f32 %v3215, %v3303
      %3305 = vmatmul.bf16.gmra.mxu0 %v1444
      %v3306 = vpop.f32.mrf.mxu0
      %v3307 = vadd.f32 %v3218, %v3306
      %v3308 = vpop.f32.mrf.mxu0
      %v3309 = vadd.f32 %v3220, %v3308
      %3310 = vmatmul.bf16.gmra.mxu0 %v1457
      %v3311 = vpop.f32.mrf.mxu0
      %v3312 = vadd.f32 %v3223, %v3311
      %v3313 = vpop.f32.mrf.mxu0
      %v3314 = vadd.f32 %v3225, %v3313
      %3315 = vmatmul.bf16.gmra.mxu0 %v1470
      %v3316 = vpop.f32.mrf.mxu0
      %v3317 = vadd.f32 %v3228, %v3316
      %v3318 = vpop.f32.mrf.mxu0
      %v3319 = vadd.f32 %v3230, %v3318
      %3320 = vmatmul.bf16.gmra.mxu0 %v1483
      %v3321 = vpop.f32.mrf.mxu0
      %v3322 = vadd.f32 %v3233, %v3321
      %v3323 = vpop.f32.mrf.mxu0
      %v3324 = vadd.f32 %v3235, %v3323
      %3325 = vmatmul.bf16.gmra.mxu0 %v1496
      %v3326 = vpop.f32.mrf.mxu0
      %v3327 = vadd.f32 %v3238, %v3326
      %v3328 = vpop.f32.mrf.mxu0
      %v3329 = vadd.f32 %v3240, %v3328
      %3330 = vmatmul.bf16.gmra.mxu0 %v1509
      %v3331 = vpop.f32.mrf.mxu0
      %v3332 = vadd.f32 %v3243, %v3331
      %v3333 = vpop.f32.mrf.mxu0
      %v3334 = vadd.f32 %v3245, %v3333
      %3335 = vmatmul.bf16.gmra.mxu0 %v1522
      %v3336 = vpop.f32.mrf.mxu0
      %v3337 = vadd.f32 %v3248, %v3336
      %v3338 = vpop.f32.mrf.mxu0
      %v3339 = vadd.f32 %v3250, %v3338
      %3340 = vmatmul.bf16.gmra.mxu0 %v1535
      %v3341 = vpop.f32.mrf.mxu0
      %v3342 = vadd.f32 %v3253, %v3341
      %v3343 = vpop.f32.mrf.mxu0
      %v3344 = vadd.f32 %v3255, %v3343
      %3345 = vdwg.mxu0
      %3346 = vmatpush.bf16.msra.mxu0 %v2217
      %3347 = vmatpush.bf16.msra.mxu0 %v2216
      %3348 = vmatpush.bf16.msra.mxu0 %v2215
      %3349 = vmatpush.bf16.msra.mxu0 %v2214
      %3350 = vmatpush.bf16.msra.mxu0 %v2213
      %3351 = vmatpush.bf16.msra.mxu0 %v2212
      %3352 = vmatpush.bf16.msra.mxu0 %v2211
      %3353 = vmatpush.bf16.msra.mxu0 %v2210
      %3354 = vmatmul.bf16.gmra.mxu0 %v1341
      %v3355 = vpop.f32.mrf.mxu0
      %v3356 = vadd.f32 %v3267, %v3355
      %v3357 = vpop.f32.mrf.mxu0
      %v3358 = vadd.f32 %v3269, %v3357
      %3359 = vmatmul.bf16.gmra.mxu0 %v1354
      %v3360 = vpop.f32.mrf.mxu0
      %v3361 = vadd.f32 %v3272, %v3360
      %v3362 = vpop.f32.mrf.mxu0
      %v3363 = vadd.f32 %v3274, %v3362
      %3364 = vmatmul.bf16.gmra.mxu0 %v1367
      %v3365 = vpop.f32.mrf.mxu0
      %v3366 = vadd.f32 %v3277, %v3365
      %v3367 = vpop.f32.mrf.mxu0
      %v3368 = vadd.f32 %v3279, %v3367
      %3369 = vmatmul.bf16.gmra.mxu0 %v1380
      %v3370 = vpop.f32.mrf.mxu0
      %v3371 = vadd.f32 %v3282, %v3370
      %v3372 = vpop.f32.mrf.mxu0
      %v3373 = vadd.f32 %v3284, %v3372
      %3374 = vmatmul.bf16.gmra.mxu0 %v1393
      %v3375 = vpop.f32.mrf.mxu0
      %v3376 = vadd.f32 %v3287, %v3375
      %v3377 = vpop.f32.mrf.mxu0
      %v3378 = vadd.f32 %v3289, %v3377
      %3379 = vmatmul.bf16.gmra.mxu0 %v1406
      %v3380 = vpop.f32.mrf.mxu0
      %v3381 = vadd.f32 %v3292, %v3380
      %v3382 = vpop.f32.mrf.mxu0
      %v3383 = vadd.f32 %v3294, %v3382
      %3384 = vmatmul.bf16.gmra.mxu0 %v1419
      %v3385 = vpop.f32.mrf.mxu0
      %v3386 = vadd.f32 %v3297, %v3385
      %v3387 = vpop.f32.mrf.mxu0
      %v3388 = vadd.f32 %v3299, %v3387
      %3389 = vmatmul.bf16.gmra.mxu0 %v1432
      %v3390 = vpop.f32.mrf.mxu0
      %v3391 = vadd.f32 %v3302, %v3390
      %v3392 = vpop.f32.mrf.mxu0
      %v3393 = vadd.f32 %v3304, %v3392
      %3394 = vmatmul.bf16.gmra.mxu0 %v1445
      %v3395 = vpop.f32.mrf.mxu0
      %v3396 = vadd.f32 %v3307, %v3395
      %v3397 = vpop.f32.mrf.mxu0
      %v3398 = vadd.f32 %v3309, %v3397
      %3399 = vmatmul.bf16.gmra.mxu0 %v1458
      %v3400 = vpop.f32.mrf.mxu0
      %v3401 = vadd.f32 %v3312, %v3400
      %v3402 = vpop.f32.mrf.mxu0
      %v3403 = vadd.f32 %v3314, %v3402
      %3404 = vmatmul.bf16.gmra.mxu0 %v1471
      %v3405 = vpop.f32.mrf.mxu0
      %v3406 = vadd.f32 %v3317, %v3405
      %v3407 = vpop.f32.mrf.mxu0
      %v3408 = vadd.f32 %v3319, %v3407
      %3409 = vmatmul.bf16.gmra.mxu0 %v1484
      %v3410 = vpop.f32.mrf.mxu0
      %v3411 = vadd.f32 %v3322, %v3410
      %v3412 = vpop.f32.mrf.mxu0
      %v3413 = vadd.f32 %v3324, %v3412
      %3414 = vmatmul.bf16.gmra.mxu0 %v1497
      %v3415 = vpop.f32.mrf.mxu0
      %v3416 = vadd.f32 %v3327, %v3415
      %v3417 = vpop.f32.mrf.mxu0
      %v3418 = vadd.f32 %v3329, %v3417
      %3419 = vmatmul.bf16.gmra.mxu0 %v1510
      %v3420 = vpop.f32.mrf.mxu0
      %v3421 = vadd.f32 %v3332, %v3420
      %v3422 = vpop.f32.mrf.mxu0
      %v3423 = vadd.f32 %v3334, %v3422
      %3424 = vmatmul.bf16.gmra.mxu0 %v1523
      %v3425 = vpop.f32.mrf.mxu0
      %v3426 = vadd.f32 %v3337, %v3425
      %v3427 = vpop.f32.mrf.mxu0
      %v3428 = vadd.f32 %v3339, %v3427
      %3429 = vmatmul.bf16.gmra.mxu0 %v1536
      %v3430 = vpop.f32.mrf.mxu0
      %v3431 = vadd.f32 %v3342, %v3430
      %v3432 = vpop.f32.mrf.mxu0
      %v3433 = vadd.f32 %v3344, %v3432
      %3434 = vdwg.mxu0
      %3435 = vmatpush.bf16.msra.mxu0 0
      %3436 = vmatpush.bf16.msra.mxu0 0
      %3437 = vmatpush.bf16.msra.mxu0 0
      %3438 = vmatpush.bf16.msra.mxu0 0
      %3439 = vmatpush.bf16.msra.mxu0 0
      %3440 = vmatpush.bf16.msra.mxu0 0
      %3441 = vmatpush.bf16.msra.mxu0 %v2219
      %3442 = vmatpush.bf16.msra.mxu0 %v2218
      %3443 = vmatmul.bf16.gmra.mxu0 %v2320
      %v3444 = vpop.f32.mrf.mxu0
      %v3445 = vadd.f32 %v3356, %v3444
      %v3446 = vpop.f32.mrf.mxu0
      %v3447 = vadd.f32 %v3358, %v3446
      %3448 = vmatmul.bf16.gmra.mxu0 %v2323
      %v3449 = vpop.f32.mrf.mxu0
      %v3450 = vadd.f32 %v3361, %v3449
      %v3451 = vpop.f32.mrf.mxu0
      %v3452 = vadd.f32 %v3363, %v3451
      %3453 = vmatmul.bf16.gmra.mxu0 %v2326
      %v3454 = vpop.f32.mrf.mxu0
      %v3455 = vadd.f32 %v3366, %v3454
      %v3456 = vpop.f32.mrf.mxu0
      %v3457 = vadd.f32 %v3368, %v3456
      %3458 = vmatmul.bf16.gmra.mxu0 %v2329
      %v3459 = vpop.f32.mrf.mxu0
      %v3460 = vadd.f32 %v3371, %v3459
      %v3461 = vpop.f32.mrf.mxu0
      %v3462 = vadd.f32 %v3373, %v3461
      %3463 = vmatmul.bf16.gmra.mxu0 %v2332
      %v3464 = vpop.f32.mrf.mxu0
      %v3465 = vadd.f32 %v3376, %v3464
      %v3466 = vpop.f32.mrf.mxu0
      %v3467 = vadd.f32 %v3378, %v3466
      %3468 = vmatmul.bf16.gmra.mxu0 %v2335
      %v3469 = vpop.f32.mrf.mxu0
      %v3470 = vadd.f32 %v3381, %v3469
      %v3471 = vpop.f32.mrf.mxu0
      %v3472 = vadd.f32 %v3383, %v3471
      %3473 = vmatmul.bf16.gmra.mxu0 %v2338
      %v3474 = vpop.f32.mrf.mxu0
      %v3475 = vadd.f32 %v3386, %v3474
      %v3476 = vpop.f32.mrf.mxu0
      %v3477 = vadd.f32 %v3388, %v3476
      %3478 = vmatmul.bf16.gmra.mxu0 %v2341
      %v3479 = vpop.f32.mrf.mxu0
      %v3480 = vadd.f32 %v3391, %v3479
      %v3481 = vpop.f32.mrf.mxu0
      %v3482 = vadd.f32 %v3393, %v3481
      %3483 = vmatmul.bf16.gmra.mxu0 %v2344
      %v3484 = vpop.f32.mrf.mxu0
      %v3485 = vadd.f32 %v3396, %v3484
      %v3486 = vpop.f32.mrf.mxu0
      %v3487 = vadd.f32 %v3398, %v3486
      %3488 = vmatmul.bf16.gmra.mxu0 %v2347
      %v3489 = vpop.f32.mrf.mxu0
      %v3490 = vadd.f32 %v3401, %v3489
      %v3491 = vpop.f32.mrf.mxu0
      %v3492 = vadd.f32 %v3403, %v3491
      %3493 = vmatmul.bf16.gmra.mxu0 %v2350
      %v3494 = vpop.f32.mrf.mxu0
      %v3495 = vadd.f32 %v3406, %v3494
      %v3496 = vpop.f32.mrf.mxu0
      %v3497 = vadd.f32 %v3408, %v3496
      %3498 = vmatmul.bf16.gmra.mxu0 %v2353
      %v3499 = vpop.f32.mrf.mxu0
      %v3500 = vadd.f32 %v3411, %v3499
      %v3501 = vpop.f32.mrf.mxu0
      %v3502 = vadd.f32 %v3413, %v3501
      %3503 = vmatmul.bf16.gmra.mxu0 %v2356
      %v3504 = vpop.f32.mrf.mxu0
      %v3505 = vadd.f32 %v3416, %v3504
      %v3506 = vpop.f32.mrf.mxu0
      %v3507 = vadd.f32 %v3418, %v3506
      %3508 = vmatmul.bf16.gmra.mxu0 %v2359
      %v3509 = vpop.f32.mrf.mxu0
      %v3510 = vadd.f32 %v3421, %v3509
      %v3511 = vpop.f32.mrf.mxu0
      %v3512 = vadd.f32 %v3423, %v3511
      %3513 = vmatmul.bf16.gmra.mxu0 %v2362
      %v3514 = vpop.f32.mrf.mxu0
      %v3515 = vadd.f32 %v3426, %v3514
      %v3516 = vpop.f32.mrf.mxu0
      %v3517 = vadd.f32 %v3428, %v3516
      %3518 = vmatmul.bf16.gmra.mxu0 %v2365
      %v3519 = vpop.f32.mrf.mxu0
      %v3520 = vadd.f32 %v3431, %v3519
      %v3521 = vpop.f32.mrf.mxu0
      %v3522 = vadd.f32 %v3433, %v3521
      %3523 = vdwg.mxu0
      %v3524 = vld [vmem:[%s256] sm:$0x1]
      %v3526 = vperm.slane %v3524, 0
      %v3528 = vmul.f32 %v3445, %v3526
      %v3529 = vmul.f32 %v3447, %v3526
      %v3530 = vmul.f32 %v3450, %v3526
      %v3531 = vmul.f32 %v3452, %v3526
      %v3532 = vmul.f32 %v3455, %v3526
      %v3533 = vmul.f32 %v3457, %v3526
      %v3534 = vmul.f32 %v3460, %v3526
      %v3535 = vmul.f32 %v3462, %v3526
      %v3536 = vmul.f32 %v3465, %v3526
      %v3537 = vmul.f32 %v3467, %v3526
      %v3538 = vmul.f32 %v3470, %v3526
      %v3539 = vmul.f32 %v3472, %v3526
      %v3540 = vmul.f32 %v3475, %v3526
      %v3541 = vmul.f32 %v3477, %v3526
      %v3542 = vmul.f32 %v3480, %v3526
      %v3543 = vmul.f32 %v3482, %v3526
      %v3544 = vmul.f32 %v3485, %v3526
      %v3545 = vmul.f32 %v3487, %v3526
      %v3546 = vmul.f32 %v3490, %v3526
      %v3547 = vmul.f32 %v3492, %v3526
      %v3548 = vmul.f32 %v3495, %v3526
      %v3549 = vmul.f32 %v3497, %v3526
      %v3550 = vmul.f32 %v3500, %v3526
      %v3551 = vmul.f32 %v3502, %v3526
      %v3552 = vmul.f32 %v3505, %v3526
      %v3553 = vmul.f32 %v3507, %v3526
      %v3554 = vmul.f32 %v3510, %v3526
      %v3555 = vmul.f32 %v3512, %v3526
      %v3556 = vmul.f32 %v3515, %v3526
      %v3557 = vmul.f32 %v3517, %v3526
      %v3558 = vmul.f32 %v3520, %v3526
      %v3559 = vmul.f32 %v3522, %v3526
      %v3560 = vld [vmem:[%s259] sm:$0x1]
      %v3562 = vperm.slane %v3560, 0
      %v3564 = vadd.f32 %v3528, %v3562
      %v3565 = vadd.f32 %v3529, %v3562
      %v3566 = vadd.f32 %v3530, %v3562
      %v3567 = vadd.f32 %v3531, %v3562
      %v3568 = vadd.f32 %v3532, %v3562
      %v3569 = vadd.f32 %v3533, %v3562
      %v3570 = vadd.f32 %v3534, %v3562
      %v3571 = vadd.f32 %v3535, %v3562
      %v3572 = vadd.f32 %v3536, %v3562
      %v3573 = vadd.f32 %v3537, %v3562
      %v3574 = vadd.f32 %v3538, %v3562
      %v3575 = vadd.f32 %v3539, %v3562
      %v3576 = vadd.f32 %v3540, %v3562
      %v3577 = vadd.f32 %v3541, %v3562
      %v3578 = vadd.f32 %v3542, %v3562
      %v3579 = vadd.f32 %v3543, %v3562
      %v3580 = vadd.f32 %v3544, %v3562
      %v3581 = vadd.f32 %v3545, %v3562
      %v3582 = vadd.f32 %v3546, %v3562
      %v3583 = vadd.f32 %v3547, %v3562
      %v3584 = vadd.f32 %v3548, %v3562
      %v3585 = vadd.f32 %v3549, %v3562
      %v3586 = vadd.f32 %v3550, %v3562
      %v3587 = vadd.f32 %v3551, %v3562
      %v3588 = vadd.f32 %v3552, %v3562
      %v3589 = vadd.f32 %v3553, %v3562
      %v3590 = vadd.f32 %v3554, %v3562
      %v3591 = vadd.f32 %v3555, %v3562
      %v3592 = vadd.f32 %v3556, %v3562
      %v3593 = vadd.f32 %v3557, %v3562
      %v3594 = vadd.f32 %v3558, %v3562
      %v3595 = vadd.f32 %v3559, %v3562
      %v3596 = vtanh.pop %v3564
      %v3597 = vtanh.pop %v3565
      %v3598 = vtanh.pop %v3566
      %v3599 = vtanh.pop %v3567
      %v3600 = vtanh.pop %v3568
      %v3601 = vtanh.pop %v3569
      %v3602 = vtanh.pop %v3570
      %v3603 = vtanh.pop %v3571
      %v3604 = vtanh.pop %v3572
      %v3605 = vtanh.pop %v3573
      %v3606 = vtanh.pop %v3574
      %v3607 = vtanh.pop %v3575
      %v3608 = vtanh.pop %v3576
      %v3609 = vtanh.pop %v3577
      %v3610 = vtanh.pop %v3578
      %v3611 = vtanh.pop %v3579
      %v3612 = vtanh.pop %v3580
      %v3613 = vtanh.pop %v3581
      %v3614 = vtanh.pop %v3582
      %v3615 = vtanh.pop %v3583
      %v3616 = vtanh.pop %v3584
      %v3617 = vtanh.pop %v3585
      %v3618 = vtanh.pop %v3586
      %v3619 = vtanh.pop %v3587
      %v3620 = vtanh.pop %v3588
      %v3621 = vtanh.pop %v3589
      %v3622 = vtanh.pop %v3590
      %v3623 = vtanh.pop %v3591
      %v3624 = vtanh.pop %v3592
      %v3625 = vtanh.pop %v3593
      %v3626 = vtanh.pop %v3594
      %v3627 = vtanh.pop %v3595
      %3628 = vst [vmem:[%s267] sm:$0xff] %v3596
      %3629 = vst [vmem:[%s267 + $0x8] sm:$0xff] %v3597
      %3630 = vst [vmem:[%s267 + $0x10] sm:$0xff] %v3598
      %3631 = vst [vmem:[%s267 + $0x18] sm:$0xff] %v3599
      %3632 = vst [vmem:[%s267 + $0x20] sm:$0xff] %v3600
      %3633 = vst [vmem:[%s267 + $0x28] sm:$0xff] %v3601
      %3634 = vst [vmem:[%s267 + $0x30] sm:$0xff] %v3602
      %3635 = vst [vmem:[%s267 + $0x38] sm:$0xff] %v3603
      %3636 = vst [vmem:[%s267 + $0x40] sm:$0xff] %v3604
      %3637 = vst [vmem:[%s267 + $0x48] sm:$0xff] %v3605
      %3638 = vst [vmem:[%s267 + $0x50] sm:$0xff] %v3606
      %3639 = vst [vmem:[%s267 + $0x58] sm:$0xff] %v3607
      %3640 = vst [vmem:[%s267 + $0x60] sm:$0xff] %v3608
      %3641 = vst [vmem:[%s267 + $0x68] sm:$0xff] %v3609
      %3642 = vst [vmem:[%s267 + $0x70] sm:$0xff] %v3610
      %3643 = vst [vmem:[%s267 + $0x78] sm:$0xff] %v3611
      %3644 = vst [vmem:[%s267 + $0x80] sm:$0xff] %v3612
      %3645 = vst [vmem:[%s267 + $0x88] sm:$0xff] %v3613
      %3646 = vst [vmem:[%s267 + $0x90] sm:$0xff] %v3614
      %3647 = vst [vmem:[%s267 + $0x98] sm:$0xff] %v3615
      %3648 = vst [vmem:[%s267 + $0xa0] sm:$0xff] %v3616
      %3649 = vst [vmem:[%s267 + $0xa8] sm:$0xff] %v3617
      %3650 = vst [vmem:[%s267 + $0xb0] sm:$0xff] %v3618
      %3651 = vst [vmem:[%s267 + $0xb8] sm:$0xff] %v3619
      %3652 = vst [vmem:[%s267 + $0xc0] sm:$0xff] %v3620
      %3653 = vst [vmem:[%s267 + $0xc8] sm:$0xff] %v3621
      %3654 = vst [vmem:[%s267 + $0xd0] sm:$0xff] %v3622
      %3655 = vst [vmem:[%s267 + $0xd8] sm:$0xff] %v3623
      %3656 = vst [vmem:[%s267 + $0xe0] sm:$0xff] %v3624
      %3657 = vst [vmem:[%s267 + $0xe8] sm:$0xff] %v3625
      %3658 = vst [vmem:[%s267 + $0xf0] sm:$0xff] %v3626
      %3659 = vst [vmem:[%s267 + $0xf8] sm:$0xff] %v3627
      %s3660 = smul.u32 32, %s19
      %p3661 = scmp.lt.s32.totalorder %s3660, 63
      %s3662 = scalar_select %p3661, %s3660, 63
      %p3663 = scmp.lt.s32.totalorder %s20, 0
      %s3664 = scalar_select %p3663, %s20, 0
      %s3665 = sadd.s32 %s3664, %s3662
      %s3666 = smul.addr %s3665, 8
      %s3667 = scalar_lea.vmem %s4, %s3666
      // Predicated region
      $region37: #{generator_forward.13} parent=35 // pred_check
        %p3668 = pneg %p151
      $region38: #{generator_forward.13} parent=35 // pred_check_branch
        %3670 = sbr.rel (%p3668) target = $region40
      $region39: #{generator_forward.13} parent=35 // pred_region
        %s3671 = smul.u32 32, %s19
      $region40: #{generator_forward.13} parent=35 // pred_fallthru
        _
    $region36: #{generator_forward.13} parent=5 // pred_fallthru
      _
    %p3672 = scmp.le.s32.totalorder 2, %s10
    // Predicated region
    $region41: #{generator_forward.13} parent=5 // pred_check
      %p3673 = pneg %p3672
    $region42: #{generator_forward.13} parent=5 // pred_check_branch
      %3675 = sbr.rel (%p3673) target = $region44
    $region43: #{generator_forward.13} parent=5 // pred_region
      %s3676 = ssub.s32 %s10, 2
      // Predicated region
      $region45: #{generator_forward.13} parent=43 // pred_check
        %p3677 = pneg %p157
      $region46: #{generator_forward.13} parent=43 // pred_check_branch
        %3679 = sbr.rel (%p3677) target = $region48
      $region47: #{generator_forward.13} parent=43 // pred_region
        %s3680 = smul.u32 32, %s21
        %p3681 = scmp.lt.s32.totalorder %s3680, 63
        %s3682 = scalar_select %p3681, %s3680, 63
        %p3683 = scmp.lt.s32.totalorder %s22, 0
        %s3684 = scalar_select %p3683, %s22, 0
        %s3685 = sadd.s32 %s3684, %s3682
        %s3686 = smul.addr %s3685, 8
        %s3687 = scalar_lea.vmem %s4, %s3686
      $region48: #{generator_forward.13} parent=43 // pred_fallthru
        _
    $region44: #{generator_forward.13} parent=5 // pred_fallthru
      _
  $region6: #{generator_forward.13} parent=0 // loop_footer
    %s14 = sadd.s32 1, %s10
  $region7: #{generator_forward.13} parent=0 // loop_footer_branch
    %9 = sbr.rel target = $region3
  $region8: #{generator_forward.13} parent=0 // loop_exit
    _

</llo_original>
